<compile_context>
chip_gen: v5e
topology: v5e:2x2
jax: 0.10.0
libtpu: 0.0.40
codegen_flags: <defaults>
</compile_context>

<pallas_src>
import functools

import numpy as np
import jax
import jax.numpy as jnp
from jax.experimental import pallas as pl
from jax.experimental.pallas import tpu as pltpu


# --------------------------------------------------------------------------------------
# Fused Pallas kernel (one batch element per grid step)
# --------------------------------------------------------------------------------------

def _im2col_3x3x3(xpad, D, H, W, out_dtype):
    """(D+2, H+2, W+2, Cin) padded volume -> (D*H*W, 27*Cin) im2col matrix.

    Tap/channel ordering of the K axis is (kd, kh, kw, ci), matching
    w.reshape(27*Cin, Cout) of a (3, 3, 3, Cin, Cout) weight.
    """
    Cin = xpad.shape[-1]
    # Three W-shifted copies concatenated on channels: xs[..., w, kw*Cin + ci] = xpad[..., w+kw, ci]
    xs = jnp.concatenate([xpad[:, :, kw:kw + W, :] for kw in range(3)], axis=-1)  # (D+2, H+2, W, 3Cin)
    # Nine (kd, kh) windows concatenated on channels -> full im2col matrix.
    return jnp.concatenate(
        [xs[kd:kd + D, kh:kh + H].reshape(D * H * W, 3 * Cin).astype(out_dtype)
         for kd in range(3) for kh in range(3)],
        axis=-1)                                                                   # (N, 27Cin)


def _pnet_head_kernel(xpad_ref, w5at_ref, b5a_ref,
                      wq_ref, bq_ref, wkt_ref, bk_ref, wv_ref, bv_ref, gamma_ref,
                      w51t_ref, b51_ref, w8t_ref, b8_ref,
                      o_ref, *, D, H, W):
    """Fused conv5a -> PAM -> conv51 -> conv8 for one batch element.

    xpad_ref : (1, D+2, H+2, W+2, Cin)  bf16  zero-padded channels-last input
    w5at_ref : (C, 27*Cin)  bf16  conv5a weights (BN scale folded), taps folded into K
    b5a_ref  : (1, C)       f32   folded BN shift
    wq/wkt/wv: (C,cqk)/(cqk,C)/(C,C) bf16 PAM 1x1 projections; bq (1,cqk), bk (cqk,1), bv (1,C) f32
    gamma_ref: (1,) f32 in SMEM
    w51t_ref : (C, 27*C)    bf16  conv51 weights (transposed -> lane-dense (C, N) accumulator)
    b51_ref  : (C, 1)       f32
    w8t_ref  : (Cout, C)    bf16  conv8 weights (transposed)
    b8_ref   : (Cout, 1)    f32
    o_ref    : (1, Cout, D*H*W) f32  -- already NCDHW-flattened, lane-dense store
    """
    f32, bf16 = jnp.float32, jnp.bfloat16
    N = D * H * W
    contract_last = (((1,), (1,)), ((), ()))   # contract last dims of both operands

    # ---- conv5a: 3x3x3 conv (pad=1, no bias) + folded BN + ReLU, one im2col matmul ----
    xpad = xpad_ref[0].astype(f32)                                   # (D+2, H+2, W+2, Cin)
    cols = _im2col_3x3x3(xpad, D, H, W, bf16)                        # (N, 27*Cin) bf16
    feat1 = jax.lax.dot_general(cols, w5at_ref[...], contract_last,
                                preferred_element_type=f32)          # (N, C) f32
    feat1 = jnp.maximum(feat1 + b5a_ref[...], 0.0)

    C = feat1.shape[-1]

    # ---- PAM spatial self-attention ----
    f1b = feat1.astype(bf16)
    q = jnp.dot(f1b, wq_ref[...], preferred_element_type=f32) + bq_ref[...]          # (N, cqk)
    k_row = jax.lax.dot_general(wkt_ref[...], f1b, contract_last,
                                preferred_element_type=f32) + bk_ref[...]            # (cqk, N)
    v = jnp.dot(f1b, wv_ref[...], preferred_element_type=f32) + bv_ref[...]          # (N, C)

    # energy[i, j] = sum_c q[i, c] * k[j, c] as a VPU broadcast outer product (no K=1 MXU push)
    cqk = q.shape[-1]
    energy = q[:, 0:1] * k_row[0:1, :]                                                # (N, N)
    for c in range(1, cqk):
        energy = energy + q[:, c:c + 1] * k_row[c:c + 1, :]

    m = jnp.max(energy, axis=-1, keepdims=True)
    e = jnp.exp(energy - m)
    attn = e * pl.reciprocal(jnp.sum(e, axis=-1, keepdims=True), approx=True)         # softmax
    out = jnp.dot(attn.astype(bf16), v.astype(bf16), preferred_element_type=f32)      # (N, C)
    sa = gamma_ref[0] * out + feat1                                                   # residual, f32

    # ---- conv51: 3x3x3 conv + folded BN + ReLU, lane-dense (C, N) accumulator ----
    sa_sp = sa.reshape(D, H, W, C)
    zw = jnp.zeros((D, H, 1, C), f32)
    t = jnp.concatenate([zw, sa_sp, zw], axis=2)
    zh = jnp.zeros((D, 1, W + 2, C), f32)
    t = jnp.concatenate([zh, t, zh], axis=1)
    zd = jnp.zeros((1, H + 2, W + 2, C), f32)
    sa_pad = jnp.concatenate([zd, t, zd], axis=0)                                      # (D+2, H+2, W+2, C)
    cols51 = _im2col_3x3x3(sa_pad, D, H, W, bf16)                                      # (N, 27*C)
    sa_conv = jax.lax.dot_general(w51t_ref[...], cols51, contract_last,
                                  preferred_element_type=f32)                          # (C, N)
    sa_conv = jnp.maximum(sa_conv + b51_ref[...], 0.0)

    # ---- conv8: 1x1x1 conv + bias + ReLU (dropout is identity in eval) ----
    y = jnp.dot(w8t_ref[...], sa_conv.astype(bf16), preferred_element_type=f32)        # (Cout, N)
    y = jnp.maximum(y + b8_ref[...], 0.0)
    o_ref[0] = y.astype(o_ref.dtype)


# --------------------------------------------------------------------------------------
# Wrapper
# --------------------------------------------------------------------------------------

def pnet_head_forward(x_ncdhw, p):
    """PNetHead.forward (eval). Input and output are NCDHW like PyTorch.

    `p` holds BN-folded, natural-layout f32 parameters (see __main__ for construction).
    """
    B, Cin, D, H, W = x_ncdhw.shape
    C = p['w5a'].shape[-1]
    cqk = p['wq'].shape[-1]
    Cout = p['w8'].shape[-1]
    N = D * H * W
    f32, bf16 = jnp.float32, jnp.bfloat16

    # Channels-last + zero spatial padding; bf16 halves the HBM read of the biggest tensor.
    x_cl = jnp.transpose(x_ncdhw, (0, 2, 3, 4, 1))
    xpad = jnp.pad(x_cl, ((0, 0), (1, 1), (1, 1), (1, 1), (0, 0))).astype(bf16)

    # Kernel-side parameter layouts (tiny XLA reshapes/casts, fused under jit).
    w5at = p['w5a'].reshape(27 * Cin, C).T.astype(bf16)      # (C, 27*Cin)
    b5a = p['b5a'].reshape(1, C).astype(f32)
    wq = p['wq'].astype(bf16)                                # (C, cqk)
    bq = p['bq'].reshape(1, cqk).astype(f32)
    wkt = p['wk'].T.astype(bf16)                             # (cqk, C)
    bk = p['bk'].reshape(cqk, 1).astype(f32)
    wv = p['wv'].astype(bf16)                                # (C, C)
    bv = p['bv'].reshape(1, C).astype(f32)
    gamma = p['gamma'].reshape(1).astype(f32)                # scalar -> SMEM
    w51t = p['w51'].reshape(27 * C, C).T.astype(bf16)        # (C, 27*C)
    b51 = p['b51'].reshape(C, 1).astype(f32)
    w8t = p['w8'].T.astype(bf16)                             # (Cout, C)
    b8 = p['b8'].reshape(Cout, 1).astype(f32)

    kern = functools.partial(_pnet_head_kernel, D=D, H=H, W=W)
    out = pl.pallas_call(
        kern,
        out_shape=jax.ShapeDtypeStruct((B, Cout, N), jnp.float32),
        grid_spec=pltpu.PrefetchScalarGridSpec(
            num_scalar_prefetch=0,
            grid=(B,),
            in_specs=[
                pl.BlockSpec((1, D + 2, H + 2, W + 2, Cin), lambda b: (b, 0, 0, 0, 0)),
                pl.BlockSpec((C, 27 * Cin), lambda b: (0, 0)),
                pl.BlockSpec((1, C), lambda b: (0, 0)),
                pl.BlockSpec((C, cqk), lambda b: (0, 0)),
                pl.BlockSpec((1, cqk), lambda b: (0, 0)),
                pl.BlockSpec((cqk, C), lambda b: (0, 0)),
                pl.BlockSpec((cqk, 1), lambda b: (0, 0)),
                pl.BlockSpec((C, C), lambda b: (0, 0)),
                pl.BlockSpec((1, C), lambda b: (0, 0)),
                pl.BlockSpec(memory_space=pltpu.MemorySpace.SMEM),   # gamma (scalar)
                pl.BlockSpec((C, 27 * C), lambda b: (0, 0)),
                pl.BlockSpec((C, 1), lambda b: (0, 0)),
                pl.BlockSpec((Cout, C), lambda b: (0, 0)),
                pl.BlockSpec((Cout, 1), lambda b: (0, 0)),
            ],
            out_specs=pl.BlockSpec((1, Cout, N), lambda b: (b, 0, 0)),
        ),
        compiler_params=pltpu.CompilerParams(dimension_semantics=("parallel",)),
    )(xpad, w5at, b5a, wq, bq, wkt, bk, wv, bv, gamma, w51t, b51, w8t, b8)

    # (B, Cout, D*H*W) is already the NCDHW flattening -> reshape only, no transpose.
    return out.reshape(B, Cout, D, H, W)


# --------------------------------------------------------------------------------------
# Pure-JAX reference (mirrors the kernel's bf16 rounding points, accumulates in f32)
# --------------------------------------------------------------------------------------

def _reference_forward(x_ncdhw, p):
    f32 = jnp.float32
    hp = jax.lax.Precision.HIGHEST
    bf = lambda a: a.astype(jnp.bfloat16).astype(f32)

    x = jnp.transpose(x_ncdhw, (0, 2, 3, 4, 1))

    def conv3(a, w):
        return jax.lax.conv_general_dilated(
            a, w, window_strides=(1, 1, 1), padding=((1, 1), (1, 1), (1, 1)),
            dimension_numbers=('NDHWC', 'DHWIO', 'NDHWC'), precision=hp)

    f1 = jax.nn.relu(conv3(bf(x), bf(p['w5a'])) + p['b5a'])
    B, D, H, W, C = f1.shape
    N = D * H * W
    xf = bf(f1).reshape(B, N, C)
    q = jnp.einsum('bnc,ck->bnk', xf, bf(p['wq']), precision=hp) + p['bq']
    k = jnp.einsum('bnc,ck->bnk', xf, bf(p['wk']), precision=hp) + p['bk']
    v = jnp.einsum('bnc,ck->bnk', xf, bf(p['wv']), precision=hp) + p['bv']
    attn = jax.nn.softmax(jnp.einsum('bnk,bmk->bnm', q, k, precision=hp), axis=-1)
    sa = p['gamma'][0] * jnp.einsum('bnm,bmc->bnc', attn, bf(v), precision=hp) + f1.reshape(B, N, C)
    sa = sa.reshape(B, D, H, W, C)
    f2 = jax.nn.relu(conv3(bf(sa), bf(p['w51'])) + p['b51'])
    y = jax.nn.relu(jnp.einsum('bdhwc,ck->bdhwk', bf(f2), bf(p['w8']), precision=hp) + p['b8'])
    return jnp.transpose(y, (0, 4, 1, 2, 3))


# --------------------------------------------------------------------------------------
# Main
# --------------------------------------------------------------------------------------

if __name__ == "__main__":
    # Module-consistent small shapes: inter = Cin // 16, q/k channels = inter // 8 >= 1.
    B, Cin, D, H, W = 2, 128, 4, 8, 8
    Cout = 4
    C = Cin // 16          # inter_channels = 8
    cqk = C // 8           # 1

    key = jax.random.PRNGKey(0)
    ks = jax.random.split(key, 20)

    def rnd(k, shape, s=0.1):
        return s * jax.random.normal(k, shape, jnp.float32)

    def fold_bn_into_conv(w, bn_w, bn_b, mean, var, eps=1e-3):  # eps=1e-3 per norm() in the module
        scale = bn_w / jnp.sqrt(var + eps)
        return w * scale, bn_b - mean * scale

    # conv5a: Conv3d(Cin -> C, 3, pad=1, bias=False) + BN(eval) + ReLU
    w5a, b5a = fold_bn_into_conv(
        rnd(ks[0], (3, 3, 3, Cin, C)),
        1.0 + rnd(ks[1], (C,)), rnd(ks[2], (C,)),
        rnd(ks[3], (C,)), 1.0 + 0.1 * jnp.abs(jax.random.normal(ks[4], (C,))))

    # PAM_Module(C): 1x1 convs with bias; gamma is a learnable scalar (init 0 in the module,
    # set nonzero here so the attention path is exercised).
    wq = rnd(ks[5], (C, cqk)); bq = rnd(ks[6], (cqk,))
    wk = rnd(ks[7], (C, cqk)); bk = rnd(ks[8], (cqk,))
    wv = rnd(ks[9], (C, C));   bv = rnd(ks[10], (C,))
    gamma = jnp.array([0.5], jnp.float32)

    # conv51: Conv3d(C -> C, 3, pad=1, bias=False) + BN(eval) + ReLU
    w51, b51 = fold_bn_into_conv(
        rnd(ks[11], (3, 3, 3, C, C)),
        1.0 + rnd(ks[12], (C,)), rnd(ks[13], (C,)),
        rnd(ks[14], (C,)), 1.0 + 0.1 * jnp.abs(jax.random.normal(ks[15], (C,))))

    # conv8: Dropout (identity in eval) + Conv3d(C -> Cout, 1, bias=True) + ReLU
    w8 = rnd(ks[16], (C, Cout)); b8 = rnd(ks[17], (Cout,))

    params = dict(w5a=w5a, b5a=b5a, wq=wq, bq=bq, wk=wk, bk=bk, wv=wv, bv=bv,
                  gamma=gamma, w51=w51, b51=b51, w8=w8, b8=b8)

    # Input in PyTorch NCDHW convention.
    x = jax.random.normal(ks[18], (B, Cin, D, H, W), jnp.float32)

    y = jax.block_until_ready(jax.jit(pnet_head_forward)(x, params))
    assert y.shape == (B, Cout, D, H, W), y.shape

    y_ref = jax.block_until_ready(_reference_forward(x, params))
    np.testing.assert_allclose(np.asarray(y), np.asarray(y_ref), rtol=1e-2, atol=1e-2)

    print("KERNEL_OK")
</pallas_src>

<mosaic_0001>
module attributes {stable_mosaic.version = 11 : i64} {
  func.func @_pnet_head_kernel(%arg0: i32, %arg1: memref<1x6x10x10x128xbf16, #tpu.memory_space<vmem>>, %arg2: memref<8x3456xbf16, #tpu.memory_space<vmem>>, %arg3: memref<1x8xf32, #tpu.memory_space<vmem>>, %arg4: memref<8x1xbf16, #tpu.memory_space<vmem>>, %arg5: memref<1x1xf32, #tpu.memory_space<vmem>>, %arg6: memref<1x8xbf16, #tpu.memory_space<vmem>>, %arg7: memref<1x1xf32, #tpu.memory_space<vmem>>, %arg8: memref<8x8xbf16, #tpu.memory_space<vmem>>, %arg9: memref<1x8xf32, #tpu.memory_space<vmem>>, %arg10: memref<1xf32, #tpu.memory_space<smem>>, %arg11: memref<8x216xbf16, #tpu.memory_space<vmem>>, %arg12: memref<8x1xf32, #tpu.memory_space<vmem>>, %arg13: memref<4x8xbf16, #tpu.memory_space<vmem>>, %arg14: memref<4x1xf32, #tpu.memory_space<vmem>>, %arg15: memref<1x4x256xf32, #tpu.memory_space<vmem>>) attributes {dimension_semantics = [#tpu.dimension_semantics<parallel>], iteration_bounds = array<i64: 2>, scalar_prefetch = 0 : i64, scratch_operands = 0 : i64, tpu.core_type = #tpu.core_type<tc>, window_params = [{transform_indices = @transform_0, window_bounds = array<i64: 1, 6, 10, 10, 128>}, {pipeline_mode = #tpu.pipeline_mode<synchronous>, transform_indices = @transform_1, window_bounds = array<i64: 8, 3456>}, {pipeline_mode = #tpu.pipeline_mode<synchronous>, transform_indices = @transform_2, window_bounds = array<i64: 1, 8>}, {pipeline_mode = #tpu.pipeline_mode<synchronous>, transform_indices = @transform_3, window_bounds = array<i64: 8, 1>}, {pipeline_mode = #tpu.pipeline_mode<synchronous>, transform_indices = @transform_4, window_bounds = array<i64: 1, 1>}, {pipeline_mode = #tpu.pipeline_mode<synchronous>, transform_indices = @transform_5, window_bounds = array<i64: 1, 8>}, {pipeline_mode = #tpu.pipeline_mode<synchronous>, transform_indices = @transform_6, window_bounds = array<i64: 1, 1>}, {pipeline_mode = #tpu.pipeline_mode<synchronous>, transform_indices = @transform_7, window_bounds = array<i64: 8, 8>}, {pipeline_mode = #tpu.pipeline_mode<synchronous>, transform_indices = @transform_8, window_bounds = array<i64: 1, 8>}, {transform_indices = @transform_9, window_bounds = array<i64: 1>}, {pipeline_mode = #tpu.pipeline_mode<synchronous>, transform_indices = @transform_10, window_bounds = array<i64: 8, 216>}, {pipeline_mode = #tpu.pipeline_mode<synchronous>, transform_indices = @transform_11, window_bounds = array<i64: 8, 1>}, {pipeline_mode = #tpu.pipeline_mode<synchronous>, transform_indices = @transform_12, window_bounds = array<i64: 4, 8>}, {pipeline_mode = #tpu.pipeline_mode<synchronous>, transform_indices = @transform_13, window_bounds = array<i64: 4, 1>}, {transform_indices = @transform_14, window_bounds = array<i64: 1, 4, 256>}]} {
    %c0 = arith.constant 0 : index
    %c0_0 = arith.constant 0 : index
    %c0_1 = arith.constant 0 : index
    %c0_2 = arith.constant 0 : index
    %c0_3 = arith.constant 0 : index
    %0 = vector.load %arg1[%c0, %c0_0, %c0_1, %c0_2, %c0_3] : memref<1x6x10x10x128xbf16, #tpu.memory_space<vmem>>, vector<1x6x10x10x128xbf16>
    %1 = vector.shape_cast %0 : vector<1x6x10x10x128xbf16> to vector<6x10x10x128xbf16>
    %2 = arith.extf %1 : vector<6x10x10x128xbf16> to vector<6x10x10x128xf32>
    %3 = vector.extract_strided_slice %2 {offsets = [0, 0, 0, 0], sizes = [6, 10, 8, 128], strides = [1, 1, 1, 1]} : vector<6x10x10x128xf32> to vector<6x10x8x128xf32>
    %4 = vector.extract_strided_slice %2 {offsets = [0, 0, 1, 0], sizes = [6, 10, 8, 128], strides = [1, 1, 1, 1]} : vector<6x10x10x128xf32> to vector<6x10x8x128xf32>
    %5 = vector.extract_strided_slice %2 {offsets = [0, 0, 2, 0], sizes = [6, 10, 8, 128], strides = [1, 1, 1, 1]} : vector<6x10x10x128xf32> to vector<6x10x8x128xf32>
    %6 = tpu.concatenate %3, %4, %5 in 3 : vector<6x10x8x128xf32>, vector<6x10x8x128xf32>, vector<6x10x8x128xf32> -> vector<6x10x8x384xf32>
    %7 = vector.extract_strided_slice %6 {offsets = [0, 0, 0, 0], sizes = [4, 8, 8, 384], strides = [1, 1, 1, 1]} : vector<6x10x8x384xf32> to vector<4x8x8x384xf32>
    %8 = vector.shape_cast %7 : vector<4x8x8x384xf32> to vector<256x384xf32>
    %9 = arith.truncf %8 : vector<256x384xf32> to vector<256x384xbf16>
    %10 = vector.extract_strided_slice %6 {offsets = [0, 1, 0, 0], sizes = [4, 8, 8, 384], strides = [1, 1, 1, 1]} : vector<6x10x8x384xf32> to vector<4x8x8x384xf32>
    %11 = vector.shape_cast %10 : vector<4x8x8x384xf32> to vector<256x384xf32>
    %12 = arith.truncf %11 : vector<256x384xf32> to vector<256x384xbf16>
    %13 = vector.extract_strided_slice %6 {offsets = [0, 2, 0, 0], sizes = [4, 8, 8, 384], strides = [1, 1, 1, 1]} : vector<6x10x8x384xf32> to vector<4x8x8x384xf32>
    %14 = vector.shape_cast %13 : vector<4x8x8x384xf32> to vector<256x384xf32>
    %15 = arith.truncf %14 : vector<256x384xf32> to vector<256x384xbf16>
    %16 = vector.extract_strided_slice %6 {offsets = [1, 0, 0, 0], sizes = [4, 8, 8, 384], strides = [1, 1, 1, 1]} : vector<6x10x8x384xf32> to vector<4x8x8x384xf32>
    %17 = vector.shape_cast %16 : vector<4x8x8x384xf32> to vector<256x384xf32>
    %18 = arith.truncf %17 : vector<256x384xf32> to vector<256x384xbf16>
    %19 = vector.extract_strided_slice %6 {offsets = [1, 1, 0, 0], sizes = [4, 8, 8, 384], strides = [1, 1, 1, 1]} : vector<6x10x8x384xf32> to vector<4x8x8x384xf32>
    %20 = vector.shape_cast %19 : vector<4x8x8x384xf32> to vector<256x384xf32>
    %21 = arith.truncf %20 : vector<256x384xf32> to vector<256x384xbf16>
    %22 = vector.extract_strided_slice %6 {offsets = [1, 2, 0, 0], sizes = [4, 8, 8, 384], strides = [1, 1, 1, 1]} : vector<6x10x8x384xf32> to vector<4x8x8x384xf32>
    %23 = vector.shape_cast %22 : vector<4x8x8x384xf32> to vector<256x384xf32>
    %24 = arith.truncf %23 : vector<256x384xf32> to vector<256x384xbf16>
    %25 = vector.extract_strided_slice %6 {offsets = [2, 0, 0, 0], sizes = [4, 8, 8, 384], strides = [1, 1, 1, 1]} : vector<6x10x8x384xf32> to vector<4x8x8x384xf32>
    %26 = vector.shape_cast %25 : vector<4x8x8x384xf32> to vector<256x384xf32>
    %27 = arith.truncf %26 : vector<256x384xf32> to vector<256x384xbf16>
    %28 = vector.extract_strided_slice %6 {offsets = [2, 1, 0, 0], sizes = [4, 8, 8, 384], strides = [1, 1, 1, 1]} : vector<6x10x8x384xf32> to vector<4x8x8x384xf32>
    %29 = vector.shape_cast %28 : vector<4x8x8x384xf32> to vector<256x384xf32>
    %30 = arith.truncf %29 : vector<256x384xf32> to vector<256x384xbf16>
    %31 = vector.extract_strided_slice %6 {offsets = [2, 2, 0, 0], sizes = [4, 8, 8, 384], strides = [1, 1, 1, 1]} : vector<6x10x8x384xf32> to vector<4x8x8x384xf32>
    %32 = vector.shape_cast %31 : vector<4x8x8x384xf32> to vector<256x384xf32>
    %33 = arith.truncf %32 : vector<256x384xf32> to vector<256x384xbf16>
    %34 = tpu.concatenate %9, %12, %15, %18, %21, %24, %27, %30, %33 in 1 : vector<256x384xbf16>, vector<256x384xbf16>, vector<256x384xbf16>, vector<256x384xbf16>, vector<256x384xbf16>, vector<256x384xbf16>, vector<256x384xbf16>, vector<256x384xbf16>, vector<256x384xbf16> -> vector<256x3456xbf16>
    %c0_4 = arith.constant 0 : index
    %c0_5 = arith.constant 0 : index
    %35 = vector.load %arg2[%c0_4, %c0_5] : memref<8x3456xbf16, #tpu.memory_space<vmem>>, vector<8x3456xbf16>
    %cst = arith.constant dense<0.000000e+00> : vector<256x8xf32>
    %36 = tpu.matmul %34, %35, %cst {dimension_numbers = #tpu.dot_dimension_numbers<[1], [1], [0], [0], [0, 0, 1, 0], [], []>} : vector<256x3456xbf16>, vector<8x3456xbf16>, vector<256x8xf32> -> vector<256x8xf32>
    %c0_6 = arith.constant 0 : index
    %c0_7 = arith.constant 0 : index
    %37 = vector.load %arg3[%c0_6, %c0_7] : memref<1x8xf32, #tpu.memory_space<vmem>>, vector<1x8xf32>
    %38 = vector.broadcast %37 : vector<1x8xf32> to vector<256x8xf32>
    %39 = arith.addf %36, %38 : vector<256x8xf32>
    %cst_8 = arith.constant 0.000000e+00 : f32
    %40 = vector.broadcast %cst_8 : f32 to vector<256x8xf32>
    %41 = arith.maximumf %39, %40 : vector<256x8xf32>
    %42 = arith.truncf %41 : vector<256x8xf32> to vector<256x8xbf16>
    %c0_9 = arith.constant 0 : index
    %c0_10 = arith.constant 0 : index
    %43 = vector.load %arg4[%c0_9, %c0_10] : memref<8x1xbf16, #tpu.memory_space<vmem>>, vector<8x1xbf16>
    %cst_11 = arith.constant dense<0.000000e+00> : vector<256x1xf32>
    %44 = tpu.matmul %42, %43, %cst_11 {dimension_numbers = #tpu.dot_dimension_numbers<[1], [0], [0], [1], [0, 0, 1, 1], [], []>} : vector<256x8xbf16>, vector<8x1xbf16>, vector<256x1xf32> -> vector<256x1xf32>
    %c0_12 = arith.constant 0 : index
    %c0_13 = arith.constant 0 : index
    %45 = vector.load %arg5[%c0_12, %c0_13] : memref<1x1xf32, #tpu.memory_space<vmem>>, vector<1x1xf32>
    %46 = vector.broadcast %45 : vector<1x1xf32> to vector<256x1xf32>
    %47 = arith.addf %44, %46 : vector<256x1xf32>
    %c0_14 = arith.constant 0 : index
    %c0_15 = arith.constant 0 : index
    %48 = vector.load %arg6[%c0_14, %c0_15] : memref<1x8xbf16, #tpu.memory_space<vmem>>, vector<1x8xbf16>
    %cst_16 = arith.constant dense<0.000000e+00> : vector<1x256xf32>
    %49 = tpu.matmul %48, %42, %cst_16 {dimension_numbers = #tpu.dot_dimension_numbers<[1], [1], [0], [0], [0, 0, 1, 0], [], []>} : vector<1x8xbf16>, vector<256x8xbf16>, vector<1x256xf32> -> vector<1x256xf32>
    %c0_17 = arith.constant 0 : index
    %c0_18 = arith.constant 0 : index
    %50 = vector.load %arg7[%c0_17, %c0_18] : memref<1x1xf32, #tpu.memory_space<vmem>>, vector<1x1xf32>
    %51 = vector.broadcast %50 : vector<1x1xf32> to vector<1x256xf32>
    %52 = arith.addf %49, %51 : vector<1x256xf32>
    %c0_19 = arith.constant 0 : index
    %c0_20 = arith.constant 0 : index
    %53 = vector.load %arg8[%c0_19, %c0_20] : memref<8x8xbf16, #tpu.memory_space<vmem>>, vector<8x8xbf16>
    %cst_21 = arith.constant dense<0.000000e+00> : vector<256x8xf32>
    %54 = tpu.matmul %42, %53, %cst_21 {dimension_numbers = #tpu.dot_dimension_numbers<[1], [0], [0], [1], [0, 0, 1, 1], [], []>} : vector<256x8xbf16>, vector<8x8xbf16>, vector<256x8xf32> -> vector<256x8xf32>
    %c0_22 = arith.constant 0 : index
    %c0_23 = arith.constant 0 : index
    %55 = vector.load %arg9[%c0_22, %c0_23] : memref<1x8xf32, #tpu.memory_space<vmem>>, vector<1x8xf32>
    %56 = vector.broadcast %55 : vector<1x8xf32> to vector<256x8xf32>
    %57 = arith.addf %54, %56 : vector<256x8xf32>
    %58 = vector.broadcast %47 : vector<256x1xf32> to vector<256x256xf32>
    %59 = vector.broadcast %52 : vector<1x256xf32> to vector<256x256xf32>
    %60 = arith.mulf %58, %59 : vector<256x256xf32>
    %cst_24 = arith.constant dense<0xFF800000> : vector<256xf32>
    %61 = vector.multi_reduction <maximumf>, %60, %cst_24 [1] : vector<256x256xf32> to vector<256xf32>
    %62 = vector.shape_cast %61 : vector<256xf32> to vector<256x1xf32>
    %63 = vector.broadcast %62 : vector<256x1xf32> to vector<256x256xf32>
    %64 = arith.subf %60, %63 : vector<256x256xf32>
    %65 = math.exp %64 : vector<256x256xf32>
    %cst_25 = arith.constant dense<0.000000e+00> : vector<256xf32>
    %66 = vector.multi_reduction <add>, %65, %cst_25 [1] : vector<256x256xf32> to vector<256xf32>
    %67 = vector.shape_cast %66 : vector<256xf32> to vector<256x1xf32>
    %68 = tpu.reciprocal %67 {approx = true} : vector<256x1xf32> -> vector<256x1xf32>
    %69 = vector.broadcast %68 : vector<256x1xf32> to vector<256x256xf32>
    %70 = arith.mulf %65, %69 : vector<256x256xf32>
    %71 = arith.truncf %70 : vector<256x256xf32> to vector<256x256xbf16>
    %72 = arith.truncf %57 : vector<256x8xf32> to vector<256x8xbf16>
    %cst_26 = arith.constant dense<0.000000e+00> : vector<256x8xf32>
    %73 = tpu.matmul %71, %72, %cst_26 {dimension_numbers = #tpu.dot_dimension_numbers<[1], [0], [0], [1], [0, 0, 1, 1], [], []>} : vector<256x256xbf16>, vector<256x8xbf16>, vector<256x8xf32> -> vector<256x8xf32>
    %c0_27 = arith.constant 0 : index
    %74 = memref.load %arg10[%c0_27] : memref<1xf32, #tpu.memory_space<smem>>
    %75 = vector.broadcast %74 : f32 to vector<256x8xf32>
    %76 = arith.mulf %75, %73 : vector<256x8xf32>
    %77 = arith.addf %76, %41 : vector<256x8xf32>
    %78 = vector.shape_cast %77 : vector<256x8xf32> to vector<4x8x8x8xf32>
    %cst_28 = arith.constant 0.000000e+00 : f32
    %79 = vector.broadcast %cst_28 : f32 to vector<4x8x1x8xf32>
    %80 = tpu.concatenate %79, %78, %79 in 2 : vector<4x8x1x8xf32>, vector<4x8x8x8xf32>, vector<4x8x1x8xf32> -> vector<4x8x10x8xf32>
    %cst_29 = arith.constant 0.000000e+00 : f32
    %81 = vector.broadcast %cst_29 : f32 to vector<4x1x10x8xf32>
    %82 = tpu.concatenate %81, %80, %81 in 1 : vector<4x1x10x8xf32>, vector<4x8x10x8xf32>, vector<4x1x10x8xf32> -> vector<4x10x10x8xf32>
    %cst_30 = arith.constant 0.000000e+00 : f32
    %83 = vector.broadcast %cst_30 : f32 to vector<1x10x10x8xf32>
    %84 = tpu.concatenate %83, %82, %83 in 0 : vector<1x10x10x8xf32>, vector<4x10x10x8xf32>, vector<1x10x10x8xf32> -> vector<6x10x10x8xf32>
    %85 = vector.extract_strided_slice %84 {offsets = [0, 0, 0, 0], sizes = [6, 10, 8, 8], strides = [1, 1, 1, 1]} : vector<6x10x10x8xf32> to vector<6x10x8x8xf32>
    %86 = vector.extract_strided_slice %84 {offsets = [0, 0, 1, 0], sizes = [6, 10, 8, 8], strides = [1, 1, 1, 1]} : vector<6x10x10x8xf32> to vector<6x10x8x8xf32>
    %87 = vector.extract_strided_slice %84 {offsets = [0, 0, 2, 0], sizes = [6, 10, 8, 8], strides = [1, 1, 1, 1]} : vector<6x10x10x8xf32> to vector<6x10x8x8xf32>
    %88 = tpu.concatenate %85, %86, %87 in 3 : vector<6x10x8x8xf32>, vector<6x10x8x8xf32>, vector<6x10x8x8xf32> -> vector<6x10x8x24xf32>
    %89 = vector.extract_strided_slice %88 {offsets = [0, 0, 0, 0], sizes = [4, 8, 8, 24], strides = [1, 1, 1, 1]} : vector<6x10x8x24xf32> to vector<4x8x8x24xf32>
    %90 = vector.shape_cast %89 : vector<4x8x8x24xf32> to vector<256x24xf32>
    %91 = arith.truncf %90 : vector<256x24xf32> to vector<256x24xbf16>
    %92 = vector.extract_strided_slice %88 {offsets = [0, 1, 0, 0], sizes = [4, 8, 8, 24], strides = [1, 1, 1, 1]} : vector<6x10x8x24xf32> to vector<4x8x8x24xf32>
    %93 = vector.shape_cast %92 : vector<4x8x8x24xf32> to vector<256x24xf32>
    %94 = arith.truncf %93 : vector<256x24xf32> to vector<256x24xbf16>
    %95 = vector.extract_strided_slice %88 {offsets = [0, 2, 0, 0], sizes = [4, 8, 8, 24], strides = [1, 1, 1, 1]} : vector<6x10x8x24xf32> to vector<4x8x8x24xf32>
    %96 = vector.shape_cast %95 : vector<4x8x8x24xf32> to vector<256x24xf32>
    %97 = arith.truncf %96 : vector<256x24xf32> to vector<256x24xbf16>
    %98 = vector.extract_strided_slice %88 {offsets = [1, 0, 0, 0], sizes = [4, 8, 8, 24], strides = [1, 1, 1, 1]} : vector<6x10x8x24xf32> to vector<4x8x8x24xf32>
    %99 = vector.shape_cast %98 : vector<4x8x8x24xf32> to vector<256x24xf32>
    %100 = arith.truncf %99 : vector<256x24xf32> to vector<256x24xbf16>
    %101 = vector.extract_strided_slice %88 {offsets = [1, 1, 0, 0], sizes = [4, 8, 8, 24], strides = [1, 1, 1, 1]} : vector<6x10x8x24xf32> to vector<4x8x8x24xf32>
    %102 = vector.shape_cast %101 : vector<4x8x8x24xf32> to vector<256x24xf32>
    %103 = arith.truncf %102 : vector<256x24xf32> to vector<256x24xbf16>
    %104 = vector.extract_strided_slice %88 {offsets = [1, 2, 0, 0], sizes = [4, 8, 8, 24], strides = [1, 1, 1, 1]} : vector<6x10x8x24xf32> to vector<4x8x8x24xf32>
    %105 = vector.shape_cast %104 : vector<4x8x8x24xf32> to vector<256x24xf32>
    %106 = arith.truncf %105 : vector<256x24xf32> to vector<256x24xbf16>
    %107 = vector.extract_strided_slice %88 {offsets = [2, 0, 0, 0], sizes = [4, 8, 8, 24], strides = [1, 1, 1, 1]} : vector<6x10x8x24xf32> to vector<4x8x8x24xf32>
    %108 = vector.shape_cast %107 : vector<4x8x8x24xf32> to vector<256x24xf32>
    %109 = arith.truncf %108 : vector<256x24xf32> to vector<256x24xbf16>
    %110 = vector.extract_strided_slice %88 {offsets = [2, 1, 0, 0], sizes = [4, 8, 8, 24], strides = [1, 1, 1, 1]} : vector<6x10x8x24xf32> to vector<4x8x8x24xf32>
    %111 = vector.shape_cast %110 : vector<4x8x8x24xf32> to vector<256x24xf32>
    %112 = arith.truncf %111 : vector<256x24xf32> to vector<256x24xbf16>
    %113 = vector.extract_strided_slice %88 {offsets = [2, 2, 0, 0], sizes = [4, 8, 8, 24], strides = [1, 1, 1, 1]} : vector<6x10x8x24xf32> to vector<4x8x8x24xf32>
    %114 = vector.shape_cast %113 : vector<4x8x8x24xf32> to vector<256x24xf32>
    %115 = arith.truncf %114 : vector<256x24xf32> to vector<256x24xbf16>
    %116 = tpu.concatenate %91, %94, %97, %100, %103, %106, %109, %112, %115 in 1 : vector<256x24xbf16>, vector<256x24xbf16>, vector<256x24xbf16>, vector<256x24xbf16>, vector<256x24xbf16>, vector<256x24xbf16>, vector<256x24xbf16>, vector<256x24xbf16>, vector<256x24xbf16> -> vector<256x216xbf16>
    %c0_31 = arith.constant 0 : index
    %c0_32 = arith.constant 0 : index
    %117 = vector.load %arg11[%c0_31, %c0_32] : memref<8x216xbf16, #tpu.memory_space<vmem>>, vector<8x216xbf16>
    %cst_33 = arith.constant dense<0.000000e+00> : vector<8x256xf32>
    %118 = tpu.matmul %117, %116, %cst_33 {dimension_numbers = #tpu.dot_dimension_numbers<[1], [1], [0], [0], [0, 0, 1, 0], [], []>} : vector<8x216xbf16>, vector<256x216xbf16>, vector<8x256xf32> -> vector<8x256xf32>
    %c0_34 = arith.constant 0 : index
    %c0_35 = arith.constant 0 : index
    %119 = vector.load %arg12[%c0_34, %c0_35] : memref<8x1xf32, #tpu.memory_space<vmem>>, vector<8x1xf32>
    %120 = vector.broadcast %119 : vector<8x1xf32> to vector<8x256xf32>
    %121 = arith.addf %118, %120 : vector<8x256xf32>
    %cst_36 = arith.constant 0.000000e+00 : f32
    %122 = vector.broadcast %cst_36 : f32 to vector<8x256xf32>
    %123 = arith.maximumf %121, %122 : vector<8x256xf32>
    %c0_37 = arith.constant 0 : index
    %c0_38 = arith.constant 0 : index
    %124 = vector.load %arg13[%c0_37, %c0_38] : memref<4x8xbf16, #tpu.memory_space<vmem>>, vector<4x8xbf16>
    %125 = arith.truncf %123 : vector<8x256xf32> to vector<8x256xbf16>
    %cst_39 = arith.constant dense<0.000000e+00> : vector<4x256xf32>
    %126 = tpu.matmul %124, %125, %cst_39 {dimension_numbers = #tpu.dot_dimension_numbers<[1], [0], [0], [1], [0, 0, 1, 1], [], []>} : vector<4x8xbf16>, vector<8x256xbf16>, vector<4x256xf32> -> vector<4x256xf32>
    %c0_40 = arith.constant 0 : index
    %c0_41 = arith.constant 0 : index
    %127 = vector.load %arg14[%c0_40, %c0_41] : memref<4x1xf32, #tpu.memory_space<vmem>>, vector<4x1xf32>
    %128 = vector.broadcast %127 : vector<4x1xf32> to vector<4x256xf32>
    %129 = arith.addf %126, %128 : vector<4x256xf32>
    %cst_42 = arith.constant 0.000000e+00 : f32
    %130 = vector.broadcast %cst_42 : f32 to vector<4x256xf32>
    %131 = arith.maximumf %129, %130 : vector<4x256xf32>
    %c0_43 = arith.constant 0 : index
    %c0_44 = arith.constant 0 : index
    %c0_45 = arith.constant 0 : index
    %132 = vector.load %arg15[%c0_43, %c0_44, %c0_45] : memref<1x4x256xf32, #tpu.memory_space<vmem>>, vector<1x4x256xf32>
    %133 = vector.shape_cast %132 : vector<1x4x256xf32> to vector<4x256xf32>
    %134 = vector.shape_cast %131 : vector<4x256xf32> to vector<1x4x256xf32>
    tpu.vector_store %arg15[%c0_43, %c0_44, %c0_45], %134 {strides = array<i32>} : memref<1x4x256xf32, #tpu.memory_space<vmem>>, vector<1x4x256xf32>,
    return
  }
  func.func @transform_0(%arg0: i32) -> (i32, i32, i32, i32, i32) {
    %c0_i32 = arith.constant 0 : i32
    %c0_i32_0 = arith.constant 0 : i32
    %c0_i32_1 = arith.constant 0 : i32
    %c0_i32_2 = arith.constant 0 : i32
    %c0_i32_3 = arith.constant 0 : i32
    return %arg0, %c0_i32, %c0_i32_0, %c0_i32_1, %c0_i32_2 : i32, i32, i32, i32, i32
  }
  func.func @transform_1(%arg0: i32) -> (i32, i32) {
    %c0_i32 = arith.constant 0 : i32
    %c0_i32_0 = arith.constant 0 : i32
    %c0_i32_1 = arith.constant 0 : i32
    return %c0_i32, %c0_i32_0 : i32, i32
  }
  func.func @transform_2(%arg0: i32) -> (i32, i32) {
    %c0_i32 = arith.constant 0 : i32
    %c0_i32_0 = arith.constant 0 : i32
    %c0_i32_1 = arith.constant 0 : i32
    return %c0_i32, %c0_i32_0 : i32, i32
  }
  func.func @transform_3(%arg0: i32) -> (i32, i32) {
    %c0_i32 = arith.constant 0 : i32
    %c0_i32_0 = arith.constant 0 : i32
    %c0_i32_1 = arith.constant 0 : i32
    return %c0_i32, %c0_i32_0 : i32, i32
  }
  func.func @transform_4(%arg0: i32) -> (i32, i32) {
    %c0_i32 = arith.constant 0 : i32
    %c0_i32_0 = arith.constant 0 : i32
    %c0_i32_1 = arith.constant 0 : i32
    return %c0_i32, %c0_i32_0 : i32, i32
  }
  func.func @transform_5(%arg0: i32) -> (i32, i32) {
    %c0_i32 = arith.constant 0 : i32
    %c0_i32_0 = arith.constant 0 : i32
    %c0_i32_1 = arith.constant 0 : i32
    return %c0_i32, %c0_i32_0 : i32, i32
  }
  func.func @transform_6(%arg0: i32) -> (i32, i32) {
    %c0_i32 = arith.constant 0 : i32
    %c0_i32_0 = arith.constant 0 : i32
    %c0_i32_1 = arith.constant 0 : i32
    return %c0_i32, %c0_i32_0 : i32, i32
  }
  func.func @transform_7(%arg0: i32) -> (i32, i32) {
    %c0_i32 = arith.constant 0 : i32
    %c0_i32_0 = arith.constant 0 : i32
    %c0_i32_1 = arith.constant 0 : i32
    return %c0_i32, %c0_i32_0 : i32, i32
  }
  func.func @transform_8(%arg0: i32) -> (i32, i32) {
    %c0_i32 = arith.constant 0 : i32
    %c0_i32_0 = arith.constant 0 : i32
    %c0_i32_1 = arith.constant 0 : i32
    return %c0_i32, %c0_i32_0 : i32, i32
  }
  func.func @transform_9(%arg0: i32) -> i32 {
    %c0_i32 = arith.constant 0 : i32
    %c0_i32_0 = arith.constant 0 : i32
    return %c0_i32 : i32
  }
  func.func @transform_10(%arg0: i32) -> (i32, i32) {
    %c0_i32 = arith.constant 0 : i32
    %c0_i32_0 = arith.constant 0 : i32
    %c0_i32_1 = arith.constant 0 : i32
    return %c0_i32, %c0_i32_0 : i32, i32
  }
  func.func @transform_11(%arg0: i32) -> (i32, i32) {
    %c0_i32 = arith.constant 0 : i32
    %c0_i32_0 = arith.constant 0 : i32
    %c0_i32_1 = arith.constant 0 : i32
    return %c0_i32, %c0_i32_0 : i32, i32
  }
  func.func @transform_12(%arg0: i32) -> (i32, i32) {
    %c0_i32 = arith.constant 0 : i32
    %c0_i32_0 = arith.constant 0 : i32
    %c0_i32_1 = arith.constant 0 : i32
    return %c0_i32, %c0_i32_0 : i32, i32
  }
  func.func @transform_13(%arg0: i32) -> (i32, i32) {
    %c0_i32 = arith.constant 0 : i32
    %c0_i32_0 = arith.constant 0 : i32
    %c0_i32_1 = arith.constant 0 : i32
    return %c0_i32, %c0_i32_0 : i32, i32
  }
  func.func @transform_14(%arg0: i32) -> (i32, i32, i32) {
    %c0_i32 = arith.constant 0 : i32
    %c0_i32_0 = arith.constant 0 : i32
    %c0_i32_1 = arith.constant 0 : i32
    return %arg0, %c0_i32, %c0_i32_0 : i32, i32, i32
  }
}

</mosaic_0001>

<llo_original>
// kernel: pnet_head_forward.1
$region0: #{pnet_head_forward.1}
  #allocation0 [shape = 'u32[]', space=smem, size = 0x4, offset = 0x4, fixed_abs, tag = 'smem constant byte address 0x4 - core index']
  #allocation1 [shape = 'u32[72,128]{1,0:T(1,128)}', space=vmem, size = 0x9000, scoped, tag = 'internal scratch']
  #allocation2 [shape = 'f32[1,1]{1,0:T(1,128)S(1)}', space=vmem, size = 0x200, scoped, tag = 'scoped memory for pnet_head_forward.1']
  #allocation3 [shape = 'f32[1,1]{1,0:T(1,128)S(1)}', space=vmem, size = 0x200, scoped, tag = 'scoped memory for pnet_head_forward.1']
  #allocation4 [shape = 'f32[1]{0:T(128)S(6)}', space=smem, size = 0x200, scoped, tag = 'scoped memory for pnet_head_forward.1']
  %s0 = inlined_call_operand.vmem [shape: bf16[2,6,10,10,128], index: 0, kind: input, shape index: {}]
  %s1 = inlined_call_operand.vmem [shape: bf16[8,3456], index: 1, kind: input, shape index: {}]
  %s2 = inlined_call_operand.vmem [shape: f32[1,8], index: 2, kind: input, shape index: {}]
  %s3 = inlined_call_operand.vmem [shape: bf16[8,1], index: 3, kind: input, shape index: {}]
  %s4 = inlined_call_operand.<no memory space> [shape: f32[1,1], index: 4, kind: input, shape index: {}]
  %s5 = inlined_call_operand.vmem [shape: bf16[1,8], index: 5, kind: input, shape index: {}]
  %s6 = inlined_call_operand.<no memory space> [shape: f32[1,1], index: 6, kind: input, shape index: {}]
  %s7 = inlined_call_operand.vmem [shape: bf16[8,8], index: 7, kind: input, shape index: {}]
  %s8 = inlined_call_operand.vmem [shape: f32[1,8], index: 8, kind: input, shape index: {}]
  %s9 = inlined_call_operand.<no memory space> [shape: f32[1], index: 9, kind: input, shape index: {}]
  %s10 = inlined_call_operand.vmem [shape: bf16[8,216], index: 10, kind: input, shape index: {}]
  %s11 = inlined_call_operand.vmem [shape: f32[8,1], index: 11, kind: input, shape index: {}]
  %s12 = inlined_call_operand.vmem [shape: bf16[4,8], index: 12, kind: input, shape index: {}]
  %s13 = inlined_call_operand.vmem [shape: f32[4,1], index: 13, kind: input, shape index: {}]
  %s14 = inlined_call_operand.vmem [shape: f32[2,4,256], index: 14, kind: output, shape index: {}]
  %s15 = sld [smem:[#allocation0]]
  $region89: #{pnet_head_forward.1} parent=0
    _
  %s17 = ssub.s32 1, %s15
  %s18 = scalar_select 0, %s17, %s15
  %v19 = vstv %s4
  %20 = vst [vmem:[#allocation2] sm:$0x1] %v19
  %v21 = vstv %s6
  %22 = vst [vmem:[#allocation3] sm:$0x1] %v21
  %23 = sst [smem:[#allocation4]] %s9
  loop: start=0, step=1, limit=4
  $region2: #{pnet_head_forward.1} parent=0 // loop_pre_header
    _
  $region3: #{pnet_head_forward.1} parent=0 // loop_header
    %s25 = sphi 0, %s29
    %p26 = scmp.ge.s32.totalorder %s25, 4
    %s35 = sphi 0, %s37
    %s38 = sphi 0, %s35
    %s39 = sphi 0, %s38
    %s55 = sphi 0, %s39
    %s59 = sphi 0, %s59
    %s61 = sphi 0, %s59
    %s62 = sphi 0, %s61
    %s76 = sphi 0, %s62
    %s80 = sphi 0, %s80
    %s82 = sphi 0, %s80
    %s83 = sphi 0, %s82
    %s97 = sphi 0, %s83
    %s101 = sphi 0, %s101
    %s103 = sphi 0, %s101
    %s104 = sphi 0, %s103
    %s118 = sphi 0, %s104
    %s122 = sphi 0, %s122
    %s124 = sphi 0, %s122
    %s125 = sphi 0, %s124
    %s139 = sphi 0, %s125
    %s143 = sphi 0, %s143
    %s145 = sphi 0, %s143
    %s146 = sphi 0, %s145
    %s160 = sphi 0, %s146
    %s164 = sphi 0, %s164
    %s166 = sphi 0, %s164
    %s167 = sphi 0, %s166
    %s181 = sphi 0, %s167
    %s185 = sphi 0, %s185
    %s187 = sphi 0, %s185
    %s188 = sphi 0, %s187
    %s202 = sphi 0, %s188
    %s206 = sphi 0, %s206
    %s208 = sphi 0, %s206
    %s209 = sphi 0, %s208
    %s223 = sphi 0, %s209
    %s227 = sphi 0, %s227
    %s229 = sphi 0, %s227
    %s230 = sphi 0, %s229
    %s244 = sphi 0, %s230
    %s248 = sphi 0, %s248
    %s250 = sphi 0, %s248
    %s251 = sphi 0, %s250
    %s265 = sphi 0, %s251
    %s269 = sphi 0, %s269
    %s271 = sphi 0, %s269
    %s272 = sphi 0, %s271
    %s286 = sphi 0, %s272
    %s290 = sphi 0, %s290
    %s292 = sphi 0, %s290
    %s293 = sphi 0, %s292
    %s307 = sphi 0, %s293
    %s311 = sphi 0, %s311
    %s313 = sphi 0, %s311
    %s314 = sphi 0, %s313
    %s328 = sphi 0, %s314
    %s334 = sphi 0, %s336
    %s337 = sphi 0, %s334
    %s338 = sphi 0, %s337
    %s354 = sphi 0, %s338
  $region4: #{pnet_head_forward.1} parent=0 // loop_header_branch
    %28 = sbr.rel (%p26) target = $region8
  $region5: #{pnet_head_forward.1} parent=0 // loop_body
    %s30 = ssub.s32 %s25, 1
    %s31 = ssub.s32 %s25, 2
    %s32 = sadd.s32 %s25, 1
    %s33 = ssub.s32 %s25, %s32
    %p34 = scmp.eq.s32.totalorder %s33, 0
    %s36 = sadd.s32 %s35, 1
    %s37 = scalar_select %p34, %s35, %s36
    %p40 = pneg %p34
    %p41 = scmp.eq.s32.totalorder %s25, 1
    %p42 = por %p40, %p41
    %p43 = scmp.ne.s32.totalorder %s35, %s38
    %p44 = scmp.eq.s32.totalorder %s25, 0
    %p45 = por %p43, %p44
    %p46 = scmp.ne.s32.totalorder %s35, %s38
    %p47 = scmp.eq.s32.totalorder %s30, 1
    %p48 = por %p46, %p47
    %p49 = scmp.ne.s32.totalorder %s38, %s39
    %p50 = scmp.eq.s32.totalorder %s30, 0
    %p51 = por %p49, %p50
    %p52 = scmp.ne.s32.totalorder %s38, %s39
    %p53 = scmp.eq.s32.totalorder %s31, 1
    %p54 = por %p52, %p53
    %p56 = scmp.ne.s32.totalorder %s39, %s55
    %p57 = scmp.eq.s32.totalorder %s31, 0
    %p58 = por %p56, %p57
    %s60 = sadd.s32 %s59, 1
    %p63 = scmp.eq.s32.totalorder %s25, 1
    %p64 = scmp.ne.s32.totalorder %s59, %s61
    %p65 = scmp.eq.s32.totalorder %s25, 0
    %p66 = por %p64, %p65
    %p67 = scmp.ne.s32.totalorder %s59, %s61
    %p68 = scmp.eq.s32.totalorder %s30, 1
    %p69 = por %p67, %p68
    %p70 = scmp.ne.s32.totalorder %s61, %s62
    %p71 = scmp.eq.s32.totalorder %s30, 0
    %p72 = por %p70, %p71
    %p73 = scmp.ne.s32.totalorder %s61, %s62
    %p74 = scmp.eq.s32.totalorder %s31, 1
    %p75 = por %p73, %p74
    %p77 = scmp.ne.s32.totalorder %s62, %s76
    %p78 = scmp.eq.s32.totalorder %s31, 0
    %p79 = por %p77, %p78
    %s81 = sadd.s32 %s80, 1
    %p84 = scmp.eq.s32.totalorder %s25, 1
    %p85 = scmp.ne.s32.totalorder %s80, %s82
    %p86 = scmp.eq.s32.totalorder %s25, 0
    %p87 = por %p85, %p86
    %p88 = scmp.ne.s32.totalorder %s80, %s82
    %p89 = scmp.eq.s32.totalorder %s30, 1
    %p90 = por %p88, %p89
    %p91 = scmp.ne.s32.totalorder %s82, %s83
    %p92 = scmp.eq.s32.totalorder %s30, 0
    %p93 = por %p91, %p92
    %p94 = scmp.ne.s32.totalorder %s82, %s83
    %p95 = scmp.eq.s32.totalorder %s31, 1
    %p96 = por %p94, %p95
    %p98 = scmp.ne.s32.totalorder %s83, %s97
    %p99 = scmp.eq.s32.totalorder %s31, 0
    %p100 = por %p98, %p99
    %s102 = sadd.s32 %s101, 1
    %p105 = scmp.eq.s32.totalorder %s25, 1
    %p106 = scmp.ne.s32.totalorder %s101, %s103
    %p107 = scmp.eq.s32.totalorder %s25, 0
    %p108 = por %p106, %p107
    %p109 = scmp.ne.s32.totalorder %s101, %s103
    %p110 = scmp.eq.s32.totalorder %s30, 1
    %p111 = por %p109, %p110
    %p112 = scmp.ne.s32.totalorder %s103, %s104
    %p113 = scmp.eq.s32.totalorder %s30, 0
    %p114 = por %p112, %p113
    %p115 = scmp.ne.s32.totalorder %s103, %s104
    %p116 = scmp.eq.s32.totalorder %s31, 1
    %p117 = por %p115, %p116
    %p119 = scmp.ne.s32.totalorder %s104, %s118
    %p120 = scmp.eq.s32.totalorder %s31, 0
    %p121 = por %p119, %p120
    %s123 = sadd.s32 %s122, 1
    %p126 = scmp.eq.s32.totalorder %s25, 1
    %p127 = scmp.ne.s32.totalorder %s122, %s124
    %p128 = scmp.eq.s32.totalorder %s25, 0
    %p129 = por %p127, %p128
    %p130 = scmp.ne.s32.totalorder %s122, %s124
    %p131 = scmp.eq.s32.totalorder %s30, 1
    %p132 = por %p130, %p131
    %p133 = scmp.ne.s32.totalorder %s124, %s125
    %p134 = scmp.eq.s32.totalorder %s30, 0
    %p135 = por %p133, %p134
    %p136 = scmp.ne.s32.totalorder %s124, %s125
    %p137 = scmp.eq.s32.totalorder %s31, 1
    %p138 = por %p136, %p137
    %p140 = scmp.ne.s32.totalorder %s125, %s139
    %p141 = scmp.eq.s32.totalorder %s31, 0
    %p142 = por %p140, %p141
    %s144 = sadd.s32 %s143, 1
    %p147 = scmp.eq.s32.totalorder %s25, 1
    %p148 = scmp.ne.s32.totalorder %s143, %s145
    %p149 = scmp.eq.s32.totalorder %s25, 0
    %p150 = por %p148, %p149
    %p151 = scmp.ne.s32.totalorder %s143, %s145
    %p152 = scmp.eq.s32.totalorder %s30, 1
    %p153 = por %p151, %p152
    %p154 = scmp.ne.s32.totalorder %s145, %s146
    %p155 = scmp.eq.s32.totalorder %s30, 0
    %p156 = por %p154, %p155
    %p157 = scmp.ne.s32.totalorder %s145, %s146
    %p158 = scmp.eq.s32.totalorder %s31, 1
    %p159 = por %p157, %p158
    %p161 = scmp.ne.s32.totalorder %s146, %s160
    %p162 = scmp.eq.s32.totalorder %s31, 0
    %p163 = por %p161, %p162
    %s165 = sadd.s32 %s164, 1
    %p168 = scmp.eq.s32.totalorder %s25, 1
    %p169 = scmp.ne.s32.totalorder %s164, %s166
    %p170 = scmp.eq.s32.totalorder %s25, 0
    %p171 = por %p169, %p170
    %p172 = scmp.ne.s32.totalorder %s164, %s166
    %p173 = scmp.eq.s32.totalorder %s30, 1
    %p174 = por %p172, %p173
    %p175 = scmp.ne.s32.totalorder %s166, %s167
    %p176 = scmp.eq.s32.totalorder %s30, 0
    %p177 = por %p175, %p176
    %p178 = scmp.ne.s32.totalorder %s166, %s167
    %p179 = scmp.eq.s32.totalorder %s31, 1
    %p180 = por %p178, %p179
    %p182 = scmp.ne.s32.totalorder %s167, %s181
    %p183 = scmp.eq.s32.totalorder %s31, 0
    %p184 = por %p182, %p183
    %s186 = sadd.s32 %s185, 1
    %p189 = scmp.eq.s32.totalorder %s25, 1
    %p190 = scmp.ne.s32.totalorder %s185, %s187
    %p191 = scmp.eq.s32.totalorder %s25, 0
    %p192 = por %p190, %p191
    %p193 = scmp.ne.s32.totalorder %s185, %s187
    %p194 = scmp.eq.s32.totalorder %s30, 1
    %p195 = por %p193, %p194
    %p196 = scmp.ne.s32.totalorder %s187, %s188
    %p197 = scmp.eq.s32.totalorder %s30, 0
    %p198 = por %p196, %p197
    %p199 = scmp.ne.s32.totalorder %s187, %s188
    %p200 = scmp.eq.s32.totalorder %s31, 1
    %p201 = por %p199, %p200
    %p203 = scmp.ne.s32.totalorder %s188, %s202
    %p204 = scmp.eq.s32.totalorder %s31, 0
    %p205 = por %p203, %p204
    %s207 = sadd.s32 %s206, 1
    %p210 = scmp.eq.s32.totalorder %s25, 1
    %p211 = scmp.ne.s32.totalorder %s206, %s208
    %p212 = scmp.eq.s32.totalorder %s25, 0
    %p213 = por %p211, %p212
    %p214 = scmp.ne.s32.totalorder %s206, %s208
    %p215 = scmp.eq.s32.totalorder %s30, 1
    %p216 = por %p214, %p215
    %p217 = scmp.ne.s32.totalorder %s208, %s209
    %p218 = scmp.eq.s32.totalorder %s30, 0
    %p219 = por %p217, %p218
    %p220 = scmp.ne.s32.totalorder %s208, %s209
    %p221 = scmp.eq.s32.totalorder %s31, 1
    %p222 = por %p220, %p221
    %p224 = scmp.ne.s32.totalorder %s209, %s223
    %p225 = scmp.eq.s32.totalorder %s31, 0
    %p226 = por %p224, %p225
    %s228 = sadd.s32 %s227, 1
    %p231 = scmp.eq.s32.totalorder %s25, 1
    %p232 = scmp.ne.s32.totalorder %s227, %s229
    %p233 = scmp.eq.s32.totalorder %s25, 0
    %p234 = por %p232, %p233
    %p235 = scmp.ne.s32.totalorder %s227, %s229
    %p236 = scmp.eq.s32.totalorder %s30, 1
    %p237 = por %p235, %p236
    %p238 = scmp.ne.s32.totalorder %s229, %s230
    %p239 = scmp.eq.s32.totalorder %s30, 0
    %p240 = por %p238, %p239
    %p241 = scmp.ne.s32.totalorder %s229, %s230
    %p242 = scmp.eq.s32.totalorder %s31, 1
    %p243 = por %p241, %p242
    %p245 = scmp.ne.s32.totalorder %s230, %s244
    %p246 = scmp.eq.s32.totalorder %s31, 0
    %p247 = por %p245, %p246
    %s249 = sadd.s32 %s248, 1
    %p252 = scmp.eq.s32.totalorder %s25, 1
    %p253 = scmp.ne.s32.totalorder %s248, %s250
    %p254 = scmp.eq.s32.totalorder %s25, 0
    %p255 = por %p253, %p254
    %p256 = scmp.ne.s32.totalorder %s248, %s250
    %p257 = scmp.eq.s32.totalorder %s30, 1
    %p258 = por %p256, %p257
    %p259 = scmp.ne.s32.totalorder %s250, %s251
    %p260 = scmp.eq.s32.totalorder %s30, 0
    %p261 = por %p259, %p260
    %p262 = scmp.ne.s32.totalorder %s250, %s251
    %p263 = scmp.eq.s32.totalorder %s31, 1
    %p264 = por %p262, %p263
    %p266 = scmp.ne.s32.totalorder %s251, %s265
    %p267 = scmp.eq.s32.totalorder %s31, 0
    %p268 = por %p266, %p267
    %s270 = sadd.s32 %s269, 1
    %p273 = scmp.eq.s32.totalorder %s25, 1
    %p274 = scmp.ne.s32.totalorder %s269, %s271
    %p275 = scmp.eq.s32.totalorder %s25, 0
    %p276 = por %p274, %p275
    %p277 = scmp.ne.s32.totalorder %s269, %s271
    %p278 = scmp.eq.s32.totalorder %s30, 1
    %p279 = por %p277, %p278
    %p280 = scmp.ne.s32.totalorder %s271, %s272
    %p281 = scmp.eq.s32.totalorder %s30, 0
    %p282 = por %p280, %p281
    %p283 = scmp.ne.s32.totalorder %s271, %s272
    %p284 = scmp.eq.s32.totalorder %s31, 1
    %p285 = por %p283, %p284
    %p287 = scmp.ne.s32.totalorder %s272, %s286
    %p288 = scmp.eq.s32.totalorder %s31, 0
    %p289 = por %p287, %p288
    %s291 = sadd.s32 %s290, 1
    %p294 = scmp.eq.s32.totalorder %s25, 1
    %p295 = scmp.ne.s32.totalorder %s290, %s292
    %p296 = scmp.eq.s32.totalorder %s25, 0
    %p297 = por %p295, %p296
    %p298 = scmp.ne.s32.totalorder %s290, %s292
    %p299 = scmp.eq.s32.totalorder %s30, 1
    %p300 = por %p298, %p299
    %p301 = scmp.ne.s32.totalorder %s292, %s293
    %p302 = scmp.eq.s32.totalorder %s30, 0
    %p303 = por %p301, %p302
    %p304 = scmp.ne.s32.totalorder %s292, %s293
    %p305 = scmp.eq.s32.totalorder %s31, 1
    %p306 = por %p304, %p305
    %p308 = scmp.ne.s32.totalorder %s293, %s307
    %p309 = scmp.eq.s32.totalorder %s31, 0
    %p310 = por %p308, %p309
    %s312 = sadd.s32 %s311, 1
    %p315 = scmp.eq.s32.totalorder %s25, 1
    %p316 = scmp.ne.s32.totalorder %s311, %s313
    %p317 = scmp.eq.s32.totalorder %s25, 0
    %p318 = por %p316, %p317
    %p319 = scmp.ne.s32.totalorder %s311, %s313
    %p320 = scmp.eq.s32.totalorder %s30, 1
    %p321 = por %p319, %p320
    %p322 = scmp.ne.s32.totalorder %s313, %s314
    %p323 = scmp.eq.s32.totalorder %s30, 0
    %p324 = por %p322, %p323
    %p325 = scmp.ne.s32.totalorder %s313, %s314
    %p326 = scmp.eq.s32.totalorder %s31, 1
    %p327 = por %p325, %p326
    %p329 = scmp.ne.s32.totalorder %s314, %s328
    %p330 = scmp.eq.s32.totalorder %s31, 0
    %p331 = por %p329, %p330
    %s332 = ssub.s32 %s25, %s32
    %p333 = scmp.eq.s32.totalorder %s332, 0
    %s335 = sadd.s32 %s334, 1
    %s336 = scalar_select %p333, %s334, %s335
    %p339 = pneg %p333
    %p340 = scmp.eq.s32.totalorder %s25, 1
    %p341 = por %p339, %p340
    %p342 = scmp.ne.s32.totalorder %s334, %s337
    %p343 = scmp.eq.s32.totalorder %s25, 0
    %p344 = por %p342, %p343
    %p345 = scmp.ne.s32.totalorder %s334, %s337
    %p346 = scmp.eq.s32.totalorder %s30, 1
    %p347 = por %p345, %p346
    %p348 = scmp.ne.s32.totalorder %s337, %s338
    %p349 = scmp.eq.s32.totalorder %s30, 0
    %p350 = por %p348, %p349
    %p351 = scmp.ne.s32.totalorder %s337, %s338
    %p352 = scmp.eq.s32.totalorder %s31, 1
    %p353 = por %p351, %p352
    %p355 = scmp.ne.s32.totalorder %s338, %s354
    %p356 = scmp.eq.s32.totalorder %s31, 0
    %p357 = por %p355, %p356
    %p358 = scmp.le.s32.totalorder 1, %s25
    %p359 = scmp.lt.s32.totalorder %s25, 3
    %p360 = pnand %p358, %p359
    %p361 = pneg %p360
    // Predicated region
    $region9: #{pnet_head_forward.1} parent=5 // pred_check
      _
    $region10: #{pnet_head_forward.1} parent=5 // pred_check_branch
      %363 = sbr.rel (%p360) target = $region12
    $region11: #{pnet_head_forward.1} parent=5 // pred_region
      %s364 = ssub.s32 %s25, 1
      // Predicated region
      $region13: #{pnet_head_forward.1} parent=11 // pred_check
        %p365 = pneg %p72
      $region14: #{pnet_head_forward.1} parent=11 // pred_check_branch
        %367 = sbr.rel (%p365) target = $region16
      $region15: #{pnet_head_forward.1} parent=11 // pred_region
        _
      $region16: #{pnet_head_forward.1} parent=11 // pred_fallthru
        _
      // Predicated region
      $region17: #{pnet_head_forward.1} parent=11 // pred_check
        %p368 = pneg %p93
      $region18: #{pnet_head_forward.1} parent=11 // pred_check_branch
        %370 = sbr.rel (%p368) target = $region20
      $region19: #{pnet_head_forward.1} parent=11 // pred_region
        _
      $region20: #{pnet_head_forward.1} parent=11 // pred_fallthru
        _
      // Predicated region
      $region21: #{pnet_head_forward.1} parent=11 // pred_check
        %p371 = pneg %p114
      $region22: #{pnet_head_forward.1} parent=11 // pred_check_branch
        %373 = sbr.rel (%p371) target = $region24
      $region23: #{pnet_head_forward.1} parent=11 // pred_region
        _
      $region24: #{pnet_head_forward.1} parent=11 // pred_fallthru
        _
      // Predicated region
      $region25: #{pnet_head_forward.1} parent=11 // pred_check
        %p374 = pneg %p135
      $region26: #{pnet_head_forward.1} parent=11 // pred_check_branch
        %376 = sbr.rel (%p374) target = $region28
      $region27: #{pnet_head_forward.1} parent=11 // pred_region
        _
      $region28: #{pnet_head_forward.1} parent=11 // pred_fallthru
        _
      // Predicated region
      $region29: #{pnet_head_forward.1} parent=11 // pred_check
        %p377 = pneg %p156
      $region30: #{pnet_head_forward.1} parent=11 // pred_check_branch
        %379 = sbr.rel (%p377) target = $region32
      $region31: #{pnet_head_forward.1} parent=11 // pred_region
        _
      $region32: #{pnet_head_forward.1} parent=11 // pred_fallthru
        _
      // Predicated region
      $region33: #{pnet_head_forward.1} parent=11 // pred_check
        %p380 = pneg %p177
      $region34: #{pnet_head_forward.1} parent=11 // pred_check_branch
        %382 = sbr.rel (%p380) target = $region36
      $region35: #{pnet_head_forward.1} parent=11 // pred_region
        _
      $region36: #{pnet_head_forward.1} parent=11 // pred_fallthru
        _
      // Predicated region
      $region37: #{pnet_head_forward.1} parent=11 // pred_check
        %p383 = pneg %p198
      $region38: #{pnet_head_forward.1} parent=11 // pred_check_branch
        %385 = sbr.rel (%p383) target = $region40
      $region39: #{pnet_head_forward.1} parent=11 // pred_region
        _
      $region40: #{pnet_head_forward.1} parent=11 // pred_fallthru
        _
      // Predicated region
      $region41: #{pnet_head_forward.1} parent=11 // pred_check
        %p386 = pneg %p219
      $region42: #{pnet_head_forward.1} parent=11 // pred_check_branch
        %388 = sbr.rel (%p386) target = $region44
      $region43: #{pnet_head_forward.1} parent=11 // pred_region
        _
      $region44: #{pnet_head_forward.1} parent=11 // pred_fallthru
        _
      // Predicated region
      $region45: #{pnet_head_forward.1} parent=11 // pred_check
        %p389 = pneg %p240
      $region46: #{pnet_head_forward.1} parent=11 // pred_check_branch
        %391 = sbr.rel (%p389) target = $region48
      $region47: #{pnet_head_forward.1} parent=11 // pred_region
        _
      $region48: #{pnet_head_forward.1} parent=11 // pred_fallthru
        _
      // Predicated region
      $region49: #{pnet_head_forward.1} parent=11 // pred_check
        %p392 = pneg %p261
      $region50: #{pnet_head_forward.1} parent=11 // pred_check_branch
        %394 = sbr.rel (%p392) target = $region52
      $region51: #{pnet_head_forward.1} parent=11 // pred_region
        _
      $region52: #{pnet_head_forward.1} parent=11 // pred_fallthru
        _
      // Predicated region
      $region53: #{pnet_head_forward.1} parent=11 // pred_check
        %p395 = pneg %p282
      $region54: #{pnet_head_forward.1} parent=11 // pred_check_branch
        %397 = sbr.rel (%p395) target = $region56
      $region55: #{pnet_head_forward.1} parent=11 // pred_region
        _
      $region56: #{pnet_head_forward.1} parent=11 // pred_fallthru
        _
      // Predicated region
      $region57: #{pnet_head_forward.1} parent=11 // pred_check
        %p398 = pneg %p303
      $region58: #{pnet_head_forward.1} parent=11 // pred_check_branch
        %400 = sbr.rel (%p398) target = $region60
      $region59: #{pnet_head_forward.1} parent=11 // pred_region
        _
      $region60: #{pnet_head_forward.1} parent=11 // pred_fallthru
        _
      // Predicated region
      $region61: #{pnet_head_forward.1} parent=11 // pred_check
        %p401 = pneg %p324
      $region62: #{pnet_head_forward.1} parent=11 // pred_check_branch
        %403 = sbr.rel (%p401) target = $region64
      $region63: #{pnet_head_forward.1} parent=11 // pred_region
        _
      $region64: #{pnet_head_forward.1} parent=11 // pred_fallthru
        _
    $region12: #{pnet_head_forward.1} parent=5 // pred_fallthru
      _
    %p404 = scmp.lt.s32.totalorder %s25, 2
    // Predicated region
    $region65: #{pnet_head_forward.1} parent=5 // pred_check
      %p405 = pneg %p404
    $region66: #{pnet_head_forward.1} parent=5 // pred_check_branch
      %407 = sbr.rel (%p405) target = $region68
    $region67: #{pnet_head_forward.1} parent=5 // pred_region
      // Predicated region
      $region69: #{pnet_head_forward.1} parent=67 // pred_check
        %p408 = pneg %p45
      $region70: #{pnet_head_forward.1} parent=67 // pred_check_branch
        %410 = sbr.rel (%p408) target = $region72
      $region71: #{pnet_head_forward.1} parent=67 // pred_region
        %p411 = scmp.lt.s32.totalorder %s25, 1
        %s412 = scalar_select %p411, %s25, 1
        %s413 = smul.addr %s412, 120
        %s414 = smul.addr %s413, 4
        %s415 = scalar_lea.vmem %s0, %s414
      $region72: #{pnet_head_forward.1} parent=67 // pred_fallthru
        _
    $region68: #{pnet_head_forward.1} parent=5 // pred_fallthru
      _
    %p416 = scmp.le.s32.totalorder 1, %s25
    %p417 = scmp.lt.s32.totalorder %s25, 3
    %p418 = pnand %p416, %p417
    %p419 = pneg %p418
    // Predicated region
    $region73: #{pnet_head_forward.1} parent=5 // pred_check
      _
    $region74: #{pnet_head_forward.1} parent=5 // pred_check_branch
      %421 = sbr.rel (%p418) target = $region76
    $region75: #{pnet_head_forward.1} parent=5 // pred_region
      %s422 = ssub.s32 %s25, 1
      %p423 = scmp.lt.s32.totalorder %s30, 1
      %s424 = scalar_select %p423, %s30, 1
      %s425 = smul.addr %s424, 120
      %s426 = smul.addr %s425, 4
      %s427 = scalar_lea.vmem %s0, %s426
      %p428 = pneg %p51
      %p429 = pneg %p48
      %p430 = pneg %p72
      %p431 = pneg %p69
      %p432 = pneg %p93
      %p433 = pneg %p90
      %p434 = pneg %p114
      %p435 = pneg %p111
      %p436 = pneg %p135
      %p437 = pneg %p132
      %p438 = pneg %p156
      %p439 = pneg %p153
      %p440 = pneg %p177
      %p441 = pneg %p174
      %p442 = pneg %p198
      %p443 = pneg %p195
      %p444 = pneg %p219
      %p445 = pneg %p216
      %p446 = pneg %p240
      %p447 = pneg %p237
      %p448 = pneg %p261
      %p449 = pneg %p258
      %p450 = pneg %p282
      %p451 = pneg %p279
      %p452 = pneg %p303
      %p453 = pneg %p300
      %p454 = pneg %p324
      %p455 = pneg %p321
      %p456 = pneg %p350
      %p457 = pneg %p347
      %p458 = scmp.lt.s32.totalorder %s30, 1
      %s459 = scalar_select %p458, %s30, 1
      %s460 = smul.addr %s459, 2
      %s461 = smul.addr %s460, 4
      %s462 = scalar_lea.vmem %s14, %s461
      %p463 = scmp.lt.s32.totalorder %s30, 1
      %s464 = scalar_select %p463, %s30, 1
      %s465 = smul.addr %s464, 120
      %s466 = smul.addr %s465, 4
      %s467 = scalar_lea.vmem %s0, %s466
      %p468 = scmp.lt.s32.totalorder %s30, 1
      %s469 = scalar_select %p468, %s30, 1
      %s470 = smul.addr %s469, 2
      %s471 = smul.addr %s470, 4
      %s472 = scalar_lea.vmem %s14, %s471
      %v474 = vld [vmem:[%s467] sm:$0xf]
      %v475 = vld [vmem:[%s467 + $0x4] sm:$0x1]
      %v476 = vld [vmem:[%s467 + $0x8] sm:$0xf]
      %v477 = vld [vmem:[%s467 + $0xc] sm:$0x1]
      %v478 = vld [vmem:[%s467 + $0x10] sm:$0xf]
      %v479 = vld [vmem:[%s467 + $0x14] sm:$0x1]
      %v480 = vld [vmem:[%s467 + $0x18] sm:$0xf]
      %v481 = vld [vmem:[%s467 + $0x1c] sm:$0x1]
      %v482 = vld [vmem:[%s467 + $0x20] sm:$0xf]
      %v483 = vld [vmem:[%s467 + $0x24] sm:$0x1]
      %v484 = vld [vmem:[%s467 + $0x28] sm:$0xf]
      %v485 = vld [vmem:[%s467 + $0x2c] sm:$0x1]
      %v486 = vld [vmem:[%s467 + $0x30] sm:$0xf]
      %v487 = vld [vmem:[%s467 + $0x34] sm:$0x1]
      %v488 = vld [vmem:[%s467 + $0x38] sm:$0xf]
      %v489 = vld [vmem:[%s467 + $0x3c] sm:$0x1]
      %v490 = vld [vmem:[%s467 + $0x40] sm:$0xf]
      %v491 = vld [vmem:[%s467 + $0x44] sm:$0x1]
      %v492 = vld [vmem:[%s467 + $0x48] sm:$0xf]
      %v493 = vld [vmem:[%s467 + $0x4c] sm:$0x1]
      %v494 = vld [vmem:[%s467 + $0x50] sm:$0xf]
      %v495 = vld [vmem:[%s467 + $0x54] sm:$0x1]
      %v496 = vld [vmem:[%s467 + $0x58] sm:$0xf]
      %v497 = vld [vmem:[%s467 + $0x5c] sm:$0x1]
      %v498 = vld [vmem:[%s467 + $0x60] sm:$0xf]
      %v499 = vld [vmem:[%s467 + $0x64] sm:$0x1]
      %v500 = vld [vmem:[%s467 + $0x68] sm:$0xf]
      %v501 = vld [vmem:[%s467 + $0x6c] sm:$0x1]
      %v502 = vld [vmem:[%s467 + $0x70] sm:$0xf]
      %v503 = vld [vmem:[%s467 + $0x74] sm:$0x1]
      %v504 = vld [vmem:[%s467 + $0x78] sm:$0xf]
      %v505 = vld [vmem:[%s467 + $0x7c] sm:$0x1]
      %v506 = vld [vmem:[%s467 + $0x80] sm:$0xf]
      %v507 = vld [vmem:[%s467 + $0x84] sm:$0x1]
      %v508 = vld [vmem:[%s467 + $0x88] sm:$0xf]
      %v509 = vld [vmem:[%s467 + $0x8c] sm:$0x1]
      %v510 = vld [vmem:[%s467 + $0x90] sm:$0xf]
      %v511 = vld [vmem:[%s467 + $0x94] sm:$0x1]
      %v512 = vld [vmem:[%s467 + $0x98] sm:$0xf]
      %v513 = vld [vmem:[%s467 + $0x9c] sm:$0x1]
      %v514 = vld [vmem:[%s467 + $0xa0] sm:$0xf]
      %v515 = vld [vmem:[%s467 + $0xa4] sm:$0x1]
      %v516 = vld [vmem:[%s467 + $0xa8] sm:$0xf]
      %v517 = vld [vmem:[%s467 + $0xac] sm:$0x1]
      %v518 = vld [vmem:[%s467 + $0xb0] sm:$0xf]
      %v519 = vld [vmem:[%s467 + $0xb4] sm:$0x1]
      %v520 = vld [vmem:[%s467 + $0xb8] sm:$0xf]
      %v521 = vld [vmem:[%s467 + $0xbc] sm:$0x1]
      %v522 = vld [vmem:[%s467 + $0xc0] sm:$0xf]
      %v523 = vld [vmem:[%s467 + $0xc4] sm:$0x1]
      %v524 = vld [vmem:[%s467 + $0xc8] sm:$0xf]
      %v525 = vld [vmem:[%s467 + $0xcc] sm:$0x1]
      %v526 = vld [vmem:[%s467 + $0xd0] sm:$0xf]
      %v527 = vld [vmem:[%s467 + $0xd4] sm:$0x1]
      %v528 = vld [vmem:[%s467 + $0xd8] sm:$0xf]
      %v529 = vld [vmem:[%s467 + $0xdc] sm:$0x1]
      %v530 = vld [vmem:[%s467 + $0xe0] sm:$0xf]
      %v531 = vld [vmem:[%s467 + $0xe4] sm:$0x1]
      %v532 = vld [vmem:[%s467 + $0xe8] sm:$0xf]
      %v533 = vld [vmem:[%s467 + $0xec] sm:$0x1]
      %v534 = vld [vmem:[%s467 + $0xf0] sm:$0xf]
      %v535 = vld [vmem:[%s467 + $0xf4] sm:$0x1]
      %v536 = vld [vmem:[%s467 + $0xf8] sm:$0xf]
      %v537 = vld [vmem:[%s467 + $0xfc] sm:$0x1]
      %v538 = vld [vmem:[%s467 + $0x100] sm:$0xf]
      %v539 = vld [vmem:[%s467 + $0x104] sm:$0x1]
      %v540 = vld [vmem:[%s467 + $0x108] sm:$0xf]
      %v541 = vld [vmem:[%s467 + $0x10c] sm:$0x1]
      %v542 = vld [vmem:[%s467 + $0x110] sm:$0xf]
      %v543 = vld [vmem:[%s467 + $0x114] sm:$0x1]
      %v544 = vld [vmem:[%s467 + $0x118] sm:$0xf]
      %v545 = vld [vmem:[%s467 + $0x11c] sm:$0x1]
      %v546 = vld [vmem:[%s467 + $0x120] sm:$0xf]
      %v547 = vld [vmem:[%s467 + $0x124] sm:$0x1]
      %v548 = vld [vmem:[%s467 + $0x128] sm:$0xf]
      %v549 = vld [vmem:[%s467 + $0x12c] sm:$0x1]
      %v550 = vld [vmem:[%s467 + $0x130] sm:$0xf]
      %v551 = vld [vmem:[%s467 + $0x134] sm:$0x1]
      %v552 = vld [vmem:[%s467 + $0x138] sm:$0xf]
      %v553 = vld [vmem:[%s467 + $0x13c] sm:$0x1]
      %v554 = vld [vmem:[%s467 + $0x140] sm:$0xf]
      %v555 = vld [vmem:[%s467 + $0x144] sm:$0x1]
      %v556 = vld [vmem:[%s467 + $0x148] sm:$0xf]
      %v557 = vld [vmem:[%s467 + $0x14c] sm:$0x1]
      %v558 = vld [vmem:[%s467 + $0x150] sm:$0xf]
      %v559 = vld [vmem:[%s467 + $0x154] sm:$0x1]
      %v560 = vld [vmem:[%s467 + $0x158] sm:$0xf]
      %v561 = vld [vmem:[%s467 + $0x15c] sm:$0x1]
      %v562 = vld [vmem:[%s467 + $0x160] sm:$0xf]
      %v563 = vld [vmem:[%s467 + $0x164] sm:$0x1]
      %v564 = vld [vmem:[%s467 + $0x168] sm:$0xf]
      %v565 = vld [vmem:[%s467 + $0x16c] sm:$0x1]
      %v566 = vld [vmem:[%s467 + $0x170] sm:$0xf]
      %v567 = vld [vmem:[%s467 + $0x174] sm:$0x1]
      %v568 = vld [vmem:[%s467 + $0x178] sm:$0xf]
      %v569 = vld [vmem:[%s467 + $0x17c] sm:$0x1]
      %v570 = vld [vmem:[%s467 + $0x180] sm:$0xf]
      %v571 = vld [vmem:[%s467 + $0x184] sm:$0x1]
      %v572 = vld [vmem:[%s467 + $0x188] sm:$0xf]
      %v573 = vld [vmem:[%s467 + $0x18c] sm:$0x1]
      %v574 = vld [vmem:[%s467 + $0x190] sm:$0xf]
      %v575 = vld [vmem:[%s467 + $0x194] sm:$0x1]
      %v576 = vld [vmem:[%s467 + $0x198] sm:$0xf]
      %v577 = vld [vmem:[%s467 + $0x19c] sm:$0x1]
      %v578 = vld [vmem:[%s467 + $0x1a0] sm:$0xf]
      %v579 = vld [vmem:[%s467 + $0x1a4] sm:$0x1]
      %v580 = vld [vmem:[%s467 + $0x1a8] sm:$0xf]
      %v581 = vld [vmem:[%s467 + $0x1ac] sm:$0x1]
      %v582 = vld [vmem:[%s467 + $0x1b0] sm:$0xf]
      %v583 = vld [vmem:[%s467 + $0x1b4] sm:$0x1]
      %v584 = vld [vmem:[%s467 + $0x1b8] sm:$0xf]
      %v585 = vld [vmem:[%s467 + $0x1bc] sm:$0x1]
      %v586 = vld [vmem:[%s467 + $0x1c0] sm:$0xf]
      %v587 = vld [vmem:[%s467 + $0x1c4] sm:$0x1]
      %v588 = vld [vmem:[%s467 + $0x1c8] sm:$0xf]
      %v589 = vld [vmem:[%s467 + $0x1cc] sm:$0x1]
      %v590 = vld [vmem:[%s467 + $0x1d0] sm:$0xf]
      %v591 = vld [vmem:[%s467 + $0x1d4] sm:$0x1]
      %v592 = vld [vmem:[%s467 + $0x1d8] sm:$0xf]
      %v593 = vld [vmem:[%s467 + $0x1dc] sm:$0x1]
      %v594 = vunpack.c.l.bf16 %v474
      %v595 = vunpack.c.l.bf16 %v475
      %v596 = vunpack.c.l.bf16 %v476
      %v597 = vunpack.c.l.bf16 %v477
      %v598 = vunpack.c.l.bf16 %v478
      %v599 = vunpack.c.l.bf16 %v479
      %v600 = vunpack.c.l.bf16 %v480
      %v601 = vunpack.c.l.bf16 %v481
      %v602 = vunpack.c.l.bf16 %v482
      %v603 = vunpack.c.l.bf16 %v483
      %v604 = vunpack.c.l.bf16 %v484
      %v605 = vunpack.c.l.bf16 %v485
      %v606 = vunpack.c.l.bf16 %v486
      %v607 = vunpack.c.l.bf16 %v487
      %v608 = vunpack.c.l.bf16 %v488
      %v609 = vunpack.c.l.bf16 %v489
      %v610 = vunpack.c.l.bf16 %v490
      %v611 = vunpack.c.l.bf16 %v491
      %v612 = vunpack.c.l.bf16 %v492
      %v613 = vunpack.c.l.bf16 %v493
      %v614 = vunpack.c.l.bf16 %v494
      %v615 = vunpack.c.l.bf16 %v495
      %v616 = vunpack.c.l.bf16 %v496
      %v617 = vunpack.c.l.bf16 %v497
      %v618 = vunpack.c.l.bf16 %v498
      %v619 = vunpack.c.l.bf16 %v499
      %v620 = vunpack.c.l.bf16 %v500
      %v621 = vunpack.c.l.bf16 %v501
      %v622 = vunpack.c.l.bf16 %v502
      %v623 = vunpack.c.l.bf16 %v503
      %v624 = vunpack.c.l.bf16 %v504
      %v625 = vunpack.c.l.bf16 %v505
      %v626 = vunpack.c.l.bf16 %v506
      %v627 = vunpack.c.l.bf16 %v507
      %v628 = vunpack.c.l.bf16 %v508
      %v629 = vunpack.c.l.bf16 %v509
      %v630 = vunpack.c.l.bf16 %v510
      %v631 = vunpack.c.l.bf16 %v511
      %v632 = vunpack.c.l.bf16 %v512
      %v633 = vunpack.c.l.bf16 %v513
      %v634 = vunpack.c.l.bf16 %v514
      %v635 = vunpack.c.l.bf16 %v515
      %v636 = vunpack.c.l.bf16 %v516
      %v637 = vunpack.c.l.bf16 %v517
      %v638 = vunpack.c.l.bf16 %v518
      %v639 = vunpack.c.l.bf16 %v519
      %v640 = vunpack.c.l.bf16 %v520
      %v641 = vunpack.c.l.bf16 %v521
      %v642 = vunpack.c.l.bf16 %v522
      %v643 = vunpack.c.l.bf16 %v523
      %v644 = vunpack.c.l.bf16 %v524
      %v645 = vunpack.c.l.bf16 %v525
      %v646 = vunpack.c.l.bf16 %v526
      %v647 = vunpack.c.l.bf16 %v527
      %v648 = vunpack.c.l.bf16 %v528
      %v649 = vunpack.c.l.bf16 %v529
      %v650 = vunpack.c.l.bf16 %v530
      %v651 = vunpack.c.l.bf16 %v531
      %v652 = vunpack.c.l.bf16 %v532
      %v653 = vunpack.c.l.bf16 %v533
      %v654 = vunpack.c.l.bf16 %v534
      %v655 = vunpack.c.l.bf16 %v535
      %v656 = vunpack.c.l.bf16 %v536
      %v657 = vunpack.c.l.bf16 %v537
      %v658 = vunpack.c.l.bf16 %v538
      %v659 = vunpack.c.l.bf16 %v539
      %v660 = vunpack.c.l.bf16 %v540
      %v661 = vunpack.c.l.bf16 %v541
      %v662 = vunpack.c.l.bf16 %v542
      %v663 = vunpack.c.l.bf16 %v543
      %v664 = vunpack.c.l.bf16 %v544
      %v665 = vunpack.c.l.bf16 %v545
      %v666 = vunpack.c.l.bf16 %v546
      %v667 = vunpack.c.l.bf16 %v547
      %v668 = vunpack.c.l.bf16 %v548
      %v669 = vunpack.c.l.bf16 %v549
      %v670 = vunpack.c.l.bf16 %v550
      %v671 = vunpack.c.l.bf16 %v551
      %v672 = vunpack.c.l.bf16 %v552
      %v673 = vunpack.c.l.bf16 %v553
      %v674 = vunpack.c.l.bf16 %v554
      %v675 = vunpack.c.l.bf16 %v555
      %v676 = vunpack.c.l.bf16 %v556
      %v677 = vunpack.c.l.bf16 %v557
      %v678 = vunpack.c.l.bf16 %v558
      %v679 = vunpack.c.l.bf16 %v559
      %v680 = vunpack.c.l.bf16 %v560
      %v681 = vunpack.c.l.bf16 %v561
      %v682 = vunpack.c.l.bf16 %v562
      %v683 = vunpack.c.l.bf16 %v563
      %v684 = vunpack.c.l.bf16 %v564
      %v685 = vunpack.c.l.bf16 %v565
      %v686 = vunpack.c.l.bf16 %v566
      %v687 = vunpack.c.l.bf16 %v567
      %v688 = vunpack.c.l.bf16 %v568
      %v689 = vunpack.c.l.bf16 %v569
      %v690 = vunpack.c.l.bf16 %v570
      %v691 = vunpack.c.l.bf16 %v571
      %v692 = vunpack.c.l.bf16 %v572
      %v693 = vunpack.c.l.bf16 %v573
      %v694 = vunpack.c.l.bf16 %v574
      %v695 = vunpack.c.l.bf16 %v575
      %v696 = vunpack.c.l.bf16 %v576
      %v697 = vunpack.c.l.bf16 %v577
      %v698 = vunpack.c.l.bf16 %v578
      %v699 = vunpack.c.l.bf16 %v579
      %v700 = vunpack.c.l.bf16 %v580
      %v701 = vunpack.c.l.bf16 %v581
      %v702 = vunpack.c.l.bf16 %v582
      %v703 = vunpack.c.l.bf16 %v583
      %v704 = vunpack.c.l.bf16 %v584
      %v705 = vunpack.c.l.bf16 %v585
      %v706 = vunpack.c.l.bf16 %v586
      %v707 = vunpack.c.l.bf16 %v587
      %v708 = vunpack.c.l.bf16 %v588
      %v709 = vunpack.c.l.bf16 %v589
      %v710 = vunpack.c.l.bf16 %v590
      %v711 = vunpack.c.l.bf16 %v591
      %v712 = vunpack.c.l.bf16 %v592
      %v713 = vunpack.c.l.bf16 %v593
      %vm834 = vcmask 1046528
      %v835 = vrot.slane %v594, 1
      %v836 = vrot.slane %v595, 1
      %v837 = vsel %vm834, %v835, %v836
      %v838 = vrot.slane %v596, 1
      %v839 = vrot.slane %v597, 1
      %v840 = vsel %vm834, %v838, %v839
      %v841 = vrot.slane %v598, 1
      %v842 = vrot.slane %v599, 1
      %v843 = vsel %vm834, %v841, %v842
      %v844 = vrot.slane %v600, 1
      %v845 = vrot.slane %v601, 1
      %v846 = vsel %vm834, %v844, %v845
      %v847 = vrot.slane %v602, 1
      %v848 = vrot.slane %v603, 1
      %v849 = vsel %vm834, %v847, %v848
      %v850 = vrot.slane %v604, 1
      %v851 = vrot.slane %v605, 1
      %v852 = vsel %vm834, %v850, %v851
      %v853 = vrot.slane %v606, 1
      %v854 = vrot.slane %v607, 1
      %v855 = vsel %vm834, %v853, %v854
      %v856 = vrot.slane %v608, 1
      %v857 = vrot.slane %v609, 1
      %v858 = vsel %vm834, %v856, %v857
      %v859 = vrot.slane %v610, 1
      %v860 = vrot.slane %v611, 1
      %v861 = vsel %vm834, %v859, %v860
      %v862 = vrot.slane %v612, 1
      %v863 = vrot.slane %v613, 1
      %v864 = vsel %vm834, %v862, %v863
      %v865 = vrot.slane %v614, 1
      %v866 = vrot.slane %v615, 1
      %v867 = vsel %vm834, %v865, %v866
      %v868 = vrot.slane %v616, 1
      %v869 = vrot.slane %v617, 1
      %v870 = vsel %vm834, %v868, %v869
      %v871 = vrot.slane %v618, 1
      %v872 = vrot.slane %v619, 1
      %v873 = vsel %vm834, %v871, %v872
      %v874 = vrot.slane %v620, 1
      %v875 = vrot.slane %v621, 1
      %v876 = vsel %vm834, %v874, %v875
      %v877 = vrot.slane %v622, 1
      %v878 = vrot.slane %v623, 1
      %v879 = vsel %vm834, %v877, %v878
      %v880 = vrot.slane %v624, 1
      %v881 = vrot.slane %v625, 1
      %v882 = vsel %vm834, %v880, %v881
      %v883 = vrot.slane %v626, 1
      %v884 = vrot.slane %v627, 1
      %v885 = vsel %vm834, %v883, %v884
      %v886 = vrot.slane %v628, 1
      %v887 = vrot.slane %v629, 1
      %v888 = vsel %vm834, %v886, %v887
      %v889 = vrot.slane %v630, 1
      %v890 = vrot.slane %v631, 1
      %v891 = vsel %vm834, %v889, %v890
      %v892 = vrot.slane %v632, 1
      %v893 = vrot.slane %v633, 1
      %v894 = vsel %vm834, %v892, %v893
      %v895 = vrot.slane %v634, 1
      %v896 = vrot.slane %v635, 1
      %v897 = vsel %vm834, %v895, %v896
      %v898 = vrot.slane %v636, 1
      %v899 = vrot.slane %v637, 1
      %v900 = vsel %vm834, %v898, %v899
      %v901 = vrot.slane %v638, 1
      %v902 = vrot.slane %v639, 1
      %v903 = vsel %vm834, %v901, %v902
      %v904 = vrot.slane %v640, 1
      %v905 = vrot.slane %v641, 1
      %v906 = vsel %vm834, %v904, %v905
      %v907 = vrot.slane %v642, 1
      %v908 = vrot.slane %v643, 1
      %v909 = vsel %vm834, %v907, %v908
      %v910 = vrot.slane %v644, 1
      %v911 = vrot.slane %v645, 1
      %v912 = vsel %vm834, %v910, %v911
      %v913 = vrot.slane %v646, 1
      %v914 = vrot.slane %v647, 1
      %v915 = vsel %vm834, %v913, %v914
      %v916 = vrot.slane %v648, 1
      %v917 = vrot.slane %v649, 1
      %v918 = vsel %vm834, %v916, %v917
      %v919 = vrot.slane %v650, 1
      %v920 = vrot.slane %v651, 1
      %v921 = vsel %vm834, %v919, %v920
      %v922 = vrot.slane %v652, 1
      %v923 = vrot.slane %v653, 1
      %v924 = vsel %vm834, %v922, %v923
      %v925 = vrot.slane %v654, 1
      %v926 = vrot.slane %v655, 1
      %v927 = vsel %vm834, %v925, %v926
      %v928 = vrot.slane %v656, 1
      %v929 = vrot.slane %v657, 1
      %v930 = vsel %vm834, %v928, %v929
      %v931 = vrot.slane %v658, 1
      %v932 = vrot.slane %v659, 1
      %v933 = vsel %vm834, %v931, %v932
      %v934 = vrot.slane %v660, 1
      %v935 = vrot.slane %v661, 1
      %v936 = vsel %vm834, %v934, %v935
      %v937 = vrot.slane %v662, 1
      %v938 = vrot.slane %v663, 1
      %v939 = vsel %vm834, %v937, %v938
      %v940 = vrot.slane %v664, 1
      %v941 = vrot.slane %v665, 1
      %v942 = vsel %vm834, %v940, %v941
      %v943 = vrot.slane %v666, 1
      %v944 = vrot.slane %v667, 1
      %v945 = vsel %vm834, %v943, %v944
      %v946 = vrot.slane %v668, 1
      %v947 = vrot.slane %v669, 1
      %v948 = vsel %vm834, %v946, %v947
      %v949 = vrot.slane %v670, 1
      %v950 = vrot.slane %v671, 1
      %v951 = vsel %vm834, %v949, %v950
      %v952 = vrot.slane %v672, 1
      %v953 = vrot.slane %v673, 1
      %v954 = vsel %vm834, %v952, %v953
      %v955 = vrot.slane %v674, 1
      %v956 = vrot.slane %v675, 1
      %v957 = vsel %vm834, %v955, %v956
      %v958 = vrot.slane %v676, 1
      %v959 = vrot.slane %v677, 1
      %v960 = vsel %vm834, %v958, %v959
      %v961 = vrot.slane %v678, 1
      %v962 = vrot.slane %v679, 1
      %v963 = vsel %vm834, %v961, %v962
      %v964 = vrot.slane %v680, 1
      %v965 = vrot.slane %v681, 1
      %v966 = vsel %vm834, %v964, %v965
      %v967 = vrot.slane %v682, 1
      %v968 = vrot.slane %v683, 1
      %v969 = vsel %vm834, %v967, %v968
      %v970 = vrot.slane %v684, 1
      %v971 = vrot.slane %v685, 1
      %v972 = vsel %vm834, %v970, %v971
      %v973 = vrot.slane %v686, 1
      %v974 = vrot.slane %v687, 1
      %v975 = vsel %vm834, %v973, %v974
      %v976 = vrot.slane %v688, 1
      %v977 = vrot.slane %v689, 1
      %v978 = vsel %vm834, %v976, %v977
      %v979 = vrot.slane %v690, 1
      %v980 = vrot.slane %v691, 1
      %v981 = vsel %vm834, %v979, %v980
      %v982 = vrot.slane %v692, 1
      %v983 = vrot.slane %v693, 1
      %v984 = vsel %vm834, %v982, %v983
      %v985 = vrot.slane %v694, 1
      %v986 = vrot.slane %v695, 1
      %v987 = vsel %vm834, %v985, %v986
      %v988 = vrot.slane %v696, 1
      %v989 = vrot.slane %v697, 1
      %v990 = vsel %vm834, %v988, %v989
      %v991 = vrot.slane %v698, 1
      %v992 = vrot.slane %v699, 1
      %v993 = vsel %vm834, %v991, %v992
      %v994 = vrot.slane %v700, 1
      %v995 = vrot.slane %v701, 1
      %v996 = vsel %vm834, %v994, %v995
      %v997 = vrot.slane %v702, 1
      %v998 = vrot.slane %v703, 1
      %v999 = vsel %vm834, %v997, %v998
      %v1000 = vrot.slane %v704, 1
      %v1001 = vrot.slane %v705, 1
      %v1002 = vsel %vm834, %v1000, %v1001
      %v1003 = vrot.slane %v706, 1
      %v1004 = vrot.slane %v707, 1
      %v1005 = vsel %vm834, %v1003, %v1004
      %v1006 = vrot.slane %v708, 1
      %v1007 = vrot.slane %v709, 1
      %v1008 = vsel %vm834, %v1006, %v1007
      %v1009 = vrot.slane %v710, 1
      %v1010 = vrot.slane %v711, 1
      %v1011 = vsel %vm834, %v1009, %v1010
      %v1012 = vrot.slane %v712, 1
      %v1013 = vrot.slane %v713, 1
      %v1014 = vsel %vm834, %v1012, %v1013
      %vm1075 = vcmask 1045504
      %v1076 = vrot.slane %v594, 2
      %v1077 = vrot.slane %v595, 2
      %v1078 = vsel %vm1075, %v1076, %v1077
      %v1079 = vrot.slane %v596, 2
      %v1080 = vrot.slane %v597, 2
      %v1081 = vsel %vm1075, %v1079, %v1080
      %v1082 = vrot.slane %v598, 2
      %v1083 = vrot.slane %v599, 2
      %v1084 = vsel %vm1075, %v1082, %v1083
      %v1085 = vrot.slane %v600, 2
      %v1086 = vrot.slane %v601, 2
      %v1087 = vsel %vm1075, %v1085, %v1086
      %v1088 = vrot.slane %v602, 2
      %v1089 = vrot.slane %v603, 2
      %v1090 = vsel %vm1075, %v1088, %v1089
      %v1091 = vrot.slane %v604, 2
      %v1092 = vrot.slane %v605, 2
      %v1093 = vsel %vm1075, %v1091, %v1092
      %v1094 = vrot.slane %v606, 2
      %v1095 = vrot.slane %v607, 2
      %v1096 = vsel %vm1075, %v1094, %v1095
      %v1097 = vrot.slane %v608, 2
      %v1098 = vrot.slane %v609, 2
      %v1099 = vsel %vm1075, %v1097, %v1098
      %v1100 = vrot.slane %v610, 2
      %v1101 = vrot.slane %v611, 2
      %v1102 = vsel %vm1075, %v1100, %v1101
      %v1103 = vrot.slane %v612, 2
      %v1104 = vrot.slane %v613, 2
      %v1105 = vsel %vm1075, %v1103, %v1104
      %v1106 = vrot.slane %v614, 2
      %v1107 = vrot.slane %v615, 2
      %v1108 = vsel %vm1075, %v1106, %v1107
      %v1109 = vrot.slane %v616, 2
      %v1110 = vrot.slane %v617, 2
      %v1111 = vsel %vm1075, %v1109, %v1110
      %v1112 = vrot.slane %v618, 2
      %v1113 = vrot.slane %v619, 2
      %v1114 = vsel %vm1075, %v1112, %v1113
      %v1115 = vrot.slane %v620, 2
      %v1116 = vrot.slane %v621, 2
      %v1117 = vsel %vm1075, %v1115, %v1116
      %v1118 = vrot.slane %v622, 2
      %v1119 = vrot.slane %v623, 2
      %v1120 = vsel %vm1075, %v1118, %v1119
      %v1121 = vrot.slane %v624, 2
      %v1122 = vrot.slane %v625, 2
      %v1123 = vsel %vm1075, %v1121, %v1122
      %v1124 = vrot.slane %v626, 2
      %v1125 = vrot.slane %v627, 2
      %v1126 = vsel %vm1075, %v1124, %v1125
      %v1127 = vrot.slane %v628, 2
      %v1128 = vrot.slane %v629, 2
      %v1129 = vsel %vm1075, %v1127, %v1128
      %v1130 = vrot.slane %v630, 2
      %v1131 = vrot.slane %v631, 2
      %v1132 = vsel %vm1075, %v1130, %v1131
      %v1133 = vrot.slane %v632, 2
      %v1134 = vrot.slane %v633, 2
      %v1135 = vsel %vm1075, %v1133, %v1134
      %v1136 = vrot.slane %v634, 2
      %v1137 = vrot.slane %v635, 2
      %v1138 = vsel %vm1075, %v1136, %v1137
      %v1139 = vrot.slane %v636, 2
      %v1140 = vrot.slane %v637, 2
      %v1141 = vsel %vm1075, %v1139, %v1140
      %v1142 = vrot.slane %v638, 2
      %v1143 = vrot.slane %v639, 2
      %v1144 = vsel %vm1075, %v1142, %v1143
      %v1145 = vrot.slane %v640, 2
      %v1146 = vrot.slane %v641, 2
      %v1147 = vsel %vm1075, %v1145, %v1146
      %v1148 = vrot.slane %v642, 2
      %v1149 = vrot.slane %v643, 2
      %v1150 = vsel %vm1075, %v1148, %v1149
      %v1151 = vrot.slane %v644, 2
      %v1152 = vrot.slane %v645, 2
      %v1153 = vsel %vm1075, %v1151, %v1152
      %v1154 = vrot.slane %v646, 2
      %v1155 = vrot.slane %v647, 2
      %v1156 = vsel %vm1075, %v1154, %v1155
      %v1157 = vrot.slane %v648, 2
      %v1158 = vrot.slane %v649, 2
      %v1159 = vsel %vm1075, %v1157, %v1158
      %v1160 = vrot.slane %v650, 2
      %v1161 = vrot.slane %v651, 2
      %v1162 = vsel %vm1075, %v1160, %v1161
      %v1163 = vrot.slane %v652, 2
      %v1164 = vrot.slane %v653, 2
      %v1165 = vsel %vm1075, %v1163, %v1164
      %v1166 = vrot.slane %v654, 2
      %v1167 = vrot.slane %v655, 2
      %v1168 = vsel %vm1075, %v1166, %v1167
      %v1169 = vrot.slane %v656, 2
      %v1170 = vrot.slane %v657, 2
      %v1171 = vsel %vm1075, %v1169, %v1170
      %v1172 = vrot.slane %v658, 2
      %v1173 = vrot.slane %v659, 2
      %v1174 = vsel %vm1075, %v1172, %v1173
      %v1175 = vrot.slane %v660, 2
      %v1176 = vrot.slane %v661, 2
      %v1177 = vsel %vm1075, %v1175, %v1176
      %v1178 = vrot.slane %v662, 2
      %v1179 = vrot.slane %v663, 2
      %v1180 = vsel %vm1075, %v1178, %v1179
      %v1181 = vrot.slane %v664, 2
      %v1182 = vrot.slane %v665, 2
      %v1183 = vsel %vm1075, %v1181, %v1182
      %v1184 = vrot.slane %v666, 2
      %v1185 = vrot.slane %v667, 2
      %v1186 = vsel %vm1075, %v1184, %v1185
      %v1187 = vrot.slane %v668, 2
      %v1188 = vrot.slane %v669, 2
      %v1189 = vsel %vm1075, %v1187, %v1188
      %v1190 = vrot.slane %v670, 2
      %v1191 = vrot.slane %v671, 2
      %v1192 = vsel %vm1075, %v1190, %v1191
      %v1193 = vrot.slane %v672, 2
      %v1194 = vrot.slane %v673, 2
      %v1195 = vsel %vm1075, %v1193, %v1194
      %v1196 = vrot.slane %v674, 2
      %v1197 = vrot.slane %v675, 2
      %v1198 = vsel %vm1075, %v1196, %v1197
      %v1199 = vrot.slane %v676, 2
      %v1200 = vrot.slane %v677, 2
      %v1201 = vsel %vm1075, %v1199, %v1200
      %v1202 = vrot.slane %v678, 2
      %v1203 = vrot.slane %v679, 2
      %v1204 = vsel %vm1075, %v1202, %v1203
      %v1205 = vrot.slane %v680, 2
      %v1206 = vrot.slane %v681, 2
      %v1207 = vsel %vm1075, %v1205, %v1206
      %v1208 = vrot.slane %v682, 2
      %v1209 = vrot.slane %v683, 2
      %v1210 = vsel %vm1075, %v1208, %v1209
      %v1211 = vrot.slane %v684, 2
      %v1212 = vrot.slane %v685, 2
      %v1213 = vsel %vm1075, %v1211, %v1212
      %v1214 = vrot.slane %v686, 2
      %v1215 = vrot.slane %v687, 2
      %v1216 = vsel %vm1075, %v1214, %v1215
      %v1217 = vrot.slane %v688, 2
      %v1218 = vrot.slane %v689, 2
      %v1219 = vsel %vm1075, %v1217, %v1218
      %v1220 = vrot.slane %v690, 2
      %v1221 = vrot.slane %v691, 2
      %v1222 = vsel %vm1075, %v1220, %v1221
      %v1223 = vrot.slane %v692, 2
      %v1224 = vrot.slane %v693, 2
      %v1225 = vsel %vm1075, %v1223, %v1224
      %v1226 = vrot.slane %v694, 2
      %v1227 = vrot.slane %v695, 2
      %v1228 = vsel %vm1075, %v1226, %v1227
      %v1229 = vrot.slane %v696, 2
      %v1230 = vrot.slane %v697, 2
      %v1231 = vsel %vm1075, %v1229, %v1230
      %v1232 = vrot.slane %v698, 2
      %v1233 = vrot.slane %v699, 2
      %v1234 = vsel %vm1075, %v1232, %v1233
      %v1235 = vrot.slane %v700, 2
      %v1236 = vrot.slane %v701, 2
      %v1237 = vsel %vm1075, %v1235, %v1236
      %v1238 = vrot.slane %v702, 2
      %v1239 = vrot.slane %v703, 2
      %v1240 = vsel %vm1075, %v1238, %v1239
      %v1241 = vrot.slane %v704, 2
      %v1242 = vrot.slane %v705, 2
      %v1243 = vsel %vm1075, %v1241, %v1242
      %v1244 = vrot.slane %v706, 2
      %v1245 = vrot.slane %v707, 2
      %v1246 = vsel %vm1075, %v1244, %v1245
      %v1247 = vrot.slane %v708, 2
      %v1248 = vrot.slane %v709, 2
      %v1249 = vsel %vm1075, %v1247, %v1248
      %v1250 = vrot.slane %v710, 2
      %v1251 = vrot.slane %v711, 2
      %v1252 = vsel %vm1075, %v1250, %v1251
      %v1253 = vrot.slane %v712, 2
      %v1254 = vrot.slane %v713, 2
      %v1255 = vsel %vm1075, %v1253, %v1254
      %v1316 = vpack.c.bf16 %v837, %v594
      %v1317 = vpack.c.bf16 %v1078, %v1078
      %v1318 = vpack.c.bf16 %v840, %v596
      %v1319 = vpack.c.bf16 %v1081, %v1081
      %v1320 = vpack.c.bf16 %v843, %v598
      %v1321 = vpack.c.bf16 %v1084, %v1084
      %v1322 = vpack.c.bf16 %v846, %v600
      %v1323 = vpack.c.bf16 %v1087, %v1087
      %v1324 = vpack.c.bf16 %v849, %v602
      %v1325 = vpack.c.bf16 %v1090, %v1090
      %v1326 = vpack.c.bf16 %v852, %v604
      %v1327 = vpack.c.bf16 %v1093, %v1093
      %v1328 = vpack.c.bf16 %v855, %v606
      %v1329 = vpack.c.bf16 %v1096, %v1096
      %v1330 = vpack.c.bf16 %v858, %v608
      %v1331 = vpack.c.bf16 %v1099, %v1099
      %v1332 = vpack.c.bf16 %v867, %v614
      %v1333 = vpack.c.bf16 %v1108, %v1108
      %v1334 = vpack.c.bf16 %v870, %v616
      %v1335 = vpack.c.bf16 %v1111, %v1111
      %v1336 = vpack.c.bf16 %v873, %v618
      %v1337 = vpack.c.bf16 %v1114, %v1114
      %v1338 = vpack.c.bf16 %v876, %v620
      %v1339 = vpack.c.bf16 %v1117, %v1117
      %v1340 = vpack.c.bf16 %v879, %v622
      %v1341 = vpack.c.bf16 %v1120, %v1120
      %v1342 = vpack.c.bf16 %v882, %v624
      %v1343 = vpack.c.bf16 %v1123, %v1123
      %v1344 = vpack.c.bf16 %v885, %v626
      %v1345 = vpack.c.bf16 %v1126, %v1126
      %v1346 = vpack.c.bf16 %v888, %v628
      %v1347 = vpack.c.bf16 %v1129, %v1129
      %v1348 = vpack.c.bf16 %v897, %v634
      %v1349 = vpack.c.bf16 %v1138, %v1138
      %v1350 = vpack.c.bf16 %v900, %v636
      %v1351 = vpack.c.bf16 %v1141, %v1141
      %v1352 = vpack.c.bf16 %v903, %v638
      %v1353 = vpack.c.bf16 %v1144, %v1144
      %v1354 = vpack.c.bf16 %v906, %v640
      %v1355 = vpack.c.bf16 %v1147, %v1147
      %v1356 = vpack.c.bf16 %v909, %v642
      %v1357 = vpack.c.bf16 %v1150, %v1150
      %v1358 = vpack.c.bf16 %v912, %v644
      %v1359 = vpack.c.bf16 %v1153, %v1153
      %v1360 = vpack.c.bf16 %v915, %v646
      %v1361 = vpack.c.bf16 %v1156, %v1156
      %v1362 = vpack.c.bf16 %v918, %v648
      %v1363 = vpack.c.bf16 %v1159, %v1159
      %v1364 = vpack.c.bf16 %v927, %v654
      %v1365 = vpack.c.bf16 %v1168, %v1168
      %v1366 = vpack.c.bf16 %v930, %v656
      %v1367 = vpack.c.bf16 %v1171, %v1171
      %v1368 = vpack.c.bf16 %v933, %v658
      %v1369 = vpack.c.bf16 %v1174, %v1174
      %v1370 = vpack.c.bf16 %v936, %v660
      %v1371 = vpack.c.bf16 %v1177, %v1177
      %v1372 = vpack.c.bf16 %v939, %v662
      %v1373 = vpack.c.bf16 %v1180, %v1180
      %v1374 = vpack.c.bf16 %v942, %v664
      %v1375 = vpack.c.bf16 %v1183, %v1183
      %v1376 = vpack.c.bf16 %v945, %v666
      %v1377 = vpack.c.bf16 %v1186, %v1186
      %v1378 = vpack.c.bf16 %v948, %v668
      %v1379 = vpack.c.bf16 %v1189, %v1189
      %v1380 = vpack.c.bf16 %v861, %v610
      %v1381 = vpack.c.bf16 %v1102, %v1102
      %v1382 = vpack.c.bf16 %v891, %v630
      %v1383 = vpack.c.bf16 %v1132, %v1132
      %v1384 = vpack.c.bf16 %v921, %v650
      %v1385 = vpack.c.bf16 %v1162, %v1162
      %v1386 = vpack.c.bf16 %v951, %v670
      %v1387 = vpack.c.bf16 %v1192, %v1192
      %v1388 = vpack.c.bf16 %v864, %v612
      %v1389 = vpack.c.bf16 %v1105, %v1105
      %v1390 = vpack.c.bf16 %v894, %v632
      %v1391 = vpack.c.bf16 %v1135, %v1135
      %v1392 = vpack.c.bf16 %v924, %v652
      %v1393 = vpack.c.bf16 %v1165, %v1165
      %v1394 = vpack.c.bf16 %v954, %v672
      %v1395 = vpack.c.bf16 %v1195, %v1195
      %v1396 = vpack.c.bf16 %v957, %v674
      %v1397 = vpack.c.bf16 %v1198, %v1198
      %v1398 = vpack.c.bf16 %v960, %v676
      %v1399 = vpack.c.bf16 %v1201, %v1201
      %v1400 = vpack.c.bf16 %v963, %v678
      %v1401 = vpack.c.bf16 %v1204, %v1204
      %v1402 = vpack.c.bf16 %v966, %v680
      %v1403 = vpack.c.bf16 %v1207, %v1207
      %v1404 = vpack.c.bf16 %v969, %v682
      %v1405 = vpack.c.bf16 %v1210, %v1210
      %v1406 = vpack.c.bf16 %v972, %v684
      %v1407 = vpack.c.bf16 %v1213, %v1213
      %v1408 = vpack.c.bf16 %v975, %v686
      %v1409 = vpack.c.bf16 %v1216, %v1216
      %v1410 = vpack.c.bf16 %v978, %v688
      %v1411 = vpack.c.bf16 %v1219, %v1219
      %v1412 = vpack.c.bf16 %v981, %v690
      %v1413 = vpack.c.bf16 %v1222, %v1222
      %v1414 = vpack.c.bf16 %v984, %v692
      %v1415 = vpack.c.bf16 %v1225, %v1225
      %v1416 = vpack.c.bf16 %v987, %v694
      %v1417 = vpack.c.bf16 %v1228, %v1228
      %v1418 = vpack.c.bf16 %v990, %v696
      %v1419 = vpack.c.bf16 %v1231, %v1231
      %v1420 = vpack.c.bf16 %v993, %v698
      %v1421 = vpack.c.bf16 %v1234, %v1234
      %v1422 = vpack.c.bf16 %v996, %v700
      %v1423 = vpack.c.bf16 %v1237, %v1237
      %v1424 = vpack.c.bf16 %v999, %v702
      %v1425 = vpack.c.bf16 %v1240, %v1240
      %v1426 = vpack.c.bf16 %v1002, %v704
      %v1427 = vpack.c.bf16 %v1243, %v1243
      %v1428 = vpack.c.bf16 %v1005, %v706
      %v1429 = vpack.c.bf16 %v1246, %v1246
      %v1430 = vpack.c.bf16 %v1008, %v708
      %v1431 = vpack.c.bf16 %v1249, %v1249
      %v1432 = vpack.c.bf16 %v1011, %v710
      %v1433 = vpack.c.bf16 %v1252, %v1252
      %v1434 = vpack.c.bf16 %v1014, %v712
      %v1435 = vpack.c.bf16 %v1255, %v1255
      %v1500 = vunpack.c.l.b16 %v1316
      %v1501 = vunpack.c.h.b16 %v1316
      %v1502 = vunpack.c.l.b16 %v1317
      %v1503 = vunpack.c.l.b16 %v1318
      %v1504 = vunpack.c.h.b16 %v1318
      %v1505 = vunpack.c.l.b16 %v1319
      %v1506 = vunpack.c.l.b16 %v1320
      %v1507 = vunpack.c.h.b16 %v1320
      %v1508 = vunpack.c.l.b16 %v1321
      %v1509 = vunpack.c.l.b16 %v1322
      %v1510 = vunpack.c.h.b16 %v1322
      %v1511 = vunpack.c.l.b16 %v1323
      %v1512 = vunpack.c.l.b16 %v1324
      %v1513 = vunpack.c.h.b16 %v1324
      %v1514 = vunpack.c.l.b16 %v1325
      %v1515 = vunpack.c.l.b16 %v1326
      %v1516 = vunpack.c.h.b16 %v1326
      %v1517 = vunpack.c.l.b16 %v1327
      %v1518 = vunpack.c.l.b16 %v1328
      %v1519 = vunpack.c.h.b16 %v1328
      %v1520 = vunpack.c.l.b16 %v1329
      %v1521 = vunpack.c.l.b16 %v1330
      %v1522 = vunpack.c.h.b16 %v1330
      %v1523 = vunpack.c.l.b16 %v1331
      %v1524 = vunpack.c.l.b16 %v1332
      %v1525 = vunpack.c.h.b16 %v1332
      %v1526 = vunpack.c.l.b16 %v1333
      %v1527 = vunpack.c.l.b16 %v1334
      %v1528 = vunpack.c.h.b16 %v1334
      %v1529 = vunpack.c.l.b16 %v1335
      %v1530 = vunpack.c.l.b16 %v1336
      %v1531 = vunpack.c.h.b16 %v1336
      %v1532 = vunpack.c.l.b16 %v1337
      %v1533 = vunpack.c.l.b16 %v1338
      %v1534 = vunpack.c.h.b16 %v1338
      %v1535 = vunpack.c.l.b16 %v1339
      %v1536 = vunpack.c.l.b16 %v1340
      %v1537 = vunpack.c.h.b16 %v1340
      %v1538 = vunpack.c.l.b16 %v1341
      %v1539 = vunpack.c.l.b16 %v1342
      %v1540 = vunpack.c.h.b16 %v1342
      %v1541 = vunpack.c.l.b16 %v1343
      %v1542 = vunpack.c.l.b16 %v1344
      %v1543 = vunpack.c.h.b16 %v1344
      %v1544 = vunpack.c.l.b16 %v1345
      %v1545 = vunpack.c.l.b16 %v1346
      %v1546 = vunpack.c.h.b16 %v1346
      %v1547 = vunpack.c.l.b16 %v1347
      %v1548 = vunpack.c.l.b16 %v1348
      %v1549 = vunpack.c.h.b16 %v1348
      %v1550 = vunpack.c.l.b16 %v1349
      %v1551 = vunpack.c.l.b16 %v1350
      %v1552 = vunpack.c.h.b16 %v1350
      %v1553 = vunpack.c.l.b16 %v1351
      %v1554 = vunpack.c.l.b16 %v1352
      %v1555 = vunpack.c.h.b16 %v1352
      %v1556 = vunpack.c.l.b16 %v1353
      %v1557 = vunpack.c.l.b16 %v1354
      %v1558 = vunpack.c.h.b16 %v1354
      %v1559 = vunpack.c.l.b16 %v1355
      %v1560 = vunpack.c.l.b16 %v1356
      %v1561 = vunpack.c.h.b16 %v1356
      %v1562 = vunpack.c.l.b16 %v1357
      %v1563 = vunpack.c.l.b16 %v1358
      %v1564 = vunpack.c.h.b16 %v1358
      %v1565 = vunpack.c.l.b16 %v1359
      %v1566 = vunpack.c.l.b16 %v1360
      %v1567 = vunpack.c.h.b16 %v1360
      %v1568 = vunpack.c.l.b16 %v1361
      %v1569 = vunpack.c.l.b16 %v1362
      %v1570 = vunpack.c.h.b16 %v1362
      %v1571 = vunpack.c.l.b16 %v1363
      %v1572 = vunpack.c.l.b16 %v1364
      %v1573 = vunpack.c.h.b16 %v1364
      %v1574 = vunpack.c.l.b16 %v1365
      %v1575 = vunpack.c.l.b16 %v1366
      %v1576 = vunpack.c.h.b16 %v1366
      %v1577 = vunpack.c.l.b16 %v1367
      %v1578 = vunpack.c.l.b16 %v1368
      %v1579 = vunpack.c.h.b16 %v1368
      %v1580 = vunpack.c.l.b16 %v1369
      %v1581 = vunpack.c.l.b16 %v1370
      %v1582 = vunpack.c.h.b16 %v1370
      %v1583 = vunpack.c.l.b16 %v1371
      %v1584 = vunpack.c.l.b16 %v1372
      %v1585 = vunpack.c.h.b16 %v1372
      %v1586 = vunpack.c.l.b16 %v1373
      %v1587 = vunpack.c.l.b16 %v1374
      %v1588 = vunpack.c.h.b16 %v1374
      %v1589 = vunpack.c.l.b16 %v1375
      %v1590 = vunpack.c.l.b16 %v1376
      %v1591 = vunpack.c.h.b16 %v1376
      %v1592 = vunpack.c.l.b16 %v1377
      %v1593 = vunpack.c.l.b16 %v1378
      %v1594 = vunpack.c.h.b16 %v1378
      %v1595 = vunpack.c.l.b16 %v1379
      %v1596 = vpack.c.b16 %v1503, %v1500
      %v1597 = vpack.c.b16 %v1504, %v1501
      %v1598 = vpack.c.b16 %v1505, %v1502
      %v1599 = vpack.c.b16 %v1509, %v1506
      %v1600 = vpack.c.b16 %v1510, %v1507
      %v1601 = vpack.c.b16 %v1511, %v1508
      %v1602 = vpack.c.b16 %v1515, %v1512
      %v1603 = vpack.c.b16 %v1516, %v1513
      %v1604 = vpack.c.b16 %v1517, %v1514
      %v1605 = vpack.c.b16 %v1521, %v1518
      %v1606 = vpack.c.b16 %v1522, %v1519
      %v1607 = vpack.c.b16 %v1523, %v1520
      %v1608 = vpack.c.b16 %v1527, %v1524
      %v1609 = vpack.c.b16 %v1528, %v1525
      %v1610 = vpack.c.b16 %v1529, %v1526
      %v1611 = vpack.c.b16 %v1533, %v1530
      %v1612 = vpack.c.b16 %v1534, %v1531
      %v1613 = vpack.c.b16 %v1535, %v1532
      %v1614 = vpack.c.b16 %v1539, %v1536
      %v1615 = vpack.c.b16 %v1540, %v1537
      %v1616 = vpack.c.b16 %v1541, %v1538
      %v1617 = vpack.c.b16 %v1545, %v1542
      %v1618 = vpack.c.b16 %v1546, %v1543
      %v1619 = vpack.c.b16 %v1547, %v1544
      %v1620 = vpack.c.b16 %v1551, %v1548
      %v1621 = vpack.c.b16 %v1552, %v1549
      %v1622 = vpack.c.b16 %v1553, %v1550
      %v1623 = vpack.c.b16 %v1557, %v1554
      %v1624 = vpack.c.b16 %v1558, %v1555
      %v1625 = vpack.c.b16 %v1559, %v1556
      %v1626 = vpack.c.b16 %v1563, %v1560
      %v1627 = vpack.c.b16 %v1564, %v1561
      %v1628 = vpack.c.b16 %v1565, %v1562
      %v1629 = vpack.c.b16 %v1569, %v1566
      %v1630 = vpack.c.b16 %v1570, %v1567
      %v1631 = vpack.c.b16 %v1571, %v1568
      %v1632 = vpack.c.b16 %v1575, %v1572
      %v1633 = vpack.c.b16 %v1576, %v1573
      %v1634 = vpack.c.b16 %v1577, %v1574
      %v1635 = vpack.c.b16 %v1581, %v1578
      %v1636 = vpack.c.b16 %v1582, %v1579
      %v1637 = vpack.c.b16 %v1583, %v1580
      %v1638 = vpack.c.b16 %v1587, %v1584
      %v1639 = vpack.c.b16 %v1588, %v1585
      %v1640 = vpack.c.b16 %v1589, %v1586
      %v1641 = vpack.c.b16 %v1593, %v1590
      %v1642 = vpack.c.b16 %v1594, %v1591
      %v1643 = vpack.c.b16 %v1595, %v1592
      %v1700 = vunpack.c.l.b16 %v1380
      %v1701 = vunpack.c.h.b16 %v1380
      %v1702 = vunpack.c.l.b16 %v1381
      %v1703 = vunpack.c.l.b16 %v1382
      %v1704 = vunpack.c.h.b16 %v1382
      %v1705 = vunpack.c.l.b16 %v1383
      %v1706 = vunpack.c.l.b16 %v1384
      %v1707 = vunpack.c.h.b16 %v1384
      %v1708 = vunpack.c.l.b16 %v1385
      %v1709 = vunpack.c.l.b16 %v1386
      %v1710 = vunpack.c.h.b16 %v1386
      %v1711 = vunpack.c.l.b16 %v1387
      %v1712 = vpack.c.b16 %v1506, %v1503
      %v1713 = vpack.c.b16 %v1507, %v1504
      %v1714 = vpack.c.b16 %v1508, %v1505
      %v1715 = vpack.c.b16 %v1512, %v1509
      %v1716 = vpack.c.b16 %v1513, %v1510
      %v1717 = vpack.c.b16 %v1514, %v1511
      %v1718 = vpack.c.b16 %v1518, %v1515
      %v1719 = vpack.c.b16 %v1519, %v1516
      %v1720 = vpack.c.b16 %v1520, %v1517
      %v1721 = vpack.c.b16 %v1700, %v1521
      %v1722 = vpack.c.b16 %v1701, %v1522
      %v1723 = vpack.c.b16 %v1702, %v1523
      %v1724 = vpack.c.b16 %v1530, %v1527
      %v1725 = vpack.c.b16 %v1531, %v1528
      %v1726 = vpack.c.b16 %v1532, %v1529
      %v1727 = vpack.c.b16 %v1536, %v1533
      %v1728 = vpack.c.b16 %v1537, %v1534
      %v1729 = vpack.c.b16 %v1538, %v1535
      %v1730 = vpack.c.b16 %v1542, %v1539
      %v1731 = vpack.c.b16 %v1543, %v1540
      %v1732 = vpack.c.b16 %v1544, %v1541
      %v1733 = vpack.c.b16 %v1703, %v1545
      %v1734 = vpack.c.b16 %v1704, %v1546
      %v1735 = vpack.c.b16 %v1705, %v1547
      %v1736 = vpack.c.b16 %v1554, %v1551
      %v1737 = vpack.c.b16 %v1555, %v1552
      %v1738 = vpack.c.b16 %v1556, %v1553
      %v1739 = vpack.c.b16 %v1560, %v1557
      %v1740 = vpack.c.b16 %v1561, %v1558
      %v1741 = vpack.c.b16 %v1562, %v1559
      %v1742 = vpack.c.b16 %v1566, %v1563
      %v1743 = vpack.c.b16 %v1567, %v1564
      %v1744 = vpack.c.b16 %v1568, %v1565
      %v1745 = vpack.c.b16 %v1706, %v1569
      %v1746 = vpack.c.b16 %v1707, %v1570
      %v1747 = vpack.c.b16 %v1708, %v1571
      %v1748 = vpack.c.b16 %v1578, %v1575
      %v1749 = vpack.c.b16 %v1579, %v1576
      %v1750 = vpack.c.b16 %v1580, %v1577
      %v1751 = vpack.c.b16 %v1584, %v1581
      %v1752 = vpack.c.b16 %v1585, %v1582
      %v1753 = vpack.c.b16 %v1586, %v1583
      %v1754 = vpack.c.b16 %v1590, %v1587
      %v1755 = vpack.c.b16 %v1591, %v1588
      %v1756 = vpack.c.b16 %v1592, %v1589
      %v1757 = vpack.c.b16 %v1709, %v1593
      %v1758 = vpack.c.b16 %v1710, %v1594
      %v1759 = vpack.c.b16 %v1711, %v1595
      %v1816 = vunpack.c.l.b16 %v1388
      %v1817 = vunpack.c.h.b16 %v1388
      %v1818 = vunpack.c.l.b16 %v1389
      %v1819 = vunpack.c.l.b16 %v1390
      %v1820 = vunpack.c.h.b16 %v1390
      %v1821 = vunpack.c.l.b16 %v1391
      %v1822 = vunpack.c.l.b16 %v1392
      %v1823 = vunpack.c.h.b16 %v1392
      %v1824 = vunpack.c.l.b16 %v1393
      %v1825 = vunpack.c.l.b16 %v1394
      %v1826 = vunpack.c.h.b16 %v1394
      %v1827 = vunpack.c.l.b16 %v1395
      %v1828 = vpack.c.b16 %v1816, %v1700
      %v1829 = vpack.c.b16 %v1817, %v1701
      %v1830 = vpack.c.b16 %v1818, %v1702
      %v1831 = vpack.c.b16 %v1819, %v1703
      %v1832 = vpack.c.b16 %v1820, %v1704
      %v1833 = vpack.c.b16 %v1821, %v1705
      %v1834 = vpack.c.b16 %v1822, %v1706
      %v1835 = vpack.c.b16 %v1823, %v1707
      %v1836 = vpack.c.b16 %v1824, %v1708
      %v1837 = vpack.c.b16 %v1825, %v1709
      %v1838 = vpack.c.b16 %v1826, %v1710
      %v1839 = vpack.c.b16 %v1827, %v1711
      %v1868 = vunpack.c.l.b16 %v1396
      %v1869 = vunpack.c.h.b16 %v1396
      %v1870 = vunpack.c.l.b16 %v1397
      %v1871 = vunpack.c.l.b16 %v1398
      %v1872 = vunpack.c.h.b16 %v1398
      %v1873 = vunpack.c.l.b16 %v1399
      %v1874 = vunpack.c.l.b16 %v1400
      %v1875 = vunpack.c.h.b16 %v1400
      %v1876 = vunpack.c.l.b16 %v1401
      %v1877 = vunpack.c.l.b16 %v1402
      %v1878 = vunpack.c.h.b16 %v1402
      %v1879 = vunpack.c.l.b16 %v1403
      %v1880 = vunpack.c.l.b16 %v1404
      %v1881 = vunpack.c.h.b16 %v1404
      %v1882 = vunpack.c.l.b16 %v1405
      %v1883 = vunpack.c.l.b16 %v1406
      %v1884 = vunpack.c.h.b16 %v1406
      %v1885 = vunpack.c.l.b16 %v1407
      %v1886 = vunpack.c.l.b16 %v1408
      %v1887 = vunpack.c.h.b16 %v1408
      %v1888 = vunpack.c.l.b16 %v1409
      %v1889 = vunpack.c.l.b16 %v1410
      %v1890 = vunpack.c.h.b16 %v1410
      %v1891 = vunpack.c.l.b16 %v1411
      %v1892 = vpack.c.b16 %v1871, %v1868
      %v1893 = vpack.c.b16 %v1872, %v1869
      %v1894 = vpack.c.b16 %v1873, %v1870
      %v1895 = vpack.c.b16 %v1877, %v1874
      %v1896 = vpack.c.b16 %v1878, %v1875
      %v1897 = vpack.c.b16 %v1879, %v1876
      %v1898 = vpack.c.b16 %v1883, %v1880
      %v1899 = vpack.c.b16 %v1884, %v1881
      %v1900 = vpack.c.b16 %v1885, %v1882
      %v1901 = vpack.c.b16 %v1889, %v1886
      %v1902 = vpack.c.b16 %v1890, %v1887
      %v1903 = vpack.c.b16 %v1891, %v1888
      %v1918 = vunpack.c.l.b16 %v1412
      %v1919 = vunpack.c.h.b16 %v1412
      %v1920 = vunpack.c.l.b16 %v1413
      %v1921 = vpack.c.b16 %v1874, %v1871
      %v1922 = vpack.c.b16 %v1875, %v1872
      %v1923 = vpack.c.b16 %v1876, %v1873
      %v1924 = vpack.c.b16 %v1880, %v1877
      %v1925 = vpack.c.b16 %v1881, %v1878
      %v1926 = vpack.c.b16 %v1882, %v1879
      %v1927 = vpack.c.b16 %v1886, %v1883
      %v1928 = vpack.c.b16 %v1887, %v1884
      %v1929 = vpack.c.b16 %v1888, %v1885
      %v1930 = vpack.c.b16 %v1918, %v1889
      %v1931 = vpack.c.b16 %v1919, %v1890
      %v1932 = vpack.c.b16 %v1920, %v1891
      %v1947 = vunpack.c.l.b16 %v1414
      %v1948 = vunpack.c.h.b16 %v1414
      %v1949 = vunpack.c.l.b16 %v1415
      %v1950 = vpack.c.b16 %v1947, %v1918
      %v1951 = vpack.c.b16 %v1948, %v1919
      %v1952 = vpack.c.b16 %v1949, %v1920
      %v1972 = vunpack.c.l.b16 %v1416
      %v1973 = vunpack.c.h.b16 %v1416
      %v1974 = vunpack.c.l.b16 %v1417
      %v1975 = vunpack.c.l.b16 %v1418
      %v1976 = vunpack.c.h.b16 %v1418
      %v1977 = vunpack.c.l.b16 %v1419
      %v1978 = vunpack.c.l.b16 %v1420
      %v1979 = vunpack.c.h.b16 %v1420
      %v1980 = vunpack.c.l.b16 %v1421
      %v1981 = vunpack.c.l.b16 %v1422
      %v1982 = vunpack.c.h.b16 %v1422
      %v1983 = vunpack.c.l.b16 %v1423
      %v1984 = vunpack.c.l.b16 %v1424
      %v1985 = vunpack.c.h.b16 %v1424
      %v1986 = vunpack.c.l.b16 %v1425
      %v1987 = vunpack.c.l.b16 %v1426
      %v1988 = vunpack.c.h.b16 %v1426
      %v1989 = vunpack.c.l.b16 %v1427
      %v1990 = vunpack.c.l.b16 %v1428
      %v1991 = vunpack.c.h.b16 %v1428
      %v1992 = vunpack.c.l.b16 %v1429
      %v1993 = vunpack.c.l.b16 %v1430
      %v1994 = vunpack.c.h.b16 %v1430
      %v1995 = vunpack.c.l.b16 %v1431
      %v1996 = vpack.c.b16 %v1975, %v1972
      %v1997 = vpack.c.b16 %v1976, %v1973
      %v1998 = vpack.c.b16 %v1977, %v1974
      %v1999 = vpack.c.b16 %v1981, %v1978
      %v2000 = vpack.c.b16 %v1982, %v1979
      %v2001 = vpack.c.b16 %v1983, %v1980
      %v2002 = vpack.c.b16 %v1987, %v1984
      %v2003 = vpack.c.b16 %v1988, %v1985
      %v2004 = vpack.c.b16 %v1989, %v1986
      %v2005 = vpack.c.b16 %v1993, %v1990
      %v2006 = vpack.c.b16 %v1994, %v1991
      %v2007 = vpack.c.b16 %v1995, %v1992
      %v2022 = vunpack.c.l.b16 %v1432
      %v2023 = vunpack.c.h.b16 %v1432
      %v2024 = vunpack.c.l.b16 %v1433
      %v2025 = vpack.c.b16 %v1978, %v1975
      %v2026 = vpack.c.b16 %v1979, %v1976
      %v2027 = vpack.c.b16 %v1980, %v1977
      %v2028 = vpack.c.b16 %v1984, %v1981
      %v2029 = vpack.c.b16 %v1985, %v1982
      %v2030 = vpack.c.b16 %v1986, %v1983
      %v2031 = vpack.c.b16 %v1990, %v1987
      %v2032 = vpack.c.b16 %v1991, %v1988
      %v2033 = vpack.c.b16 %v1992, %v1989
      %v2034 = vpack.c.b16 %v2022, %v1993
      %v2035 = vpack.c.b16 %v2023, %v1994
      %v2036 = vpack.c.b16 %v2024, %v1995
      %v2051 = vunpack.c.l.b16 %v1434
      %v2052 = vunpack.c.h.b16 %v1434
      %v2053 = vunpack.c.l.b16 %v1435
      %v2054 = vpack.c.b16 %v2051, %v2022
      %v2055 = vpack.c.b16 %v2052, %v2023
      %v2056 = vpack.c.b16 %v2053, %v2024
      %v2060 = vld [vmem:[%s1] sm:$0xff]
      %v2061 = vld [vmem:[%s1 + $0x8] sm:$0xff]
      %v2062 = vld [vmem:[%s1 + $0x10] sm:$0xff]
      %v2063 = vld [vmem:[%s1 + $0x18] sm:$0xff]
      %v2064 = vld [vmem:[%s1 + $0x20] sm:$0xff]
      %v2065 = vld [vmem:[%s1 + $0x28] sm:$0xff]
      %v2066 = vld [vmem:[%s1 + $0x30] sm:$0xff]
      %v2067 = vld [vmem:[%s1 + $0x38] sm:$0xff]
      %v2068 = vld [vmem:[%s1 + $0x40] sm:$0xff]
      %v2069 = vld [vmem:[%s1 + $0x48] sm:$0xff]
      %v2070 = vld [vmem:[%s1 + $0x50] sm:$0xff]
      %v2071 = vld [vmem:[%s1 + $0x58] sm:$0xff]
      %v2072 = vld [vmem:[%s1 + $0x60] sm:$0xff]
      %v2073 = vld [vmem:[%s1 + $0x68] sm:$0xf]
      %v2074 = vld [vmem:[%s2] sm:$0x1]
      %v2076 = vperm.slane %v2074, 0
      %v2092 = vunpack.c.l.b16 %v2060
      %v2093 = vunpack.c.h.b16 %v2060
      %v2094 = vunpack.c.l.b16 %v2061
      %v2095 = vunpack.c.h.b16 %v2061
      %v2096 = vunpack.c.l.b16 %v2062
      %v2097 = vunpack.c.h.b16 %v2062
      %v2098 = vunpack.c.l.b16 %v2063
      %v2099 = vunpack.c.h.b16 %v2063
      %v2100 = vunpack.c.l.b16 %v2064
      %v2101 = vunpack.c.h.b16 %v2064
      %v2102 = vunpack.c.l.b16 %v2065
      %v2103 = vunpack.c.h.b16 %v2065
      %v2104 = vunpack.c.l.b16 %v2066
      %v2105 = vunpack.c.h.b16 %v2066
      %v2106 = vunpack.c.l.b16 %v2067
      %v2107 = vunpack.c.h.b16 %v2067
      %v2108 = vunpack.c.l.b16 %v2068
      %v2109 = vunpack.c.h.b16 %v2068
      %v2110 = vunpack.c.l.b16 %v2069
      %v2111 = vunpack.c.h.b16 %v2069
      %v2112 = vunpack.c.l.b16 %v2070
      %v2113 = vunpack.c.h.b16 %v2070
      %v2114 = vunpack.c.l.b16 %v2071
      %v2115 = vunpack.c.h.b16 %v2071
      %v2116 = vunpack.c.l.b16 %v2072
      %v2117 = vunpack.c.h.b16 %v2072
      %v2118 = vunpack.c.l.b16 %v2073
      %v2119 = vpack.c.b16 %v2092, %v2092
      %v2120 = vpack.c.b16 %v2093, %v2093
      %v2121 = vpack.c.b16 %v2094, %v2094
      %v2122 = vpack.c.b16 %v2095, %v2095
      %v2123 = vpack.c.b16 %v2096, %v2096
      %v2124 = vpack.c.b16 %v2097, %v2097
      %v2125 = vpack.c.b16 %v2098, %v2098
      %v2126 = vpack.c.b16 %v2099, %v2099
      %v2127 = vpack.c.b16 %v2100, %v2100
      %v2128 = vpack.c.b16 %v2101, %v2101
      %v2129 = vpack.c.b16 %v2102, %v2102
      %v2130 = vpack.c.b16 %v2103, %v2103
      %v2131 = vpack.c.b16 %v2104, %v2104
      %v2132 = vpack.c.b16 %v2105, %v2105
      %v2133 = vpack.c.b16 %v2106, %v2106
      %v2134 = vpack.c.b16 %v2107, %v2107
      %v2135 = vpack.c.b16 %v2108, %v2108
      %v2136 = vpack.c.b16 %v2109, %v2109
      %v2137 = vpack.c.b16 %v2110, %v2110
      %v2138 = vpack.c.b16 %v2111, %v2111
      %v2139 = vpack.c.b16 %v2112, %v2112
      %v2140 = vpack.c.b16 %v2113, %v2113
      %v2141 = vpack.c.b16 %v2114, %v2114
      %v2142 = vpack.c.b16 %v2115, %v2115
      %v2143 = vpack.c.b16 %v2116, %v2116
      %v2144 = vpack.c.b16 %v2117, %v2117
      %v2145 = vpack.c.b16 %v2118, %v2118
      %2173 = vmatpush.bf16.xpose.msra.mxu0 0
      %2174 = vmatpush.bf16.xpose.msra.mxu0 0
      %2175 = vmatpush.bf16.xpose.msra.mxu0 0
      %2176 = vmatpush.bf16.xpose.msra.mxu0 0
      %2177 = vmatpush.bf16.xpose.msra.mxu0 0
      %2178 = vmatpush.bf16.xpose.msra.mxu0 0
      %2179 = vmatpush.bf16.xpose.msra.mxu0 0
      %2180 = vmatpush.bf16.xpose.msra.mxu0 %v2119
      %2181 = vmatmul.bf16.gmra.mxu0 %v1596
      %v2182 = vpop.f32.mrf.mxu0
      %v2183 = vadd.f32 %v2076, %v2182
      %v2184 = vpop.f32.mrf.mxu0
      %v2185 = vadd.f32 %v2076, %v2184
      %2186 = vmatmul.bf16.gmra.mxu0 %v1599
      %v2187 = vpop.f32.mrf.mxu0
      %v2188 = vadd.f32 %v2076, %v2187
      %v2189 = vpop.f32.mrf.mxu0
      %v2190 = vadd.f32 %v2076, %v2189
      %2191 = vmatmul.bf16.gmra.mxu0 %v1602
      %v2192 = vpop.f32.mrf.mxu0
      %v2193 = vadd.f32 %v2076, %v2192
      %v2194 = vpop.f32.mrf.mxu0
      %v2195 = vadd.f32 %v2076, %v2194
      %2196 = vmatmul.bf16.gmra.mxu0 %v1605
      %v2197 = vpop.f32.mrf.mxu0
      %v2198 = vadd.f32 %v2076, %v2197
      %v2199 = vpop.f32.mrf.mxu0
      %v2200 = vadd.f32 %v2076, %v2199
      %2201 = vmatmul.bf16.gmra.mxu0 %v1608
      %v2202 = vpop.f32.mrf.mxu0
      %v2203 = vadd.f32 %v2076, %v2202
      %v2204 = vpop.f32.mrf.mxu0
      %v2205 = vadd.f32 %v2076, %v2204
      %2206 = vmatmul.bf16.gmra.mxu0 %v1611
      %v2207 = vpop.f32.mrf.mxu0
      %v2208 = vadd.f32 %v2076, %v2207
      %v2209 = vpop.f32.mrf.mxu0
      %v2210 = vadd.f32 %v2076, %v2209
      %2211 = vmatmul.bf16.gmra.mxu0 %v1614
      %v2212 = vpop.f32.mrf.mxu0
      %v2213 = vadd.f32 %v2076, %v2212
      %v2214 = vpop.f32.mrf.mxu0
      %v2215 = vadd.f32 %v2076, %v2214
      %2216 = vmatmul.bf16.gmra.mxu0 %v1617
      %v2217 = vpop.f32.mrf.mxu0
      %v2218 = vadd.f32 %v2076, %v2217
      %v2219 = vpop.f32.mrf.mxu0
      %v2220 = vadd.f32 %v2076, %v2219
      %2221 = vmatmul.bf16.gmra.mxu0 %v1620
      %v2222 = vpop.f32.mrf.mxu0
      %v2223 = vadd.f32 %v2076, %v2222
      %v2224 = vpop.f32.mrf.mxu0
      %v2225 = vadd.f32 %v2076, %v2224
      %2226 = vmatmul.bf16.gmra.mxu0 %v1623
      %v2227 = vpop.f32.mrf.mxu0
      %v2228 = vadd.f32 %v2076, %v2227
      %v2229 = vpop.f32.mrf.mxu0
      %v2230 = vadd.f32 %v2076, %v2229
      %2231 = vmatmul.bf16.gmra.mxu0 %v1626
      %v2232 = vpop.f32.mrf.mxu0
      %v2233 = vadd.f32 %v2076, %v2232
      %v2234 = vpop.f32.mrf.mxu0
      %v2235 = vadd.f32 %v2076, %v2234
      %2236 = vmatmul.bf16.gmra.mxu0 %v1629
      %v2237 = vpop.f32.mrf.mxu0
      %v2238 = vadd.f32 %v2076, %v2237
      %v2239 = vpop.f32.mrf.mxu0
      %v2240 = vadd.f32 %v2076, %v2239
      %2241 = vmatmul.bf16.gmra.mxu0 %v1632
      %v2242 = vpop.f32.mrf.mxu0
      %v2243 = vadd.f32 %v2076, %v2242
      %v2244 = vpop.f32.mrf.mxu0
      %v2245 = vadd.f32 %v2076, %v2244
      %2246 = vmatmul.bf16.gmra.mxu0 %v1635
      %v2247 = vpop.f32.mrf.mxu0
      %v2248 = vadd.f32 %v2076, %v2247
      %v2249 = vpop.f32.mrf.mxu0
      %v2250 = vadd.f32 %v2076, %v2249
      %2251 = vmatmul.bf16.gmra.mxu0 %v1638
      %v2252 = vpop.f32.mrf.mxu0
      %v2253 = vadd.f32 %v2076, %v2252
      %v2254 = vpop.f32.mrf.mxu0
      %v2255 = vadd.f32 %v2076, %v2254
      %2256 = vmatmul.bf16.gmra.mxu0 %v1641
      %v2257 = vpop.f32.mrf.mxu0
      %v2258 = vadd.f32 %v2076, %v2257
      %v2259 = vpop.f32.mrf.mxu0
      %v2260 = vadd.f32 %v2076, %v2259
      %2261 = vdwg.mxu0
      %2262 = vmatpush.bf16.xpose.msra.mxu0 0
      %2263 = vmatpush.bf16.xpose.msra.mxu0 0
      %2264 = vmatpush.bf16.xpose.msra.mxu0 0
      %2265 = vmatpush.bf16.xpose.msra.mxu0 0
      %2266 = vmatpush.bf16.xpose.msra.mxu0 0
      %2267 = vmatpush.bf16.xpose.msra.mxu0 0
      %2268 = vmatpush.bf16.xpose.msra.mxu0 0
      %2269 = vmatpush.bf16.xpose.msra.mxu0 %v2120
      %2270 = vmatmul.bf16.gmra.mxu0 %v1597
      %v2271 = vpop.f32.mrf.mxu0
      %v2272 = vadd.f32 %v2183, %v2271
      %v2273 = vpop.f32.mrf.mxu0
      %v2274 = vadd.f32 %v2185, %v2273
      %2275 = vmatmul.bf16.gmra.mxu0 %v1600
      %v2276 = vpop.f32.mrf.mxu0
      %v2277 = vadd.f32 %v2188, %v2276
      %v2278 = vpop.f32.mrf.mxu0
      %v2279 = vadd.f32 %v2190, %v2278
      %2280 = vmatmul.bf16.gmra.mxu0 %v1603
      %v2281 = vpop.f32.mrf.mxu0
      %v2282 = vadd.f32 %v2193, %v2281
      %v2283 = vpop.f32.mrf.mxu0
      %v2284 = vadd.f32 %v2195, %v2283
      %2285 = vmatmul.bf16.gmra.mxu0 %v1606
      %v2286 = vpop.f32.mrf.mxu0
      %v2287 = vadd.f32 %v2198, %v2286
      %v2288 = vpop.f32.mrf.mxu0
      %v2289 = vadd.f32 %v2200, %v2288
      %2290 = vmatmul.bf16.gmra.mxu0 %v1609
      %v2291 = vpop.f32.mrf.mxu0
      %v2292 = vadd.f32 %v2203, %v2291
      %v2293 = vpop.f32.mrf.mxu0
      %v2294 = vadd.f32 %v2205, %v2293
      %2295 = vmatmul.bf16.gmra.mxu0 %v1612
      %v2296 = vpop.f32.mrf.mxu0
      %v2297 = vadd.f32 %v2208, %v2296
      %v2298 = vpop.f32.mrf.mxu0
      %v2299 = vadd.f32 %v2210, %v2298
      %2300 = vmatmul.bf16.gmra.mxu0 %v1615
      %v2301 = vpop.f32.mrf.mxu0
      %v2302 = vadd.f32 %v2213, %v2301
      %v2303 = vpop.f32.mrf.mxu0
      %v2304 = vadd.f32 %v2215, %v2303
      %2305 = vmatmul.bf16.gmra.mxu0 %v1618
      %v2306 = vpop.f32.mrf.mxu0
      %v2307 = vadd.f32 %v2218, %v2306
      %v2308 = vpop.f32.mrf.mxu0
      %v2309 = vadd.f32 %v2220, %v2308
      %2310 = vmatmul.bf16.gmra.mxu0 %v1621
      %v2311 = vpop.f32.mrf.mxu0
      %v2312 = vadd.f32 %v2223, %v2311
      %v2313 = vpop.f32.mrf.mxu0
      %v2314 = vadd.f32 %v2225, %v2313
      %2315 = vmatmul.bf16.gmra.mxu0 %v1624
      %v2316 = vpop.f32.mrf.mxu0
      %v2317 = vadd.f32 %v2228, %v2316
      %v2318 = vpop.f32.mrf.mxu0
      %v2319 = vadd.f32 %v2230, %v2318
      %2320 = vmatmul.bf16.gmra.mxu0 %v1627
      %v2321 = vpop.f32.mrf.mxu0
      %v2322 = vadd.f32 %v2233, %v2321
      %v2323 = vpop.f32.mrf.mxu0
      %v2324 = vadd.f32 %v2235, %v2323
      %2325 = vmatmul.bf16.gmra.mxu0 %v1630
      %v2326 = vpop.f32.mrf.mxu0
      %v2327 = vadd.f32 %v2238, %v2326
      %v2328 = vpop.f32.mrf.mxu0
      %v2329 = vadd.f32 %v2240, %v2328
      %2330 = vmatmul.bf16.gmra.mxu0 %v1633
      %v2331 = vpop.f32.mrf.mxu0
      %v2332 = vadd.f32 %v2243, %v2331
      %v2333 = vpop.f32.mrf.mxu0
      %v2334 = vadd.f32 %v2245, %v2333
      %2335 = vmatmul.bf16.gmra.mxu0 %v1636
      %v2336 = vpop.f32.mrf.mxu0
      %v2337 = vadd.f32 %v2248, %v2336
      %v2338 = vpop.f32.mrf.mxu0
      %v2339 = vadd.f32 %v2250, %v2338
      %2340 = vmatmul.bf16.gmra.mxu0 %v1639
      %v2341 = vpop.f32.mrf.mxu0
      %v2342 = vadd.f32 %v2253, %v2341
      %v2343 = vpop.f32.mrf.mxu0
      %v2344 = vadd.f32 %v2255, %v2343
      %2345 = vmatmul.bf16.gmra.mxu0 %v1642
      %v2346 = vpop.f32.mrf.mxu0
      %v2347 = vadd.f32 %v2258, %v2346
      %v2348 = vpop.f32.mrf.mxu0
      %v2349 = vadd.f32 %v2260, %v2348
      %2350 = vdwg.mxu0
      %2351 = vmatpush.bf16.xpose.msra.mxu0 0
      %2352 = vmatpush.bf16.xpose.msra.mxu0 0
      %2353 = vmatpush.bf16.xpose.msra.mxu0 0
      %2354 = vmatpush.bf16.xpose.msra.mxu0 0
      %2355 = vmatpush.bf16.xpose.msra.mxu0 0
      %2356 = vmatpush.bf16.xpose.msra.mxu0 0
      %2357 = vmatpush.bf16.xpose.msra.mxu0 0
      %2358 = vmatpush.bf16.xpose.msra.mxu0 %v2121
      %2359 = vmatmul.bf16.gmra.mxu0 %v1598
      %v2360 = vpop.f32.mrf.mxu0
      %v2361 = vadd.f32 %v2272, %v2360
      %v2362 = vpop.f32.mrf.mxu0
      %v2363 = vadd.f32 %v2274, %v2362
      %2364 = vmatmul.bf16.gmra.mxu0 %v1601
      %v2365 = vpop.f32.mrf.mxu0
      %v2366 = vadd.f32 %v2277, %v2365
      %v2367 = vpop.f32.mrf.mxu0
      %v2368 = vadd.f32 %v2279, %v2367
      %2369 = vmatmul.bf16.gmra.mxu0 %v1604
      %v2370 = vpop.f32.mrf.mxu0
      %v2371 = vadd.f32 %v2282, %v2370
      %v2372 = vpop.f32.mrf.mxu0
      %v2373 = vadd.f32 %v2284, %v2372
      %2374 = vmatmul.bf16.gmra.mxu0 %v1607
      %v2375 = vpop.f32.mrf.mxu0
      %v2376 = vadd.f32 %v2287, %v2375
      %v2377 = vpop.f32.mrf.mxu0
      %v2378 = vadd.f32 %v2289, %v2377
      %2379 = vmatmul.bf16.gmra.mxu0 %v1610
      %v2380 = vpop.f32.mrf.mxu0
      %v2381 = vadd.f32 %v2292, %v2380
      %v2382 = vpop.f32.mrf.mxu0
      %v2383 = vadd.f32 %v2294, %v2382
      %2384 = vmatmul.bf16.gmra.mxu0 %v1613
      %v2385 = vpop.f32.mrf.mxu0
      %v2386 = vadd.f32 %v2297, %v2385
      %v2387 = vpop.f32.mrf.mxu0
      %v2388 = vadd.f32 %v2299, %v2387
      %2389 = vmatmul.bf16.gmra.mxu0 %v1616
      %v2390 = vpop.f32.mrf.mxu0
      %v2391 = vadd.f32 %v2302, %v2390
      %v2392 = vpop.f32.mrf.mxu0
      %v2393 = vadd.f32 %v2304, %v2392
      %2394 = vmatmul.bf16.gmra.mxu0 %v1619
      %v2395 = vpop.f32.mrf.mxu0
      %v2396 = vadd.f32 %v2307, %v2395
      %v2397 = vpop.f32.mrf.mxu0
      %v2398 = vadd.f32 %v2309, %v2397
      %2399 = vmatmul.bf16.gmra.mxu0 %v1622
      %v2400 = vpop.f32.mrf.mxu0
      %v2401 = vadd.f32 %v2312, %v2400
      %v2402 = vpop.f32.mrf.mxu0
      %v2403 = vadd.f32 %v2314, %v2402
      %2404 = vmatmul.bf16.gmra.mxu0 %v1625
      %v2405 = vpop.f32.mrf.mxu0
      %v2406 = vadd.f32 %v2317, %v2405
      %v2407 = vpop.f32.mrf.mxu0
      %v2408 = vadd.f32 %v2319, %v2407
      %2409 = vmatmul.bf16.gmra.mxu0 %v1628
      %v2410 = vpop.f32.mrf.mxu0
      %v2411 = vadd.f32 %v2322, %v2410
      %v2412 = vpop.f32.mrf.mxu0
      %v2413 = vadd.f32 %v2324, %v2412
      %2414 = vmatmul.bf16.gmra.mxu0 %v1631
      %v2415 = vpop.f32.mrf.mxu0
      %v2416 = vadd.f32 %v2327, %v2415
      %v2417 = vpop.f32.mrf.mxu0
      %v2418 = vadd.f32 %v2329, %v2417
      %2419 = vmatmul.bf16.gmra.mxu0 %v1634
      %v2420 = vpop.f32.mrf.mxu0
      %v2421 = vadd.f32 %v2332, %v2420
      %v2422 = vpop.f32.mrf.mxu0
      %v2423 = vadd.f32 %v2334, %v2422
      %2424 = vmatmul.bf16.gmra.mxu0 %v1637
      %v2425 = vpop.f32.mrf.mxu0
      %v2426 = vadd.f32 %v2337, %v2425
      %v2427 = vpop.f32.mrf.mxu0
      %v2428 = vadd.f32 %v2339, %v2427
      %2429 = vmatmul.bf16.gmra.mxu0 %v1640
      %v2430 = vpop.f32.mrf.mxu0
      %v2431 = vadd.f32 %v2342, %v2430
      %v2432 = vpop.f32.mrf.mxu0
      %v2433 = vadd.f32 %v2344, %v2432
      %2434 = vmatmul.bf16.gmra.mxu0 %v1643
      %v2435 = vpop.f32.mrf.mxu0
      %v2436 = vadd.f32 %v2347, %v2435
      %v2437 = vpop.f32.mrf.mxu0
      %v2438 = vadd.f32 %v2349, %v2437
      %2439 = vdwg.mxu0
      %2440 = vmatpush.bf16.xpose.msra.mxu0 0
      %2441 = vmatpush.bf16.xpose.msra.mxu0 0
      %2442 = vmatpush.bf16.xpose.msra.mxu0 0
      %2443 = vmatpush.bf16.xpose.msra.mxu0 0
      %2444 = vmatpush.bf16.xpose.msra.mxu0 0
      %2445 = vmatpush.bf16.xpose.msra.mxu0 0
      %2446 = vmatpush.bf16.xpose.msra.mxu0 0
      %2447 = vmatpush.bf16.xpose.msra.mxu0 %v2122
      %2448 = vmatmul.bf16.gmra.mxu0 %v1712
      %v2449 = vpop.f32.mrf.mxu0
      %v2450 = vadd.f32 %v2361, %v2449
      %v2451 = vpop.f32.mrf.mxu0
      %v2452 = vadd.f32 %v2363, %v2451
      %2453 = vmatmul.bf16.gmra.mxu0 %v1715
      %v2454 = vpop.f32.mrf.mxu0
      %v2455 = vadd.f32 %v2366, %v2454
      %v2456 = vpop.f32.mrf.mxu0
      %v2457 = vadd.f32 %v2368, %v2456
      %2458 = vmatmul.bf16.gmra.mxu0 %v1718
      %v2459 = vpop.f32.mrf.mxu0
      %v2460 = vadd.f32 %v2371, %v2459
      %v2461 = vpop.f32.mrf.mxu0
      %v2462 = vadd.f32 %v2373, %v2461
      %2463 = vmatmul.bf16.gmra.mxu0 %v1721
      %v2464 = vpop.f32.mrf.mxu0
      %v2465 = vadd.f32 %v2376, %v2464
      %v2466 = vpop.f32.mrf.mxu0
      %v2467 = vadd.f32 %v2378, %v2466
      %2468 = vmatmul.bf16.gmra.mxu0 %v1724
      %v2469 = vpop.f32.mrf.mxu0
      %v2470 = vadd.f32 %v2381, %v2469
      %v2471 = vpop.f32.mrf.mxu0
      %v2472 = vadd.f32 %v2383, %v2471
      %2473 = vmatmul.bf16.gmra.mxu0 %v1727
      %v2474 = vpop.f32.mrf.mxu0
      %v2475 = vadd.f32 %v2386, %v2474
      %v2476 = vpop.f32.mrf.mxu0
      %v2477 = vadd.f32 %v2388, %v2476
      %2478 = vmatmul.bf16.gmra.mxu0 %v1730
      %v2479 = vpop.f32.mrf.mxu0
      %v2480 = vadd.f32 %v2391, %v2479
      %v2481 = vpop.f32.mrf.mxu0
      %v2482 = vadd.f32 %v2393, %v2481
      %2483 = vmatmul.bf16.gmra.mxu0 %v1733
      %v2484 = vpop.f32.mrf.mxu0
      %v2485 = vadd.f32 %v2396, %v2484
      %v2486 = vpop.f32.mrf.mxu0
      %v2487 = vadd.f32 %v2398, %v2486
      %2488 = vmatmul.bf16.gmra.mxu0 %v1736
      %v2489 = vpop.f32.mrf.mxu0
      %v2490 = vadd.f32 %v2401, %v2489
      %v2491 = vpop.f32.mrf.mxu0
      %v2492 = vadd.f32 %v2403, %v2491
      %2493 = vmatmul.bf16.gmra.mxu0 %v1739
      %v2494 = vpop.f32.mrf.mxu0
      %v2495 = vadd.f32 %v2406, %v2494
      %v2496 = vpop.f32.mrf.mxu0
      %v2497 = vadd.f32 %v2408, %v2496
      %2498 = vmatmul.bf16.gmra.mxu0 %v1742
      %v2499 = vpop.f32.mrf.mxu0
      %v2500 = vadd.f32 %v2411, %v2499
      %v2501 = vpop.f32.mrf.mxu0
      %v2502 = vadd.f32 %v2413, %v2501
      %2503 = vmatmul.bf16.gmra.mxu0 %v1745
      %v2504 = vpop.f32.mrf.mxu0
      %v2505 = vadd.f32 %v2416, %v2504
      %v2506 = vpop.f32.mrf.mxu0
      %v2507 = vadd.f32 %v2418, %v2506
      %2508 = vmatmul.bf16.gmra.mxu0 %v1748
      %v2509 = vpop.f32.mrf.mxu0
      %v2510 = vadd.f32 %v2421, %v2509
      %v2511 = vpop.f32.mrf.mxu0
      %v2512 = vadd.f32 %v2423, %v2511
      %2513 = vmatmul.bf16.gmra.mxu0 %v1751
      %v2514 = vpop.f32.mrf.mxu0
      %v2515 = vadd.f32 %v2426, %v2514
      %v2516 = vpop.f32.mrf.mxu0
      %v2517 = vadd.f32 %v2428, %v2516
      %2518 = vmatmul.bf16.gmra.mxu0 %v1754
      %v2519 = vpop.f32.mrf.mxu0
      %v2520 = vadd.f32 %v2431, %v2519
      %v2521 = vpop.f32.mrf.mxu0
      %v2522 = vadd.f32 %v2433, %v2521
      %2523 = vmatmul.bf16.gmra.mxu0 %v1757
      %v2524 = vpop.f32.mrf.mxu0
      %v2525 = vadd.f32 %v2436, %v2524
      %v2526 = vpop.f32.mrf.mxu0
      %v2527 = vadd.f32 %v2438, %v2526
      %2528 = vdwg.mxu0
      %2529 = vmatpush.bf16.xpose.msra.mxu0 0
      %2530 = vmatpush.bf16.xpose.msra.mxu0 0
      %2531 = vmatpush.bf16.xpose.msra.mxu0 0
      %2532 = vmatpush.bf16.xpose.msra.mxu0 0
      %2533 = vmatpush.bf16.xpose.msra.mxu0 0
      %2534 = vmatpush.bf16.xpose.msra.mxu0 0
      %2535 = vmatpush.bf16.xpose.msra.mxu0 0
      %2536 = vmatpush.bf16.xpose.msra.mxu0 %v2123
      %2537 = vmatmul.bf16.gmra.mxu0 %v1713
      %v2538 = vpop.f32.mrf.mxu0
      %v2539 = vadd.f32 %v2450, %v2538
      %v2540 = vpop.f32.mrf.mxu0
      %v2541 = vadd.f32 %v2452, %v2540
      %2542 = vmatmul.bf16.gmra.mxu0 %v1716
      %v2543 = vpop.f32.mrf.mxu0
      %v2544 = vadd.f32 %v2455, %v2543
      %v2545 = vpop.f32.mrf.mxu0
      %v2546 = vadd.f32 %v2457, %v2545
      %2547 = vmatmul.bf16.gmra.mxu0 %v1719
      %v2548 = vpop.f32.mrf.mxu0
      %v2549 = vadd.f32 %v2460, %v2548
      %v2550 = vpop.f32.mrf.mxu0
      %v2551 = vadd.f32 %v2462, %v2550
      %2552 = vmatmul.bf16.gmra.mxu0 %v1722
      %v2553 = vpop.f32.mrf.mxu0
      %v2554 = vadd.f32 %v2465, %v2553
      %v2555 = vpop.f32.mrf.mxu0
      %v2556 = vadd.f32 %v2467, %v2555
      %2557 = vmatmul.bf16.gmra.mxu0 %v1725
      %v2558 = vpop.f32.mrf.mxu0
      %v2559 = vadd.f32 %v2470, %v2558
      %v2560 = vpop.f32.mrf.mxu0
      %v2561 = vadd.f32 %v2472, %v2560
      %2562 = vmatmul.bf16.gmra.mxu0 %v1728
      %v2563 = vpop.f32.mrf.mxu0
      %v2564 = vadd.f32 %v2475, %v2563
      %v2565 = vpop.f32.mrf.mxu0
      %v2566 = vadd.f32 %v2477, %v2565
      %2567 = vmatmul.bf16.gmra.mxu0 %v1731
      %v2568 = vpop.f32.mrf.mxu0
      %v2569 = vadd.f32 %v2480, %v2568
      %v2570 = vpop.f32.mrf.mxu0
      %v2571 = vadd.f32 %v2482, %v2570
      %2572 = vmatmul.bf16.gmra.mxu0 %v1734
      %v2573 = vpop.f32.mrf.mxu0
      %v2574 = vadd.f32 %v2485, %v2573
      %v2575 = vpop.f32.mrf.mxu0
      %v2576 = vadd.f32 %v2487, %v2575
      %2577 = vmatmul.bf16.gmra.mxu0 %v1737
      %v2578 = vpop.f32.mrf.mxu0
      %v2579 = vadd.f32 %v2490, %v2578
      %v2580 = vpop.f32.mrf.mxu0
      %v2581 = vadd.f32 %v2492, %v2580
      %2582 = vmatmul.bf16.gmra.mxu0 %v1740
      %v2583 = vpop.f32.mrf.mxu0
      %v2584 = vadd.f32 %v2495, %v2583
      %v2585 = vpop.f32.mrf.mxu0
      %v2586 = vadd.f32 %v2497, %v2585
      %2587 = vmatmul.bf16.gmra.mxu0 %v1743
      %v2588 = vpop.f32.mrf.mxu0
      %v2589 = vadd.f32 %v2500, %v2588
      %v2590 = vpop.f32.mrf.mxu0
      %v2591 = vadd.f32 %v2502, %v2590
      %2592 = vmatmul.bf16.gmra.mxu0 %v1746
      %v2593 = vpop.f32.mrf.mxu0
      %v2594 = vadd.f32 %v2505, %v2593
      %v2595 = vpop.f32.mrf.mxu0
      %v2596 = vadd.f32 %v2507, %v2595
      %2597 = vmatmul.bf16.gmra.mxu0 %v1749
      %v2598 = vpop.f32.mrf.mxu0
      %v2599 = vadd.f32 %v2510, %v2598
      %v2600 = vpop.f32.mrf.mxu0
      %v2601 = vadd.f32 %v2512, %v2600
      %2602 = vmatmul.bf16.gmra.mxu0 %v1752
      %v2603 = vpop.f32.mrf.mxu0
      %v2604 = vadd.f32 %v2515, %v2603
      %v2605 = vpop.f32.mrf.mxu0
      %v2606 = vadd.f32 %v2517, %v2605
      %2607 = vmatmul.bf16.gmra.mxu0 %v1755
      %v2608 = vpop.f32.mrf.mxu0
      %v2609 = vadd.f32 %v2520, %v2608
      %v2610 = vpop.f32.mrf.mxu0
      %v2611 = vadd.f32 %v2522, %v2610
      %2612 = vmatmul.bf16.gmra.mxu0 %v1758
      %v2613 = vpop.f32.mrf.mxu0
      %v2614 = vadd.f32 %v2525, %v2613
      %v2615 = vpop.f32.mrf.mxu0
      %v2616 = vadd.f32 %v2527, %v2615
      %2617 = vdwg.mxu0
      %2618 = vmatpush.bf16.xpose.msra.mxu0 0
      %2619 = vmatpush.bf16.xpose.msra.mxu0 0
      %2620 = vmatpush.bf16.xpose.msra.mxu0 0
      %2621 = vmatpush.bf16.xpose.msra.mxu0 0
      %2622 = vmatpush.bf16.xpose.msra.mxu0 0
      %2623 = vmatpush.bf16.xpose.msra.mxu0 0
      %2624 = vmatpush.bf16.xpose.msra.mxu0 0
      %2625 = vmatpush.bf16.xpose.msra.mxu0 %v2124
      %2626 = vmatmul.bf16.gmra.mxu0 %v1714
      %v2627 = vpop.f32.mrf.mxu0
      %v2628 = vadd.f32 %v2539, %v2627
      %v2629 = vpop.f32.mrf.mxu0
      %v2630 = vadd.f32 %v2541, %v2629
      %2631 = vmatmul.bf16.gmra.mxu0 %v1717
      %v2632 = vpop.f32.mrf.mxu0
      %v2633 = vadd.f32 %v2544, %v2632
      %v2634 = vpop.f32.mrf.mxu0
      %v2635 = vadd.f32 %v2546, %v2634
      %2636 = vmatmul.bf16.gmra.mxu0 %v1720
      %v2637 = vpop.f32.mrf.mxu0
      %v2638 = vadd.f32 %v2549, %v2637
      %v2639 = vpop.f32.mrf.mxu0
      %v2640 = vadd.f32 %v2551, %v2639
      %2641 = vmatmul.bf16.gmra.mxu0 %v1723
      %v2642 = vpop.f32.mrf.mxu0
      %v2643 = vadd.f32 %v2554, %v2642
      %v2644 = vpop.f32.mrf.mxu0
      %v2645 = vadd.f32 %v2556, %v2644
      %2646 = vmatmul.bf16.gmra.mxu0 %v1726
      %v2647 = vpop.f32.mrf.mxu0
      %v2648 = vadd.f32 %v2559, %v2647
      %v2649 = vpop.f32.mrf.mxu0
      %v2650 = vadd.f32 %v2561, %v2649
      %2651 = vmatmul.bf16.gmra.mxu0 %v1729
      %v2652 = vpop.f32.mrf.mxu0
      %v2653 = vadd.f32 %v2564, %v2652
      %v2654 = vpop.f32.mrf.mxu0
      %v2655 = vadd.f32 %v2566, %v2654
      %2656 = vmatmul.bf16.gmra.mxu0 %v1732
      %v2657 = vpop.f32.mrf.mxu0
      %v2658 = vadd.f32 %v2569, %v2657
      %v2659 = vpop.f32.mrf.mxu0
      %v2660 = vadd.f32 %v2571, %v2659
      %2661 = vmatmul.bf16.gmra.mxu0 %v1735
      %v2662 = vpop.f32.mrf.mxu0
      %v2663 = vadd.f32 %v2574, %v2662
      %v2664 = vpop.f32.mrf.mxu0
      %v2665 = vadd.f32 %v2576, %v2664
      %2666 = vmatmul.bf16.gmra.mxu0 %v1738
      %v2667 = vpop.f32.mrf.mxu0
      %v2668 = vadd.f32 %v2579, %v2667
      %v2669 = vpop.f32.mrf.mxu0
      %v2670 = vadd.f32 %v2581, %v2669
      %2671 = vmatmul.bf16.gmra.mxu0 %v1741
      %v2672 = vpop.f32.mrf.mxu0
      %v2673 = vadd.f32 %v2584, %v2672
      %v2674 = vpop.f32.mrf.mxu0
      %v2675 = vadd.f32 %v2586, %v2674
      %2676 = vmatmul.bf16.gmra.mxu0 %v1744
      %v2677 = vpop.f32.mrf.mxu0
      %v2678 = vadd.f32 %v2589, %v2677
      %v2679 = vpop.f32.mrf.mxu0
      %v2680 = vadd.f32 %v2591, %v2679
      %2681 = vmatmul.bf16.gmra.mxu0 %v1747
      %v2682 = vpop.f32.mrf.mxu0
      %v2683 = vadd.f32 %v2594, %v2682
      %v2684 = vpop.f32.mrf.mxu0
      %v2685 = vadd.f32 %v2596, %v2684
      %2686 = vmatmul.bf16.gmra.mxu0 %v1750
      %v2687 = vpop.f32.mrf.mxu0
      %v2688 = vadd.f32 %v2599, %v2687
      %v2689 = vpop.f32.mrf.mxu0
      %v2690 = vadd.f32 %v2601, %v2689
      %2691 = vmatmul.bf16.gmra.mxu0 %v1753
      %v2692 = vpop.f32.mrf.mxu0
      %v2693 = vadd.f32 %v2604, %v2692
      %v2694 = vpop.f32.mrf.mxu0
      %v2695 = vadd.f32 %v2606, %v2694
      %2696 = vmatmul.bf16.gmra.mxu0 %v1756
      %v2697 = vpop.f32.mrf.mxu0
      %v2698 = vadd.f32 %v2609, %v2697
      %v2699 = vpop.f32.mrf.mxu0
      %v2700 = vadd.f32 %v2611, %v2699
      %2701 = vmatmul.bf16.gmra.mxu0 %v1759
      %v2702 = vpop.f32.mrf.mxu0
      %v2703 = vadd.f32 %v2614, %v2702
      %v2704 = vpop.f32.mrf.mxu0
      %v2705 = vadd.f32 %v2616, %v2704
      %2706 = vdwg.mxu0
      %2707 = vmatpush.bf16.xpose.msra.mxu0 0
      %2708 = vmatpush.bf16.xpose.msra.mxu0 0
      %2709 = vmatpush.bf16.xpose.msra.mxu0 0
      %2710 = vmatpush.bf16.xpose.msra.mxu0 0
      %2711 = vmatpush.bf16.xpose.msra.mxu0 0
      %2712 = vmatpush.bf16.xpose.msra.mxu0 0
      %2713 = vmatpush.bf16.xpose.msra.mxu0 0
      %2714 = vmatpush.bf16.xpose.msra.mxu0 %v2125
      %2715 = vmatmul.bf16.gmra.mxu0 %v1599
      %v2716 = vpop.f32.mrf.mxu0
      %v2717 = vadd.f32 %v2628, %v2716
      %v2718 = vpop.f32.mrf.mxu0
      %v2719 = vadd.f32 %v2630, %v2718
      %2720 = vmatmul.bf16.gmra.mxu0 %v1602
      %v2721 = vpop.f32.mrf.mxu0
      %v2722 = vadd.f32 %v2633, %v2721
      %v2723 = vpop.f32.mrf.mxu0
      %v2724 = vadd.f32 %v2635, %v2723
      %2725 = vmatmul.bf16.gmra.mxu0 %v1605
      %v2726 = vpop.f32.mrf.mxu0
      %v2727 = vadd.f32 %v2638, %v2726
      %v2728 = vpop.f32.mrf.mxu0
      %v2729 = vadd.f32 %v2640, %v2728
      %2730 = vmatmul.bf16.gmra.mxu0 %v1828
      %v2731 = vpop.f32.mrf.mxu0
      %v2732 = vadd.f32 %v2643, %v2731
      %v2733 = vpop.f32.mrf.mxu0
      %v2734 = vadd.f32 %v2645, %v2733
      %2735 = vmatmul.bf16.gmra.mxu0 %v1611
      %v2736 = vpop.f32.mrf.mxu0
      %v2737 = vadd.f32 %v2648, %v2736
      %v2738 = vpop.f32.mrf.mxu0
      %v2739 = vadd.f32 %v2650, %v2738
      %2740 = vmatmul.bf16.gmra.mxu0 %v1614
      %v2741 = vpop.f32.mrf.mxu0
      %v2742 = vadd.f32 %v2653, %v2741
      %v2743 = vpop.f32.mrf.mxu0
      %v2744 = vadd.f32 %v2655, %v2743
      %2745 = vmatmul.bf16.gmra.mxu0 %v1617
      %v2746 = vpop.f32.mrf.mxu0
      %v2747 = vadd.f32 %v2658, %v2746
      %v2748 = vpop.f32.mrf.mxu0
      %v2749 = vadd.f32 %v2660, %v2748
      %2750 = vmatmul.bf16.gmra.mxu0 %v1831
      %v2751 = vpop.f32.mrf.mxu0
      %v2752 = vadd.f32 %v2663, %v2751
      %v2753 = vpop.f32.mrf.mxu0
      %v2754 = vadd.f32 %v2665, %v2753
      %2755 = vmatmul.bf16.gmra.mxu0 %v1623
      %v2756 = vpop.f32.mrf.mxu0
      %v2757 = vadd.f32 %v2668, %v2756
      %v2758 = vpop.f32.mrf.mxu0
      %v2759 = vadd.f32 %v2670, %v2758
      %2760 = vmatmul.bf16.gmra.mxu0 %v1626
      %v2761 = vpop.f32.mrf.mxu0
      %v2762 = vadd.f32 %v2673, %v2761
      %v2763 = vpop.f32.mrf.mxu0
      %v2764 = vadd.f32 %v2675, %v2763
      %2765 = vmatmul.bf16.gmra.mxu0 %v1629
      %v2766 = vpop.f32.mrf.mxu0
      %v2767 = vadd.f32 %v2678, %v2766
      %v2768 = vpop.f32.mrf.mxu0
      %v2769 = vadd.f32 %v2680, %v2768
      %2770 = vmatmul.bf16.gmra.mxu0 %v1834
      %v2771 = vpop.f32.mrf.mxu0
      %v2772 = vadd.f32 %v2683, %v2771
      %v2773 = vpop.f32.mrf.mxu0
      %v2774 = vadd.f32 %v2685, %v2773
      %2775 = vmatmul.bf16.gmra.mxu0 %v1635
      %v2776 = vpop.f32.mrf.mxu0
      %v2777 = vadd.f32 %v2688, %v2776
      %v2778 = vpop.f32.mrf.mxu0
      %v2779 = vadd.f32 %v2690, %v2778
      %2780 = vmatmul.bf16.gmra.mxu0 %v1638
      %v2781 = vpop.f32.mrf.mxu0
      %v2782 = vadd.f32 %v2693, %v2781
      %v2783 = vpop.f32.mrf.mxu0
      %v2784 = vadd.f32 %v2695, %v2783
      %2785 = vmatmul.bf16.gmra.mxu0 %v1641
      %v2786 = vpop.f32.mrf.mxu0
      %v2787 = vadd.f32 %v2698, %v2786
      %v2788 = vpop.f32.mrf.mxu0
      %v2789 = vadd.f32 %v2700, %v2788
      %2790 = vmatmul.bf16.gmra.mxu0 %v1837
      %v2791 = vpop.f32.mrf.mxu0
      %v2792 = vadd.f32 %v2703, %v2791
      %v2793 = vpop.f32.mrf.mxu0
      %v2794 = vadd.f32 %v2705, %v2793
      %2795 = vdwg.mxu0
      %2796 = vmatpush.bf16.xpose.msra.mxu0 0
      %2797 = vmatpush.bf16.xpose.msra.mxu0 0
      %2798 = vmatpush.bf16.xpose.msra.mxu0 0
      %2799 = vmatpush.bf16.xpose.msra.mxu0 0
      %2800 = vmatpush.bf16.xpose.msra.mxu0 0
      %2801 = vmatpush.bf16.xpose.msra.mxu0 0
      %2802 = vmatpush.bf16.xpose.msra.mxu0 0
      %2803 = vmatpush.bf16.xpose.msra.mxu0 %v2126
      %2804 = vmatmul.bf16.gmra.mxu0 %v1600
      %v2805 = vpop.f32.mrf.mxu0
      %v2806 = vadd.f32 %v2717, %v2805
      %v2807 = vpop.f32.mrf.mxu0
      %v2808 = vadd.f32 %v2719, %v2807
      %2809 = vmatmul.bf16.gmra.mxu0 %v1603
      %v2810 = vpop.f32.mrf.mxu0
      %v2811 = vadd.f32 %v2722, %v2810
      %v2812 = vpop.f32.mrf.mxu0
      %v2813 = vadd.f32 %v2724, %v2812
      %2814 = vmatmul.bf16.gmra.mxu0 %v1606
      %v2815 = vpop.f32.mrf.mxu0
      %v2816 = vadd.f32 %v2727, %v2815
      %v2817 = vpop.f32.mrf.mxu0
      %v2818 = vadd.f32 %v2729, %v2817
      %2819 = vmatmul.bf16.gmra.mxu0 %v1829
      %v2820 = vpop.f32.mrf.mxu0
      %v2821 = vadd.f32 %v2732, %v2820
      %v2822 = vpop.f32.mrf.mxu0
      %v2823 = vadd.f32 %v2734, %v2822
      %2824 = vmatmul.bf16.gmra.mxu0 %v1612
      %v2825 = vpop.f32.mrf.mxu0
      %v2826 = vadd.f32 %v2737, %v2825
      %v2827 = vpop.f32.mrf.mxu0
      %v2828 = vadd.f32 %v2739, %v2827
      %2829 = vmatmul.bf16.gmra.mxu0 %v1615
      %v2830 = vpop.f32.mrf.mxu0
      %v2831 = vadd.f32 %v2742, %v2830
      %v2832 = vpop.f32.mrf.mxu0
      %v2833 = vadd.f32 %v2744, %v2832
      %2834 = vmatmul.bf16.gmra.mxu0 %v1618
      %v2835 = vpop.f32.mrf.mxu0
      %v2836 = vadd.f32 %v2747, %v2835
      %v2837 = vpop.f32.mrf.mxu0
      %v2838 = vadd.f32 %v2749, %v2837
      %2839 = vmatmul.bf16.gmra.mxu0 %v1832
      %v2840 = vpop.f32.mrf.mxu0
      %v2841 = vadd.f32 %v2752, %v2840
      %v2842 = vpop.f32.mrf.mxu0
      %v2843 = vadd.f32 %v2754, %v2842
      %2844 = vmatmul.bf16.gmra.mxu0 %v1624
      %v2845 = vpop.f32.mrf.mxu0
      %v2846 = vadd.f32 %v2757, %v2845
      %v2847 = vpop.f32.mrf.mxu0
      %v2848 = vadd.f32 %v2759, %v2847
      %2849 = vmatmul.bf16.gmra.mxu0 %v1627
      %v2850 = vpop.f32.mrf.mxu0
      %v2851 = vadd.f32 %v2762, %v2850
      %v2852 = vpop.f32.mrf.mxu0
      %v2853 = vadd.f32 %v2764, %v2852
      %2854 = vmatmul.bf16.gmra.mxu0 %v1630
      %v2855 = vpop.f32.mrf.mxu0
      %v2856 = vadd.f32 %v2767, %v2855
      %v2857 = vpop.f32.mrf.mxu0
      %v2858 = vadd.f32 %v2769, %v2857
      %2859 = vmatmul.bf16.gmra.mxu0 %v1835
      %v2860 = vpop.f32.mrf.mxu0
      %v2861 = vadd.f32 %v2772, %v2860
      %v2862 = vpop.f32.mrf.mxu0
      %v2863 = vadd.f32 %v2774, %v2862
      %2864 = vmatmul.bf16.gmra.mxu0 %v1636
      %v2865 = vpop.f32.mrf.mxu0
      %v2866 = vadd.f32 %v2777, %v2865
      %v2867 = vpop.f32.mrf.mxu0
      %v2868 = vadd.f32 %v2779, %v2867
      %2869 = vmatmul.bf16.gmra.mxu0 %v1639
      %v2870 = vpop.f32.mrf.mxu0
      %v2871 = vadd.f32 %v2782, %v2870
      %v2872 = vpop.f32.mrf.mxu0
      %v2873 = vadd.f32 %v2784, %v2872
      %2874 = vmatmul.bf16.gmra.mxu0 %v1642
      %v2875 = vpop.f32.mrf.mxu0
      %v2876 = vadd.f32 %v2787, %v2875
      %v2877 = vpop.f32.mrf.mxu0
      %v2878 = vadd.f32 %v2789, %v2877
      %2879 = vmatmul.bf16.gmra.mxu0 %v1838
      %v2880 = vpop.f32.mrf.mxu0
      %v2881 = vadd.f32 %v2792, %v2880
      %v2882 = vpop.f32.mrf.mxu0
      %v2883 = vadd.f32 %v2794, %v2882
      %2884 = vdwg.mxu0
      %2885 = vmatpush.bf16.xpose.msra.mxu0 0
      %2886 = vmatpush.bf16.xpose.msra.mxu0 0
      %2887 = vmatpush.bf16.xpose.msra.mxu0 0
      %2888 = vmatpush.bf16.xpose.msra.mxu0 0
      %2889 = vmatpush.bf16.xpose.msra.mxu0 0
      %2890 = vmatpush.bf16.xpose.msra.mxu0 0
      %2891 = vmatpush.bf16.xpose.msra.mxu0 0
      %2892 = vmatpush.bf16.xpose.msra.mxu0 %v2127
      %2893 = vmatmul.bf16.gmra.mxu0 %v1601
      %v2894 = vpop.f32.mrf.mxu0
      %v2895 = vadd.f32 %v2806, %v2894
      %v2896 = vpop.f32.mrf.mxu0
      %v2897 = vadd.f32 %v2808, %v2896
      %2898 = vmatmul.bf16.gmra.mxu0 %v1604
      %v2899 = vpop.f32.mrf.mxu0
      %v2900 = vadd.f32 %v2811, %v2899
      %v2901 = vpop.f32.mrf.mxu0
      %v2902 = vadd.f32 %v2813, %v2901
      %2903 = vmatmul.bf16.gmra.mxu0 %v1607
      %v2904 = vpop.f32.mrf.mxu0
      %v2905 = vadd.f32 %v2816, %v2904
      %v2906 = vpop.f32.mrf.mxu0
      %v2907 = vadd.f32 %v2818, %v2906
      %2908 = vmatmul.bf16.gmra.mxu0 %v1830
      %v2909 = vpop.f32.mrf.mxu0
      %v2910 = vadd.f32 %v2821, %v2909
      %v2911 = vpop.f32.mrf.mxu0
      %v2912 = vadd.f32 %v2823, %v2911
      %2913 = vmatmul.bf16.gmra.mxu0 %v1613
      %v2914 = vpop.f32.mrf.mxu0
      %v2915 = vadd.f32 %v2826, %v2914
      %v2916 = vpop.f32.mrf.mxu0
      %v2917 = vadd.f32 %v2828, %v2916
      %2918 = vmatmul.bf16.gmra.mxu0 %v1616
      %v2919 = vpop.f32.mrf.mxu0
      %v2920 = vadd.f32 %v2831, %v2919
      %v2921 = vpop.f32.mrf.mxu0
      %v2922 = vadd.f32 %v2833, %v2921
      %2923 = vmatmul.bf16.gmra.mxu0 %v1619
      %v2924 = vpop.f32.mrf.mxu0
      %v2925 = vadd.f32 %v2836, %v2924
      %v2926 = vpop.f32.mrf.mxu0
      %v2927 = vadd.f32 %v2838, %v2926
      %2928 = vmatmul.bf16.gmra.mxu0 %v1833
      %v2929 = vpop.f32.mrf.mxu0
      %v2930 = vadd.f32 %v2841, %v2929
      %v2931 = vpop.f32.mrf.mxu0
      %v2932 = vadd.f32 %v2843, %v2931
      %2933 = vmatmul.bf16.gmra.mxu0 %v1625
      %v2934 = vpop.f32.mrf.mxu0
      %v2935 = vadd.f32 %v2846, %v2934
      %v2936 = vpop.f32.mrf.mxu0
      %v2937 = vadd.f32 %v2848, %v2936
      %2938 = vmatmul.bf16.gmra.mxu0 %v1628
      %v2939 = vpop.f32.mrf.mxu0
      %v2940 = vadd.f32 %v2851, %v2939
      %v2941 = vpop.f32.mrf.mxu0
      %v2942 = vadd.f32 %v2853, %v2941
      %2943 = vmatmul.bf16.gmra.mxu0 %v1631
      %v2944 = vpop.f32.mrf.mxu0
      %v2945 = vadd.f32 %v2856, %v2944
      %v2946 = vpop.f32.mrf.mxu0
      %v2947 = vadd.f32 %v2858, %v2946
      %2948 = vmatmul.bf16.gmra.mxu0 %v1836
      %v2949 = vpop.f32.mrf.mxu0
      %v2950 = vadd.f32 %v2861, %v2949
      %v2951 = vpop.f32.mrf.mxu0
      %v2952 = vadd.f32 %v2863, %v2951
      %2953 = vmatmul.bf16.gmra.mxu0 %v1637
      %v2954 = vpop.f32.mrf.mxu0
      %v2955 = vadd.f32 %v2866, %v2954
      %v2956 = vpop.f32.mrf.mxu0
      %v2957 = vadd.f32 %v2868, %v2956
      %2958 = vmatmul.bf16.gmra.mxu0 %v1640
      %v2959 = vpop.f32.mrf.mxu0
      %v2960 = vadd.f32 %v2871, %v2959
      %v2961 = vpop.f32.mrf.mxu0
      %v2962 = vadd.f32 %v2873, %v2961
      %2963 = vmatmul.bf16.gmra.mxu0 %v1643
      %v2964 = vpop.f32.mrf.mxu0
      %v2965 = vadd.f32 %v2876, %v2964
      %v2966 = vpop.f32.mrf.mxu0
      %v2967 = vadd.f32 %v2878, %v2966
      %2968 = vmatmul.bf16.gmra.mxu0 %v1839
      %v2969 = vpop.f32.mrf.mxu0
      %v2970 = vadd.f32 %v2881, %v2969
      %v2971 = vpop.f32.mrf.mxu0
      %v2972 = vadd.f32 %v2883, %v2971
      %2973 = vdwg.mxu0
      %2974 = vmatpush.bf16.xpose.msra.mxu0 0
      %2975 = vmatpush.bf16.xpose.msra.mxu0 0
      %2976 = vmatpush.bf16.xpose.msra.mxu0 0
      %2977 = vmatpush.bf16.xpose.msra.mxu0 0
      %2978 = vmatpush.bf16.xpose.msra.mxu0 0
      %2979 = vmatpush.bf16.xpose.msra.mxu0 0
      %2980 = vmatpush.bf16.xpose.msra.mxu0 0
      %2981 = vmatpush.bf16.xpose.msra.mxu0 %v2128
      %2982 = vmatmul.bf16.gmra.mxu0 %v1608
      %v2983 = vpop.f32.mrf.mxu0
      %v2984 = vadd.f32 %v2895, %v2983
      %v2985 = vpop.f32.mrf.mxu0
      %v2986 = vadd.f32 %v2897, %v2985
      %2987 = vmatmul.bf16.gmra.mxu0 %v1611
      %v2988 = vpop.f32.mrf.mxu0
      %v2989 = vadd.f32 %v2900, %v2988
      %v2990 = vpop.f32.mrf.mxu0
      %v2991 = vadd.f32 %v2902, %v2990
      %2992 = vmatmul.bf16.gmra.mxu0 %v1614
      %v2993 = vpop.f32.mrf.mxu0
      %v2994 = vadd.f32 %v2905, %v2993
      %v2995 = vpop.f32.mrf.mxu0
      %v2996 = vadd.f32 %v2907, %v2995
      %2997 = vmatmul.bf16.gmra.mxu0 %v1617
      %v2998 = vpop.f32.mrf.mxu0
      %v2999 = vadd.f32 %v2910, %v2998
      %v3000 = vpop.f32.mrf.mxu0
      %v3001 = vadd.f32 %v2912, %v3000
      %3002 = vmatmul.bf16.gmra.mxu0 %v1620
      %v3003 = vpop.f32.mrf.mxu0
      %v3004 = vadd.f32 %v2915, %v3003
      %v3005 = vpop.f32.mrf.mxu0
      %v3006 = vadd.f32 %v2917, %v3005
      %3007 = vmatmul.bf16.gmra.mxu0 %v1623
      %v3008 = vpop.f32.mrf.mxu0
      %v3009 = vadd.f32 %v2920, %v3008
      %v3010 = vpop.f32.mrf.mxu0
      %v3011 = vadd.f32 %v2922, %v3010
      %3012 = vmatmul.bf16.gmra.mxu0 %v1626
      %v3013 = vpop.f32.mrf.mxu0
      %v3014 = vadd.f32 %v2925, %v3013
      %v3015 = vpop.f32.mrf.mxu0
      %v3016 = vadd.f32 %v2927, %v3015
      %3017 = vmatmul.bf16.gmra.mxu0 %v1629
      %v3018 = vpop.f32.mrf.mxu0
      %v3019 = vadd.f32 %v2930, %v3018
      %v3020 = vpop.f32.mrf.mxu0
      %v3021 = vadd.f32 %v2932, %v3020
      %3022 = vmatmul.bf16.gmra.mxu0 %v1632
      %v3023 = vpop.f32.mrf.mxu0
      %v3024 = vadd.f32 %v2935, %v3023
      %v3025 = vpop.f32.mrf.mxu0
      %v3026 = vadd.f32 %v2937, %v3025
      %3027 = vmatmul.bf16.gmra.mxu0 %v1635
      %v3028 = vpop.f32.mrf.mxu0
      %v3029 = vadd.f32 %v2940, %v3028
      %v3030 = vpop.f32.mrf.mxu0
      %v3031 = vadd.f32 %v2942, %v3030
      %3032 = vmatmul.bf16.gmra.mxu0 %v1638
      %v3033 = vpop.f32.mrf.mxu0
      %v3034 = vadd.f32 %v2945, %v3033
      %v3035 = vpop.f32.mrf.mxu0
      %v3036 = vadd.f32 %v2947, %v3035
      %3037 = vmatmul.bf16.gmra.mxu0 %v1641
      %v3038 = vpop.f32.mrf.mxu0
      %v3039 = vadd.f32 %v2950, %v3038
      %v3040 = vpop.f32.mrf.mxu0
      %v3041 = vadd.f32 %v2952, %v3040
      %3042 = vmatmul.bf16.gmra.mxu0 %v1892
      %v3043 = vpop.f32.mrf.mxu0
      %v3044 = vadd.f32 %v2955, %v3043
      %v3045 = vpop.f32.mrf.mxu0
      %v3046 = vadd.f32 %v2957, %v3045
      %3047 = vmatmul.bf16.gmra.mxu0 %v1895
      %v3048 = vpop.f32.mrf.mxu0
      %v3049 = vadd.f32 %v2960, %v3048
      %v3050 = vpop.f32.mrf.mxu0
      %v3051 = vadd.f32 %v2962, %v3050
      %3052 = vmatmul.bf16.gmra.mxu0 %v1898
      %v3053 = vpop.f32.mrf.mxu0
      %v3054 = vadd.f32 %v2965, %v3053
      %v3055 = vpop.f32.mrf.mxu0
      %v3056 = vadd.f32 %v2967, %v3055
      %3057 = vmatmul.bf16.gmra.mxu0 %v1901
      %v3058 = vpop.f32.mrf.mxu0
      %v3059 = vadd.f32 %v2970, %v3058
      %v3060 = vpop.f32.mrf.mxu0
      %v3061 = vadd.f32 %v2972, %v3060
      %3062 = vdwg.mxu0
      %3063 = vmatpush.bf16.xpose.msra.mxu0 0
      %3064 = vmatpush.bf16.xpose.msra.mxu0 0
      %3065 = vmatpush.bf16.xpose.msra.mxu0 0
      %3066 = vmatpush.bf16.xpose.msra.mxu0 0
      %3067 = vmatpush.bf16.xpose.msra.mxu0 0
      %3068 = vmatpush.bf16.xpose.msra.mxu0 0
      %3069 = vmatpush.bf16.xpose.msra.mxu0 0
      %3070 = vmatpush.bf16.xpose.msra.mxu0 %v2129
      %3071 = vmatmul.bf16.gmra.mxu0 %v1609
      %v3072 = vpop.f32.mrf.mxu0
      %v3073 = vadd.f32 %v2984, %v3072
      %v3074 = vpop.f32.mrf.mxu0
      %v3075 = vadd.f32 %v2986, %v3074
      %3076 = vmatmul.bf16.gmra.mxu0 %v1612
      %v3077 = vpop.f32.mrf.mxu0
      %v3078 = vadd.f32 %v2989, %v3077
      %v3079 = vpop.f32.mrf.mxu0
      %v3080 = vadd.f32 %v2991, %v3079
      %3081 = vmatmul.bf16.gmra.mxu0 %v1615
      %v3082 = vpop.f32.mrf.mxu0
      %v3083 = vadd.f32 %v2994, %v3082
      %v3084 = vpop.f32.mrf.mxu0
      %v3085 = vadd.f32 %v2996, %v3084
      %3086 = vmatmul.bf16.gmra.mxu0 %v1618
      %v3087 = vpop.f32.mrf.mxu0
      %v3088 = vadd.f32 %v2999, %v3087
      %v3089 = vpop.f32.mrf.mxu0
      %v3090 = vadd.f32 %v3001, %v3089
      %3091 = vmatmul.bf16.gmra.mxu0 %v1621
      %v3092 = vpop.f32.mrf.mxu0
      %v3093 = vadd.f32 %v3004, %v3092
      %v3094 = vpop.f32.mrf.mxu0
      %v3095 = vadd.f32 %v3006, %v3094
      %3096 = vmatmul.bf16.gmra.mxu0 %v1624
      %v3097 = vpop.f32.mrf.mxu0
      %v3098 = vadd.f32 %v3009, %v3097
      %v3099 = vpop.f32.mrf.mxu0
      %v3100 = vadd.f32 %v3011, %v3099
      %3101 = vmatmul.bf16.gmra.mxu0 %v1627
      %v3102 = vpop.f32.mrf.mxu0
      %v3103 = vadd.f32 %v3014, %v3102
      %v3104 = vpop.f32.mrf.mxu0
      %v3105 = vadd.f32 %v3016, %v3104
      %3106 = vmatmul.bf16.gmra.mxu0 %v1630
      %v3107 = vpop.f32.mrf.mxu0
      %v3108 = vadd.f32 %v3019, %v3107
      %v3109 = vpop.f32.mrf.mxu0
      %v3110 = vadd.f32 %v3021, %v3109
      %3111 = vmatmul.bf16.gmra.mxu0 %v1633
      %v3112 = vpop.f32.mrf.mxu0
      %v3113 = vadd.f32 %v3024, %v3112
      %v3114 = vpop.f32.mrf.mxu0
      %v3115 = vadd.f32 %v3026, %v3114
      %3116 = vmatmul.bf16.gmra.mxu0 %v1636
      %v3117 = vpop.f32.mrf.mxu0
      %v3118 = vadd.f32 %v3029, %v3117
      %v3119 = vpop.f32.mrf.mxu0
      %v3120 = vadd.f32 %v3031, %v3119
      %3121 = vmatmul.bf16.gmra.mxu0 %v1639
      %v3122 = vpop.f32.mrf.mxu0
      %v3123 = vadd.f32 %v3034, %v3122
      %v3124 = vpop.f32.mrf.mxu0
      %v3125 = vadd.f32 %v3036, %v3124
      %3126 = vmatmul.bf16.gmra.mxu0 %v1642
      %v3127 = vpop.f32.mrf.mxu0
      %v3128 = vadd.f32 %v3039, %v3127
      %v3129 = vpop.f32.mrf.mxu0
      %v3130 = vadd.f32 %v3041, %v3129
      %3131 = vmatmul.bf16.gmra.mxu0 %v1893
      %v3132 = vpop.f32.mrf.mxu0
      %v3133 = vadd.f32 %v3044, %v3132
      %v3134 = vpop.f32.mrf.mxu0
      %v3135 = vadd.f32 %v3046, %v3134
      %3136 = vmatmul.bf16.gmra.mxu0 %v1896
      %v3137 = vpop.f32.mrf.mxu0
      %v3138 = vadd.f32 %v3049, %v3137
      %v3139 = vpop.f32.mrf.mxu0
      %v3140 = vadd.f32 %v3051, %v3139
      %3141 = vmatmul.bf16.gmra.mxu0 %v1899
      %v3142 = vpop.f32.mrf.mxu0
      %v3143 = vadd.f32 %v3054, %v3142
      %v3144 = vpop.f32.mrf.mxu0
      %v3145 = vadd.f32 %v3056, %v3144
      %3146 = vmatmul.bf16.gmra.mxu0 %v1902
      %v3147 = vpop.f32.mrf.mxu0
      %v3148 = vadd.f32 %v3059, %v3147
      %v3149 = vpop.f32.mrf.mxu0
      %v3150 = vadd.f32 %v3061, %v3149
      %3151 = vdwg.mxu0
      %3152 = vmatpush.bf16.xpose.msra.mxu0 0
      %3153 = vmatpush.bf16.xpose.msra.mxu0 0
      %3154 = vmatpush.bf16.xpose.msra.mxu0 0
      %3155 = vmatpush.bf16.xpose.msra.mxu0 0
      %3156 = vmatpush.bf16.xpose.msra.mxu0 0
      %3157 = vmatpush.bf16.xpose.msra.mxu0 0
      %3158 = vmatpush.bf16.xpose.msra.mxu0 0
      %3159 = vmatpush.bf16.xpose.msra.mxu0 %v2130
      %3160 = vmatmul.bf16.gmra.mxu0 %v1610
      %v3161 = vpop.f32.mrf.mxu0
      %v3162 = vadd.f32 %v3073, %v3161
      %v3163 = vpop.f32.mrf.mxu0
      %v3164 = vadd.f32 %v3075, %v3163
      %3165 = vmatmul.bf16.gmra.mxu0 %v1613
      %v3166 = vpop.f32.mrf.mxu0
      %v3167 = vadd.f32 %v3078, %v3166
      %v3168 = vpop.f32.mrf.mxu0
      %v3169 = vadd.f32 %v3080, %v3168
      %3170 = vmatmul.bf16.gmra.mxu0 %v1616
      %v3171 = vpop.f32.mrf.mxu0
      %v3172 = vadd.f32 %v3083, %v3171
      %v3173 = vpop.f32.mrf.mxu0
      %v3174 = vadd.f32 %v3085, %v3173
      %3175 = vmatmul.bf16.gmra.mxu0 %v1619
      %v3176 = vpop.f32.mrf.mxu0
      %v3177 = vadd.f32 %v3088, %v3176
      %v3178 = vpop.f32.mrf.mxu0
      %v3179 = vadd.f32 %v3090, %v3178
      %3180 = vmatmul.bf16.gmra.mxu0 %v1622
      %v3181 = vpop.f32.mrf.mxu0
      %v3182 = vadd.f32 %v3093, %v3181
      %v3183 = vpop.f32.mrf.mxu0
      %v3184 = vadd.f32 %v3095, %v3183
      %3185 = vmatmul.bf16.gmra.mxu0 %v1625
      %v3186 = vpop.f32.mrf.mxu0
      %v3187 = vadd.f32 %v3098, %v3186
      %v3188 = vpop.f32.mrf.mxu0
      %v3189 = vadd.f32 %v3100, %v3188
      %3190 = vmatmul.bf16.gmra.mxu0 %v1628
      %v3191 = vpop.f32.mrf.mxu0
      %v3192 = vadd.f32 %v3103, %v3191
      %v3193 = vpop.f32.mrf.mxu0
      %v3194 = vadd.f32 %v3105, %v3193
      %3195 = vmatmul.bf16.gmra.mxu0 %v1631
      %v3196 = vpop.f32.mrf.mxu0
      %v3197 = vadd.f32 %v3108, %v3196
      %v3198 = vpop.f32.mrf.mxu0
      %v3199 = vadd.f32 %v3110, %v3198
      %3200 = vmatmul.bf16.gmra.mxu0 %v1634
      %v3201 = vpop.f32.mrf.mxu0
      %v3202 = vadd.f32 %v3113, %v3201
      %v3203 = vpop.f32.mrf.mxu0
      %v3204 = vadd.f32 %v3115, %v3203
      %3205 = vmatmul.bf16.gmra.mxu0 %v1637
      %v3206 = vpop.f32.mrf.mxu0
      %v3207 = vadd.f32 %v3118, %v3206
      %v3208 = vpop.f32.mrf.mxu0
      %v3209 = vadd.f32 %v3120, %v3208
      %3210 = vmatmul.bf16.gmra.mxu0 %v1640
      %v3211 = vpop.f32.mrf.mxu0
      %v3212 = vadd.f32 %v3123, %v3211
      %v3213 = vpop.f32.mrf.mxu0
      %v3214 = vadd.f32 %v3125, %v3213
      %3215 = vmatmul.bf16.gmra.mxu0 %v1643
      %v3216 = vpop.f32.mrf.mxu0
      %v3217 = vadd.f32 %v3128, %v3216
      %v3218 = vpop.f32.mrf.mxu0
      %v3219 = vadd.f32 %v3130, %v3218
      %3220 = vmatmul.bf16.gmra.mxu0 %v1894
      %v3221 = vpop.f32.mrf.mxu0
      %v3222 = vadd.f32 %v3133, %v3221
      %v3223 = vpop.f32.mrf.mxu0
      %v3224 = vadd.f32 %v3135, %v3223
      %3225 = vmatmul.bf16.gmra.mxu0 %v1897
      %v3226 = vpop.f32.mrf.mxu0
      %v3227 = vadd.f32 %v3138, %v3226
      %v3228 = vpop.f32.mrf.mxu0
      %v3229 = vadd.f32 %v3140, %v3228
      %3230 = vmatmul.bf16.gmra.mxu0 %v1900
      %v3231 = vpop.f32.mrf.mxu0
      %v3232 = vadd.f32 %v3143, %v3231
      %v3233 = vpop.f32.mrf.mxu0
      %v3234 = vadd.f32 %v3145, %v3233
      %3235 = vmatmul.bf16.gmra.mxu0 %v1903
      %v3236 = vpop.f32.mrf.mxu0
      %v3237 = vadd.f32 %v3148, %v3236
      %v3238 = vpop.f32.mrf.mxu0
      %v3239 = vadd.f32 %v3150, %v3238
      %3240 = vdwg.mxu0
      %3241 = vmatpush.bf16.xpose.msra.mxu0 0
      %3242 = vmatpush.bf16.xpose.msra.mxu0 0
      %3243 = vmatpush.bf16.xpose.msra.mxu0 0
      %3244 = vmatpush.bf16.xpose.msra.mxu0 0
      %3245 = vmatpush.bf16.xpose.msra.mxu0 0
      %3246 = vmatpush.bf16.xpose.msra.mxu0 0
      %3247 = vmatpush.bf16.xpose.msra.mxu0 0
      %3248 = vmatpush.bf16.xpose.msra.mxu0 %v2131
      %3249 = vmatmul.bf16.gmra.mxu0 %v1724
      %v3250 = vpop.f32.mrf.mxu0
      %v3251 = vadd.f32 %v3162, %v3250
      %v3252 = vpop.f32.mrf.mxu0
      %v3253 = vadd.f32 %v3164, %v3252
      %3254 = vmatmul.bf16.gmra.mxu0 %v1727
      %v3255 = vpop.f32.mrf.mxu0
      %v3256 = vadd.f32 %v3167, %v3255
      %v3257 = vpop.f32.mrf.mxu0
      %v3258 = vadd.f32 %v3169, %v3257
      %3259 = vmatmul.bf16.gmra.mxu0 %v1730
      %v3260 = vpop.f32.mrf.mxu0
      %v3261 = vadd.f32 %v3172, %v3260
      %v3262 = vpop.f32.mrf.mxu0
      %v3263 = vadd.f32 %v3174, %v3262
      %3264 = vmatmul.bf16.gmra.mxu0 %v1733
      %v3265 = vpop.f32.mrf.mxu0
      %v3266 = vadd.f32 %v3177, %v3265
      %v3267 = vpop.f32.mrf.mxu0
      %v3268 = vadd.f32 %v3179, %v3267
      %3269 = vmatmul.bf16.gmra.mxu0 %v1736
      %v3270 = vpop.f32.mrf.mxu0
      %v3271 = vadd.f32 %v3182, %v3270
      %v3272 = vpop.f32.mrf.mxu0
      %v3273 = vadd.f32 %v3184, %v3272
      %3274 = vmatmul.bf16.gmra.mxu0 %v1739
      %v3275 = vpop.f32.mrf.mxu0
      %v3276 = vadd.f32 %v3187, %v3275
      %v3277 = vpop.f32.mrf.mxu0
      %v3278 = vadd.f32 %v3189, %v3277
      %3279 = vmatmul.bf16.gmra.mxu0 %v1742
      %v3280 = vpop.f32.mrf.mxu0
      %v3281 = vadd.f32 %v3192, %v3280
      %v3282 = vpop.f32.mrf.mxu0
      %v3283 = vadd.f32 %v3194, %v3282
      %3284 = vmatmul.bf16.gmra.mxu0 %v1745
      %v3285 = vpop.f32.mrf.mxu0
      %v3286 = vadd.f32 %v3197, %v3285
      %v3287 = vpop.f32.mrf.mxu0
      %v3288 = vadd.f32 %v3199, %v3287
      %3289 = vmatmul.bf16.gmra.mxu0 %v1748
      %v3290 = vpop.f32.mrf.mxu0
      %v3291 = vadd.f32 %v3202, %v3290
      %v3292 = vpop.f32.mrf.mxu0
      %v3293 = vadd.f32 %v3204, %v3292
      %3294 = vmatmul.bf16.gmra.mxu0 %v1751
      %v3295 = vpop.f32.mrf.mxu0
      %v3296 = vadd.f32 %v3207, %v3295
      %v3297 = vpop.f32.mrf.mxu0
      %v3298 = vadd.f32 %v3209, %v3297
      %3299 = vmatmul.bf16.gmra.mxu0 %v1754
      %v3300 = vpop.f32.mrf.mxu0
      %v3301 = vadd.f32 %v3212, %v3300
      %v3302 = vpop.f32.mrf.mxu0
      %v3303 = vadd.f32 %v3214, %v3302
      %3304 = vmatmul.bf16.gmra.mxu0 %v1757
      %v3305 = vpop.f32.mrf.mxu0
      %v3306 = vadd.f32 %v3217, %v3305
      %v3307 = vpop.f32.mrf.mxu0
      %v3308 = vadd.f32 %v3219, %v3307
      %3309 = vmatmul.bf16.gmra.mxu0 %v1921
      %v3310 = vpop.f32.mrf.mxu0
      %v3311 = vadd.f32 %v3222, %v3310
      %v3312 = vpop.f32.mrf.mxu0
      %v3313 = vadd.f32 %v3224, %v3312
      %3314 = vmatmul.bf16.gmra.mxu0 %v1924
      %v3315 = vpop.f32.mrf.mxu0
      %v3316 = vadd.f32 %v3227, %v3315
      %v3317 = vpop.f32.mrf.mxu0
      %v3318 = vadd.f32 %v3229, %v3317
      %3319 = vmatmul.bf16.gmra.mxu0 %v1927
      %v3320 = vpop.f32.mrf.mxu0
      %v3321 = vadd.f32 %v3232, %v3320
      %v3322 = vpop.f32.mrf.mxu0
      %v3323 = vadd.f32 %v3234, %v3322
      %3324 = vmatmul.bf16.gmra.mxu0 %v1930
      %v3325 = vpop.f32.mrf.mxu0
      %v3326 = vadd.f32 %v3237, %v3325
      %v3327 = vpop.f32.mrf.mxu0
      %v3328 = vadd.f32 %v3239, %v3327
      %3329 = vdwg.mxu0
      %3330 = vmatpush.bf16.xpose.msra.mxu0 0
      %3331 = vmatpush.bf16.xpose.msra.mxu0 0
      %3332 = vmatpush.bf16.xpose.msra.mxu0 0
      %3333 = vmatpush.bf16.xpose.msra.mxu0 0
      %3334 = vmatpush.bf16.xpose.msra.mxu0 0
      %3335 = vmatpush.bf16.xpose.msra.mxu0 0
      %3336 = vmatpush.bf16.xpose.msra.mxu0 0
      %3337 = vmatpush.bf16.xpose.msra.mxu0 %v2132
      %3338 = vmatmul.bf16.gmra.mxu0 %v1725
      %v3339 = vpop.f32.mrf.mxu0
      %v3340 = vadd.f32 %v3251, %v3339
      %v3341 = vpop.f32.mrf.mxu0
      %v3342 = vadd.f32 %v3253, %v3341
      %3343 = vmatmul.bf16.gmra.mxu0 %v1728
      %v3344 = vpop.f32.mrf.mxu0
      %v3345 = vadd.f32 %v3256, %v3344
      %v3346 = vpop.f32.mrf.mxu0
      %v3347 = vadd.f32 %v3258, %v3346
      %3348 = vmatmul.bf16.gmra.mxu0 %v1731
      %v3349 = vpop.f32.mrf.mxu0
      %v3350 = vadd.f32 %v3261, %v3349
      %v3351 = vpop.f32.mrf.mxu0
      %v3352 = vadd.f32 %v3263, %v3351
      %3353 = vmatmul.bf16.gmra.mxu0 %v1734
      %v3354 = vpop.f32.mrf.mxu0
      %v3355 = vadd.f32 %v3266, %v3354
      %v3356 = vpop.f32.mrf.mxu0
      %v3357 = vadd.f32 %v3268, %v3356
      %3358 = vmatmul.bf16.gmra.mxu0 %v1737
      %v3359 = vpop.f32.mrf.mxu0
      %v3360 = vadd.f32 %v3271, %v3359
      %v3361 = vpop.f32.mrf.mxu0
      %v3362 = vadd.f32 %v3273, %v3361
      %3363 = vmatmul.bf16.gmra.mxu0 %v1740
      %v3364 = vpop.f32.mrf.mxu0
      %v3365 = vadd.f32 %v3276, %v3364
      %v3366 = vpop.f32.mrf.mxu0
      %v3367 = vadd.f32 %v3278, %v3366
      %3368 = vmatmul.bf16.gmra.mxu0 %v1743
      %v3369 = vpop.f32.mrf.mxu0
      %v3370 = vadd.f32 %v3281, %v3369
      %v3371 = vpop.f32.mrf.mxu0
      %v3372 = vadd.f32 %v3283, %v3371
      %3373 = vmatmul.bf16.gmra.mxu0 %v1746
      %v3374 = vpop.f32.mrf.mxu0
      %v3375 = vadd.f32 %v3286, %v3374
      %v3376 = vpop.f32.mrf.mxu0
      %v3377 = vadd.f32 %v3288, %v3376
      %3378 = vmatmul.bf16.gmra.mxu0 %v1749
      %v3379 = vpop.f32.mrf.mxu0
      %v3380 = vadd.f32 %v3291, %v3379
      %v3381 = vpop.f32.mrf.mxu0
      %v3382 = vadd.f32 %v3293, %v3381
      %3383 = vmatmul.bf16.gmra.mxu0 %v1752
      %v3384 = vpop.f32.mrf.mxu0
      %v3385 = vadd.f32 %v3296, %v3384
      %v3386 = vpop.f32.mrf.mxu0
      %v3387 = vadd.f32 %v3298, %v3386
      %3388 = vmatmul.bf16.gmra.mxu0 %v1755
      %v3389 = vpop.f32.mrf.mxu0
      %v3390 = vadd.f32 %v3301, %v3389
      %v3391 = vpop.f32.mrf.mxu0
      %v3392 = vadd.f32 %v3303, %v3391
      %3393 = vmatmul.bf16.gmra.mxu0 %v1758
      %v3394 = vpop.f32.mrf.mxu0
      %v3395 = vadd.f32 %v3306, %v3394
      %v3396 = vpop.f32.mrf.mxu0
      %v3397 = vadd.f32 %v3308, %v3396
      %3398 = vmatmul.bf16.gmra.mxu0 %v1922
      %v3399 = vpop.f32.mrf.mxu0
      %v3400 = vadd.f32 %v3311, %v3399
      %v3401 = vpop.f32.mrf.mxu0
      %v3402 = vadd.f32 %v3313, %v3401
      %3403 = vmatmul.bf16.gmra.mxu0 %v1925
      %v3404 = vpop.f32.mrf.mxu0
      %v3405 = vadd.f32 %v3316, %v3404
      %v3406 = vpop.f32.mrf.mxu0
      %v3407 = vadd.f32 %v3318, %v3406
      %3408 = vmatmul.bf16.gmra.mxu0 %v1928
      %v3409 = vpop.f32.mrf.mxu0
      %v3410 = vadd.f32 %v3321, %v3409
      %v3411 = vpop.f32.mrf.mxu0
      %v3412 = vadd.f32 %v3323, %v3411
      %3413 = vmatmul.bf16.gmra.mxu0 %v1931
      %v3414 = vpop.f32.mrf.mxu0
      %v3415 = vadd.f32 %v3326, %v3414
      %v3416 = vpop.f32.mrf.mxu0
      %v3417 = vadd.f32 %v3328, %v3416
      %3418 = vdwg.mxu0
      %3419 = vmatpush.bf16.xpose.msra.mxu0 0
      %3420 = vmatpush.bf16.xpose.msra.mxu0 0
      %3421 = vmatpush.bf16.xpose.msra.mxu0 0
      %3422 = vmatpush.bf16.xpose.msra.mxu0 0
      %3423 = vmatpush.bf16.xpose.msra.mxu0 0
      %3424 = vmatpush.bf16.xpose.msra.mxu0 0
      %3425 = vmatpush.bf16.xpose.msra.mxu0 0
      %3426 = vmatpush.bf16.xpose.msra.mxu0 %v2133
      %3427 = vmatmul.bf16.gmra.mxu0 %v1726
      %v3428 = vpop.f32.mrf.mxu0
      %v3429 = vadd.f32 %v3340, %v3428
      %v3430 = vpop.f32.mrf.mxu0
      %v3431 = vadd.f32 %v3342, %v3430
      %3432 = vmatmul.bf16.gmra.mxu0 %v1729
      %v3433 = vpop.f32.mrf.mxu0
      %v3434 = vadd.f32 %v3345, %v3433
      %v3435 = vpop.f32.mrf.mxu0
      %v3436 = vadd.f32 %v3347, %v3435
      %3437 = vmatmul.bf16.gmra.mxu0 %v1732
      %v3438 = vpop.f32.mrf.mxu0
      %v3439 = vadd.f32 %v3350, %v3438
      %v3440 = vpop.f32.mrf.mxu0
      %v3441 = vadd.f32 %v3352, %v3440
      %3442 = vmatmul.bf16.gmra.mxu0 %v1735
      %v3443 = vpop.f32.mrf.mxu0
      %v3444 = vadd.f32 %v3355, %v3443
      %v3445 = vpop.f32.mrf.mxu0
      %v3446 = vadd.f32 %v3357, %v3445
      %3447 = vmatmul.bf16.gmra.mxu0 %v1738
      %v3448 = vpop.f32.mrf.mxu0
      %v3449 = vadd.f32 %v3360, %v3448
      %v3450 = vpop.f32.mrf.mxu0
      %v3451 = vadd.f32 %v3362, %v3450
      %3452 = vmatmul.bf16.gmra.mxu0 %v1741
      %v3453 = vpop.f32.mrf.mxu0
      %v3454 = vadd.f32 %v3365, %v3453
      %v3455 = vpop.f32.mrf.mxu0
      %v3456 = vadd.f32 %v3367, %v3455
      %3457 = vmatmul.bf16.gmra.mxu0 %v1744
      %v3458 = vpop.f32.mrf.mxu0
      %v3459 = vadd.f32 %v3370, %v3458
      %v3460 = vpop.f32.mrf.mxu0
      %v3461 = vadd.f32 %v3372, %v3460
      %3462 = vmatmul.bf16.gmra.mxu0 %v1747
      %v3463 = vpop.f32.mrf.mxu0
      %v3464 = vadd.f32 %v3375, %v3463
      %v3465 = vpop.f32.mrf.mxu0
      %v3466 = vadd.f32 %v3377, %v3465
      %3467 = vmatmul.bf16.gmra.mxu0 %v1750
      %v3468 = vpop.f32.mrf.mxu0
      %v3469 = vadd.f32 %v3380, %v3468
      %v3470 = vpop.f32.mrf.mxu0
      %v3471 = vadd.f32 %v3382, %v3470
      %3472 = vmatmul.bf16.gmra.mxu0 %v1753
      %v3473 = vpop.f32.mrf.mxu0
      %v3474 = vadd.f32 %v3385, %v3473
      %v3475 = vpop.f32.mrf.mxu0
      %v3476 = vadd.f32 %v3387, %v3475
      %3477 = vmatmul.bf16.gmra.mxu0 %v1756
      %v3478 = vpop.f32.mrf.mxu0
      %v3479 = vadd.f32 %v3390, %v3478
      %v3480 = vpop.f32.mrf.mxu0
      %v3481 = vadd.f32 %v3392, %v3480
      %3482 = vmatmul.bf16.gmra.mxu0 %v1759
      %v3483 = vpop.f32.mrf.mxu0
      %v3484 = vadd.f32 %v3395, %v3483
      %v3485 = vpop.f32.mrf.mxu0
      %v3486 = vadd.f32 %v3397, %v3485
      %3487 = vmatmul.bf16.gmra.mxu0 %v1923
      %v3488 = vpop.f32.mrf.mxu0
      %v3489 = vadd.f32 %v3400, %v3488
      %v3490 = vpop.f32.mrf.mxu0
      %v3491 = vadd.f32 %v3402, %v3490
      %3492 = vmatmul.bf16.gmra.mxu0 %v1926
      %v3493 = vpop.f32.mrf.mxu0
      %v3494 = vadd.f32 %v3405, %v3493
      %v3495 = vpop.f32.mrf.mxu0
      %v3496 = vadd.f32 %v3407, %v3495
      %3497 = vmatmul.bf16.gmra.mxu0 %v1929
      %v3498 = vpop.f32.mrf.mxu0
      %v3499 = vadd.f32 %v3410, %v3498
      %v3500 = vpop.f32.mrf.mxu0
      %v3501 = vadd.f32 %v3412, %v3500
      %3502 = vmatmul.bf16.gmra.mxu0 %v1932
      %v3503 = vpop.f32.mrf.mxu0
      %v3504 = vadd.f32 %v3415, %v3503
      %v3505 = vpop.f32.mrf.mxu0
      %v3506 = vadd.f32 %v3417, %v3505
      %3507 = vdwg.mxu0
      %3508 = vmatpush.bf16.xpose.msra.mxu0 0
      %3509 = vmatpush.bf16.xpose.msra.mxu0 0
      %3510 = vmatpush.bf16.xpose.msra.mxu0 0
      %3511 = vmatpush.bf16.xpose.msra.mxu0 0
      %3512 = vmatpush.bf16.xpose.msra.mxu0 0
      %3513 = vmatpush.bf16.xpose.msra.mxu0 0
      %3514 = vmatpush.bf16.xpose.msra.mxu0 0
      %3515 = vmatpush.bf16.xpose.msra.mxu0 %v2134
      %3516 = vmatmul.bf16.gmra.mxu0 %v1611
      %v3517 = vpop.f32.mrf.mxu0
      %v3518 = vadd.f32 %v3429, %v3517
      %v3519 = vpop.f32.mrf.mxu0
      %v3520 = vadd.f32 %v3431, %v3519
      %3521 = vmatmul.bf16.gmra.mxu0 %v1614
      %v3522 = vpop.f32.mrf.mxu0
      %v3523 = vadd.f32 %v3434, %v3522
      %v3524 = vpop.f32.mrf.mxu0
      %v3525 = vadd.f32 %v3436, %v3524
      %3526 = vmatmul.bf16.gmra.mxu0 %v1617
      %v3527 = vpop.f32.mrf.mxu0
      %v3528 = vadd.f32 %v3439, %v3527
      %v3529 = vpop.f32.mrf.mxu0
      %v3530 = vadd.f32 %v3441, %v3529
      %3531 = vmatmul.bf16.gmra.mxu0 %v1831
      %v3532 = vpop.f32.mrf.mxu0
      %v3533 = vadd.f32 %v3444, %v3532
      %v3534 = vpop.f32.mrf.mxu0
      %v3535 = vadd.f32 %v3446, %v3534
      %3536 = vmatmul.bf16.gmra.mxu0 %v1623
      %v3537 = vpop.f32.mrf.mxu0
      %v3538 = vadd.f32 %v3449, %v3537
      %v3539 = vpop.f32.mrf.mxu0
      %v3540 = vadd.f32 %v3451, %v3539
      %3541 = vmatmul.bf16.gmra.mxu0 %v1626
      %v3542 = vpop.f32.mrf.mxu0
      %v3543 = vadd.f32 %v3454, %v3542
      %v3544 = vpop.f32.mrf.mxu0
      %v3545 = vadd.f32 %v3456, %v3544
      %3546 = vmatmul.bf16.gmra.mxu0 %v1629
      %v3547 = vpop.f32.mrf.mxu0
      %v3548 = vadd.f32 %v3459, %v3547
      %v3549 = vpop.f32.mrf.mxu0
      %v3550 = vadd.f32 %v3461, %v3549
      %3551 = vmatmul.bf16.gmra.mxu0 %v1834
      %v3552 = vpop.f32.mrf.mxu0
      %v3553 = vadd.f32 %v3464, %v3552
      %v3554 = vpop.f32.mrf.mxu0
      %v3555 = vadd.f32 %v3466, %v3554
      %3556 = vmatmul.bf16.gmra.mxu0 %v1635
      %v3557 = vpop.f32.mrf.mxu0
      %v3558 = vadd.f32 %v3469, %v3557
      %v3559 = vpop.f32.mrf.mxu0
      %v3560 = vadd.f32 %v3471, %v3559
      %3561 = vmatmul.bf16.gmra.mxu0 %v1638
      %v3562 = vpop.f32.mrf.mxu0
      %v3563 = vadd.f32 %v3474, %v3562
      %v3564 = vpop.f32.mrf.mxu0
      %v3565 = vadd.f32 %v3476, %v3564
      %3566 = vmatmul.bf16.gmra.mxu0 %v1641
      %v3567 = vpop.f32.mrf.mxu0
      %v3568 = vadd.f32 %v3479, %v3567
      %v3569 = vpop.f32.mrf.mxu0
      %v3570 = vadd.f32 %v3481, %v3569
      %3571 = vmatmul.bf16.gmra.mxu0 %v1837
      %v3572 = vpop.f32.mrf.mxu0
      %v3573 = vadd.f32 %v3484, %v3572
      %v3574 = vpop.f32.mrf.mxu0
      %v3575 = vadd.f32 %v3486, %v3574
      %3576 = vmatmul.bf16.gmra.mxu0 %v1895
      %v3577 = vpop.f32.mrf.mxu0
      %v3578 = vadd.f32 %v3489, %v3577
      %v3579 = vpop.f32.mrf.mxu0
      %v3580 = vadd.f32 %v3491, %v3579
      %3581 = vmatmul.bf16.gmra.mxu0 %v1898
      %v3582 = vpop.f32.mrf.mxu0
      %v3583 = vadd.f32 %v3494, %v3582
      %v3584 = vpop.f32.mrf.mxu0
      %v3585 = vadd.f32 %v3496, %v3584
      %3586 = vmatmul.bf16.gmra.mxu0 %v1901
      %v3587 = vpop.f32.mrf.mxu0
      %v3588 = vadd.f32 %v3499, %v3587
      %v3589 = vpop.f32.mrf.mxu0
      %v3590 = vadd.f32 %v3501, %v3589
      %3591 = vmatmul.bf16.gmra.mxu0 %v1950
      %v3592 = vpop.f32.mrf.mxu0
      %v3593 = vadd.f32 %v3504, %v3592
      %v3594 = vpop.f32.mrf.mxu0
      %v3595 = vadd.f32 %v3506, %v3594
      %3596 = vdwg.mxu0
      %3597 = vmatpush.bf16.xpose.msra.mxu0 0
      %3598 = vmatpush.bf16.xpose.msra.mxu0 0
      %3599 = vmatpush.bf16.xpose.msra.mxu0 0
      %3600 = vmatpush.bf16.xpose.msra.mxu0 0
      %3601 = vmatpush.bf16.xpose.msra.mxu0 0
      %3602 = vmatpush.bf16.xpose.msra.mxu0 0
      %3603 = vmatpush.bf16.xpose.msra.mxu0 0
      %3604 = vmatpush.bf16.xpose.msra.mxu0 %v2135
      %3605 = vmatmul.bf16.gmra.mxu0 %v1612
      %v3606 = vpop.f32.mrf.mxu0
      %v3607 = vadd.f32 %v3518, %v3606
      %v3608 = vpop.f32.mrf.mxu0
      %v3609 = vadd.f32 %v3520, %v3608
      %3610 = vmatmul.bf16.gmra.mxu0 %v1615
      %v3611 = vpop.f32.mrf.mxu0
      %v3612 = vadd.f32 %v3523, %v3611
      %v3613 = vpop.f32.mrf.mxu0
      %v3614 = vadd.f32 %v3525, %v3613
      %3615 = vmatmul.bf16.gmra.mxu0 %v1618
      %v3616 = vpop.f32.mrf.mxu0
      %v3617 = vadd.f32 %v3528, %v3616
      %v3618 = vpop.f32.mrf.mxu0
      %v3619 = vadd.f32 %v3530, %v3618
      %3620 = vmatmul.bf16.gmra.mxu0 %v1832
      %v3621 = vpop.f32.mrf.mxu0
      %v3622 = vadd.f32 %v3533, %v3621
      %v3623 = vpop.f32.mrf.mxu0
      %v3624 = vadd.f32 %v3535, %v3623
      %3625 = vmatmul.bf16.gmra.mxu0 %v1624
      %v3626 = vpop.f32.mrf.mxu0
      %v3627 = vadd.f32 %v3538, %v3626
      %v3628 = vpop.f32.mrf.mxu0
      %v3629 = vadd.f32 %v3540, %v3628
      %3630 = vmatmul.bf16.gmra.mxu0 %v1627
      %v3631 = vpop.f32.mrf.mxu0
      %v3632 = vadd.f32 %v3543, %v3631
      %v3633 = vpop.f32.mrf.mxu0
      %v3634 = vadd.f32 %v3545, %v3633
      %3635 = vmatmul.bf16.gmra.mxu0 %v1630
      %v3636 = vpop.f32.mrf.mxu0
      %v3637 = vadd.f32 %v3548, %v3636
      %v3638 = vpop.f32.mrf.mxu0
      %v3639 = vadd.f32 %v3550, %v3638
      %3640 = vmatmul.bf16.gmra.mxu0 %v1835
      %v3641 = vpop.f32.mrf.mxu0
      %v3642 = vadd.f32 %v3553, %v3641
      %v3643 = vpop.f32.mrf.mxu0
      %v3644 = vadd.f32 %v3555, %v3643
      %3645 = vmatmul.bf16.gmra.mxu0 %v1636
      %v3646 = vpop.f32.mrf.mxu0
      %v3647 = vadd.f32 %v3558, %v3646
      %v3648 = vpop.f32.mrf.mxu0
      %v3649 = vadd.f32 %v3560, %v3648
      %3650 = vmatmul.bf16.gmra.mxu0 %v1639
      %v3651 = vpop.f32.mrf.mxu0
      %v3652 = vadd.f32 %v3563, %v3651
      %v3653 = vpop.f32.mrf.mxu0
      %v3654 = vadd.f32 %v3565, %v3653
      %3655 = vmatmul.bf16.gmra.mxu0 %v1642
      %v3656 = vpop.f32.mrf.mxu0
      %v3657 = vadd.f32 %v3568, %v3656
      %v3658 = vpop.f32.mrf.mxu0
      %v3659 = vadd.f32 %v3570, %v3658
      %3660 = vmatmul.bf16.gmra.mxu0 %v1838
      %v3661 = vpop.f32.mrf.mxu0
      %v3662 = vadd.f32 %v3573, %v3661
      %v3663 = vpop.f32.mrf.mxu0
      %v3664 = vadd.f32 %v3575, %v3663
      %3665 = vmatmul.bf16.gmra.mxu0 %v1896
      %v3666 = vpop.f32.mrf.mxu0
      %v3667 = vadd.f32 %v3578, %v3666
      %v3668 = vpop.f32.mrf.mxu0
      %v3669 = vadd.f32 %v3580, %v3668
      %3670 = vmatmul.bf16.gmra.mxu0 %v1899
      %v3671 = vpop.f32.mrf.mxu0
      %v3672 = vadd.f32 %v3583, %v3671
      %v3673 = vpop.f32.mrf.mxu0
      %v3674 = vadd.f32 %v3585, %v3673
      %3675 = vmatmul.bf16.gmra.mxu0 %v1902
      %v3676 = vpop.f32.mrf.mxu0
      %v3677 = vadd.f32 %v3588, %v3676
      %v3678 = vpop.f32.mrf.mxu0
      %v3679 = vadd.f32 %v3590, %v3678
      %3680 = vmatmul.bf16.gmra.mxu0 %v1951
      %v3681 = vpop.f32.mrf.mxu0
      %v3682 = vadd.f32 %v3593, %v3681
      %v3683 = vpop.f32.mrf.mxu0
      %v3684 = vadd.f32 %v3595, %v3683
      %3685 = vdwg.mxu0
      %3686 = vmatpush.bf16.xpose.msra.mxu0 0
      %3687 = vmatpush.bf16.xpose.msra.mxu0 0
      %3688 = vmatpush.bf16.xpose.msra.mxu0 0
      %3689 = vmatpush.bf16.xpose.msra.mxu0 0
      %3690 = vmatpush.bf16.xpose.msra.mxu0 0
      %3691 = vmatpush.bf16.xpose.msra.mxu0 0
      %3692 = vmatpush.bf16.xpose.msra.mxu0 0
      %3693 = vmatpush.bf16.xpose.msra.mxu0 %v2136
      %3694 = vmatmul.bf16.gmra.mxu0 %v1613
      %v3695 = vpop.f32.mrf.mxu0
      %v3696 = vadd.f32 %v3607, %v3695
      %v3697 = vpop.f32.mrf.mxu0
      %v3698 = vadd.f32 %v3609, %v3697
      %3699 = vmatmul.bf16.gmra.mxu0 %v1616
      %v3700 = vpop.f32.mrf.mxu0
      %v3701 = vadd.f32 %v3612, %v3700
      %v3702 = vpop.f32.mrf.mxu0
      %v3703 = vadd.f32 %v3614, %v3702
      %3704 = vmatmul.bf16.gmra.mxu0 %v1619
      %v3705 = vpop.f32.mrf.mxu0
      %v3706 = vadd.f32 %v3617, %v3705
      %v3707 = vpop.f32.mrf.mxu0
      %v3708 = vadd.f32 %v3619, %v3707
      %3709 = vmatmul.bf16.gmra.mxu0 %v1833
      %v3710 = vpop.f32.mrf.mxu0
      %v3711 = vadd.f32 %v3622, %v3710
      %v3712 = vpop.f32.mrf.mxu0
      %v3713 = vadd.f32 %v3624, %v3712
      %3714 = vmatmul.bf16.gmra.mxu0 %v1625
      %v3715 = vpop.f32.mrf.mxu0
      %v3716 = vadd.f32 %v3627, %v3715
      %v3717 = vpop.f32.mrf.mxu0
      %v3718 = vadd.f32 %v3629, %v3717
      %3719 = vmatmul.bf16.gmra.mxu0 %v1628
      %v3720 = vpop.f32.mrf.mxu0
      %v3721 = vadd.f32 %v3632, %v3720
      %v3722 = vpop.f32.mrf.mxu0
      %v3723 = vadd.f32 %v3634, %v3722
      %3724 = vmatmul.bf16.gmra.mxu0 %v1631
      %v3725 = vpop.f32.mrf.mxu0
      %v3726 = vadd.f32 %v3637, %v3725
      %v3727 = vpop.f32.mrf.mxu0
      %v3728 = vadd.f32 %v3639, %v3727
      %3729 = vmatmul.bf16.gmra.mxu0 %v1836
      %v3730 = vpop.f32.mrf.mxu0
      %v3731 = vadd.f32 %v3642, %v3730
      %v3732 = vpop.f32.mrf.mxu0
      %v3733 = vadd.f32 %v3644, %v3732
      %3734 = vmatmul.bf16.gmra.mxu0 %v1637
      %v3735 = vpop.f32.mrf.mxu0
      %v3736 = vadd.f32 %v3647, %v3735
      %v3737 = vpop.f32.mrf.mxu0
      %v3738 = vadd.f32 %v3649, %v3737
      %3739 = vmatmul.bf16.gmra.mxu0 %v1640
      %v3740 = vpop.f32.mrf.mxu0
      %v3741 = vadd.f32 %v3652, %v3740
      %v3742 = vpop.f32.mrf.mxu0
      %v3743 = vadd.f32 %v3654, %v3742
      %3744 = vmatmul.bf16.gmra.mxu0 %v1643
      %v3745 = vpop.f32.mrf.mxu0
      %v3746 = vadd.f32 %v3657, %v3745
      %v3747 = vpop.f32.mrf.mxu0
      %v3748 = vadd.f32 %v3659, %v3747
      %3749 = vmatmul.bf16.gmra.mxu0 %v1839
      %v3750 = vpop.f32.mrf.mxu0
      %v3751 = vadd.f32 %v3662, %v3750
      %v3752 = vpop.f32.mrf.mxu0
      %v3753 = vadd.f32 %v3664, %v3752
      %3754 = vmatmul.bf16.gmra.mxu0 %v1897
      %v3755 = vpop.f32.mrf.mxu0
      %v3756 = vadd.f32 %v3667, %v3755
      %v3757 = vpop.f32.mrf.mxu0
      %v3758 = vadd.f32 %v3669, %v3757
      %3759 = vmatmul.bf16.gmra.mxu0 %v1900
      %v3760 = vpop.f32.mrf.mxu0
      %v3761 = vadd.f32 %v3672, %v3760
      %v3762 = vpop.f32.mrf.mxu0
      %v3763 = vadd.f32 %v3674, %v3762
      %3764 = vmatmul.bf16.gmra.mxu0 %v1903
      %v3765 = vpop.f32.mrf.mxu0
      %v3766 = vadd.f32 %v3677, %v3765
      %v3767 = vpop.f32.mrf.mxu0
      %v3768 = vadd.f32 %v3679, %v3767
      %3769 = vmatmul.bf16.gmra.mxu0 %v1952
      %v3770 = vpop.f32.mrf.mxu0
      %v3771 = vadd.f32 %v3682, %v3770
      %v3772 = vpop.f32.mrf.mxu0
      %v3773 = vadd.f32 %v3684, %v3772
      %3774 = vdwg.mxu0
      %3775 = vmatpush.bf16.xpose.msra.mxu0 0
      %3776 = vmatpush.bf16.xpose.msra.mxu0 0
      %3777 = vmatpush.bf16.xpose.msra.mxu0 0
      %3778 = vmatpush.bf16.xpose.msra.mxu0 0
      %3779 = vmatpush.bf16.xpose.msra.mxu0 0
      %3780 = vmatpush.bf16.xpose.msra.mxu0 0
      %3781 = vmatpush.bf16.xpose.msra.mxu0 0
      %3782 = vmatpush.bf16.xpose.msra.mxu0 %v2137
      %3783 = vmatmul.bf16.gmra.mxu0 %v1620
      %v3784 = vpop.f32.mrf.mxu0
      %v3785 = vadd.f32 %v3696, %v3784
      %v3786 = vpop.f32.mrf.mxu0
      %v3787 = vadd.f32 %v3698, %v3786
      %3788 = vmatmul.bf16.gmra.mxu0 %v1623
      %v3789 = vpop.f32.mrf.mxu0
      %v3790 = vadd.f32 %v3701, %v3789
      %v3791 = vpop.f32.mrf.mxu0
      %v3792 = vadd.f32 %v3703, %v3791
      %3793 = vmatmul.bf16.gmra.mxu0 %v1626
      %v3794 = vpop.f32.mrf.mxu0
      %v3795 = vadd.f32 %v3706, %v3794
      %v3796 = vpop.f32.mrf.mxu0
      %v3797 = vadd.f32 %v3708, %v3796
      %3798 = vmatmul.bf16.gmra.mxu0 %v1629
      %v3799 = vpop.f32.mrf.mxu0
      %v3800 = vadd.f32 %v3711, %v3799
      %v3801 = vpop.f32.mrf.mxu0
      %v3802 = vadd.f32 %v3713, %v3801
      %3803 = vmatmul.bf16.gmra.mxu0 %v1632
      %v3804 = vpop.f32.mrf.mxu0
      %v3805 = vadd.f32 %v3716, %v3804
      %v3806 = vpop.f32.mrf.mxu0
      %v3807 = vadd.f32 %v3718, %v3806
      %3808 = vmatmul.bf16.gmra.mxu0 %v1635
      %v3809 = vpop.f32.mrf.mxu0
      %v3810 = vadd.f32 %v3721, %v3809
      %v3811 = vpop.f32.mrf.mxu0
      %v3812 = vadd.f32 %v3723, %v3811
      %3813 = vmatmul.bf16.gmra.mxu0 %v1638
      %v3814 = vpop.f32.mrf.mxu0
      %v3815 = vadd.f32 %v3726, %v3814
      %v3816 = vpop.f32.mrf.mxu0
      %v3817 = vadd.f32 %v3728, %v3816
      %3818 = vmatmul.bf16.gmra.mxu0 %v1641
      %v3819 = vpop.f32.mrf.mxu0
      %v3820 = vadd.f32 %v3731, %v3819
      %v3821 = vpop.f32.mrf.mxu0
      %v3822 = vadd.f32 %v3733, %v3821
      %3823 = vmatmul.bf16.gmra.mxu0 %v1892
      %v3824 = vpop.f32.mrf.mxu0
      %v3825 = vadd.f32 %v3736, %v3824
      %v3826 = vpop.f32.mrf.mxu0
      %v3827 = vadd.f32 %v3738, %v3826
      %3828 = vmatmul.bf16.gmra.mxu0 %v1895
      %v3829 = vpop.f32.mrf.mxu0
      %v3830 = vadd.f32 %v3741, %v3829
      %v3831 = vpop.f32.mrf.mxu0
      %v3832 = vadd.f32 %v3743, %v3831
      %3833 = vmatmul.bf16.gmra.mxu0 %v1898
      %v3834 = vpop.f32.mrf.mxu0
      %v3835 = vadd.f32 %v3746, %v3834
      %v3836 = vpop.f32.mrf.mxu0
      %v3837 = vadd.f32 %v3748, %v3836
      %3838 = vmatmul.bf16.gmra.mxu0 %v1901
      %v3839 = vpop.f32.mrf.mxu0
      %v3840 = vadd.f32 %v3751, %v3839
      %v3841 = vpop.f32.mrf.mxu0
      %v3842 = vadd.f32 %v3753, %v3841
      %3843 = vmatmul.bf16.gmra.mxu0 %v1996
      %v3844 = vpop.f32.mrf.mxu0
      %v3845 = vadd.f32 %v3756, %v3844
      %v3846 = vpop.f32.mrf.mxu0
      %v3847 = vadd.f32 %v3758, %v3846
      %3848 = vmatmul.bf16.gmra.mxu0 %v1999
      %v3849 = vpop.f32.mrf.mxu0
      %v3850 = vadd.f32 %v3761, %v3849
      %v3851 = vpop.f32.mrf.mxu0
      %v3852 = vadd.f32 %v3763, %v3851
      %3853 = vmatmul.bf16.gmra.mxu0 %v2002
      %v3854 = vpop.f32.mrf.mxu0
      %v3855 = vadd.f32 %v3766, %v3854
      %v3856 = vpop.f32.mrf.mxu0
      %v3857 = vadd.f32 %v3768, %v3856
      %3858 = vmatmul.bf16.gmra.mxu0 %v2005
      %v3859 = vpop.f32.mrf.mxu0
      %v3860 = vadd.f32 %v3771, %v3859
      %v3861 = vpop.f32.mrf.mxu0
      %v3862 = vadd.f32 %v3773, %v3861
      %3863 = vdwg.mxu0
      %3864 = vmatpush.bf16.xpose.msra.mxu0 0
      %3865 = vmatpush.bf16.xpose.msra.mxu0 0
      %3866 = vmatpush.bf16.xpose.msra.mxu0 0
      %3867 = vmatpush.bf16.xpose.msra.mxu0 0
      %3868 = vmatpush.bf16.xpose.msra.mxu0 0
      %3869 = vmatpush.bf16.xpose.msra.mxu0 0
      %3870 = vmatpush.bf16.xpose.msra.mxu0 0
      %3871 = vmatpush.bf16.xpose.msra.mxu0 %v2138
      %3872 = vmatmul.bf16.gmra.mxu0 %v1621
      %v3873 = vpop.f32.mrf.mxu0
      %v3874 = vadd.f32 %v3785, %v3873
      %v3875 = vpop.f32.mrf.mxu0
      %v3876 = vadd.f32 %v3787, %v3875
      %3877 = vmatmul.bf16.gmra.mxu0 %v1624
      %v3878 = vpop.f32.mrf.mxu0
      %v3879 = vadd.f32 %v3790, %v3878
      %v3880 = vpop.f32.mrf.mxu0
      %v3881 = vadd.f32 %v3792, %v3880
      %3882 = vmatmul.bf16.gmra.mxu0 %v1627
      %v3883 = vpop.f32.mrf.mxu0
      %v3884 = vadd.f32 %v3795, %v3883
      %v3885 = vpop.f32.mrf.mxu0
      %v3886 = vadd.f32 %v3797, %v3885
      %3887 = vmatmul.bf16.gmra.mxu0 %v1630
      %v3888 = vpop.f32.mrf.mxu0
      %v3889 = vadd.f32 %v3800, %v3888
      %v3890 = vpop.f32.mrf.mxu0
      %v3891 = vadd.f32 %v3802, %v3890
      %3892 = vmatmul.bf16.gmra.mxu0 %v1633
      %v3893 = vpop.f32.mrf.mxu0
      %v3894 = vadd.f32 %v3805, %v3893
      %v3895 = vpop.f32.mrf.mxu0
      %v3896 = vadd.f32 %v3807, %v3895
      %3897 = vmatmul.bf16.gmra.mxu0 %v1636
      %v3898 = vpop.f32.mrf.mxu0
      %v3899 = vadd.f32 %v3810, %v3898
      %v3900 = vpop.f32.mrf.mxu0
      %v3901 = vadd.f32 %v3812, %v3900
      %3902 = vmatmul.bf16.gmra.mxu0 %v1639
      %v3903 = vpop.f32.mrf.mxu0
      %v3904 = vadd.f32 %v3815, %v3903
      %v3905 = vpop.f32.mrf.mxu0
      %v3906 = vadd.f32 %v3817, %v3905
      %3907 = vmatmul.bf16.gmra.mxu0 %v1642
      %v3908 = vpop.f32.mrf.mxu0
      %v3909 = vadd.f32 %v3820, %v3908
      %v3910 = vpop.f32.mrf.mxu0
      %v3911 = vadd.f32 %v3822, %v3910
      %3912 = vmatmul.bf16.gmra.mxu0 %v1893
      %v3913 = vpop.f32.mrf.mxu0
      %v3914 = vadd.f32 %v3825, %v3913
      %v3915 = vpop.f32.mrf.mxu0
      %v3916 = vadd.f32 %v3827, %v3915
      %3917 = vmatmul.bf16.gmra.mxu0 %v1896
      %v3918 = vpop.f32.mrf.mxu0
      %v3919 = vadd.f32 %v3830, %v3918
      %v3920 = vpop.f32.mrf.mxu0
      %v3921 = vadd.f32 %v3832, %v3920
      %3922 = vmatmul.bf16.gmra.mxu0 %v1899
      %v3923 = vpop.f32.mrf.mxu0
      %v3924 = vadd.f32 %v3835, %v3923
      %v3925 = vpop.f32.mrf.mxu0
      %v3926 = vadd.f32 %v3837, %v3925
      %3927 = vmatmul.bf16.gmra.mxu0 %v1902
      %v3928 = vpop.f32.mrf.mxu0
      %v3929 = vadd.f32 %v3840, %v3928
      %v3930 = vpop.f32.mrf.mxu0
      %v3931 = vadd.f32 %v3842, %v3930
      %3932 = vmatmul.bf16.gmra.mxu0 %v1997
      %v3933 = vpop.f32.mrf.mxu0
      %v3934 = vadd.f32 %v3845, %v3933
      %v3935 = vpop.f32.mrf.mxu0
      %v3936 = vadd.f32 %v3847, %v3935
      %3937 = vmatmul.bf16.gmra.mxu0 %v2000
      %v3938 = vpop.f32.mrf.mxu0
      %v3939 = vadd.f32 %v3850, %v3938
      %v3940 = vpop.f32.mrf.mxu0
      %v3941 = vadd.f32 %v3852, %v3940
      %3942 = vmatmul.bf16.gmra.mxu0 %v2003
      %v3943 = vpop.f32.mrf.mxu0
      %v3944 = vadd.f32 %v3855, %v3943
      %v3945 = vpop.f32.mrf.mxu0
      %v3946 = vadd.f32 %v3857, %v3945
      %3947 = vmatmul.bf16.gmra.mxu0 %v2006
      %v3948 = vpop.f32.mrf.mxu0
      %v3949 = vadd.f32 %v3860, %v3948
      %v3950 = vpop.f32.mrf.mxu0
      %v3951 = vadd.f32 %v3862, %v3950
      %3952 = vdwg.mxu0
      %3953 = vmatpush.bf16.xpose.msra.mxu0 0
      %3954 = vmatpush.bf16.xpose.msra.mxu0 0
      %3955 = vmatpush.bf16.xpose.msra.mxu0 0
      %3956 = vmatpush.bf16.xpose.msra.mxu0 0
      %3957 = vmatpush.bf16.xpose.msra.mxu0 0
      %3958 = vmatpush.bf16.xpose.msra.mxu0 0
      %3959 = vmatpush.bf16.xpose.msra.mxu0 0
      %3960 = vmatpush.bf16.xpose.msra.mxu0 %v2139
      %3961 = vmatmul.bf16.gmra.mxu0 %v1622
      %v3962 = vpop.f32.mrf.mxu0
      %v3963 = vadd.f32 %v3874, %v3962
      %v3964 = vpop.f32.mrf.mxu0
      %v3965 = vadd.f32 %v3876, %v3964
      %3966 = vmatmul.bf16.gmra.mxu0 %v1625
      %v3967 = vpop.f32.mrf.mxu0
      %v3968 = vadd.f32 %v3879, %v3967
      %v3969 = vpop.f32.mrf.mxu0
      %v3970 = vadd.f32 %v3881, %v3969
      %3971 = vmatmul.bf16.gmra.mxu0 %v1628
      %v3972 = vpop.f32.mrf.mxu0
      %v3973 = vadd.f32 %v3884, %v3972
      %v3974 = vpop.f32.mrf.mxu0
      %v3975 = vadd.f32 %v3886, %v3974
      %3976 = vmatmul.bf16.gmra.mxu0 %v1631
      %v3977 = vpop.f32.mrf.mxu0
      %v3978 = vadd.f32 %v3889, %v3977
      %v3979 = vpop.f32.mrf.mxu0
      %v3980 = vadd.f32 %v3891, %v3979
      %3981 = vmatmul.bf16.gmra.mxu0 %v1634
      %v3982 = vpop.f32.mrf.mxu0
      %v3983 = vadd.f32 %v3894, %v3982
      %v3984 = vpop.f32.mrf.mxu0
      %v3985 = vadd.f32 %v3896, %v3984
      %3986 = vmatmul.bf16.gmra.mxu0 %v1637
      %v3987 = vpop.f32.mrf.mxu0
      %v3988 = vadd.f32 %v3899, %v3987
      %v3989 = vpop.f32.mrf.mxu0
      %v3990 = vadd.f32 %v3901, %v3989
      %3991 = vmatmul.bf16.gmra.mxu0 %v1640
      %v3992 = vpop.f32.mrf.mxu0
      %v3993 = vadd.f32 %v3904, %v3992
      %v3994 = vpop.f32.mrf.mxu0
      %v3995 = vadd.f32 %v3906, %v3994
      %3996 = vmatmul.bf16.gmra.mxu0 %v1643
      %v3997 = vpop.f32.mrf.mxu0
      %v3998 = vadd.f32 %v3909, %v3997
      %v3999 = vpop.f32.mrf.mxu0
      %v4000 = vadd.f32 %v3911, %v3999
      %4001 = vmatmul.bf16.gmra.mxu0 %v1894
      %v4002 = vpop.f32.mrf.mxu0
      %v4003 = vadd.f32 %v3914, %v4002
      %v4004 = vpop.f32.mrf.mxu0
      %v4005 = vadd.f32 %v3916, %v4004
      %4006 = vmatmul.bf16.gmra.mxu0 %v1897
      %v4007 = vpop.f32.mrf.mxu0
      %v4008 = vadd.f32 %v3919, %v4007
      %v4009 = vpop.f32.mrf.mxu0
      %v4010 = vadd.f32 %v3921, %v4009
      %4011 = vmatmul.bf16.gmra.mxu0 %v1900
      %v4012 = vpop.f32.mrf.mxu0
      %v4013 = vadd.f32 %v3924, %v4012
      %v4014 = vpop.f32.mrf.mxu0
      %v4015 = vadd.f32 %v3926, %v4014
      %4016 = vmatmul.bf16.gmra.mxu0 %v1903
      %v4017 = vpop.f32.mrf.mxu0
      %v4018 = vadd.f32 %v3929, %v4017
      %v4019 = vpop.f32.mrf.mxu0
      %v4020 = vadd.f32 %v3931, %v4019
      %4021 = vmatmul.bf16.gmra.mxu0 %v1998
      %v4022 = vpop.f32.mrf.mxu0
      %v4023 = vadd.f32 %v3934, %v4022
      %v4024 = vpop.f32.mrf.mxu0
      %v4025 = vadd.f32 %v3936, %v4024
      %4026 = vmatmul.bf16.gmra.mxu0 %v2001
      %v4027 = vpop.f32.mrf.mxu0
      %v4028 = vadd.f32 %v3939, %v4027
      %v4029 = vpop.f32.mrf.mxu0
      %v4030 = vadd.f32 %v3941, %v4029
      %4031 = vmatmul.bf16.gmra.mxu0 %v2004
      %v4032 = vpop.f32.mrf.mxu0
      %v4033 = vadd.f32 %v3944, %v4032
      %v4034 = vpop.f32.mrf.mxu0
      %v4035 = vadd.f32 %v3946, %v4034
      %4036 = vmatmul.bf16.gmra.mxu0 %v2007
      %v4037 = vpop.f32.mrf.mxu0
      %v4038 = vadd.f32 %v3949, %v4037
      %v4039 = vpop.f32.mrf.mxu0
      %v4040 = vadd.f32 %v3951, %v4039
      %4041 = vdwg.mxu0
      %4042 = vmatpush.bf16.xpose.msra.mxu0 0
      %4043 = vmatpush.bf16.xpose.msra.mxu0 0
      %4044 = vmatpush.bf16.xpose.msra.mxu0 0
      %4045 = vmatpush.bf16.xpose.msra.mxu0 0
      %4046 = vmatpush.bf16.xpose.msra.mxu0 0
      %4047 = vmatpush.bf16.xpose.msra.mxu0 0
      %4048 = vmatpush.bf16.xpose.msra.mxu0 0
      %4049 = vmatpush.bf16.xpose.msra.mxu0 %v2140
      %4050 = vmatmul.bf16.gmra.mxu0 %v1736
      %v4051 = vpop.f32.mrf.mxu0
      %v4052 = vadd.f32 %v3963, %v4051
      %v4053 = vpop.f32.mrf.mxu0
      %v4054 = vadd.f32 %v3965, %v4053
      %4055 = vmatmul.bf16.gmra.mxu0 %v1739
      %v4056 = vpop.f32.mrf.mxu0
      %v4057 = vadd.f32 %v3968, %v4056
      %v4058 = vpop.f32.mrf.mxu0
      %v4059 = vadd.f32 %v3970, %v4058
      %4060 = vmatmul.bf16.gmra.mxu0 %v1742
      %v4061 = vpop.f32.mrf.mxu0
      %v4062 = vadd.f32 %v3973, %v4061
      %v4063 = vpop.f32.mrf.mxu0
      %v4064 = vadd.f32 %v3975, %v4063
      %4065 = vmatmul.bf16.gmra.mxu0 %v1745
      %v4066 = vpop.f32.mrf.mxu0
      %v4067 = vadd.f32 %v3978, %v4066
      %v4068 = vpop.f32.mrf.mxu0
      %v4069 = vadd.f32 %v3980, %v4068
      %4070 = vmatmul.bf16.gmra.mxu0 %v1748
      %v4071 = vpop.f32.mrf.mxu0
      %v4072 = vadd.f32 %v3983, %v4071
      %v4073 = vpop.f32.mrf.mxu0
      %v4074 = vadd.f32 %v3985, %v4073
      %4075 = vmatmul.bf16.gmra.mxu0 %v1751
      %v4076 = vpop.f32.mrf.mxu0
      %v4077 = vadd.f32 %v3988, %v4076
      %v4078 = vpop.f32.mrf.mxu0
      %v4079 = vadd.f32 %v3990, %v4078
      %4080 = vmatmul.bf16.gmra.mxu0 %v1754
      %v4081 = vpop.f32.mrf.mxu0
      %v4082 = vadd.f32 %v3993, %v4081
      %v4083 = vpop.f32.mrf.mxu0
      %v4084 = vadd.f32 %v3995, %v4083
      %4085 = vmatmul.bf16.gmra.mxu0 %v1757
      %v4086 = vpop.f32.mrf.mxu0
      %v4087 = vadd.f32 %v3998, %v4086
      %v4088 = vpop.f32.mrf.mxu0
      %v4089 = vadd.f32 %v4000, %v4088
      %4090 = vmatmul.bf16.gmra.mxu0 %v1921
      %v4091 = vpop.f32.mrf.mxu0
      %v4092 = vadd.f32 %v4003, %v4091
      %v4093 = vpop.f32.mrf.mxu0
      %v4094 = vadd.f32 %v4005, %v4093
      %4095 = vmatmul.bf16.gmra.mxu0 %v1924
      %v4096 = vpop.f32.mrf.mxu0
      %v4097 = vadd.f32 %v4008, %v4096
      %v4098 = vpop.f32.mrf.mxu0
      %v4099 = vadd.f32 %v4010, %v4098
      %4100 = vmatmul.bf16.gmra.mxu0 %v1927
      %v4101 = vpop.f32.mrf.mxu0
      %v4102 = vadd.f32 %v4013, %v4101
      %v4103 = vpop.f32.mrf.mxu0
      %v4104 = vadd.f32 %v4015, %v4103
      %4105 = vmatmul.bf16.gmra.mxu0 %v1930
      %v4106 = vpop.f32.mrf.mxu0
      %v4107 = vadd.f32 %v4018, %v4106
      %v4108 = vpop.f32.mrf.mxu0
      %v4109 = vadd.f32 %v4020, %v4108
      %4110 = vmatmul.bf16.gmra.mxu0 %v2025
      %v4111 = vpop.f32.mrf.mxu0
      %v4112 = vadd.f32 %v4023, %v4111
      %v4113 = vpop.f32.mrf.mxu0
      %v4114 = vadd.f32 %v4025, %v4113
      %4115 = vmatmul.bf16.gmra.mxu0 %v2028
      %v4116 = vpop.f32.mrf.mxu0
      %v4117 = vadd.f32 %v4028, %v4116
      %v4118 = vpop.f32.mrf.mxu0
      %v4119 = vadd.f32 %v4030, %v4118
      %4120 = vmatmul.bf16.gmra.mxu0 %v2031
      %v4121 = vpop.f32.mrf.mxu0
      %v4122 = vadd.f32 %v4033, %v4121
      %v4123 = vpop.f32.mrf.mxu0
      %v4124 = vadd.f32 %v4035, %v4123
      %4125 = vmatmul.bf16.gmra.mxu0 %v2034
      %v4126 = vpop.f32.mrf.mxu0
      %v4127 = vadd.f32 %v4038, %v4126
      %v4128 = vpop.f32.mrf.mxu0
      %v4129 = vadd.f32 %v4040, %v4128
      %4130 = vdwg.mxu0
      %4131 = vmatpush.bf16.xpose.msra.mxu0 0
      %4132 = vmatpush.bf16.xpose.msra.mxu0 0
      %4133 = vmatpush.bf16.xpose.msra.mxu0 0
      %4134 = vmatpush.bf16.xpose.msra.mxu0 0
      %4135 = vmatpush.bf16.xpose.msra.mxu0 0
      %4136 = vmatpush.bf16.xpose.msra.mxu0 0
      %4137 = vmatpush.bf16.xpose.msra.mxu0 0
      %4138 = vmatpush.bf16.xpose.msra.mxu0 %v2141
      %4139 = vmatmul.bf16.gmra.mxu0 %v1737
      %v4140 = vpop.f32.mrf.mxu0
      %v4141 = vadd.f32 %v4052, %v4140
      %v4142 = vpop.f32.mrf.mxu0
      %v4143 = vadd.f32 %v4054, %v4142
      %4144 = vmatmul.bf16.gmra.mxu0 %v1740
      %v4145 = vpop.f32.mrf.mxu0
      %v4146 = vadd.f32 %v4057, %v4145
      %v4147 = vpop.f32.mrf.mxu0
      %v4148 = vadd.f32 %v4059, %v4147
      %4149 = vmatmul.bf16.gmra.mxu0 %v1743
      %v4150 = vpop.f32.mrf.mxu0
      %v4151 = vadd.f32 %v4062, %v4150
      %v4152 = vpop.f32.mrf.mxu0
      %v4153 = vadd.f32 %v4064, %v4152
      %4154 = vmatmul.bf16.gmra.mxu0 %v1746
      %v4155 = vpop.f32.mrf.mxu0
      %v4156 = vadd.f32 %v4067, %v4155
      %v4157 = vpop.f32.mrf.mxu0
      %v4158 = vadd.f32 %v4069, %v4157
      %4159 = vmatmul.bf16.gmra.mxu0 %v1749
      %v4160 = vpop.f32.mrf.mxu0
      %v4161 = vadd.f32 %v4072, %v4160
      %v4162 = vpop.f32.mrf.mxu0
      %v4163 = vadd.f32 %v4074, %v4162
      %4164 = vmatmul.bf16.gmra.mxu0 %v1752
      %v4165 = vpop.f32.mrf.mxu0
      %v4166 = vadd.f32 %v4077, %v4165
      %v4167 = vpop.f32.mrf.mxu0
      %v4168 = vadd.f32 %v4079, %v4167
      %4169 = vmatmul.bf16.gmra.mxu0 %v1755
      %v4170 = vpop.f32.mrf.mxu0
      %v4171 = vadd.f32 %v4082, %v4170
      %v4172 = vpop.f32.mrf.mxu0
      %v4173 = vadd.f32 %v4084, %v4172
      %4174 = vmatmul.bf16.gmra.mxu0 %v1758
      %v4175 = vpop.f32.mrf.mxu0
      %v4176 = vadd.f32 %v4087, %v4175
      %v4177 = vpop.f32.mrf.mxu0
      %v4178 = vadd.f32 %v4089, %v4177
      %4179 = vmatmul.bf16.gmra.mxu0 %v1922
      %v4180 = vpop.f32.mrf.mxu0
      %v4181 = vadd.f32 %v4092, %v4180
      %v4182 = vpop.f32.mrf.mxu0
      %v4183 = vadd.f32 %v4094, %v4182
      %4184 = vmatmul.bf16.gmra.mxu0 %v1925
      %v4185 = vpop.f32.mrf.mxu0
      %v4186 = vadd.f32 %v4097, %v4185
      %v4187 = vpop.f32.mrf.mxu0
      %v4188 = vadd.f32 %v4099, %v4187
      %4189 = vmatmul.bf16.gmra.mxu0 %v1928
      %v4190 = vpop.f32.mrf.mxu0
      %v4191 = vadd.f32 %v4102, %v4190
      %v4192 = vpop.f32.mrf.mxu0
      %v4193 = vadd.f32 %v4104, %v4192
      %4194 = vmatmul.bf16.gmra.mxu0 %v1931
      %v4195 = vpop.f32.mrf.mxu0
      %v4196 = vadd.f32 %v4107, %v4195
      %v4197 = vpop.f32.mrf.mxu0
      %v4198 = vadd.f32 %v4109, %v4197
      %4199 = vmatmul.bf16.gmra.mxu0 %v2026
      %v4200 = vpop.f32.mrf.mxu0
      %v4201 = vadd.f32 %v4112, %v4200
      %v4202 = vpop.f32.mrf.mxu0
      %v4203 = vadd.f32 %v4114, %v4202
      %4204 = vmatmul.bf16.gmra.mxu0 %v2029
      %v4205 = vpop.f32.mrf.mxu0
      %v4206 = vadd.f32 %v4117, %v4205
      %v4207 = vpop.f32.mrf.mxu0
      %v4208 = vadd.f32 %v4119, %v4207
      %4209 = vmatmul.bf16.gmra.mxu0 %v2032
      %v4210 = vpop.f32.mrf.mxu0
      %v4211 = vadd.f32 %v4122, %v4210
      %v4212 = vpop.f32.mrf.mxu0
      %v4213 = vadd.f32 %v4124, %v4212
      %4214 = vmatmul.bf16.gmra.mxu0 %v2035
      %v4215 = vpop.f32.mrf.mxu0
      %v4216 = vadd.f32 %v4127, %v4215
      %v4217 = vpop.f32.mrf.mxu0
      %v4218 = vadd.f32 %v4129, %v4217
      %4219 = vdwg.mxu0
      %4220 = vmatpush.bf16.xpose.msra.mxu0 0
      %4221 = vmatpush.bf16.xpose.msra.mxu0 0
      %4222 = vmatpush.bf16.xpose.msra.mxu0 0
      %4223 = vmatpush.bf16.xpose.msra.mxu0 0
      %4224 = vmatpush.bf16.xpose.msra.mxu0 0
      %4225 = vmatpush.bf16.xpose.msra.mxu0 0
      %4226 = vmatpush.bf16.xpose.msra.mxu0 0
      %4227 = vmatpush.bf16.xpose.msra.mxu0 %v2142
      %4228 = vmatmul.bf16.gmra.mxu0 %v1738
      %v4229 = vpop.f32.mrf.mxu0
      %v4230 = vadd.f32 %v4141, %v4229
      %v4231 = vpop.f32.mrf.mxu0
      %v4232 = vadd.f32 %v4143, %v4231
      %4233 = vmatmul.bf16.gmra.mxu0 %v1741
      %v4234 = vpop.f32.mrf.mxu0
      %v4235 = vadd.f32 %v4146, %v4234
      %v4236 = vpop.f32.mrf.mxu0
      %v4237 = vadd.f32 %v4148, %v4236
      %4238 = vmatmul.bf16.gmra.mxu0 %v1744
      %v4239 = vpop.f32.mrf.mxu0
      %v4240 = vadd.f32 %v4151, %v4239
      %v4241 = vpop.f32.mrf.mxu0
      %v4242 = vadd.f32 %v4153, %v4241
      %4243 = vmatmul.bf16.gmra.mxu0 %v1747
      %v4244 = vpop.f32.mrf.mxu0
      %v4245 = vadd.f32 %v4156, %v4244
      %v4246 = vpop.f32.mrf.mxu0
      %v4247 = vadd.f32 %v4158, %v4246
      %4248 = vmatmul.bf16.gmra.mxu0 %v1750
      %v4249 = vpop.f32.mrf.mxu0
      %v4250 = vadd.f32 %v4161, %v4249
      %v4251 = vpop.f32.mrf.mxu0
      %v4252 = vadd.f32 %v4163, %v4251
      %4253 = vmatmul.bf16.gmra.mxu0 %v1753
      %v4254 = vpop.f32.mrf.mxu0
      %v4255 = vadd.f32 %v4166, %v4254
      %v4256 = vpop.f32.mrf.mxu0
      %v4257 = vadd.f32 %v4168, %v4256
      %4258 = vmatmul.bf16.gmra.mxu0 %v1756
      %v4259 = vpop.f32.mrf.mxu0
      %v4260 = vadd.f32 %v4171, %v4259
      %v4261 = vpop.f32.mrf.mxu0
      %v4262 = vadd.f32 %v4173, %v4261
      %4263 = vmatmul.bf16.gmra.mxu0 %v1759
      %v4264 = vpop.f32.mrf.mxu0
      %v4265 = vadd.f32 %v4176, %v4264
      %v4266 = vpop.f32.mrf.mxu0
      %v4267 = vadd.f32 %v4178, %v4266
      %4268 = vmatmul.bf16.gmra.mxu0 %v1923
      %v4269 = vpop.f32.mrf.mxu0
      %v4270 = vadd.f32 %v4181, %v4269
      %v4271 = vpop.f32.mrf.mxu0
      %v4272 = vadd.f32 %v4183, %v4271
      %4273 = vmatmul.bf16.gmra.mxu0 %v1926
      %v4274 = vpop.f32.mrf.mxu0
      %v4275 = vadd.f32 %v4186, %v4274
      %v4276 = vpop.f32.mrf.mxu0
      %v4277 = vadd.f32 %v4188, %v4276
      %4278 = vmatmul.bf16.gmra.mxu0 %v1929
      %v4279 = vpop.f32.mrf.mxu0
      %v4280 = vadd.f32 %v4191, %v4279
      %v4281 = vpop.f32.mrf.mxu0
      %v4282 = vadd.f32 %v4193, %v4281
      %4283 = vmatmul.bf16.gmra.mxu0 %v1932
      %v4284 = vpop.f32.mrf.mxu0
      %v4285 = vadd.f32 %v4196, %v4284
      %v4286 = vpop.f32.mrf.mxu0
      %v4287 = vadd.f32 %v4198, %v4286
      %4288 = vmatmul.bf16.gmra.mxu0 %v2027
      %v4289 = vpop.f32.mrf.mxu0
      %v4290 = vadd.f32 %v4201, %v4289
      %v4291 = vpop.f32.mrf.mxu0
      %v4292 = vadd.f32 %v4203, %v4291
      %4293 = vmatmul.bf16.gmra.mxu0 %v2030
      %v4294 = vpop.f32.mrf.mxu0
      %v4295 = vadd.f32 %v4206, %v4294
      %v4296 = vpop.f32.mrf.mxu0
      %v4297 = vadd.f32 %v4208, %v4296
      %4298 = vmatmul.bf16.gmra.mxu0 %v2033
      %v4299 = vpop.f32.mrf.mxu0
      %v4300 = vadd.f32 %v4211, %v4299
      %v4301 = vpop.f32.mrf.mxu0
      %v4302 = vadd.f32 %v4213, %v4301
      %4303 = vmatmul.bf16.gmra.mxu0 %v2036
      %v4304 = vpop.f32.mrf.mxu0
      %v4305 = vadd.f32 %v4216, %v4304
      %v4306 = vpop.f32.mrf.mxu0
      %v4307 = vadd.f32 %v4218, %v4306
      %4308 = vdwg.mxu0
      %4309 = vmatpush.bf16.xpose.msra.mxu0 0
      %4310 = vmatpush.bf16.xpose.msra.mxu0 0
      %4311 = vmatpush.bf16.xpose.msra.mxu0 0
      %4312 = vmatpush.bf16.xpose.msra.mxu0 0
      %4313 = vmatpush.bf16.xpose.msra.mxu0 0
      %4314 = vmatpush.bf16.xpose.msra.mxu0 0
      %4315 = vmatpush.bf16.xpose.msra.mxu0 0
      %4316 = vmatpush.bf16.xpose.msra.mxu0 %v2143
      %4317 = vmatmul.bf16.gmra.mxu0 %v1623
      %v4318 = vpop.f32.mrf.mxu0
      %v4319 = vadd.f32 %v4230, %v4318
      %v4320 = vpop.f32.mrf.mxu0
      %v4321 = vadd.f32 %v4232, %v4320
      %4322 = vmatmul.bf16.gmra.mxu0 %v1626
      %v4323 = vpop.f32.mrf.mxu0
      %v4324 = vadd.f32 %v4235, %v4323
      %v4325 = vpop.f32.mrf.mxu0
      %v4326 = vadd.f32 %v4237, %v4325
      %4327 = vmatmul.bf16.gmra.mxu0 %v1629
      %v4328 = vpop.f32.mrf.mxu0
      %v4329 = vadd.f32 %v4240, %v4328
      %v4330 = vpop.f32.mrf.mxu0
      %v4331 = vadd.f32 %v4242, %v4330
      %4332 = vmatmul.bf16.gmra.mxu0 %v1834
      %v4333 = vpop.f32.mrf.mxu0
      %v4334 = vadd.f32 %v4245, %v4333
      %v4335 = vpop.f32.mrf.mxu0
      %v4336 = vadd.f32 %v4247, %v4335
      %4337 = vmatmul.bf16.gmra.mxu0 %v1635
      %v4338 = vpop.f32.mrf.mxu0
      %v4339 = vadd.f32 %v4250, %v4338
      %v4340 = vpop.f32.mrf.mxu0
      %v4341 = vadd.f32 %v4252, %v4340
      %4342 = vmatmul.bf16.gmra.mxu0 %v1638
      %v4343 = vpop.f32.mrf.mxu0
      %v4344 = vadd.f32 %v4255, %v4343
      %v4345 = vpop.f32.mrf.mxu0
      %v4346 = vadd.f32 %v4257, %v4345
      %4347 = vmatmul.bf16.gmra.mxu0 %v1641
      %v4348 = vpop.f32.mrf.mxu0
      %v4349 = vadd.f32 %v4260, %v4348
      %v4350 = vpop.f32.mrf.mxu0
      %v4351 = vadd.f32 %v4262, %v4350
      %4352 = vmatmul.bf16.gmra.mxu0 %v1837
      %v4353 = vpop.f32.mrf.mxu0
      %v4354 = vadd.f32 %v4265, %v4353
      %v4355 = vpop.f32.mrf.mxu0
      %v4356 = vadd.f32 %v4267, %v4355
      %4357 = vmatmul.bf16.gmra.mxu0 %v1895
      %v4358 = vpop.f32.mrf.mxu0
      %v4359 = vadd.f32 %v4270, %v4358
      %v4360 = vpop.f32.mrf.mxu0
      %v4361 = vadd.f32 %v4272, %v4360
      %4362 = vmatmul.bf16.gmra.mxu0 %v1898
      %v4363 = vpop.f32.mrf.mxu0
      %v4364 = vadd.f32 %v4275, %v4363
      %v4365 = vpop.f32.mrf.mxu0
      %v4366 = vadd.f32 %v4277, %v4365
      %4367 = vmatmul.bf16.gmra.mxu0 %v1901
      %v4368 = vpop.f32.mrf.mxu0
      %v4369 = vadd.f32 %v4280, %v4368
      %v4370 = vpop.f32.mrf.mxu0
      %v4371 = vadd.f32 %v4282, %v4370
      %4372 = vmatmul.bf16.gmra.mxu0 %v1950
      %v4373 = vpop.f32.mrf.mxu0
      %v4374 = vadd.f32 %v4285, %v4373
      %v4375 = vpop.f32.mrf.mxu0
      %v4376 = vadd.f32 %v4287, %v4375
      %4377 = vmatmul.bf16.gmra.mxu0 %v1999
      %v4378 = vpop.f32.mrf.mxu0
      %v4379 = vadd.f32 %v4290, %v4378
      %v4380 = vpop.f32.mrf.mxu0
      %v4381 = vadd.f32 %v4292, %v4380
      %4382 = vmatmul.bf16.gmra.mxu0 %v2002
      %v4383 = vpop.f32.mrf.mxu0
      %v4384 = vadd.f32 %v4295, %v4383
      %v4385 = vpop.f32.mrf.mxu0
      %v4386 = vadd.f32 %v4297, %v4385
      %4387 = vmatmul.bf16.gmra.mxu0 %v2005
      %v4388 = vpop.f32.mrf.mxu0
      %v4389 = vadd.f32 %v4300, %v4388
      %v4390 = vpop.f32.mrf.mxu0
      %v4391 = vadd.f32 %v4302, %v4390
      %4392 = vmatmul.bf16.gmra.mxu0 %v2054
      %v4393 = vpop.f32.mrf.mxu0
      %v4394 = vadd.f32 %v4305, %v4393
      %v4395 = vpop.f32.mrf.mxu0
      %v4396 = vadd.f32 %v4307, %v4395
      %4397 = vdwg.mxu0
      %4398 = vmatpush.bf16.xpose.msra.mxu0 0
      %4399 = vmatpush.bf16.xpose.msra.mxu0 0
      %4400 = vmatpush.bf16.xpose.msra.mxu0 0
      %4401 = vmatpush.bf16.xpose.msra.mxu0 0
      %4402 = vmatpush.bf16.xpose.msra.mxu0 0
      %4403 = vmatpush.bf16.xpose.msra.mxu0 0
      %4404 = vmatpush.bf16.xpose.msra.mxu0 0
      %4405 = vmatpush.bf16.xpose.msra.mxu0 %v2144
      %4406 = vmatmul.bf16.gmra.mxu0 %v1624
      %v4407 = vpop.f32.mrf.mxu0
      %v4408 = vadd.f32 %v4319, %v4407
      %v4409 = vpop.f32.mrf.mxu0
      %v4410 = vadd.f32 %v4321, %v4409
      %4411 = vmatmul.bf16.gmra.mxu0 %v1627
      %v4412 = vpop.f32.mrf.mxu0
      %v4413 = vadd.f32 %v4324, %v4412
      %v4414 = vpop.f32.mrf.mxu0
      %v4415 = vadd.f32 %v4326, %v4414
      %4416 = vmatmul.bf16.gmra.mxu0 %v1630
      %v4417 = vpop.f32.mrf.mxu0
      %v4418 = vadd.f32 %v4329, %v4417
      %v4419 = vpop.f32.mrf.mxu0
      %v4420 = vadd.f32 %v4331, %v4419
      %4421 = vmatmul.bf16.gmra.mxu0 %v1835
      %v4422 = vpop.f32.mrf.mxu0
      %v4423 = vadd.f32 %v4334, %v4422
      %v4424 = vpop.f32.mrf.mxu0
      %v4425 = vadd.f32 %v4336, %v4424
      %4426 = vmatmul.bf16.gmra.mxu0 %v1636
      %v4427 = vpop.f32.mrf.mxu0
      %v4428 = vadd.f32 %v4339, %v4427
      %v4429 = vpop.f32.mrf.mxu0
      %v4430 = vadd.f32 %v4341, %v4429
      %4431 = vmatmul.bf16.gmra.mxu0 %v1639
      %v4432 = vpop.f32.mrf.mxu0
      %v4433 = vadd.f32 %v4344, %v4432
      %v4434 = vpop.f32.mrf.mxu0
      %v4435 = vadd.f32 %v4346, %v4434
      %4436 = vmatmul.bf16.gmra.mxu0 %v1642
      %v4437 = vpop.f32.mrf.mxu0
      %v4438 = vadd.f32 %v4349, %v4437
      %v4439 = vpop.f32.mrf.mxu0
      %v4440 = vadd.f32 %v4351, %v4439
      %4441 = vmatmul.bf16.gmra.mxu0 %v1838
      %v4442 = vpop.f32.mrf.mxu0
      %v4443 = vadd.f32 %v4354, %v4442
      %v4444 = vpop.f32.mrf.mxu0
      %v4445 = vadd.f32 %v4356, %v4444
      %4446 = vmatmul.bf16.gmra.mxu0 %v1896
      %v4447 = vpop.f32.mrf.mxu0
      %v4448 = vadd.f32 %v4359, %v4447
      %v4449 = vpop.f32.mrf.mxu0
      %v4450 = vadd.f32 %v4361, %v4449
      %4451 = vmatmul.bf16.gmra.mxu0 %v1899
      %v4452 = vpop.f32.mrf.mxu0
      %v4453 = vadd.f32 %v4364, %v4452
      %v4454 = vpop.f32.mrf.mxu0
      %v4455 = vadd.f32 %v4366, %v4454
      %4456 = vmatmul.bf16.gmra.mxu0 %v1902
      %v4457 = vpop.f32.mrf.mxu0
      %v4458 = vadd.f32 %v4369, %v4457
      %v4459 = vpop.f32.mrf.mxu0
      %v4460 = vadd.f32 %v4371, %v4459
      %4461 = vmatmul.bf16.gmra.mxu0 %v1951
      %v4462 = vpop.f32.mrf.mxu0
      %v4463 = vadd.f32 %v4374, %v4462
      %v4464 = vpop.f32.mrf.mxu0
      %v4465 = vadd.f32 %v4376, %v4464
      %4466 = vmatmul.bf16.gmra.mxu0 %v2000
      %v4467 = vpop.f32.mrf.mxu0
      %v4468 = vadd.f32 %v4379, %v4467
      %v4469 = vpop.f32.mrf.mxu0
      %v4470 = vadd.f32 %v4381, %v4469
      %4471 = vmatmul.bf16.gmra.mxu0 %v2003
      %v4472 = vpop.f32.mrf.mxu0
      %v4473 = vadd.f32 %v4384, %v4472
      %v4474 = vpop.f32.mrf.mxu0
      %v4475 = vadd.f32 %v4386, %v4474
      %4476 = vmatmul.bf16.gmra.mxu0 %v2006
      %v4477 = vpop.f32.mrf.mxu0
      %v4478 = vadd.f32 %v4389, %v4477
      %v4479 = vpop.f32.mrf.mxu0
      %v4480 = vadd.f32 %v4391, %v4479
      %4481 = vmatmul.bf16.gmra.mxu0 %v2055
      %v4482 = vpop.f32.mrf.mxu0
      %v4483 = vadd.f32 %v4394, %v4482
      %v4484 = vpop.f32.mrf.mxu0
      %v4485 = vadd.f32 %v4396, %v4484
      %4486 = vdwg.mxu0
      %4487 = vmatpush.bf16.xpose.msra.mxu0 0
      %4488 = vmatpush.bf16.xpose.msra.mxu0 0
      %4489 = vmatpush.bf16.xpose.msra.mxu0 0
      %4490 = vmatpush.bf16.xpose.msra.mxu0 0
      %4491 = vmatpush.bf16.xpose.msra.mxu0 0
      %4492 = vmatpush.bf16.xpose.msra.mxu0 0
      %4493 = vmatpush.bf16.xpose.msra.mxu0 0
      %4494 = vmatpush.bf16.xpose.msra.mxu0 %v2145
      %4495 = vmatmul.bf16.gmra.mxu0 %v1625
      %v4496 = vpop.f32.mrf.mxu0
      %v4497 = vadd.f32 %v4408, %v4496
      %v4498 = vpop.f32.mrf.mxu0
      %v4499 = vadd.f32 %v4410, %v4498
      %4500 = vmatmul.bf16.gmra.mxu0 %v1628
      %v4501 = vpop.f32.mrf.mxu0
      %v4502 = vadd.f32 %v4413, %v4501
      %v4503 = vpop.f32.mrf.mxu0
      %v4504 = vadd.f32 %v4415, %v4503
      %4505 = vmatmul.bf16.gmra.mxu0 %v1631
      %v4506 = vpop.f32.mrf.mxu0
      %v4507 = vadd.f32 %v4418, %v4506
      %v4508 = vpop.f32.mrf.mxu0
      %v4509 = vadd.f32 %v4420, %v4508
      %4510 = vmatmul.bf16.gmra.mxu0 %v1836
      %v4511 = vpop.f32.mrf.mxu0
      %v4512 = vadd.f32 %v4423, %v4511
      %v4513 = vpop.f32.mrf.mxu0
      %v4514 = vadd.f32 %v4425, %v4513
      %4515 = vmatmul.bf16.gmra.mxu0 %v1637
      %v4516 = vpop.f32.mrf.mxu0
      %v4517 = vadd.f32 %v4428, %v4516
      %v4518 = vpop.f32.mrf.mxu0
      %v4519 = vadd.f32 %v4430, %v4518
      %4520 = vmatmul.bf16.gmra.mxu0 %v1640
      %v4521 = vpop.f32.mrf.mxu0
      %v4522 = vadd.f32 %v4433, %v4521
      %v4523 = vpop.f32.mrf.mxu0
      %v4524 = vadd.f32 %v4435, %v4523
      %4525 = vmatmul.bf16.gmra.mxu0 %v1643
      %v4526 = vpop.f32.mrf.mxu0
      %v4527 = vadd.f32 %v4438, %v4526
      %v4528 = vpop.f32.mrf.mxu0
      %v4529 = vadd.f32 %v4440, %v4528
      %4530 = vmatmul.bf16.gmra.mxu0 %v1839
      %v4531 = vpop.f32.mrf.mxu0
      %v4532 = vadd.f32 %v4443, %v4531
      %v4533 = vpop.f32.mrf.mxu0
      %v4534 = vadd.f32 %v4445, %v4533
      %4535 = vmatmul.bf16.gmra.mxu0 %v1897
      %v4536 = vpop.f32.mrf.mxu0
      %v4537 = vadd.f32 %v4448, %v4536
      %v4538 = vpop.f32.mrf.mxu0
      %v4539 = vadd.f32 %v4450, %v4538
      %4540 = vmatmul.bf16.gmra.mxu0 %v1900
      %v4541 = vpop.f32.mrf.mxu0
      %v4542 = vadd.f32 %v4453, %v4541
      %v4543 = vpop.f32.mrf.mxu0
      %v4544 = vadd.f32 %v4455, %v4543
      %4545 = vmatmul.bf16.gmra.mxu0 %v1903
      %v4546 = vpop.f32.mrf.mxu0
      %v4547 = vadd.f32 %v4458, %v4546
      %v4548 = vpop.f32.mrf.mxu0
      %v4549 = vadd.f32 %v4460, %v4548
      %4550 = vmatmul.bf16.gmra.mxu0 %v1952
      %v4551 = vpop.f32.mrf.mxu0
      %v4552 = vadd.f32 %v4463, %v4551
      %v4553 = vpop.f32.mrf.mxu0
      %v4554 = vadd.f32 %v4465, %v4553
      %4555 = vmatmul.bf16.gmra.mxu0 %v2001
      %v4556 = vpop.f32.mrf.mxu0
      %v4557 = vadd.f32 %v4468, %v4556
      %v4558 = vpop.f32.mrf.mxu0
      %v4559 = vadd.f32 %v4470, %v4558
      %4560 = vmatmul.bf16.gmra.mxu0 %v2004
      %v4561 = vpop.f32.mrf.mxu0
      %v4562 = vadd.f32 %v4473, %v4561
      %v4563 = vpop.f32.mrf.mxu0
      %v4564 = vadd.f32 %v4475, %v4563
      %4565 = vmatmul.bf16.gmra.mxu0 %v2007
      %v4566 = vpop.f32.mrf.mxu0
      %v4567 = vadd.f32 %v4478, %v4566
      %v4568 = vpop.f32.mrf.mxu0
      %v4569 = vadd.f32 %v4480, %v4568
      %4570 = vmatmul.bf16.gmra.mxu0 %v2056
      %v4571 = vpop.f32.mrf.mxu0
      %v4572 = vadd.f32 %v4483, %v4571
      %v4573 = vpop.f32.mrf.mxu0
      %v4574 = vadd.f32 %v4485, %v4573
      %4575 = vdwg.mxu0
      %v4576 = vmax.f32 %v4497, 0.0
      %v4577 = vmax.f32 %v4499, 0.0
      %v4578 = vmax.f32 %v4502, 0.0
      %v4579 = vmax.f32 %v4504, 0.0
      %v4580 = vmax.f32 %v4507, 0.0
      %v4581 = vmax.f32 %v4509, 0.0
      %v4582 = vmax.f32 %v4512, 0.0
      %v4583 = vmax.f32 %v4514, 0.0
      %v4584 = vmax.f32 %v4517, 0.0
      %v4585 = vmax.f32 %v4519, 0.0
      %v4586 = vmax.f32 %v4522, 0.0
      %v4587 = vmax.f32 %v4524, 0.0
      %v4588 = vmax.f32 %v4527, 0.0
      %v4589 = vmax.f32 %v4529, 0.0
      %v4590 = vmax.f32 %v4532, 0.0
      %v4591 = vmax.f32 %v4534, 0.0
      %v4592 = vmax.f32 %v4537, 0.0
      %v4593 = vmax.f32 %v4539, 0.0
      %v4594 = vmax.f32 %v4542, 0.0
      %v4595 = vmax.f32 %v4544, 0.0
      %v4596 = vmax.f32 %v4547, 0.0
      %v4597 = vmax.f32 %v4549, 0.0
      %v4598 = vmax.f32 %v4552, 0.0
      %v4599 = vmax.f32 %v4554, 0.0
      %v4600 = vmax.f32 %v4557, 0.0
      %v4601 = vmax.f32 %v4559, 0.0
      %v4602 = vmax.f32 %v4562, 0.0
      %v4603 = vmax.f32 %v4564, 0.0
      %v4604 = vmax.f32 %v4567, 0.0
      %v4605 = vmax.f32 %v4569, 0.0
      %v4606 = vmax.f32 %v4572, 0.0
      %v4607 = vmax.f32 %v4574, 0.0
      %v4608 = vpack.c.bf16 %v4577, %v4576
      %v4609 = vpack.c.bf16 %v4579, %v4578
      %v4610 = vpack.c.bf16 %v4581, %v4580
      %v4611 = vpack.c.bf16 %v4583, %v4582
      %v4612 = vpack.c.bf16 %v4585, %v4584
      %v4613 = vpack.c.bf16 %v4587, %v4586
      %v4614 = vpack.c.bf16 %v4589, %v4588
      %v4615 = vpack.c.bf16 %v4591, %v4590
      %v4616 = vpack.c.bf16 %v4593, %v4592
      %v4617 = vpack.c.bf16 %v4595, %v4594
      %v4618 = vpack.c.bf16 %v4597, %v4596
      %v4619 = vpack.c.bf16 %v4599, %v4598
      %v4620 = vpack.c.bf16 %v4601, %v4600
      %v4621 = vpack.c.bf16 %v4603, %v4602
      %v4622 = vpack.c.bf16 %v4605, %v4604
      %v4623 = vpack.c.bf16 %v4607, %v4606
      %v4624 = vld [vmem:[%s3] sm:$0xf]
      %v4625 = vld [vmem:[#allocation2] sm:$0x1]
      %v4627 = vperm.slane %v4625, 0
      %vm4629 = vcmask 64512
      %v4631 = vsel %vm4629, %v4608, 0
      %v4634 = vsel %vm4629, %v4609, 0
      %v4637 = vsel %vm4629, %v4610, 0
      %v4640 = vsel %vm4629, %v4611, 0
      %v4643 = vsel %vm4629, %v4612, 0
      %v4646 = vsel %vm4629, %v4613, 0
      %v4649 = vsel %vm4629, %v4614, 0
      %v4652 = vsel %vm4629, %v4615, 0
      %v4655 = vsel %vm4629, %v4616, 0
      %v4658 = vsel %vm4629, %v4617, 0
      %v4661 = vsel %vm4629, %v4618, 0
      %v4664 = vsel %vm4629, %v4619, 0
      %v4667 = vsel %vm4629, %v4620, 0
      %v4670 = vsel %vm4629, %v4621, 0
      %v4673 = vsel %vm4629, %v4622, 0
      %v4676 = vsel %vm4629, %v4623, 0
      %vm4678 = vcmask 1043456
      %v4680 = vsel %vm4678, %v4624, 0
      %4682 = vmatpush.bf16.msra.mxu0 0
      %4683 = vmatpush.bf16.msra.mxu0 0
      %4684 = vmatpush.bf16.msra.mxu0 0
      %4685 = vmatpush.bf16.msra.mxu0 0
      %4686 = vmatpush.bf16.msra.mxu0 0
      %4687 = vmatpush.bf16.msra.mxu0 0
      %4688 = vmatpush.bf16.msra.mxu0 0
      %4689 = vmatpush.bf16.msra.mxu0 %v4680
      %4690 = vmatmul.bf16.gmra.mxu0 %v4631
      %v4691 = vpop.f32.mrf.mxu0
      %v4692 = vadd.f32 %v4627, %v4691
      %v4693 = vpop.f32.mrf.mxu0
      %v4694 = vadd.f32 %v4627, %v4693
      %4695 = vmatmul.bf16.gmra.mxu0 %v4634
      %v4696 = vpop.f32.mrf.mxu0
      %v4697 = vadd.f32 %v4627, %v4696
      %v4698 = vpop.f32.mrf.mxu0
      %v4699 = vadd.f32 %v4627, %v4698
      %4700 = vmatmul.bf16.gmra.mxu0 %v4637
      %v4701 = vpop.f32.mrf.mxu0
      %v4702 = vadd.f32 %v4627, %v4701
      %v4703 = vpop.f32.mrf.mxu0
      %v4704 = vadd.f32 %v4627, %v4703
      %4705 = vmatmul.bf16.gmra.mxu0 %v4640
      %v4706 = vpop.f32.mrf.mxu0
      %v4707 = vadd.f32 %v4627, %v4706
      %v4708 = vpop.f32.mrf.mxu0
      %v4709 = vadd.f32 %v4627, %v4708
      %4710 = vmatmul.bf16.gmra.mxu0 %v4643
      %v4711 = vpop.f32.mrf.mxu0
      %v4712 = vadd.f32 %v4627, %v4711
      %v4713 = vpop.f32.mrf.mxu0
      %v4714 = vadd.f32 %v4627, %v4713
      %4715 = vmatmul.bf16.gmra.mxu0 %v4646
      %v4716 = vpop.f32.mrf.mxu0
      %v4717 = vadd.f32 %v4627, %v4716
      %v4718 = vpop.f32.mrf.mxu0
      %v4719 = vadd.f32 %v4627, %v4718
      %4720 = vmatmul.bf16.gmra.mxu0 %v4649
      %v4721 = vpop.f32.mrf.mxu0
      %v4722 = vadd.f32 %v4627, %v4721
      %v4723 = vpop.f32.mrf.mxu0
      %v4724 = vadd.f32 %v4627, %v4723
      %4725 = vmatmul.bf16.gmra.mxu0 %v4652
      %v4726 = vpop.f32.mrf.mxu0
      %v4727 = vadd.f32 %v4627, %v4726
      %v4728 = vpop.f32.mrf.mxu0
      %v4729 = vadd.f32 %v4627, %v4728
      %4730 = vmatmul.bf16.gmra.mxu0 %v4655
      %v4731 = vpop.f32.mrf.mxu0
      %v4732 = vadd.f32 %v4627, %v4731
      %v4733 = vpop.f32.mrf.mxu0
      %v4734 = vadd.f32 %v4627, %v4733
      %4735 = vmatmul.bf16.gmra.mxu0 %v4658
      %v4736 = vpop.f32.mrf.mxu0
      %v4737 = vadd.f32 %v4627, %v4736
      %v4738 = vpop.f32.mrf.mxu0
      %v4739 = vadd.f32 %v4627, %v4738
      %4740 = vmatmul.bf16.gmra.mxu0 %v4661
      %v4741 = vpop.f32.mrf.mxu0
      %v4742 = vadd.f32 %v4627, %v4741
      %v4743 = vpop.f32.mrf.mxu0
      %v4744 = vadd.f32 %v4627, %v4743
      %4745 = vmatmul.bf16.gmra.mxu0 %v4664
      %v4746 = vpop.f32.mrf.mxu0
      %v4747 = vadd.f32 %v4627, %v4746
      %v4748 = vpop.f32.mrf.mxu0
      %v4749 = vadd.f32 %v4627, %v4748
      %4750 = vmatmul.bf16.gmra.mxu0 %v4667
      %v4751 = vpop.f32.mrf.mxu0
      %v4752 = vadd.f32 %v4627, %v4751
      %v4753 = vpop.f32.mrf.mxu0
      %v4754 = vadd.f32 %v4627, %v4753
      %4755 = vmatmul.bf16.gmra.mxu0 %v4670
      %v4756 = vpop.f32.mrf.mxu0
      %v4757 = vadd.f32 %v4627, %v4756
      %v4758 = vpop.f32.mrf.mxu0
      %v4759 = vadd.f32 %v4627, %v4758
      %4760 = vmatmul.bf16.gmra.mxu0 %v4673
      %v4761 = vpop.f32.mrf.mxu0
      %v4762 = vadd.f32 %v4627, %v4761
      %v4763 = vpop.f32.mrf.mxu0
      %v4764 = vadd.f32 %v4627, %v4763
      %4765 = vmatmul.bf16.gmra.mxu0 %v4676
      %v4766 = vpop.f32.mrf.mxu0
      %v4767 = vadd.f32 %v4627, %v4766
      %v4768 = vpop.f32.mrf.mxu0
      %v4769 = vadd.f32 %v4627, %v4768
      %4770 = vdwg.mxu0
      %v4771 = vld [vmem:[%s5] sm:$0x1]
      %v4772 = vld [vmem:[#allocation3] sm:$0x1]
      %4774 = vset.pattern.permute.xlu0 0
      %4775 = vperm.xlu0 %4774, %v4772
      %v4776 = vpop.permute.xlu0 %4775
      %v4778 = vperm.slane %v4776, 0
      %v4780 = vsel %vm4629, %v4771, 0
      %4782 = vmatpush.bf16.xpose.msra.mxu0 %v4652
      %4783 = vmatpush.bf16.xpose.msra.mxu0 %v4649
      %4784 = vmatpush.bf16.xpose.msra.mxu0 %v4646
      %4785 = vmatpush.bf16.xpose.msra.mxu0 %v4643
      %4786 = vmatpush.bf16.xpose.msra.mxu0 %v4640
      %4787 = vmatpush.bf16.xpose.msra.mxu0 %v4637
      %4788 = vmatpush.bf16.xpose.msra.mxu0 %v4634
      %4789 = vmatpush.bf16.xpose.msra.mxu0 %v4631
      %4790 = vmatmul.bf16.gmra.mxu0 %v4780
      %v4791 = vpop.f32.mrf.mxu0
      %v4792 = vadd.f32 %v4778, %v4791
      %v4793 = vpop.f32.mrf.mxu0
      %4794 = vdwg.mxu0
      %4795 = vmatpush.bf16.xpose.msra.mxu0 %v4676
      %4796 = vmatpush.bf16.xpose.msra.mxu0 %v4673
      %4797 = vmatpush.bf16.xpose.msra.mxu0 %v4670
      %4798 = vmatpush.bf16.xpose.msra.mxu0 %v4667
      %4799 = vmatpush.bf16.xpose.msra.mxu0 %v4664
      %4800 = vmatpush.bf16.xpose.msra.mxu0 %v4661
      %4801 = vmatpush.bf16.xpose.msra.mxu0 %v4658
      %4802 = vmatpush.bf16.xpose.msra.mxu0 %v4655
      %4803 = vmatmul.bf16.gmra.mxu0 %v4780
      %v4804 = vpop.f32.mrf.mxu0
      %v4805 = vadd.f32 %v4778, %v4804
      %v4806 = vpop.f32.mrf.mxu0
      %4807 = vdwg.mxu0
      %v4808 = vld [vmem:[%s7] sm:$0xf]
      %v4809 = vld [vmem:[%s8] sm:$0x1]
      %v4811 = vperm.slane %v4809, 0
      %v4814 = vsel %vm4678, %v4808, 0
      %4816 = vmatpush.bf16.msra.mxu0 0
      %4817 = vmatpush.bf16.msra.mxu0 0
      %4818 = vmatpush.bf16.msra.mxu0 0
      %4819 = vmatpush.bf16.msra.mxu0 0
      %4820 = vmatpush.bf16.msra.mxu0 0
      %4821 = vmatpush.bf16.msra.mxu0 0
      %4822 = vmatpush.bf16.msra.mxu0 0
      %4823 = vmatpush.bf16.msra.mxu0 %v4814
      %4824 = vmatmul.bf16.gmra.mxu0 %v4631
      %v4825 = vpop.f32.mrf.mxu0
      %v4826 = vadd.f32 %v4811, %v4825
      %v4827 = vpop.f32.mrf.mxu0
      %v4828 = vadd.f32 %v4811, %v4827
      %4829 = vmatmul.bf16.gmra.mxu0 %v4634
      %v4830 = vpop.f32.mrf.mxu0
      %v4831 = vadd.f32 %v4811, %v4830
      %v4832 = vpop.f32.mrf.mxu0
      %v4833 = vadd.f32 %v4811, %v4832
      %4834 = vmatmul.bf16.gmra.mxu0 %v4637
      %v4835 = vpop.f32.mrf.mxu0
      %v4836 = vadd.f32 %v4811, %v4835
      %v4837 = vpop.f32.mrf.mxu0
      %v4838 = vadd.f32 %v4811, %v4837
      %4839 = vmatmul.bf16.gmra.mxu0 %v4640
      %v4840 = vpop.f32.mrf.mxu0
      %v4841 = vadd.f32 %v4811, %v4840
      %v4842 = vpop.f32.mrf.mxu0
      %v4843 = vadd.f32 %v4811, %v4842
      %4844 = vmatmul.bf16.gmra.mxu0 %v4643
      %v4845 = vpop.f32.mrf.mxu0
      %v4846 = vadd.f32 %v4811, %v4845
      %v4847 = vpop.f32.mrf.mxu0
      %v4848 = vadd.f32 %v4811, %v4847
      %4849 = vmatmul.bf16.gmra.mxu0 %v4646
      %v4850 = vpop.f32.mrf.mxu0
      %v4851 = vadd.f32 %v4811, %v4850
      %v4852 = vpop.f32.mrf.mxu0
      %v4853 = vadd.f32 %v4811, %v4852
      %4854 = vmatmul.bf16.gmra.mxu0 %v4649
      %v4855 = vpop.f32.mrf.mxu0
      %v4856 = vadd.f32 %v4811, %v4855
      %v4857 = vpop.f32.mrf.mxu0
      %v4858 = vadd.f32 %v4811, %v4857
      %4859 = vmatmul.bf16.gmra.mxu0 %v4652
      %v4860 = vpop.f32.mrf.mxu0
      %v4861 = vadd.f32 %v4811, %v4860
      %v4862 = vpop.f32.mrf.mxu0
      %v4863 = vadd.f32 %v4811, %v4862
      %4864 = vmatmul.bf16.gmra.mxu0 %v4655
      %v4865 = vpop.f32.mrf.mxu0
      %v4866 = vadd.f32 %v4811, %v4865
      %v4867 = vpop.f32.mrf.mxu0
      %v4868 = vadd.f32 %v4811, %v4867
      %4869 = vmatmul.bf16.gmra.mxu0 %v4658
      %v4870 = vpop.f32.mrf.mxu0
      %v4871 = vadd.f32 %v4811, %v4870
      %v4872 = vpop.f32.mrf.mxu0
      %v4873 = vadd.f32 %v4811, %v4872
      %4874 = vmatmul.bf16.gmra.mxu0 %v4661
      %v4875 = vpop.f32.mrf.mxu0
      %v4876 = vadd.f32 %v4811, %v4875
      %v4877 = vpop.f32.mrf.mxu0
      %v4878 = vadd.f32 %v4811, %v4877
      %4879 = vmatmul.bf16.gmra.mxu0 %v4664
      %v4880 = vpop.f32.mrf.mxu0
      %v4881 = vadd.f32 %v4811, %v4880
      %v4882 = vpop.f32.mrf.mxu0
      %v4883 = vadd.f32 %v4811, %v4882
      %4884 = vmatmul.bf16.gmra.mxu0 %v4667
      %v4885 = vpop.f32.mrf.mxu0
      %v4886 = vadd.f32 %v4811, %v4885
      %v4887 = vpop.f32.mrf.mxu0
      %v4888 = vadd.f32 %v4811, %v4887
      %4889 = vmatmul.bf16.gmra.mxu0 %v4670
      %v4890 = vpop.f32.mrf.mxu0
      %v4891 = vadd.f32 %v4811, %v4890
      %v4892 = vpop.f32.mrf.mxu0
      %v4893 = vadd.f32 %v4811, %v4892
      %4894 = vmatmul.bf16.gmra.mxu0 %v4673
      %v4895 = vpop.f32.mrf.mxu0
      %v4896 = vadd.f32 %v4811, %v4895
      %v4897 = vpop.f32.mrf.mxu0
      %v4898 = vadd.f32 %v4811, %v4897
      %4899 = vmatmul.bf16.gmra.mxu0 %v4676
      %v4900 = vpop.f32.mrf.mxu0
      %v4901 = vadd.f32 %v4811, %v4900
      %v4902 = vpop.f32.mrf.mxu0
      %v4903 = vadd.f32 %v4811, %v4902
      %4904 = vdwg.mxu0
      %4906 = vset.pattern.permute.xlu0 0
      %4907 = vperm.xlu0 %4906, %v4692
      %v4908 = vpop.permute.xlu0 %4907
      %4911 = vset.pattern.permute.xlu0 0
      %4912 = vperm.xlu0 %4911, %v4694
      %v4913 = vpop.permute.xlu0 %4912
      %4916 = vset.pattern.permute.xlu0 0
      %4917 = vperm.xlu0 %4916, %v4697
      %v4918 = vpop.permute.xlu0 %4917
      %4921 = vset.pattern.permute.xlu0 0
      %4922 = vperm.xlu0 %4921, %v4699
      %v4923 = vpop.permute.xlu0 %4922
      %4926 = vset.pattern.permute.xlu0 0
      %4927 = vperm.xlu0 %4926, %v4702
      %v4928 = vpop.permute.xlu0 %4927
      %4931 = vset.pattern.permute.xlu0 0
      %4932 = vperm.xlu0 %4931, %v4704
      %v4933 = vpop.permute.xlu0 %4932
      %4936 = vset.pattern.permute.xlu0 0
      %4937 = vperm.xlu0 %4936, %v4707
      %v4938 = vpop.permute.xlu0 %4937
      %4941 = vset.pattern.permute.xlu0 0
      %4942 = vperm.xlu0 %4941, %v4709
      %v4943 = vpop.permute.xlu0 %4942
      %4946 = vset.pattern.permute.xlu0 0
      %4947 = vperm.xlu0 %4946, %v4712
      %v4948 = vpop.permute.xlu0 %4947
      %4951 = vset.pattern.permute.xlu0 0
      %4952 = vperm.xlu0 %4951, %v4714
      %v4953 = vpop.permute.xlu0 %4952
      %4956 = vset.pattern.permute.xlu0 0
      %4957 = vperm.xlu0 %4956, %v4717
      %v4958 = vpop.permute.xlu0 %4957
      %4961 = vset.pattern.permute.xlu0 0
      %4962 = vperm.xlu0 %4961, %v4719
      %v4963 = vpop.permute.xlu0 %4962
      %4966 = vset.pattern.permute.xlu0 0
      %4967 = vperm.xlu0 %4966, %v4722
      %v4968 = vpop.permute.xlu0 %4967
      %4971 = vset.pattern.permute.xlu0 0
      %4972 = vperm.xlu0 %4971, %v4724
      %v4973 = vpop.permute.xlu0 %4972
      %4976 = vset.pattern.permute.xlu0 0
      %4977 = vperm.xlu0 %4976, %v4727
      %v4978 = vpop.permute.xlu0 %4977
      %4981 = vset.pattern.permute.xlu0 0
      %4982 = vperm.xlu0 %4981, %v4729
      %v4983 = vpop.permute.xlu0 %4982
      %4986 = vset.pattern.permute.xlu0 0
      %4987 = vperm.xlu0 %4986, %v4732
      %v4988 = vpop.permute.xlu0 %4987
      %4991 = vset.pattern.permute.xlu0 0
      %4992 = vperm.xlu0 %4991, %v4734
      %v4993 = vpop.permute.xlu0 %4992
      %4996 = vset.pattern.permute.xlu0 0
      %4997 = vperm.xlu0 %4996, %v4737
      %v4998 = vpop.permute.xlu0 %4997
      %5001 = vset.pattern.permute.xlu0 0
      %5002 = vperm.xlu0 %5001, %v4739
      %v5003 = vpop.permute.xlu0 %5002
      %5006 = vset.pattern.permute.xlu0 0
      %5007 = vperm.xlu0 %5006, %v4742
      %v5008 = vpop.permute.xlu0 %5007
      %5011 = vset.pattern.permute.xlu0 0
      %5012 = vperm.xlu0 %5011, %v4744
      %v5013 = vpop.permute.xlu0 %5012
      %5016 = vset.pattern.permute.xlu0 0
      %5017 = vperm.xlu0 %5016, %v4747
      %v5018 = vpop.permute.xlu0 %5017
      %5021 = vset.pattern.permute.xlu0 0
      %5022 = vperm.xlu0 %5021, %v4749
      %v5023 = vpop.permute.xlu0 %5022
      %5026 = vset.pattern.permute.xlu0 0
      %5027 = vperm.xlu0 %5026, %v4752
      %v5028 = vpop.permute.xlu0 %5027
      %5031 = vset.pattern.permute.xlu0 0
      %5032 = vperm.xlu0 %5031, %v4754
      %v5033 = vpop.permute.xlu0 %5032
      %5036 = vset.pattern.permute.xlu0 0
      %5037 = vperm.xlu0 %5036, %v4757
      %v5038 = vpop.permute.xlu0 %5037
      %5041 = vset.pattern.permute.xlu0 0
      %5042 = vperm.xlu0 %5041, %v4759
      %v5043 = vpop.permute.xlu0 %5042
      %5046 = vset.pattern.permute.xlu0 0
      %5047 = vperm.xlu0 %5046, %v4762
      %v5048 = vpop.permute.xlu0 %5047
      %5051 = vset.pattern.permute.xlu0 0
      %5052 = vperm.xlu0 %5051, %v4764
      %v5053 = vpop.permute.xlu0 %5052
      %5056 = vset.pattern.permute.xlu0 0
      %5057 = vperm.xlu0 %5056, %v4767
      %v5058 = vpop.permute.xlu0 %5057
      %5061 = vset.pattern.permute.xlu0 0
      %5062 = vperm.xlu0 %5061, %v4769
      %v5063 = vpop.permute.xlu0 %5062
      %v5065 = vperm.slane %v4792, 0
      %v5066 = vperm.slane %v4805, 0
      %v5067 = vmul.f32 %v4908, %v5065
      %v5068 = vmul.f32 %v4908, %v5066
      %v5069 = vmul.f32 %v4913, %v5065
      %v5070 = vmul.f32 %v4913, %v5066
      %v5071 = vmul.f32 %v4918, %v5065
      %v5072 = vmul.f32 %v4918, %v5066
      %v5073 = vmul.f32 %v4923, %v5065
      %v5074 = vmul.f32 %v4923, %v5066
      %v5075 = vmul.f32 %v4928, %v5065
      %v5076 = vmul.f32 %v4928, %v5066
      %v5077 = vmul.f32 %v4933, %v5065
      %v5078 = vmul.f32 %v4933, %v5066
      %v5079 = vmul.f32 %v4938, %v5065
      %v5080 = vmul.f32 %v4938, %v5066
      %v5081 = vmul.f32 %v4943, %v5065
      %v5082 = vmul.f32 %v4943, %v5066
      %v5083 = vmul.f32 %v4948, %v5065
      %v5084 = vmul.f32 %v4948, %v5066
      %v5085 = vmul.f32 %v4953, %v5065
      %v5086 = vmul.f32 %v4953, %v5066
      %v5087 = vmul.f32 %v4958, %v5065
      %v5088 = vmul.f32 %v4958, %v5066
      %v5089 = vmul.f32 %v4963, %v5065
      %v5090 = vmul.f32 %v4963, %v5066
      %v5091 = vmul.f32 %v4968, %v5065
      %v5092 = vmul.f32 %v4968, %v5066
      %v5093 = vmul.f32 %v4973, %v5065
      %v5094 = vmul.f32 %v4973, %v5066
      %v5095 = vmul.f32 %v4978, %v5065
      %v5096 = vmul.f32 %v4978, %v5066
      %v5097 = vmul.f32 %v4983, %v5065
      %v5098 = vmul.f32 %v4983, %v5066
      %v5099 = vmul.f32 %v4988, %v5065
      %v5100 = vmul.f32 %v4988, %v5066
      %v5101 = vmul.f32 %v4993, %v5065
      %v5102 = vmul.f32 %v4993, %v5066
      %v5103 = vmul.f32 %v4998, %v5065
      %v5104 = vmul.f32 %v4998, %v5066
      %v5105 = vmul.f32 %v5003, %v5065
      %v5106 = vmul.f32 %v5003, %v5066
      %v5107 = vmul.f32 %v5008, %v5065
      %v5108 = vmul.f32 %v5008, %v5066
      %v5109 = vmul.f32 %v5013, %v5065
      %v5110 = vmul.f32 %v5013, %v5066
      %v5111 = vmul.f32 %v5018, %v5065
      %v5112 = vmul.f32 %v5018, %v5066
      %v5113 = vmul.f32 %v5023, %v5065
      %v5114 = vmul.f32 %v5023, %v5066
      %v5115 = vmul.f32 %v5028, %v5065
      %v5116 = vmul.f32 %v5028, %v5066
      %v5117 = vmul.f32 %v5033, %v5065
      %v5118 = vmul.f32 %v5033, %v5066
      %v5119 = vmul.f32 %v5038, %v5065
      %v5120 = vmul.f32 %v5038, %v5066
      %v5121 = vmul.f32 %v5043, %v5065
      %v5122 = vmul.f32 %v5043, %v5066
      %v5123 = vmul.f32 %v5048, %v5065
      %v5124 = vmul.f32 %v5048, %v5066
      %v5125 = vmul.f32 %v5053, %v5065
      %v5126 = vmul.f32 %v5053, %v5066
      %v5127 = vmul.f32 %v5058, %v5065
      %v5128 = vmul.f32 %v5058, %v5066
      %v5129 = vmul.f32 %v5063, %v5065
      %v5130 = vmul.f32 %v5063, %v5066
      %v5131 = vmax.f32 %v5067, %v5068
      %5132 = vmax.xlane.f32.xlu0 %v5131
      %v5133 = vpop.xlane.xlu0 %5132
      %v5134 = vmax.f32 %v5069, %v5070
      %5135 = vmax.xlane.f32.xlu0 %v5134
      %v5136 = vpop.xlane.xlu0 %5135
      %v5137 = vmax.f32 %v5071, %v5072
      %5138 = vmax.xlane.f32.xlu0 %v5137
      %v5139 = vpop.xlane.xlu0 %5138
      %v5140 = vmax.f32 %v5073, %v5074
      %5141 = vmax.xlane.f32.xlu0 %v5140
      %v5142 = vpop.xlane.xlu0 %5141
      %v5143 = vmax.f32 %v5075, %v5076
      %5144 = vmax.xlane.f32.xlu0 %v5143
      %v5145 = vpop.xlane.xlu0 %5144
      %v5146 = vmax.f32 %v5077, %v5078
      %5147 = vmax.xlane.f32.xlu0 %v5146
      %v5148 = vpop.xlane.xlu0 %5147
      %v5149 = vmax.f32 %v5079, %v5080
      %5150 = vmax.xlane.f32.xlu0 %v5149
      %v5151 = vpop.xlane.xlu0 %5150
      %v5152 = vmax.f32 %v5081, %v5082
      %5153 = vmax.xlane.f32.xlu0 %v5152
      %v5154 = vpop.xlane.xlu0 %5153
      %v5155 = vmax.f32 %v5083, %v5084
      %5156 = vmax.xlane.f32.xlu0 %v5155
      %v5157 = vpop.xlane.xlu0 %5156
      %v5158 = vmax.f32 %v5085, %v5086
      %5159 = vmax.xlane.f32.xlu0 %v5158
      %v5160 = vpop.xlane.xlu0 %5159
      %v5161 = vmax.f32 %v5087, %v5088
      %5162 = vmax.xlane.f32.xlu0 %v5161
      %v5163 = vpop.xlane.xlu0 %5162
      %v5164 = vmax.f32 %v5089, %v5090
      %5165 = vmax.xlane.f32.xlu0 %v5164
      %v5166 = vpop.xlane.xlu0 %5165
      %v5167 = vmax.f32 %v5091, %v5092
      %5168 = vmax.xlane.f32.xlu0 %v5167
      %v5169 = vpop.xlane.xlu0 %5168
      %v5170 = vmax.f32 %v5093, %v5094
      %5171 = vmax.xlane.f32.xlu0 %v5170
      %v5172 = vpop.xlane.xlu0 %5171
      %v5173 = vmax.f32 %v5095, %v5096
      %5174 = vmax.xlane.f32.xlu0 %v5173
      %v5175 = vpop.xlane.xlu0 %5174
      %v5176 = vmax.f32 %v5097, %v5098
      %5177 = vmax.xlane.f32.xlu0 %v5176
      %v5178 = vpop.xlane.xlu0 %5177
      %v5179 = vmax.f32 %v5099, %v5100
      %5180 = vmax.xlane.f32.xlu0 %v5179
      %v5181 = vpop.xlane.xlu0 %5180
      %v5182 = vmax.f32 %v5101, %v5102
      %5183 = vmax.xlane.f32.xlu0 %v5182
      %v5184 = vpop.xlane.xlu0 %5183
      %v5185 = vmax.f32 %v5103, %v5104
      %5186 = vmax.xlane.f32.xlu0 %v5185
      %v5187 = vpop.xlane.xlu0 %5186
      %v5188 = vmax.f32 %v5105, %v5106
      %5189 = vmax.xlane.f32.xlu0 %v5188
      %v5190 = vpop.xlane.xlu0 %5189
      %v5191 = vmax.f32 %v5107, %v5108
      %5192 = vmax.xlane.f32.xlu0 %v5191
      %v5193 = vpop.xlane.xlu0 %5192
      %v5194 = vmax.f32 %v5109, %v5110
      %5195 = vmax.xlane.f32.xlu0 %v5194
      %v5196 = vpop.xlane.xlu0 %5195
      %v5197 = vmax.f32 %v5111, %v5112
      %5198 = vmax.xlane.f32.xlu0 %v5197
      %v5199 = vpop.xlane.xlu0 %5198
      %v5200 = vmax.f32 %v5113, %v5114
      %5201 = vmax.xlane.f32.xlu0 %v5200
      %v5202 = vpop.xlane.xlu0 %5201
      %v5203 = vmax.f32 %v5115, %v5116
      %5204 = vmax.xlane.f32.xlu0 %v5203
      %v5205 = vpop.xlane.xlu0 %5204
      %v5206 = vmax.f32 %v5117, %v5118
      %5207 = vmax.xlane.f32.xlu0 %v5206
      %v5208 = vpop.xlane.xlu0 %5207
      %v5209 = vmax.f32 %v5119, %v5120
      %5210 = vmax.xlane.f32.xlu0 %v5209
      %v5211 = vpop.xlane.xlu0 %5210
      %v5212 = vmax.f32 %v5121, %v5122
      %5213 = vmax.xlane.f32.xlu0 %v5212
      %v5214 = vpop.xlane.xlu0 %5213
      %v5215 = vmax.f32 %v5123, %v5124
      %5216 = vmax.xlane.f32.xlu0 %v5215
      %v5217 = vpop.xlane.xlu0 %5216
      %v5218 = vmax.f32 %v5125, %v5126
      %5219 = vmax.xlane.f32.xlu0 %v5218
      %v5220 = vpop.xlane.xlu0 %5219
      %v5221 = vmax.f32 %v5127, %v5128
      %5222 = vmax.xlane.f32.xlu0 %v5221
      %v5223 = vpop.xlane.xlu0 %5222
      %v5224 = vmax.f32 %v5129, %v5130
      %5225 = vmax.xlane.f32.xlu0 %v5224
      %v5226 = vpop.xlane.xlu0 %5225
      %v5227 = vsub.f32 %v5067, %v5133
      %v5228 = vsub.f32 %v5068, %v5133
      %v5229 = vsub.f32 %v5069, %v5136
      %v5230 = vsub.f32 %v5070, %v5136
      %v5231 = vsub.f32 %v5071, %v5139
      %v5232 = vsub.f32 %v5072, %v5139
      %v5233 = vsub.f32 %v5073, %v5142
      %v5234 = vsub.f32 %v5074, %v5142
      %v5235 = vsub.f32 %v5075, %v5145
      %v5236 = vsub.f32 %v5076, %v5145
      %v5237 = vsub.f32 %v5077, %v5148
      %v5238 = vsub.f32 %v5078, %v5148
      %v5239 = vsub.f32 %v5079, %v5151
      %v5240 = vsub.f32 %v5080, %v5151
      %v5241 = vsub.f32 %v5081, %v5154
      %v5242 = vsub.f32 %v5082, %v5154
      %v5243 = vsub.f32 %v5083, %v5157
      %v5244 = vsub.f32 %v5084, %v5157
      %v5245 = vsub.f32 %v5085, %v5160
      %v5246 = vsub.f32 %v5086, %v5160
      %v5247 = vsub.f32 %v5087, %v5163
      %v5248 = vsub.f32 %v5088, %v5163
      %v5249 = vsub.f32 %v5089, %v5166
      %v5250 = vsub.f32 %v5090, %v5166
      %v5251 = vsub.f32 %v5091, %v5169
      %v5252 = vsub.f32 %v5092, %v5169
      %v5253 = vsub.f32 %v5093, %v5172
      %v5254 = vsub.f32 %v5094, %v5172
      %v5255 = vsub.f32 %v5095, %v5175
      %v5256 = vsub.f32 %v5096, %v5175
      %v5257 = vsub.f32 %v5097, %v5178
      %v5258 = vsub.f32 %v5098, %v5178
      %v5259 = vsub.f32 %v5099, %v5181
      %v5260 = vsub.f32 %v5100, %v5181
      %v5261 = vsub.f32 %v5101, %v5184
      %v5262 = vsub.f32 %v5102, %v5184
      %v5263 = vsub.f32 %v5103, %v5187
      %v5264 = vsub.f32 %v5104, %v5187
      %v5265 = vsub.f32 %v5105, %v5190
      %v5266 = vsub.f32 %v5106, %v5190
      %v5267 = vsub.f32 %v5107, %v5193
      %v5268 = vsub.f32 %v5108, %v5193
      %v5269 = vsub.f32 %v5109, %v5196
      %v5270 = vsub.f32 %v5110, %v5196
      %v5271 = vsub.f32 %v5111, %v5199
      %v5272 = vsub.f32 %v5112, %v5199
      %v5273 = vsub.f32 %v5113, %v5202
      %v5274 = vsub.f32 %v5114, %v5202
      %v5275 = vsub.f32 %v5115, %v5205
      %v5276 = vsub.f32 %v5116, %v5205
      %v5277 = vsub.f32 %v5117, %v5208
      %v5278 = vsub.f32 %v5118, %v5208
      %v5279 = vsub.f32 %v5119, %v5211
      %v5280 = vsub.f32 %v5120, %v5211
      %v5281 = vsub.f32 %v5121, %v5214
      %v5282 = vsub.f32 %v5122, %v5214
      %v5283 = vsub.f32 %v5123, %v5217
      %v5284 = vsub.f32 %v5124, %v5217
      %v5285 = vsub.f32 %v5125, %v5220
      %v5286 = vsub.f32 %v5126, %v5220
      %v5287 = vsub.f32 %v5127, %v5223
      %v5288 = vsub.f32 %v5128, %v5223
      %v5289 = vsub.f32 %v5129, %v5226
      %v5290 = vsub.f32 %v5130, %v5226
      %v5291 = vmul.f32 %v5227, 1.442695
      %v5292 = vpow.pop %v5291
      %v5293 = vmul.f32 %v5228, 1.442695
      %v5294 = vpow.pop %v5293
      %v5295 = vmul.f32 %v5229, 1.442695
      %v5296 = vpow.pop %v5295
      %v5297 = vmul.f32 %v5230, 1.442695
      %v5298 = vpow.pop %v5297
      %v5299 = vmul.f32 %v5231, 1.442695
      %v5300 = vpow.pop %v5299
      %v5301 = vmul.f32 %v5232, 1.442695
      %v5302 = vpow.pop %v5301
      %v5303 = vmul.f32 %v5233, 1.442695
      %v5304 = vpow.pop %v5303
      %v5305 = vmul.f32 %v5234, 1.442695
      %v5306 = vpow.pop %v5305
      %v5307 = vmul.f32 %v5235, 1.442695
      %v5308 = vpow.pop %v5307
      %v5309 = vmul.f32 %v5236, 1.442695
      %v5310 = vpow.pop %v5309
      %v5311 = vmul.f32 %v5237, 1.442695
      %v5312 = vpow.pop %v5311
      %v5313 = vmul.f32 %v5238, 1.442695
      %v5314 = vpow.pop %v5313
      %v5315 = vmul.f32 %v5239, 1.442695
      %v5316 = vpow.pop %v5315
      %v5317 = vmul.f32 %v5240, 1.442695
      %v5318 = vpow.pop %v5317
      %v5319 = vmul.f32 %v5241, 1.442695
      %v5320 = vpow.pop %v5319
      %v5321 = vmul.f32 %v5242, 1.442695
      %v5322 = vpow.pop %v5321
      %v5323 = vmul.f32 %v5243, 1.442695
      %v5324 = vpow.pop %v5323
      %v5325 = vmul.f32 %v5244, 1.442695
      %v5326 = vpow.pop %v5325
      %v5327 = vmul.f32 %v5245, 1.442695
      %v5328 = vpow.pop %v5327
      %v5329 = vmul.f32 %v5246, 1.442695
      %v5330 = vpow.pop %v5329
      %v5331 = vmul.f32 %v5247, 1.442695
      %v5332 = vpow.pop %v5331
      %v5333 = vmul.f32 %v5248, 1.442695
      %v5334 = vpow.pop %v5333
      %v5335 = vmul.f32 %v5249, 1.442695
      %v5336 = vpow.pop %v5335
      %v5337 = vmul.f32 %v5250, 1.442695
      %v5338 = vpow.pop %v5337
      %v5339 = vmul.f32 %v5251, 1.442695
      %v5340 = vpow.pop %v5339
      %v5341 = vmul.f32 %v5252, 1.442695
      %v5342 = vpow.pop %v5341
      %v5343 = vmul.f32 %v5253, 1.442695
      %v5344 = vpow.pop %v5343
      %v5345 = vmul.f32 %v5254, 1.442695
      %v5346 = vpow.pop %v5345
      %v5347 = vmul.f32 %v5255, 1.442695
      %v5348 = vpow.pop %v5347
      %v5349 = vmul.f32 %v5256, 1.442695
      %v5350 = vpow.pop %v5349
      %v5351 = vmul.f32 %v5257, 1.442695
      %v5352 = vpow.pop %v5351
      %v5353 = vmul.f32 %v5258, 1.442695
      %v5354 = vpow.pop %v5353
      %v5355 = vmul.f32 %v5259, 1.442695
      %v5356 = vpow.pop %v5355
      %v5357 = vmul.f32 %v5260, 1.442695
      %v5358 = vpow.pop %v5357
      %v5359 = vmul.f32 %v5261, 1.442695
      %v5360 = vpow.pop %v5359
      %v5361 = vmul.f32 %v5262, 1.442695
      %v5362 = vpow.pop %v5361
      %v5363 = vmul.f32 %v5263, 1.442695
      %v5364 = vpow.pop %v5363
      %v5365 = vmul.f32 %v5264, 1.442695
      %v5366 = vpow.pop %v5365
      %v5367 = vmul.f32 %v5265, 1.442695
      %v5368 = vpow.pop %v5367
      %v5369 = vmul.f32 %v5266, 1.442695
      %v5370 = vpow.pop %v5369
      %v5371 = vmul.f32 %v5267, 1.442695
      %v5372 = vpow.pop %v5371
      %v5373 = vmul.f32 %v5268, 1.442695
      %v5374 = vpow.pop %v5373
      %v5375 = vmul.f32 %v5269, 1.442695
      %v5376 = vpow.pop %v5375
      %v5377 = vmul.f32 %v5270, 1.442695
      %v5378 = vpow.pop %v5377
      %v5379 = vmul.f32 %v5271, 1.442695
      %v5380 = vpow.pop %v5379
      %v5381 = vmul.f32 %v5272, 1.442695
      %v5382 = vpow.pop %v5381
      %v5383 = vmul.f32 %v5273, 1.442695
      %v5384 = vpow.pop %v5383
      %v5385 = vmul.f32 %v5274, 1.442695
      %v5386 = vpow.pop %v5385
      %v5387 = vmul.f32 %v5275, 1.442695
      %v5388 = vpow.pop %v5387
      %v5389 = vmul.f32 %v5276, 1.442695
      %v5390 = vpow.pop %v5389
      %v5391 = vmul.f32 %v5277, 1.442695
      %v5392 = vpow.pop %v5391
      %v5393 = vmul.f32 %v5278, 1.442695
      %v5394 = vpow.pop %v5393
      %v5395 = vmul.f32 %v5279, 1.442695
      %v5396 = vpow.pop %v5395
      %v5397 = vmul.f32 %v5280, 1.442695
      %v5398 = vpow.pop %v5397
      %v5399 = vmul.f32 %v5281, 1.442695
      %v5400 = vpow.pop %v5399
      %v5401 = vmul.f32 %v5282, 1.442695
      %v5402 = vpow.pop %v5401
      %v5403 = vmul.f32 %v5283, 1.442695
      %v5404 = vpow.pop %v5403
      %v5405 = vmul.f32 %v5284, 1.442695
      %v5406 = vpow.pop %v5405
      %v5407 = vmul.f32 %v5285, 1.442695
      %v5408 = vpow.pop %v5407
      %v5409 = vmul.f32 %v5286, 1.442695
      %v5410 = vpow.pop %v5409
      %v5411 = vmul.f32 %v5287, 1.442695
      %v5412 = vpow.pop %v5411
      %v5413 = vmul.f32 %v5288, 1.442695
      %v5414 = vpow.pop %v5413
      %v5415 = vmul.f32 %v5289, 1.442695
      %v5416 = vpow.pop %v5415
      %v5417 = vmul.f32 %v5290, 1.442695
      %v5418 = vpow.pop %v5417
      %v5419 = vadd.f32 %v5292, %v5294
      %5420 = vadd.xlane.f32.xlu0 %v5419
      %v5421 = vpop.xlane.xlu0 %5420
      %v5422 = vadd.f32 %v5296, %v5298
      %5423 = vadd.xlane.f32.xlu0 %v5422
      %v5424 = vpop.xlane.xlu0 %5423
      %v5425 = vadd.f32 %v5300, %v5302
      %5426 = vadd.xlane.f32.xlu0 %v5425
      %v5427 = vpop.xlane.xlu0 %5426
      %v5428 = vadd.f32 %v5304, %v5306
      %5429 = vadd.xlane.f32.xlu0 %v5428
      %v5430 = vpop.xlane.xlu0 %5429
      %v5431 = vadd.f32 %v5308, %v5310
      %5432 = vadd.xlane.f32.xlu0 %v5431
      %v5433 = vpop.xlane.xlu0 %5432
      %v5434 = vadd.f32 %v5312, %v5314
      %5435 = vadd.xlane.f32.xlu0 %v5434
      %v5436 = vpop.xlane.xlu0 %5435
      %v5437 = vadd.f32 %v5316, %v5318
      %5438 = vadd.xlane.f32.xlu0 %v5437
      %v5439 = vpop.xlane.xlu0 %5438
      %v5440 = vadd.f32 %v5320, %v5322
      %5441 = vadd.xlane.f32.xlu0 %v5440
      %v5442 = vpop.xlane.xlu0 %5441
      %v5443 = vadd.f32 %v5324, %v5326
      %5444 = vadd.xlane.f32.xlu0 %v5443
      %v5445 = vpop.xlane.xlu0 %5444
      %v5446 = vadd.f32 %v5328, %v5330
      %5447 = vadd.xlane.f32.xlu0 %v5446
      %v5448 = vpop.xlane.xlu0 %5447
      %v5449 = vadd.f32 %v5332, %v5334
      %5450 = vadd.xlane.f32.xlu0 %v5449
      %v5451 = vpop.xlane.xlu0 %5450
      %v5452 = vadd.f32 %v5336, %v5338
      %5453 = vadd.xlane.f32.xlu0 %v5452
      %v5454 = vpop.xlane.xlu0 %5453
      %v5455 = vadd.f32 %v5340, %v5342
      %5456 = vadd.xlane.f32.xlu0 %v5455
      %v5457 = vpop.xlane.xlu0 %5456
      %v5458 = vadd.f32 %v5344, %v5346
      %5459 = vadd.xlane.f32.xlu0 %v5458
      %v5460 = vpop.xlane.xlu0 %5459
      %v5461 = vadd.f32 %v5348, %v5350
      %5462 = vadd.xlane.f32.xlu0 %v5461
      %v5463 = vpop.xlane.xlu0 %5462
      %v5464 = vadd.f32 %v5352, %v5354
      %5465 = vadd.xlane.f32.xlu0 %v5464
      %v5466 = vpop.xlane.xlu0 %5465
      %v5467 = vadd.f32 %v5356, %v5358
      %5468 = vadd.xlane.f32.xlu0 %v5467
      %v5469 = vpop.xlane.xlu0 %5468
      %v5470 = vadd.f32 %v5360, %v5362
      %5471 = vadd.xlane.f32.xlu0 %v5470
      %v5472 = vpop.xlane.xlu0 %5471
      %v5473 = vadd.f32 %v5364, %v5366
      %5474 = vadd.xlane.f32.xlu0 %v5473
      %v5475 = vpop.xlane.xlu0 %5474
      %v5476 = vadd.f32 %v5368, %v5370
      %5477 = vadd.xlane.f32.xlu0 %v5476
      %v5478 = vpop.xlane.xlu0 %5477
      %v5479 = vadd.f32 %v5372, %v5374
      %5480 = vadd.xlane.f32.xlu0 %v5479
      %v5481 = vpop.xlane.xlu0 %5480
      %v5482 = vadd.f32 %v5376, %v5378
      %5483 = vadd.xlane.f32.xlu0 %v5482
      %v5484 = vpop.xlane.xlu0 %5483
      %v5485 = vadd.f32 %v5380, %v5382
      %5486 = vadd.xlane.f32.xlu0 %v5485
      %v5487 = vpop.xlane.xlu0 %5486
      %v5488 = vadd.f32 %v5384, %v5386
      %5489 = vadd.xlane.f32.xlu0 %v5488
      %v5490 = vpop.xlane.xlu0 %5489
      %v5491 = vadd.f32 %v5388, %v5390
      %5492 = vadd.xlane.f32.xlu0 %v5491
      %v5493 = vpop.xlane.xlu0 %5492
      %v5494 = vadd.f32 %v5392, %v5394
      %5495 = vadd.xlane.f32.xlu0 %v5494
      %v5496 = vpop.xlane.xlu0 %5495
      %v5497 = vadd.f32 %v5396, %v5398
      %5498 = vadd.xlane.f32.xlu0 %v5497
      %v5499 = vpop.xlane.xlu0 %5498
      %v5500 = vadd.f32 %v5400, %v5402
      %5501 = vadd.xlane.f32.xlu0 %v5500
      %v5502 = vpop.xlane.xlu0 %5501
      %v5503 = vadd.f32 %v5404, %v5406
      %5504 = vadd.xlane.f32.xlu0 %v5503
      %v5505 = vpop.xlane.xlu0 %5504
      %v5506 = vadd.f32 %v5408, %v5410
      %5507 = vadd.xlane.f32.xlu0 %v5506
      %v5508 = vpop.xlane.xlu0 %5507
      %v5509 = vadd.f32 %v5412, %v5414
      %5510 = vadd.xlane.f32.xlu0 %v5509
      %v5511 = vpop.xlane.xlu0 %5510
      %v5512 = vadd.f32 %v5416, %v5418
      %5513 = vadd.xlane.f32.xlu0 %v5512
      %v5514 = vpop.xlane.xlu0 %5513
      %v5515 = vrcp.pop %v5421
      %v5516 = vrcp.pop %v5424
      %v5517 = vrcp.pop %v5427
      %v5518 = vrcp.pop %v5430
      %v5519 = vrcp.pop %v5433
      %v5520 = vrcp.pop %v5436
      %v5521 = vrcp.pop %v5439
      %v5522 = vrcp.pop %v5442
      %v5523 = vrcp.pop %v5445
      %v5524 = vrcp.pop %v5448
      %v5525 = vrcp.pop %v5451
      %v5526 = vrcp.pop %v5454
      %v5527 = vrcp.pop %v5457
      %v5528 = vrcp.pop %v5460
      %v5529 = vrcp.pop %v5463
      %v5530 = vrcp.pop %v5466
      %v5531 = vrcp.pop %v5469
      %v5532 = vrcp.pop %v5472
      %v5533 = vrcp.pop %v5475
      %v5534 = vrcp.pop %v5478
      %v5535 = vrcp.pop %v5481
      %v5536 = vrcp.pop %v5484
      %v5537 = vrcp.pop %v5487
      %v5538 = vrcp.pop %v5490
      %v5539 = vrcp.pop %v5493
      %v5540 = vrcp.pop %v5496
      %v5541 = vrcp.pop %v5499
      %v5542 = vrcp.pop %v5502
      %v5543 = vrcp.pop %v5505
      %v5544 = vrcp.pop %v5508
      %v5545 = vrcp.pop %v5511
      %v5546 = vrcp.pop %v5514
      %v5547 = vmul.f32 %v5292, %v5515
      %v5548 = vmul.f32 %v5294, %v5515
      %v5549 = vmul.f32 %v5296, %v5516
      %v5550 = vmul.f32 %v5298, %v5516
      %v5551 = vmul.f32 %v5300, %v5517
      %v5552 = vmul.f32 %v5302, %v5517
      %v5553 = vmul.f32 %v5304, %v5518
      %v5554 = vmul.f32 %v5306, %v5518
      %v5555 = vmul.f32 %v5308, %v5519
      %v5556 = vmul.f32 %v5310, %v5519
      %v5557 = vmul.f32 %v5312, %v5520
      %v5558 = vmul.f32 %v5314, %v5520
      %v5559 = vmul.f32 %v5316, %v5521
      %v5560 = vmul.f32 %v5318, %v5521
      %v5561 = vmul.f32 %v5320, %v5522
      %v5562 = vmul.f32 %v5322, %v5522
      %v5563 = vmul.f32 %v5324, %v5523
      %v5564 = vmul.f32 %v5326, %v5523
      %v5565 = vmul.f32 %v5328, %v5524
      %v5566 = vmul.f32 %v5330, %v5524
      %v5567 = vmul.f32 %v5332, %v5525
      %v5568 = vmul.f32 %v5334, %v5525
      %v5569 = vmul.f32 %v5336, %v5526
      %v5570 = vmul.f32 %v5338, %v5526
      %v5571 = vmul.f32 %v5340, %v5527
      %v5572 = vmul.f32 %v5342, %v5527
      %v5573 = vmul.f32 %v5344, %v5528
      %v5574 = vmul.f32 %v5346, %v5528
      %v5575 = vmul.f32 %v5348, %v5529
      %v5576 = vmul.f32 %v5350, %v5529
      %v5577 = vmul.f32 %v5352, %v5530
      %v5578 = vmul.f32 %v5354, %v5530
      %v5579 = vmul.f32 %v5356, %v5531
      %v5580 = vmul.f32 %v5358, %v5531
      %v5581 = vmul.f32 %v5360, %v5532
      %v5582 = vmul.f32 %v5362, %v5532
      %v5583 = vmul.f32 %v5364, %v5533
      %v5584 = vmul.f32 %v5366, %v5533
      %v5585 = vmul.f32 %v5368, %v5534
      %v5586 = vmul.f32 %v5370, %v5534
      %v5587 = vmul.f32 %v5372, %v5535
      %v5588 = vmul.f32 %v5374, %v5535
      %v5589 = vmul.f32 %v5376, %v5536
      %v5590 = vmul.f32 %v5378, %v5536
      %v5591 = vmul.f32 %v5380, %v5537
      %v5592 = vmul.f32 %v5382, %v5537
      %v5593 = vmul.f32 %v5384, %v5538
      %v5594 = vmul.f32 %v5386, %v5538
      %v5595 = vmul.f32 %v5388, %v5539
      %v5596 = vmul.f32 %v5390, %v5539
      %v5597 = vmul.f32 %v5392, %v5540
      %v5598 = vmul.f32 %v5394, %v5540
      %v5599 = vmul.f32 %v5396, %v5541
      %v5600 = vmul.f32 %v5398, %v5541
      %v5601 = vmul.f32 %v5400, %v5542
      %v5602 = vmul.f32 %v5402, %v5542
      %v5603 = vmul.f32 %v5404, %v5543
      %v5604 = vmul.f32 %v5406, %v5543
      %v5605 = vmul.f32 %v5408, %v5544
      %v5606 = vmul.f32 %v5410, %v5544
      %v5607 = vmul.f32 %v5412, %v5545
      %v5608 = vmul.f32 %v5414, %v5545
      %v5609 = vmul.f32 %v5416, %v5546
      %v5610 = vmul.f32 %v5418, %v5546
      %v5611 = vpack.c.bf16 %v5549, %v5547
      %v5612 = vpack.c.bf16 %v5550, %v5548
      %v5613 = vpack.c.bf16 %v5553, %v5551
      %v5614 = vpack.c.bf16 %v5554, %v5552
      %v5615 = vpack.c.bf16 %v5557, %v5555
      %v5616 = vpack.c.bf16 %v5558, %v5556
      %v5617 = vpack.c.bf16 %v5561, %v5559
      %v5618 = vpack.c.bf16 %v5562, %v5560
      %v5619 = vpack.c.bf16 %v5565, %v5563
      %v5620 = vpack.c.bf16 %v5566, %v5564
      %v5621 = vpack.c.bf16 %v5569, %v5567
      %v5622 = vpack.c.bf16 %v5570, %v5568
      %v5623 = vpack.c.bf16 %v5573, %v5571
      %v5624 = vpack.c.bf16 %v5574, %v5572
      %v5625 = vpack.c.bf16 %v5577, %v5575
      %v5626 = vpack.c.bf16 %v5578, %v5576
      %v5627 = vpack.c.bf16 %v5581, %v5579
      %v5628 = vpack.c.bf16 %v5582, %v5580
      %v5629 = vpack.c.bf16 %v5585, %v5583
      %v5630 = vpack.c.bf16 %v5586, %v5584
      %v5631 = vpack.c.bf16 %v5589, %v5587
      %v5632 = vpack.c.bf16 %v5590, %v5588
      %v5633 = vpack.c.bf16 %v5593, %v5591
      %v5634 = vpack.c.bf16 %v5594, %v5592
      %v5635 = vpack.c.bf16 %v5597, %v5595
      %v5636 = vpack.c.bf16 %v5598, %v5596
      %v5637 = vpack.c.bf16 %v5601, %v5599
      %v5638 = vpack.c.bf16 %v5602, %v5600
      %v5639 = vpack.c.bf16 %v5605, %v5603
      %v5640 = vpack.c.bf16 %v5606, %v5604
      %v5641 = vpack.c.bf16 %v5609, %v5607
      %v5642 = vpack.c.bf16 %v5610, %v5608
      %v5643 = vpack.c.bf16 %v4828, %v4826
      %v5644 = vpack.c.bf16 %v4833, %v4831
      %v5645 = vpack.c.bf16 %v4838, %v4836
      %v5646 = vpack.c.bf16 %v4843, %v4841
      %v5647 = vpack.c.bf16 %v4848, %v4846
      %v5648 = vpack.c.bf16 %v4853, %v4851
      %v5649 = vpack.c.bf16 %v4858, %v4856
      %v5650 = vpack.c.bf16 %v4863, %v4861
      %v5651 = vpack.c.bf16 %v4868, %v4866
      %v5652 = vpack.c.bf16 %v4873, %v4871
      %v5653 = vpack.c.bf16 %v4878, %v4876
      %v5654 = vpack.c.bf16 %v4883, %v4881
      %v5655 = vpack.c.bf16 %v4888, %v4886
      %v5656 = vpack.c.bf16 %v4893, %v4891
      %v5657 = vpack.c.bf16 %v4898, %v4896
      %v5658 = vpack.c.bf16 %v4903, %v4901
      %5659 = vmatpush.bf16.msra.mxu0 %v5650
      %5660 = vmatpush.bf16.msra.mxu0 %v5649
      %5661 = vmatpush.bf16.msra.mxu0 %v5648
      %5662 = vmatpush.bf16.msra.mxu0 %v5647
      %5663 = vmatpush.bf16.msra.mxu0 %v5646
      %5664 = vmatpush.bf16.msra.mxu0 %v5645
      %5665 = vmatpush.bf16.msra.mxu0 %v5644
      %5666 = vmatpush.bf16.msra.mxu0 %v5643
      %5667 = vmatmul.bf16.gmra.mxu0 %v5611
      %v5668 = vpop.f32.mrf.mxu0
      %v5669 = vadd.f32 0.0, %v5668
      %v5670 = vpop.f32.mrf.mxu0
      %v5671 = vadd.f32 0.0, %v5670
      %5672 = vmatmul.bf16.gmra.mxu0 %v5613
      %v5673 = vpop.f32.mrf.mxu0
      %v5674 = vadd.f32 0.0, %v5673
      %v5675 = vpop.f32.mrf.mxu0
      %v5676 = vadd.f32 0.0, %v5675
      %5677 = vmatmul.bf16.gmra.mxu0 %v5615
      %v5678 = vpop.f32.mrf.mxu0
      %v5679 = vadd.f32 0.0, %v5678
      %v5680 = vpop.f32.mrf.mxu0
      %v5681 = vadd.f32 0.0, %v5680
      %5682 = vmatmul.bf16.gmra.mxu0 %v5617
      %v5683 = vpop.f32.mrf.mxu0
      %v5684 = vadd.f32 0.0, %v5683
      %v5685 = vpop.f32.mrf.mxu0
      %v5686 = vadd.f32 0.0, %v5685
      %5687 = vmatmul.bf16.gmra.mxu0 %v5619
      %v5688 = vpop.f32.mrf.mxu0
      %v5689 = vadd.f32 0.0, %v5688
      %v5690 = vpop.f32.mrf.mxu0
      %v5691 = vadd.f32 0.0, %v5690
      %5692 = vmatmul.bf16.gmra.mxu0 %v5621
      %v5693 = vpop.f32.mrf.mxu0
      %v5694 = vadd.f32 0.0, %v5693
      %v5695 = vpop.f32.mrf.mxu0
      %v5696 = vadd.f32 0.0, %v5695
      %5697 = vmatmul.bf16.gmra.mxu0 %v5623
      %v5698 = vpop.f32.mrf.mxu0
      %v5699 = vadd.f32 0.0, %v5698
      %v5700 = vpop.f32.mrf.mxu0
      %v5701 = vadd.f32 0.0, %v5700
      %5702 = vmatmul.bf16.gmra.mxu0 %v5625
      %v5703 = vpop.f32.mrf.mxu0
      %v5704 = vadd.f32 0.0, %v5703
      %v5705 = vpop.f32.mrf.mxu0
      %v5706 = vadd.f32 0.0, %v5705
      %5707 = vmatmul.bf16.gmra.mxu0 %v5627
      %v5708 = vpop.f32.mrf.mxu0
      %v5709 = vadd.f32 0.0, %v5708
      %v5710 = vpop.f32.mrf.mxu0
      %v5711 = vadd.f32 0.0, %v5710
      %5712 = vmatmul.bf16.gmra.mxu0 %v5629
      %v5713 = vpop.f32.mrf.mxu0
      %v5714 = vadd.f32 0.0, %v5713
      %v5715 = vpop.f32.mrf.mxu0
      %v5716 = vadd.f32 0.0, %v5715
      %5717 = vmatmul.bf16.gmra.mxu0 %v5631
      %v5718 = vpop.f32.mrf.mxu0
      %v5719 = vadd.f32 0.0, %v5718
      %v5720 = vpop.f32.mrf.mxu0
      %v5721 = vadd.f32 0.0, %v5720
      %5722 = vmatmul.bf16.gmra.mxu0 %v5633
      %v5723 = vpop.f32.mrf.mxu0
      %v5724 = vadd.f32 0.0, %v5723
      %v5725 = vpop.f32.mrf.mxu0
      %v5726 = vadd.f32 0.0, %v5725
      %5727 = vmatmul.bf16.gmra.mxu0 %v5635
      %v5728 = vpop.f32.mrf.mxu0
      %v5729 = vadd.f32 0.0, %v5728
      %v5730 = vpop.f32.mrf.mxu0
      %v5731 = vadd.f32 0.0, %v5730
      %5732 = vmatmul.bf16.gmra.mxu0 %v5637
      %v5733 = vpop.f32.mrf.mxu0
      %v5734 = vadd.f32 0.0, %v5733
      %v5735 = vpop.f32.mrf.mxu0
      %v5736 = vadd.f32 0.0, %v5735
      %5737 = vmatmul.bf16.gmra.mxu0 %v5639
      %v5738 = vpop.f32.mrf.mxu0
      %v5739 = vadd.f32 0.0, %v5738
      %v5740 = vpop.f32.mrf.mxu0
      %v5741 = vadd.f32 0.0, %v5740
      %5742 = vmatmul.bf16.gmra.mxu0 %v5641
      %v5743 = vpop.f32.mrf.mxu0
      %v5744 = vadd.f32 0.0, %v5743
      %v5745 = vpop.f32.mrf.mxu0
      %v5746 = vadd.f32 0.0, %v5745
      %5747 = vdwg.mxu0
      %5748 = vmatpush.bf16.msra.mxu0 %v5658
      %5749 = vmatpush.bf16.msra.mxu0 %v5657
      %5750 = vmatpush.bf16.msra.mxu0 %v5656
      %5751 = vmatpush.bf16.msra.mxu0 %v5655
      %5752 = vmatpush.bf16.msra.mxu0 %v5654
      %5753 = vmatpush.bf16.msra.mxu0 %v5653
      %5754 = vmatpush.bf16.msra.mxu0 %v5652
      %5755 = vmatpush.bf16.msra.mxu0 %v5651
      %5756 = vmatmul.bf16.gmra.mxu0 %v5612
      %v5757 = vpop.f32.mrf.mxu0
      %v5758 = vadd.f32 %v5669, %v5757
      %v5759 = vpop.f32.mrf.mxu0
      %v5760 = vadd.f32 %v5671, %v5759
      %5761 = vmatmul.bf16.gmra.mxu0 %v5614
      %v5762 = vpop.f32.mrf.mxu0
      %v5763 = vadd.f32 %v5674, %v5762
      %v5764 = vpop.f32.mrf.mxu0
      %v5765 = vadd.f32 %v5676, %v5764
      %5766 = vmatmul.bf16.gmra.mxu0 %v5616
      %v5767 = vpop.f32.mrf.mxu0
      %v5768 = vadd.f32 %v5679, %v5767
      %v5769 = vpop.f32.mrf.mxu0
      %v5770 = vadd.f32 %v5681, %v5769
      %5771 = vmatmul.bf16.gmra.mxu0 %v5618
      %v5772 = vpop.f32.mrf.mxu0
      %v5773 = vadd.f32 %v5684, %v5772
      %v5774 = vpop.f32.mrf.mxu0
      %v5775 = vadd.f32 %v5686, %v5774
      %5776 = vmatmul.bf16.gmra.mxu0 %v5620
      %v5777 = vpop.f32.mrf.mxu0
      %v5778 = vadd.f32 %v5689, %v5777
      %v5779 = vpop.f32.mrf.mxu0
      %v5780 = vadd.f32 %v5691, %v5779
      %5781 = vmatmul.bf16.gmra.mxu0 %v5622
      %v5782 = vpop.f32.mrf.mxu0
      %v5783 = vadd.f32 %v5694, %v5782
      %v5784 = vpop.f32.mrf.mxu0
      %v5785 = vadd.f32 %v5696, %v5784
      %5786 = vmatmul.bf16.gmra.mxu0 %v5624
      %v5787 = vpop.f32.mrf.mxu0
      %v5788 = vadd.f32 %v5699, %v5787
      %v5789 = vpop.f32.mrf.mxu0
      %v5790 = vadd.f32 %v5701, %v5789
      %5791 = vmatmul.bf16.gmra.mxu0 %v5626
      %v5792 = vpop.f32.mrf.mxu0
      %v5793 = vadd.f32 %v5704, %v5792
      %v5794 = vpop.f32.mrf.mxu0
      %v5795 = vadd.f32 %v5706, %v5794
      %5796 = vmatmul.bf16.gmra.mxu0 %v5628
      %v5797 = vpop.f32.mrf.mxu0
      %v5798 = vadd.f32 %v5709, %v5797
      %v5799 = vpop.f32.mrf.mxu0
      %v5800 = vadd.f32 %v5711, %v5799
      %5801 = vmatmul.bf16.gmra.mxu0 %v5630
      %v5802 = vpop.f32.mrf.mxu0
      %v5803 = vadd.f32 %v5714, %v5802
      %v5804 = vpop.f32.mrf.mxu0
      %v5805 = vadd.f32 %v5716, %v5804
      %5806 = vmatmul.bf16.gmra.mxu0 %v5632
      %v5807 = vpop.f32.mrf.mxu0
      %v5808 = vadd.f32 %v5719, %v5807
      %v5809 = vpop.f32.mrf.mxu0
      %v5810 = vadd.f32 %v5721, %v5809
      %5811 = vmatmul.bf16.gmra.mxu0 %v5634
      %v5812 = vpop.f32.mrf.mxu0
      %v5813 = vadd.f32 %v5724, %v5812
      %v5814 = vpop.f32.mrf.mxu0
      %v5815 = vadd.f32 %v5726, %v5814
      %5816 = vmatmul.bf16.gmra.mxu0 %v5636
      %v5817 = vpop.f32.mrf.mxu0
      %v5818 = vadd.f32 %v5729, %v5817
      %v5819 = vpop.f32.mrf.mxu0
      %v5820 = vadd.f32 %v5731, %v5819
      %5821 = vmatmul.bf16.gmra.mxu0 %v5638
      %v5822 = vpop.f32.mrf.mxu0
      %v5823 = vadd.f32 %v5734, %v5822
      %v5824 = vpop.f32.mrf.mxu0
      %v5825 = vadd.f32 %v5736, %v5824
      %5826 = vmatmul.bf16.gmra.mxu0 %v5640
      %v5827 = vpop.f32.mrf.mxu0
      %v5828 = vadd.f32 %v5739, %v5827
      %v5829 = vpop.f32.mrf.mxu0
      %v5830 = vadd.f32 %v5741, %v5829
      %5831 = vmatmul.bf16.gmra.mxu0 %v5642
      %v5832 = vpop.f32.mrf.mxu0
      %v5833 = vadd.f32 %v5744, %v5832
      %v5834 = vpop.f32.mrf.mxu0
      %v5835 = vadd.f32 %v5746, %v5834
      %5836 = vdwg.mxu0
      %s5837 = sld [smem:[#allocation4]]
      %v5838 = vstv %s5837
      %v5839 = vmul.f32 %v5838, %v5758
      %v5840 = vmul.f32 %v5838, %v5760
      %v5841 = vmul.f32 %v5838, %v5763
      %v5842 = vmul.f32 %v5838, %v5765
      %v5843 = vmul.f32 %v5838, %v5768
      %v5844 = vmul.f32 %v5838, %v5770
      %v5845 = vmul.f32 %v5838, %v5773
      %v5846 = vmul.f32 %v5838, %v5775
      %v5847 = vmul.f32 %v5838, %v5778
      %v5848 = vmul.f32 %v5838, %v5780
      %v5849 = vmul.f32 %v5838, %v5783
      %v5850 = vmul.f32 %v5838, %v5785
      %v5851 = vmul.f32 %v5838, %v5788
      %v5852 = vmul.f32 %v5838, %v5790
      %v5853 = vmul.f32 %v5838, %v5793
      %v5854 = vmul.f32 %v5838, %v5795
      %v5855 = vmul.f32 %v5838, %v5798
      %v5856 = vmul.f32 %v5838, %v5800
      %v5857 = vmul.f32 %v5838, %v5803
      %v5858 = vmul.f32 %v5838, %v5805
      %v5859 = vmul.f32 %v5838, %v5808
      %v5860 = vmul.f32 %v5838, %v5810
      %v5861 = vmul.f32 %v5838, %v5813
      %v5862 = vmul.f32 %v5838, %v5815
      %v5863 = vmul.f32 %v5838, %v5818
      %v5864 = vmul.f32 %v5838, %v5820
      %v5865 = vmul.f32 %v5838, %v5823
      %v5866 = vmul.f32 %v5838, %v5825
      %v5867 = vmul.f32 %v5838, %v5828
      %v5868 = vmul.f32 %v5838, %v5830
      %v5869 = vmul.f32 %v5838, %v5833
      %v5870 = vmul.f32 %v5838, %v5835
      %v5871 = vadd.f32 %v5839, %v4576
      %v5872 = vadd.f32 %v5840, %v4577
      %v5873 = vadd.f32 %v5841, %v4578
      %v5874 = vadd.f32 %v5842, %v4579
      %v5875 = vadd.f32 %v5843, %v4580
      %v5876 = vadd.f32 %v5844, %v4581
      %v5877 = vadd.f32 %v5845, %v4582
      %v5878 = vadd.f32 %v5846, %v4583
      %v5879 = vadd.f32 %v5847, %v4584
      %v5880 = vadd.f32 %v5848, %v4585
      %v5881 = vadd.f32 %v5849, %v4586
      %v5882 = vadd.f32 %v5850, %v4587
      %v5883 = vadd.f32 %v5851, %v4588
      %v5884 = vadd.f32 %v5852, %v4589
      %v5885 = vadd.f32 %v5853, %v4590
      %v5886 = vadd.f32 %v5854, %v4591
      %v5887 = vadd.f32 %v5855, %v4592
      %v5888 = vadd.f32 %v5856, %v4593
      %v5889 = vadd.f32 %v5857, %v4594
      %v5890 = vadd.f32 %v5858, %v4595
      %v5891 = vadd.f32 %v5859, %v4596
      %v5892 = vadd.f32 %v5860, %v4597
      %v5893 = vadd.f32 %v5861, %v4598
      %v5894 = vadd.f32 %v5862, %v4599
      %v5895 = vadd.f32 %v5863, %v4600
      %v5896 = vadd.f32 %v5864, %v4601
      %v5897 = vadd.f32 %v5865, %v4602
      %v5898 = vadd.f32 %v5866, %v4603
      %v5899 = vadd.f32 %v5867, %v4604
      %v5900 = vadd.f32 %v5868, %v4605
      %v5901 = vadd.f32 %v5869, %v4606
      %v5902 = vadd.f32 %v5870, %v4607
      %v5935 = vrot.slane %v5871, 7
      %v5936 = vrot.slane %v5872, 7
      %v5937 = vrot.slane %v5873, 7
      %v5938 = vrot.slane %v5874, 7
      %v5939 = vrot.slane %v5875, 7
      %v5940 = vrot.slane %v5876, 7
      %v5941 = vrot.slane %v5877, 7
      %v5942 = vrot.slane %v5878, 7
      %v5943 = vrot.slane %v5879, 7
      %v5944 = vrot.slane %v5880, 7
      %v5945 = vrot.slane %v5881, 7
      %v5946 = vrot.slane %v5882, 7
      %v5947 = vrot.slane %v5883, 7
      %v5948 = vrot.slane %v5884, 7
      %v5949 = vrot.slane %v5885, 7
      %v5950 = vrot.slane %v5886, 7
      %v5951 = vrot.slane %v5887, 7
      %v5952 = vrot.slane %v5888, 7
      %v5953 = vrot.slane %v5889, 7
      %v5954 = vrot.slane %v5890, 7
      %v5955 = vrot.slane %v5891, 7
      %v5956 = vrot.slane %v5892, 7
      %v5957 = vrot.slane %v5893, 7
      %v5958 = vrot.slane %v5894, 7
      %v5959 = vrot.slane %v5895, 7
      %v5960 = vrot.slane %v5896, 7
      %v5961 = vrot.slane %v5897, 7
      %v5962 = vrot.slane %v5898, 7
      %v5963 = vrot.slane %v5899, 7
      %v5964 = vrot.slane %v5900, 7
      %v5965 = vrot.slane %v5901, 7
      %v5966 = vrot.slane %v5902, 7
      %vm5999 = vcmask 1040384
      %v6000 = vsel %vm5999, 0.0, %v5935
      %v6001 = vsel %vm5999, 0.0, %v5936
      %v6002 = vsel %vm5999, 0.0, %v5937
      %v6003 = vsel %vm5999, 0.0, %v5938
      %v6004 = vsel %vm5999, 0.0, %v5939
      %v6005 = vsel %vm5999, 0.0, %v5940
      %v6006 = vsel %vm5999, 0.0, %v5941
      %v6007 = vsel %vm5999, 0.0, %v5942
      %v6008 = vsel %vm5999, 0.0, %v5943
      %v6009 = vsel %vm5999, 0.0, %v5944
      %v6010 = vsel %vm5999, 0.0, %v5945
      %v6011 = vsel %vm5999, 0.0, %v5946
      %v6012 = vsel %vm5999, 0.0, %v5947
      %v6013 = vsel %vm5999, 0.0, %v5948
      %v6014 = vsel %vm5999, 0.0, %v5949
      %v6015 = vsel %vm5999, 0.0, %v5950
      %v6016 = vsel %vm5999, 0.0, %v5951
      %v6017 = vsel %vm5999, 0.0, %v5952
      %v6018 = vsel %vm5999, 0.0, %v5953
      %v6019 = vsel %vm5999, 0.0, %v5954
      %v6020 = vsel %vm5999, 0.0, %v5955
      %v6021 = vsel %vm5999, 0.0, %v5956
      %v6022 = vsel %vm5999, 0.0, %v5957
      %v6023 = vsel %vm5999, 0.0, %v5958
      %v6024 = vsel %vm5999, 0.0, %v5959
      %v6025 = vsel %vm5999, 0.0, %v5960
      %v6026 = vsel %vm5999, 0.0, %v5961
      %v6027 = vsel %vm5999, 0.0, %v5962
      %v6028 = vsel %vm5999, 0.0, %v5963
      %v6029 = vsel %vm5999, 0.0, %v5964
      %v6030 = vsel %vm5999, 0.0, %v5965
      %v6031 = vsel %vm5999, 0.0, %v5966
      %v6032 = vsel %vm5999, %v5935, 0.0
      %v6033 = vsel %vm5999, %v5936, 0.0
      %v6034 = vsel %vm5999, %v5937, 0.0
      %v6035 = vsel %vm5999, %v5938, 0.0
      %v6036 = vsel %vm5999, %v5939, 0.0
      %v6037 = vsel %vm5999, %v5940, 0.0
      %v6038 = vsel %vm5999, %v5941, 0.0
      %v6039 = vsel %vm5999, %v5942, 0.0
      %v6040 = vsel %vm5999, %v5943, 0.0
      %v6041 = vsel %vm5999, %v5944, 0.0
      %v6042 = vsel %vm5999, %v5945, 0.0
      %v6043 = vsel %vm5999, %v5946, 0.0
      %v6044 = vsel %vm5999, %v5947, 0.0
      %v6045 = vsel %vm5999, %v5948, 0.0
      %v6046 = vsel %vm5999, %v5949, 0.0
      %v6047 = vsel %vm5999, %v5950, 0.0
      %v6048 = vsel %vm5999, %v5951, 0.0
      %v6049 = vsel %vm5999, %v5952, 0.0
      %v6050 = vsel %vm5999, %v5953, 0.0
      %v6051 = vsel %vm5999, %v5954, 0.0
      %v6052 = vsel %vm5999, %v5955, 0.0
      %v6053 = vsel %vm5999, %v5956, 0.0
      %v6054 = vsel %vm5999, %v5957, 0.0
      %v6055 = vsel %vm5999, %v5958, 0.0
      %v6056 = vsel %vm5999, %v5959, 0.0
      %v6057 = vsel %vm5999, %v5960, 0.0
      %v6058 = vsel %vm5999, %v5961, 0.0
      %v6059 = vsel %vm5999, %v5962, 0.0
      %v6060 = vsel %vm5999, %v5963, 0.0
      %v6061 = vsel %vm5999, %v5964, 0.0
      %v6062 = vsel %vm5999, %v5965, 0.0
      %v6063 = vsel %vm5999, %v5966, 0.0
      %v6129 = vrot.slane 0.0, 1
      %v6130 = vsel %vm834, %v6129, %v6129
      %v6131 = vrot.slane %v6000, 1
      %v6132 = vrot.slane %v6032, 1
      %v6133 = vsel %vm834, %v6131, %v6132
      %v6134 = vrot.slane %v6001, 1
      %v6135 = vrot.slane %v6033, 1
      %v6136 = vsel %vm834, %v6134, %v6135
      %v6137 = vrot.slane %v6002, 1
      %v6138 = vrot.slane %v6034, 1
      %v6139 = vsel %vm834, %v6137, %v6138
      %v6140 = vrot.slane %v6003, 1
      %v6141 = vrot.slane %v6035, 1
      %v6142 = vsel %vm834, %v6140, %v6141
      %v6143 = vrot.slane %v6004, 1
      %v6144 = vrot.slane %v6036, 1
      %v6145 = vsel %vm834, %v6143, %v6144
      %v6146 = vrot.slane %v6005, 1
      %v6147 = vrot.slane %v6037, 1
      %v6148 = vsel %vm834, %v6146, %v6147
      %v6149 = vrot.slane %v6006, 1
      %v6150 = vrot.slane %v6038, 1
      %v6151 = vsel %vm834, %v6149, %v6150
      %v6152 = vrot.slane %v6007, 1
      %v6153 = vrot.slane %v6039, 1
      %v6154 = vsel %vm834, %v6152, %v6153
      %v6155 = vrot.slane %v6008, 1
      %v6156 = vrot.slane %v6040, 1
      %v6157 = vsel %vm834, %v6155, %v6156
      %v6158 = vrot.slane %v6009, 1
      %v6159 = vrot.slane %v6041, 1
      %v6160 = vsel %vm834, %v6158, %v6159
      %v6161 = vrot.slane %v6010, 1
      %v6162 = vrot.slane %v6042, 1
      %v6163 = vsel %vm834, %v6161, %v6162
      %v6164 = vrot.slane %v6011, 1
      %v6165 = vrot.slane %v6043, 1
      %v6166 = vsel %vm834, %v6164, %v6165
      %v6167 = vrot.slane %v6012, 1
      %v6168 = vrot.slane %v6044, 1
      %v6169 = vsel %vm834, %v6167, %v6168
      %v6170 = vrot.slane %v6013, 1
      %v6171 = vrot.slane %v6045, 1
      %v6172 = vsel %vm834, %v6170, %v6171
      %v6173 = vrot.slane %v6014, 1
      %v6174 = vrot.slane %v6046, 1
      %v6175 = vsel %vm834, %v6173, %v6174
      %v6176 = vrot.slane %v6015, 1
      %v6177 = vrot.slane %v6047, 1
      %v6178 = vsel %vm834, %v6176, %v6177
      %v6179 = vrot.slane %v6016, 1
      %v6180 = vrot.slane %v6048, 1
      %v6181 = vsel %vm834, %v6179, %v6180
      %v6182 = vrot.slane %v6017, 1
      %v6183 = vrot.slane %v6049, 1
      %v6184 = vsel %vm834, %v6182, %v6183
      %v6185 = vrot.slane %v6018, 1
      %v6186 = vrot.slane %v6050, 1
      %v6187 = vsel %vm834, %v6185, %v6186
      %v6188 = vrot.slane %v6019, 1
      %v6189 = vrot.slane %v6051, 1
      %v6190 = vsel %vm834, %v6188, %v6189
      %v6191 = vrot.slane %v6020, 1
      %v6192 = vrot.slane %v6052, 1
      %v6193 = vsel %vm834, %v6191, %v6192
      %v6194 = vrot.slane %v6021, 1
      %v6195 = vrot.slane %v6053, 1
      %v6196 = vsel %vm834, %v6194, %v6195
      %v6197 = vrot.slane %v6022, 1
      %v6198 = vrot.slane %v6054, 1
      %v6199 = vsel %vm834, %v6197, %v6198
      %v6200 = vrot.slane %v6023, 1
      %v6201 = vrot.slane %v6055, 1
      %v6202 = vsel %vm834, %v6200, %v6201
      %v6203 = vrot.slane %v6024, 1
      %v6204 = vrot.slane %v6056, 1
      %v6205 = vsel %vm834, %v6203, %v6204
      %v6206 = vrot.slane %v6025, 1
      %v6207 = vrot.slane %v6057, 1
      %v6208 = vsel %vm834, %v6206, %v6207
      %v6209 = vrot.slane %v6026, 1
      %v6210 = vrot.slane %v6058, 1
      %v6211 = vsel %vm834, %v6209, %v6210
      %v6212 = vrot.slane %v6027, 1
      %v6213 = vrot.slane %v6059, 1
      %v6214 = vsel %vm834, %v6212, %v6213
      %v6215 = vrot.slane %v6028, 1
      %v6216 = vrot.slane %v6060, 1
      %v6217 = vsel %vm834, %v6215, %v6216
      %v6218 = vrot.slane %v6029, 1
      %v6219 = vrot.slane %v6061, 1
      %v6220 = vsel %vm834, %v6218, %v6219
      %v6221 = vrot.slane %v6030, 1
      %v6222 = vrot.slane %v6062, 1
      %v6223 = vsel %vm834, %v6221, %v6222
      %v6224 = vrot.slane %v6031, 1
      %v6225 = vrot.slane %v6063, 1
      %v6226 = vsel %vm834, %v6224, %v6225
      %6227 = vrot.lane.b32.xlu0 %v6130, 8
      %v6228 = vpop.permute.xlu0 %6227
      %6229 = vrot.lane.b32.xlu0 %v6133, 8
      %v6230 = vpop.permute.xlu0 %6229
      %6231 = vrot.lane.b32.xlu0 %v6136, 8
      %v6232 = vpop.permute.xlu0 %6231
      %6233 = vrot.lane.b32.xlu0 %v6139, 8
      %v6234 = vpop.permute.xlu0 %6233
      %6235 = vrot.lane.b32.xlu0 %v6142, 8
      %v6236 = vpop.permute.xlu0 %6235
      %6237 = vrot.lane.b32.xlu0 %v6145, 8
      %v6238 = vpop.permute.xlu0 %6237
      %6239 = vrot.lane.b32.xlu0 %v6148, 8
      %v6240 = vpop.permute.xlu0 %6239
      %6241 = vrot.lane.b32.xlu0 %v6151, 8
      %v6242 = vpop.permute.xlu0 %6241
      %6243 = vrot.lane.b32.xlu0 %v6154, 8
      %v6244 = vpop.permute.xlu0 %6243
      %6245 = vrot.lane.b32.xlu0 %v6157, 8
      %v6246 = vpop.permute.xlu0 %6245
      %6247 = vrot.lane.b32.xlu0 %v6160, 8
      %v6248 = vpop.permute.xlu0 %6247
      %6249 = vrot.lane.b32.xlu0 %v6163, 8
      %v6250 = vpop.permute.xlu0 %6249
      %6251 = vrot.lane.b32.xlu0 %v6166, 8
      %v6252 = vpop.permute.xlu0 %6251
      %6253 = vrot.lane.b32.xlu0 %v6169, 8
      %v6254 = vpop.permute.xlu0 %6253
      %6255 = vrot.lane.b32.xlu0 %v6172, 8
      %v6256 = vpop.permute.xlu0 %6255
      %6257 = vrot.lane.b32.xlu0 %v6175, 8
      %v6258 = vpop.permute.xlu0 %6257
      %6259 = vrot.lane.b32.xlu0 %v6178, 8
      %v6260 = vpop.permute.xlu0 %6259
      %6261 = vrot.lane.b32.xlu0 %v6181, 8
      %v6262 = vpop.permute.xlu0 %6261
      %6263 = vrot.lane.b32.xlu0 %v6184, 8
      %v6264 = vpop.permute.xlu0 %6263
      %6265 = vrot.lane.b32.xlu0 %v6187, 8
      %v6266 = vpop.permute.xlu0 %6265
      %6267 = vrot.lane.b32.xlu0 %v6190, 8
      %v6268 = vpop.permute.xlu0 %6267
      %6269 = vrot.lane.b32.xlu0 %v6193, 8
      %v6270 = vpop.permute.xlu0 %6269
      %6271 = vrot.lane.b32.xlu0 %v6196, 8
      %v6272 = vpop.permute.xlu0 %6271
      %6273 = vrot.lane.b32.xlu0 %v6199, 8
      %v6274 = vpop.permute.xlu0 %6273
      %6275 = vrot.lane.b32.xlu0 %v6202, 8
      %v6276 = vpop.permute.xlu0 %6275
      %6277 = vrot.lane.b32.xlu0 %v6205, 8
      %v6278 = vpop.permute.xlu0 %6277
      %6279 = vrot.lane.b32.xlu0 %v6208, 8
      %v6280 = vpop.permute.xlu0 %6279
      %6281 = vrot.lane.b32.xlu0 %v6211, 8
      %v6282 = vpop.permute.xlu0 %6281
      %6283 = vrot.lane.b32.xlu0 %v6214, 8
      %v6284 = vpop.permute.xlu0 %6283
      %6285 = vrot.lane.b32.xlu0 %v6217, 8
      %v6286 = vpop.permute.xlu0 %6285
      %6287 = vrot.lane.b32.xlu0 %v6220, 8
      %v6288 = vpop.permute.xlu0 %6287
      %6289 = vrot.lane.b32.xlu0 %v6223, 8
      %v6290 = vpop.permute.xlu0 %6289
      %6291 = vrot.lane.b32.xlu0 %v6226, 8
      %v6292 = vpop.permute.xlu0 %6291
      %v6326 = vrot.slane 0.0, 2
      %v6327 = vsel %vm1075, %v6326, %v6326
      %v6328 = vrot.slane %v6000, 2
      %v6329 = vrot.slane %v6032, 2
      %v6330 = vsel %vm1075, %v6328, %v6329
      %v6331 = vrot.slane %v6001, 2
      %v6332 = vrot.slane %v6033, 2
      %v6333 = vsel %vm1075, %v6331, %v6332
      %v6334 = vrot.slane %v6002, 2
      %v6335 = vrot.slane %v6034, 2
      %v6336 = vsel %vm1075, %v6334, %v6335
      %v6337 = vrot.slane %v6003, 2
      %v6338 = vrot.slane %v6035, 2
      %v6339 = vsel %vm1075, %v6337, %v6338
      %v6340 = vrot.slane %v6004, 2
      %v6341 = vrot.slane %v6036, 2
      %v6342 = vsel %vm1075, %v6340, %v6341
      %v6343 = vrot.slane %v6005, 2
      %v6344 = vrot.slane %v6037, 2
      %v6345 = vsel %vm1075, %v6343, %v6344
      %v6346 = vrot.slane %v6006, 2
      %v6347 = vrot.slane %v6038, 2
      %v6348 = vsel %vm1075, %v6346, %v6347
      %v6349 = vrot.slane %v6007, 2
      %v6350 = vrot.slane %v6039, 2
      %v6351 = vsel %vm1075, %v6349, %v6350
      %v6352 = vrot.slane %v6008, 2
      %v6353 = vrot.slane %v6040, 2
      %v6354 = vsel %vm1075, %v6352, %v6353
      %v6355 = vrot.slane %v6009, 2
      %v6356 = vrot.slane %v6041, 2
      %v6357 = vsel %vm1075, %v6355, %v6356
      %v6358 = vrot.slane %v6010, 2
      %v6359 = vrot.slane %v6042, 2
      %v6360 = vsel %vm1075, %v6358, %v6359
      %v6361 = vrot.slane %v6011, 2
      %v6362 = vrot.slane %v6043, 2
      %v6363 = vsel %vm1075, %v6361, %v6362
      %v6364 = vrot.slane %v6012, 2
      %v6365 = vrot.slane %v6044, 2
      %v6366 = vsel %vm1075, %v6364, %v6365
      %v6367 = vrot.slane %v6013, 2
      %v6368 = vrot.slane %v6045, 2
      %v6369 = vsel %vm1075, %v6367, %v6368
      %v6370 = vrot.slane %v6014, 2
      %v6371 = vrot.slane %v6046, 2
      %v6372 = vsel %vm1075, %v6370, %v6371
      %v6373 = vrot.slane %v6015, 2
      %v6374 = vrot.slane %v6047, 2
      %v6375 = vsel %vm1075, %v6373, %v6374
      %v6376 = vrot.slane %v6016, 2
      %v6377 = vrot.slane %v6048, 2
      %v6378 = vsel %vm1075, %v6376, %v6377
      %v6379 = vrot.slane %v6017, 2
      %v6380 = vrot.slane %v6049, 2
      %v6381 = vsel %vm1075, %v6379, %v6380
      %v6382 = vrot.slane %v6018, 2
      %v6383 = vrot.slane %v6050, 2
      %v6384 = vsel %vm1075, %v6382, %v6383
      %v6385 = vrot.slane %v6019, 2
      %v6386 = vrot.slane %v6051, 2
      %v6387 = vsel %vm1075, %v6385, %v6386
      %v6388 = vrot.slane %v6020, 2
      %v6389 = vrot.slane %v6052, 2
      %v6390 = vsel %vm1075, %v6388, %v6389
      %v6391 = vrot.slane %v6021, 2
      %v6392 = vrot.slane %v6053, 2
      %v6393 = vsel %vm1075, %v6391, %v6392
      %v6394 = vrot.slane %v6022, 2
      %v6395 = vrot.slane %v6054, 2
      %v6396 = vsel %vm1075, %v6394, %v6395
      %v6397 = vrot.slane %v6023, 2
      %v6398 = vrot.slane %v6055, 2
      %v6399 = vsel %vm1075, %v6397, %v6398
      %v6400 = vrot.slane %v6024, 2
      %v6401 = vrot.slane %v6056, 2
      %v6402 = vsel %vm1075, %v6400, %v6401
      %v6403 = vrot.slane %v6025, 2
      %v6404 = vrot.slane %v6057, 2
      %v6405 = vsel %vm1075, %v6403, %v6404
      %v6406 = vrot.slane %v6026, 2
      %v6407 = vrot.slane %v6058, 2
      %v6408 = vsel %vm1075, %v6406, %v6407
      %v6409 = vrot.slane %v6027, 2
      %v6410 = vrot.slane %v6059, 2
      %v6411 = vsel %vm1075, %v6409, %v6410
      %v6412 = vrot.slane %v6028, 2
      %v6413 = vrot.slane %v6060, 2
      %v6414 = vsel %vm1075, %v6412, %v6413
      %v6415 = vrot.slane %v6029, 2
      %v6416 = vrot.slane %v6061, 2
      %v6417 = vsel %vm1075, %v6415, %v6416
      %v6418 = vrot.slane %v6030, 2
      %v6419 = vrot.slane %v6062, 2
      %v6420 = vsel %vm1075, %v6418, %v6419
      %v6421 = vrot.slane %v6031, 2
      %v6422 = vrot.slane %v6063, 2
      %v6423 = vsel %vm1075, %v6421, %v6422
      %6424 = vrot.lane.b32.xlu0 %v6327, 16
      %v6425 = vpop.permute.xlu0 %6424
      %6426 = vrot.lane.b32.xlu0 %v6330, 16
      %v6427 = vpop.permute.xlu0 %6426
      %6428 = vrot.lane.b32.xlu0 %v6333, 16
      %v6429 = vpop.permute.xlu0 %6428
      %6430 = vrot.lane.b32.xlu0 %v6336, 16
      %v6431 = vpop.permute.xlu0 %6430
      %6432 = vrot.lane.b32.xlu0 %v6339, 16
      %v6433 = vpop.permute.xlu0 %6432
      %6434 = vrot.lane.b32.xlu0 %v6342, 16
      %v6435 = vpop.permute.xlu0 %6434
      %6436 = vrot.lane.b32.xlu0 %v6345, 16
      %v6437 = vpop.permute.xlu0 %6436
      %6438 = vrot.lane.b32.xlu0 %v6348, 16
      %v6439 = vpop.permute.xlu0 %6438
      %6440 = vrot.lane.b32.xlu0 %v6351, 16
      %v6441 = vpop.permute.xlu0 %6440
      %6442 = vrot.lane.b32.xlu0 %v6354, 16
      %v6443 = vpop.permute.xlu0 %6442
      %6444 = vrot.lane.b32.xlu0 %v6357, 16
      %v6445 = vpop.permute.xlu0 %6444
      %6446 = vrot.lane.b32.xlu0 %v6360, 16
      %v6447 = vpop.permute.xlu0 %6446
      %6448 = vrot.lane.b32.xlu0 %v6363, 16
      %v6449 = vpop.permute.xlu0 %6448
      %6450 = vrot.lane.b32.xlu0 %v6366, 16
      %v6451 = vpop.permute.xlu0 %6450
      %6452 = vrot.lane.b32.xlu0 %v6369, 16
      %v6453 = vpop.permute.xlu0 %6452
      %6454 = vrot.lane.b32.xlu0 %v6372, 16
      %v6455 = vpop.permute.xlu0 %6454
      %6456 = vrot.lane.b32.xlu0 %v6375, 16
      %v6457 = vpop.permute.xlu0 %6456
      %6458 = vrot.lane.b32.xlu0 %v6378, 16
      %v6459 = vpop.permute.xlu0 %6458
      %6460 = vrot.lane.b32.xlu0 %v6381, 16
      %v6461 = vpop.permute.xlu0 %6460
      %6462 = vrot.lane.b32.xlu0 %v6384, 16
      %v6463 = vpop.permute.xlu0 %6462
      %6464 = vrot.lane.b32.xlu0 %v6387, 16
      %v6465 = vpop.permute.xlu0 %6464
      %6466 = vrot.lane.b32.xlu0 %v6390, 16
      %v6467 = vpop.permute.xlu0 %6466
      %6468 = vrot.lane.b32.xlu0 %v6393, 16
      %v6469 = vpop.permute.xlu0 %6468
      %6470 = vrot.lane.b32.xlu0 %v6396, 16
      %v6471 = vpop.permute.xlu0 %6470
      %6472 = vrot.lane.b32.xlu0 %v6399, 16
      %v6473 = vpop.permute.xlu0 %6472
      %6474 = vrot.lane.b32.xlu0 %v6402, 16
      %v6475 = vpop.permute.xlu0 %6474
      %6476 = vrot.lane.b32.xlu0 %v6405, 16
      %v6477 = vpop.permute.xlu0 %6476
      %6478 = vrot.lane.b32.xlu0 %v6408, 16
      %v6479 = vpop.permute.xlu0 %6478
      %6480 = vrot.lane.b32.xlu0 %v6411, 16
      %v6481 = vpop.permute.xlu0 %6480
      %6482 = vrot.lane.b32.xlu0 %v6414, 16
      %v6483 = vpop.permute.xlu0 %6482
      %6484 = vrot.lane.b32.xlu0 %v6417, 16
      %v6485 = vpop.permute.xlu0 %6484
      %6486 = vrot.lane.b32.xlu0 %v6420, 16
      %v6487 = vpop.permute.xlu0 %6486
      %6488 = vrot.lane.b32.xlu0 %v6423, 16
      %v6489 = vpop.permute.xlu0 %6488
      %v6523 = vsel %vm4629, 0.0, %v6228
      %v6524 = vsel %vm4629, %v6000, %v6230
      %v6525 = vsel %vm4629, %v6001, %v6232
      %v6526 = vsel %vm4629, %v6002, %v6234
      %v6527 = vsel %vm4629, %v6003, %v6236
      %v6528 = vsel %vm4629, %v6004, %v6238
      %v6529 = vsel %vm4629, %v6005, %v6240
      %v6530 = vsel %vm4629, %v6006, %v6242
      %v6531 = vsel %vm4629, %v6007, %v6244
      %v6532 = vsel %vm4629, %v6008, %v6246
      %v6533 = vsel %vm4629, %v6009, %v6248
      %v6534 = vsel %vm4629, %v6010, %v6250
      %v6535 = vsel %vm4629, %v6011, %v6252
      %v6536 = vsel %vm4629, %v6012, %v6254
      %v6537 = vsel %vm4629, %v6013, %v6256
      %v6538 = vsel %vm4629, %v6014, %v6258
      %v6539 = vsel %vm4629, %v6015, %v6260
      %v6540 = vsel %vm4629, %v6016, %v6262
      %v6541 = vsel %vm4629, %v6017, %v6264
      %v6542 = vsel %vm4629, %v6018, %v6266
      %v6543 = vsel %vm4629, %v6019, %v6268
      %v6544 = vsel %vm4629, %v6020, %v6270
      %v6545 = vsel %vm4629, %v6021, %v6272
      %v6546 = vsel %vm4629, %v6022, %v6274
      %v6547 = vsel %vm4629, %v6023, %v6276
      %v6548 = vsel %vm4629, %v6024, %v6278
      %v6549 = vsel %vm4629, %v6025, %v6280
      %v6550 = vsel %vm4629, %v6026, %v6282
      %v6551 = vsel %vm4629, %v6027, %v6284
      %v6552 = vsel %vm4629, %v6028, %v6286
      %v6553 = vsel %vm4629, %v6029, %v6288
      %v6554 = vsel %vm4629, %v6030, %v6290
      %v6555 = vsel %vm4629, %v6031, %v6292
      %vm6556 = vcmask 130048
      %v6557 = vsel %vm6556, %v6523, %v6425
      %v6558 = vsel %vm6556, %v6524, %v6427
      %v6559 = vsel %vm6556, %v6525, %v6429
      %v6560 = vsel %vm6556, %v6526, %v6431
      %v6561 = vsel %vm6556, %v6527, %v6433
      %v6562 = vsel %vm6556, %v6528, %v6435
      %v6563 = vsel %vm6556, %v6529, %v6437
      %v6564 = vsel %vm6556, %v6530, %v6439
      %v6565 = vsel %vm6556, %v6531, %v6441
      %v6566 = vsel %vm6556, %v6532, %v6443
      %v6567 = vsel %vm6556, %v6533, %v6445
      %v6568 = vsel %vm6556, %v6534, %v6447
      %v6569 = vsel %vm6556, %v6535, %v6449
      %v6570 = vsel %vm6556, %v6536, %v6451
      %v6571 = vsel %vm6556, %v6537, %v6453
      %v6572 = vsel %vm6556, %v6538, %v6455
      %v6573 = vsel %vm6556, %v6539, %v6457
      %v6574 = vsel %vm6556, %v6540, %v6459
      %v6575 = vsel %vm6556, %v6541, %v6461
      %v6576 = vsel %vm6556, %v6542, %v6463
      %v6577 = vsel %vm6556, %v6543, %v6465
      %v6578 = vsel %vm6556, %v6544, %v6467
      %v6579 = vsel %vm6556, %v6545, %v6469
      %v6580 = vsel %vm6556, %v6546, %v6471
      %v6581 = vsel %vm6556, %v6547, %v6473
      %v6582 = vsel %vm6556, %v6548, %v6475
      %v6583 = vsel %vm6556, %v6549, %v6477
      %v6584 = vsel %vm6556, %v6550, %v6479
      %v6585 = vsel %vm6556, %v6551, %v6481
      %v6586 = vsel %vm6556, %v6552, %v6483
      %v6587 = vsel %vm6556, %v6553, %v6485
      %v6588 = vsel %vm6556, %v6554, %v6487
      %v6589 = vsel %vm6556, %v6555, %v6489
      %v6590 = vpack.c.bf16 %v6557, %v6557
      %v6591 = vpack.c.bf16 %v6558, %v6558
      %v6592 = vpack.c.bf16 %v6559, %v6559
      %v6593 = vpack.c.bf16 %v6560, %v6560
      %v6594 = vpack.c.bf16 %v6561, %v6561
      %v6595 = vpack.c.bf16 %v6562, %v6562
      %v6596 = vpack.c.bf16 %v6563, %v6563
      %v6597 = vpack.c.bf16 %v6564, %v6564
      %v6598 = vpack.c.bf16 %v6566, %v6566
      %v6599 = vpack.c.bf16 %v6567, %v6567
      %v6600 = vpack.c.bf16 %v6568, %v6568
      %v6601 = vpack.c.bf16 %v6569, %v6569
      %v6602 = vpack.c.bf16 %v6570, %v6570
      %v6603 = vpack.c.bf16 %v6571, %v6571
      %v6604 = vpack.c.bf16 %v6572, %v6572
      %v6605 = vpack.c.bf16 %v6574, %v6574
      %v6606 = vpack.c.bf16 %v6575, %v6575
      %v6607 = vpack.c.bf16 %v6576, %v6576
      %v6608 = vpack.c.bf16 %v6577, %v6577
      %v6609 = vpack.c.bf16 %v6578, %v6578
      %v6610 = vpack.c.bf16 %v6579, %v6579
      %v6611 = vpack.c.bf16 %v6580, %v6580
      %v6612 = vpack.c.bf16 %v6565, %v6565
      %v6613 = vpack.c.bf16 %v6573, %v6573
      %v6614 = vpack.c.bf16 %v6581, %v6581
      %v6615 = vpack.c.bf16 %v6582, %v6582
      %v6616 = vpack.c.bf16 %v6583, %v6583
      %v6617 = vpack.c.bf16 %v6584, %v6584
      %v6618 = vpack.c.bf16 %v6585, %v6585
      %v6619 = vpack.c.bf16 %v6586, %v6586
      %v6620 = vpack.c.bf16 %v6587, %v6587
      %v6621 = vpack.c.bf16 %v6588, %v6588
      %v6622 = vpack.c.bf16 %v6589, %v6589
      %v6645 = vunpack.c.l.b16 %v6590
      %v6646 = vunpack.c.l.b16 %v6591
      %v6647 = vunpack.c.l.b16 %v6592
      %v6648 = vunpack.c.l.b16 %v6593
      %v6649 = vunpack.c.l.b16 %v6594
      %v6650 = vunpack.c.l.b16 %v6595
      %v6651 = vunpack.c.l.b16 %v6596
      %v6652 = vunpack.c.l.b16 %v6597
      %v6653 = vunpack.c.l.b16 %v6598
      %v6654 = vunpack.c.l.b16 %v6599
      %v6655 = vunpack.c.l.b16 %v6600
      %v6656 = vunpack.c.l.b16 %v6601
      %v6657 = vunpack.c.l.b16 %v6602
      %v6658 = vunpack.c.l.b16 %v6603
      %v6659 = vunpack.c.l.b16 %v6604
      %v6660 = vunpack.c.l.b16 %v6605
      %v6661 = vunpack.c.l.b16 %v6606
      %v6662 = vunpack.c.l.b16 %v6607
      %v6663 = vunpack.c.l.b16 %v6608
      %v6664 = vunpack.c.l.b16 %v6609
      %v6665 = vunpack.c.l.b16 %v6610
      %v6666 = vunpack.c.l.b16 %v6611
      %v6667 = vpack.c.b16 %v6645, %v6645
      %v6668 = vpack.c.b16 %v6646, %v6645
      %v6669 = vpack.c.b16 %v6648, %v6647
      %v6670 = vpack.c.b16 %v6650, %v6649
      %v6671 = vpack.c.b16 %v6652, %v6651
      %v6672 = vpack.c.b16 %v6653, %v6645
      %v6673 = vpack.c.b16 %v6655, %v6654
      %v6674 = vpack.c.b16 %v6657, %v6656
      %v6675 = vpack.c.b16 %v6659, %v6658
      %v6676 = vpack.c.b16 %v6660, %v6645
      %v6677 = vpack.c.b16 %v6662, %v6661
      %v6678 = vpack.c.b16 %v6664, %v6663
      %v6679 = vpack.c.b16 %v6666, %v6665
      %v6683 = vunpack.c.l.b16 %v6612
      %v6684 = vunpack.c.l.b16 %v6613
      %v6685 = vunpack.c.l.b16 %v6614
      %v6686 = vpack.c.b16 %v6647, %v6646
      %v6687 = vpack.c.b16 %v6649, %v6648
      %v6688 = vpack.c.b16 %v6651, %v6650
      %v6689 = vpack.c.b16 %v6683, %v6652
      %v6690 = vpack.c.b16 %v6654, %v6653
      %v6691 = vpack.c.b16 %v6656, %v6655
      %v6692 = vpack.c.b16 %v6658, %v6657
      %v6693 = vpack.c.b16 %v6684, %v6659
      %v6694 = vpack.c.b16 %v6661, %v6660
      %v6695 = vpack.c.b16 %v6663, %v6662
      %v6696 = vpack.c.b16 %v6665, %v6664
      %v6697 = vpack.c.b16 %v6685, %v6666
      %6698 = vrot.lane.b32.xlu0 %v6667, 24
      %v6699 = vpop.permute.xlu0 %6698
      %6700 = vrot.lane.b32.xlu0 %v6686, 24
      %v6701 = vpop.permute.xlu0 %6700
      %6702 = vrot.lane.b32.xlu0 %v6687, 24
      %v6703 = vpop.permute.xlu0 %6702
      %6704 = vrot.lane.b32.xlu0 %v6688, 24
      %v6705 = vpop.permute.xlu0 %6704
      %6706 = vrot.lane.b32.xlu0 %v6689, 24
      %v6707 = vpop.permute.xlu0 %6706
      %6708 = vrot.lane.b32.xlu0 %v6690, 24
      %v6709 = vpop.permute.xlu0 %6708
      %6710 = vrot.lane.b32.xlu0 %v6691, 24
      %v6711 = vpop.permute.xlu0 %6710
      %6712 = vrot.lane.b32.xlu0 %v6692, 24
      %v6713 = vpop.permute.xlu0 %6712
      %6714 = vrot.lane.b32.xlu0 %v6693, 24
      %v6715 = vpop.permute.xlu0 %6714
      %6716 = vrot.lane.b32.xlu0 %v6694, 24
      %v6717 = vpop.permute.xlu0 %6716
      %6718 = vrot.lane.b32.xlu0 %v6695, 24
      %v6719 = vpop.permute.xlu0 %6718
      %6720 = vrot.lane.b32.xlu0 %v6696, 24
      %v6721 = vpop.permute.xlu0 %6720
      %6722 = vrot.lane.b32.xlu0 %v6697, 24
      %v6723 = vpop.permute.xlu0 %6722
      %v6724 = vpack.c.b16 %v6645, %v6683
      %v6725 = vpack.c.b16 %v6645, %v6684
      %v6726 = vpack.c.b16 %v6645, %v6685
      %6727 = vrot.lane.b32.xlu0 %v6667, 48
      %v6728 = vpop.permute.xlu0 %6727
      %6729 = vrot.lane.b32.xlu0 %v6669, 48
      %v6730 = vpop.permute.xlu0 %6729
      %6731 = vrot.lane.b32.xlu0 %v6670, 48
      %v6732 = vpop.permute.xlu0 %6731
      %6733 = vrot.lane.b32.xlu0 %v6671, 48
      %v6734 = vpop.permute.xlu0 %6733
      %6735 = vrot.lane.b32.xlu0 %v6724, 48
      %v6736 = vpop.permute.xlu0 %6735
      %6737 = vrot.lane.b32.xlu0 %v6673, 48
      %v6738 = vpop.permute.xlu0 %6737
      %6739 = vrot.lane.b32.xlu0 %v6674, 48
      %v6740 = vpop.permute.xlu0 %6739
      %6741 = vrot.lane.b32.xlu0 %v6675, 48
      %v6742 = vpop.permute.xlu0 %6741
      %6743 = vrot.lane.b32.xlu0 %v6725, 48
      %v6744 = vpop.permute.xlu0 %6743
      %6745 = vrot.lane.b32.xlu0 %v6677, 48
      %v6746 = vpop.permute.xlu0 %6745
      %6747 = vrot.lane.b32.xlu0 %v6678, 48
      %v6748 = vpop.permute.xlu0 %6747
      %6749 = vrot.lane.b32.xlu0 %v6679, 48
      %v6750 = vpop.permute.xlu0 %6749
      %6751 = vrot.lane.b32.xlu0 %v6726, 48
      %v6752 = vpop.permute.xlu0 %6751
      %v6760 = vunpack.c.l.b16 %v6615
      %v6761 = vunpack.c.l.b16 %v6616
      %v6762 = vunpack.c.l.b16 %v6617
      %v6763 = vunpack.c.l.b16 %v6618
      %v6764 = vunpack.c.l.b16 %v6619
      %v6765 = vunpack.c.l.b16 %v6620
      %v6766 = vunpack.c.l.b16 %v6621
      %v6767 = vpack.c.b16 %v6760, %v6645
      %v6768 = vpack.c.b16 %v6762, %v6761
      %v6769 = vpack.c.b16 %v6764, %v6763
      %v6770 = vpack.c.b16 %v6766, %v6765
      %6771 = vrot.lane.b32.xlu0 %v6668, 72
      %v6772 = vpop.permute.xlu0 %6771
      %6773 = vrot.lane.b32.xlu0 %v6669, 72
      %v6774 = vpop.permute.xlu0 %6773
      %6775 = vrot.lane.b32.xlu0 %v6670, 72
      %v6776 = vpop.permute.xlu0 %6775
      %6777 = vrot.lane.b32.xlu0 %v6671, 72
      %v6778 = vpop.permute.xlu0 %6777
      %6779 = vrot.lane.b32.xlu0 %v6672, 72
      %v6780 = vpop.permute.xlu0 %6779
      %6781 = vrot.lane.b32.xlu0 %v6673, 72
      %v6782 = vpop.permute.xlu0 %6781
      %6783 = vrot.lane.b32.xlu0 %v6674, 72
      %v6784 = vpop.permute.xlu0 %6783
      %6785 = vrot.lane.b32.xlu0 %v6675, 72
      %v6786 = vpop.permute.xlu0 %6785
      %6787 = vrot.lane.b32.xlu0 %v6676, 72
      %v6788 = vpop.permute.xlu0 %6787
      %6789 = vrot.lane.b32.xlu0 %v6677, 72
      %v6790 = vpop.permute.xlu0 %6789
      %6791 = vrot.lane.b32.xlu0 %v6678, 72
      %v6792 = vpop.permute.xlu0 %6791
      %6793 = vrot.lane.b32.xlu0 %v6679, 72
      %v6794 = vpop.permute.xlu0 %6793
      %6795 = vrot.lane.b32.xlu0 %v6767, 72
      %v6796 = vpop.permute.xlu0 %6795
      %6797 = vrot.lane.b32.xlu0 %v6768, 72
      %v6798 = vpop.permute.xlu0 %6797
      %6799 = vrot.lane.b32.xlu0 %v6769, 72
      %v6800 = vpop.permute.xlu0 %6799
      %6801 = vrot.lane.b32.xlu0 %v6770, 72
      %v6802 = vpop.permute.xlu0 %6801
      %v6804 = vunpack.c.l.b16 %v6622
      %v6805 = vpack.c.b16 %v6761, %v6760
      %v6806 = vpack.c.b16 %v6763, %v6762
      %v6807 = vpack.c.b16 %v6765, %v6764
      %v6808 = vpack.c.b16 %v6804, %v6766
      %6809 = vrot.lane.b32.xlu0 %v6686, 96
      %v6810 = vpop.permute.xlu0 %6809
      %6811 = vrot.lane.b32.xlu0 %v6687, 96
      %v6812 = vpop.permute.xlu0 %6811
      %6813 = vrot.lane.b32.xlu0 %v6688, 96
      %v6814 = vpop.permute.xlu0 %6813
      %6815 = vrot.lane.b32.xlu0 %v6689, 96
      %v6816 = vpop.permute.xlu0 %6815
      %6817 = vrot.lane.b32.xlu0 %v6690, 96
      %v6818 = vpop.permute.xlu0 %6817
      %6819 = vrot.lane.b32.xlu0 %v6691, 96
      %v6820 = vpop.permute.xlu0 %6819
      %6821 = vrot.lane.b32.xlu0 %v6692, 96
      %v6822 = vpop.permute.xlu0 %6821
      %6823 = vrot.lane.b32.xlu0 %v6693, 96
      %v6824 = vpop.permute.xlu0 %6823
      %6825 = vrot.lane.b32.xlu0 %v6694, 96
      %v6826 = vpop.permute.xlu0 %6825
      %6827 = vrot.lane.b32.xlu0 %v6695, 96
      %v6828 = vpop.permute.xlu0 %6827
      %6829 = vrot.lane.b32.xlu0 %v6696, 96
      %v6830 = vpop.permute.xlu0 %6829
      %6831 = vrot.lane.b32.xlu0 %v6697, 96
      %v6832 = vpop.permute.xlu0 %6831
      %6833 = vrot.lane.b32.xlu0 %v6805, 96
      %v6834 = vpop.permute.xlu0 %6833
      %6835 = vrot.lane.b32.xlu0 %v6806, 96
      %v6836 = vpop.permute.xlu0 %6835
      %6837 = vrot.lane.b32.xlu0 %v6807, 96
      %v6838 = vpop.permute.xlu0 %6837
      %6839 = vrot.lane.b32.xlu0 %v6808, 96
      %v6840 = vpop.permute.xlu0 %6839
      %v6841 = vpack.c.b16 %v6645, %v6804
      %6842 = vrot.lane.b32.xlu0 %v6669, 120
      %v6843 = vpop.permute.xlu0 %6842
      %6844 = vrot.lane.b32.xlu0 %v6670, 120
      %v6845 = vpop.permute.xlu0 %6844
      %6846 = vrot.lane.b32.xlu0 %v6671, 120
      %v6847 = vpop.permute.xlu0 %6846
      %6848 = vrot.lane.b32.xlu0 %v6724, 120
      %v6849 = vpop.permute.xlu0 %6848
      %6850 = vrot.lane.b32.xlu0 %v6673, 120
      %v6851 = vpop.permute.xlu0 %6850
      %6852 = vrot.lane.b32.xlu0 %v6674, 120
      %v6853 = vpop.permute.xlu0 %6852
      %6854 = vrot.lane.b32.xlu0 %v6675, 120
      %v6855 = vpop.permute.xlu0 %6854
      %6856 = vrot.lane.b32.xlu0 %v6725, 120
      %v6857 = vpop.permute.xlu0 %6856
      %6858 = vrot.lane.b32.xlu0 %v6677, 120
      %v6859 = vpop.permute.xlu0 %6858
      %6860 = vrot.lane.b32.xlu0 %v6678, 120
      %v6861 = vpop.permute.xlu0 %6860
      %6862 = vrot.lane.b32.xlu0 %v6679, 120
      %v6863 = vpop.permute.xlu0 %6862
      %6864 = vrot.lane.b32.xlu0 %v6726, 120
      %v6865 = vpop.permute.xlu0 %6864
      %6866 = vrot.lane.b32.xlu0 %v6768, 120
      %v6867 = vpop.permute.xlu0 %6866
      %6868 = vrot.lane.b32.xlu0 %v6769, 120
      %v6869 = vpop.permute.xlu0 %6868
      %6870 = vrot.lane.b32.xlu0 %v6770, 120
      %v6871 = vpop.permute.xlu0 %6870
      %6872 = vrot.lane.b32.xlu0 %v6841, 120
      %v6873 = vpop.permute.xlu0 %6872
      %6874 = vrot.lane.b32.xlu0 %v6672, 16
      %v6875 = vpop.permute.xlu0 %6874
      %6876 = vrot.lane.b32.xlu0 %v6673, 16
      %v6877 = vpop.permute.xlu0 %6876
      %6878 = vrot.lane.b32.xlu0 %v6674, 16
      %v6879 = vpop.permute.xlu0 %6878
      %6880 = vrot.lane.b32.xlu0 %v6675, 16
      %v6881 = vpop.permute.xlu0 %6880
      %6882 = vrot.lane.b32.xlu0 %v6676, 16
      %v6883 = vpop.permute.xlu0 %6882
      %6884 = vrot.lane.b32.xlu0 %v6677, 16
      %v6885 = vpop.permute.xlu0 %6884
      %6886 = vrot.lane.b32.xlu0 %v6678, 16
      %v6887 = vpop.permute.xlu0 %6886
      %6888 = vrot.lane.b32.xlu0 %v6679, 16
      %v6889 = vpop.permute.xlu0 %6888
      %6890 = vrot.lane.b32.xlu0 %v6767, 16
      %v6891 = vpop.permute.xlu0 %6890
      %6892 = vrot.lane.b32.xlu0 %v6768, 16
      %v6893 = vpop.permute.xlu0 %6892
      %6894 = vrot.lane.b32.xlu0 %v6769, 16
      %v6895 = vpop.permute.xlu0 %6894
      %6896 = vrot.lane.b32.xlu0 %v6770, 16
      %v6897 = vpop.permute.xlu0 %6896
      %6898 = vrot.lane.b32.xlu0 %v6667, 16
      %v6899 = vpop.permute.xlu0 %6898
      %6900 = vrot.lane.b32.xlu0 %v6690, 40
      %v6901 = vpop.permute.xlu0 %6900
      %6902 = vrot.lane.b32.xlu0 %v6691, 40
      %v6903 = vpop.permute.xlu0 %6902
      %6904 = vrot.lane.b32.xlu0 %v6692, 40
      %v6905 = vpop.permute.xlu0 %6904
      %6906 = vrot.lane.b32.xlu0 %v6693, 40
      %v6907 = vpop.permute.xlu0 %6906
      %6908 = vrot.lane.b32.xlu0 %v6694, 40
      %v6909 = vpop.permute.xlu0 %6908
      %6910 = vrot.lane.b32.xlu0 %v6695, 40
      %v6911 = vpop.permute.xlu0 %6910
      %6912 = vrot.lane.b32.xlu0 %v6696, 40
      %v6913 = vpop.permute.xlu0 %6912
      %6914 = vrot.lane.b32.xlu0 %v6697, 40
      %v6915 = vpop.permute.xlu0 %6914
      %6916 = vrot.lane.b32.xlu0 %v6805, 40
      %v6917 = vpop.permute.xlu0 %6916
      %6918 = vrot.lane.b32.xlu0 %v6806, 40
      %v6919 = vpop.permute.xlu0 %6918
      %6920 = vrot.lane.b32.xlu0 %v6807, 40
      %v6921 = vpop.permute.xlu0 %6920
      %6922 = vrot.lane.b32.xlu0 %v6808, 40
      %v6923 = vpop.permute.xlu0 %6922
      %6924 = vrot.lane.b32.xlu0 %v6667, 40
      %v6925 = vpop.permute.xlu0 %6924
      %6926 = vrot.lane.b32.xlu0 %v6673, 64
      %v6927 = vpop.permute.xlu0 %6926
      %6928 = vrot.lane.b32.xlu0 %v6674, 64
      %v6929 = vpop.permute.xlu0 %6928
      %6930 = vrot.lane.b32.xlu0 %v6675, 64
      %v6931 = vpop.permute.xlu0 %6930
      %6932 = vrot.lane.b32.xlu0 %v6725, 64
      %v6933 = vpop.permute.xlu0 %6932
      %6934 = vrot.lane.b32.xlu0 %v6677, 64
      %v6935 = vpop.permute.xlu0 %6934
      %6936 = vrot.lane.b32.xlu0 %v6678, 64
      %v6937 = vpop.permute.xlu0 %6936
      %6938 = vrot.lane.b32.xlu0 %v6679, 64
      %v6939 = vpop.permute.xlu0 %6938
      %6940 = vrot.lane.b32.xlu0 %v6726, 64
      %v6941 = vpop.permute.xlu0 %6940
      %6942 = vrot.lane.b32.xlu0 %v6768, 64
      %v6943 = vpop.permute.xlu0 %6942
      %6944 = vrot.lane.b32.xlu0 %v6769, 64
      %v6945 = vpop.permute.xlu0 %6944
      %6946 = vrot.lane.b32.xlu0 %v6770, 64
      %v6947 = vpop.permute.xlu0 %6946
      %6948 = vrot.lane.b32.xlu0 %v6841, 64
      %v6949 = vpop.permute.xlu0 %6948
      %6950 = vrot.lane.b32.xlu0 %v6667, 64
      %v6951 = vpop.permute.xlu0 %6950
      %vm6952 = vcmask 195584
      %v6955 = vsel %vm6952, %v6667, %v6699
      %v6958 = vsel %vm6952, %v6668, %v6701
      %v6961 = vsel %vm6952, %v6669, %v6703
      %v6964 = vsel %vm6952, %v6670, %v6705
      %v6967 = vsel %vm6952, %v6671, %v6707
      %v6970 = vsel %vm6952, %v6672, %v6709
      %v6973 = vsel %vm6952, %v6673, %v6711
      %v6976 = vsel %vm6952, %v6674, %v6713
      %v6979 = vsel %vm6952, %v6675, %v6715
      %v6982 = vsel %vm6952, %v6676, %v6717
      %v6985 = vsel %vm6952, %v6677, %v6719
      %v6988 = vsel %vm6952, %v6678, %v6721
      %v6991 = vsel %vm6952, %v6679, %v6723
      %vm6992 = vcmask 392192
      %v6994 = vsel %vm6992, %v6955, %v6728
      %v6996 = vsel %vm6992, %v6958, %v6730
      %v6998 = vsel %vm6992, %v6961, %v6732
      %v7000 = vsel %vm6992, %v6964, %v6734
      %v7002 = vsel %vm6992, %v6967, %v6736
      %v7004 = vsel %vm6992, %v6970, %v6738
      %v7006 = vsel %vm6992, %v6973, %v6740
      %v7008 = vsel %vm6992, %v6976, %v6742
      %v7010 = vsel %vm6992, %v6979, %v6744
      %v7012 = vsel %vm6992, %v6982, %v6746
      %v7014 = vsel %vm6992, %v6985, %v6748
      %v7016 = vsel %vm6992, %v6988, %v6750
      %v7018 = vsel %vm6992, %v6991, %v6752
      %vm7019 = vcmask 588800
      %v7021 = vsel %vm7019, %v6994, %v6772
      %v7023 = vsel %vm7019, %v6994, %v6774
      %v7025 = vsel %vm7019, %v6994, %v6776
      %v7027 = vsel %vm7019, %v6994, %v6778
      %v7029 = vsel %vm7019, %v6996, %v6780
      %v7031 = vsel %vm7019, %v6998, %v6782
      %v7033 = vsel %vm7019, %v7000, %v6784
      %v7035 = vsel %vm7019, %v7002, %v6786
      %v7037 = vsel %vm7019, %v7004, %v6788
      %v7039 = vsel %vm7019, %v7006, %v6790
      %v7041 = vsel %vm7019, %v7008, %v6792
      %v7043 = vsel %vm7019, %v7010, %v6794
      %v7045 = vsel %vm7019, %v7012, %v6796
      %v7047 = vsel %vm7019, %v7014, %v6798
      %v7049 = vsel %vm7019, %v7016, %v6800
      %v7051 = vsel %vm7019, %v7018, %v6802
      %vm7052 = vcmask 785408
      %v7054 = vsel %vm7052, %v7021, %v6810
      %v7056 = vsel %vm7052, %v7023, %v6812
      %v7058 = vsel %vm7052, %v7025, %v6814
      %v7060 = vsel %vm7052, %v7027, %v6816
      %v7062 = vsel %vm7052, %v7029, %v6818
      %v7064 = vsel %vm7052, %v7031, %v6820
      %v7066 = vsel %vm7052, %v7033, %v6822
      %v7068 = vsel %vm7052, %v7035, %v6824
      %v7070 = vsel %vm7052, %v7037, %v6826
      %v7072 = vsel %vm7052, %v7039, %v6828
      %v7074 = vsel %vm7052, %v7041, %v6830
      %v7076 = vsel %vm7052, %v7043, %v6832
      %v7078 = vsel %vm7052, %v7045, %v6834
      %v7080 = vsel %vm7052, %v7047, %v6836
      %v7082 = vsel %vm7052, %v7049, %v6838
      %v7084 = vsel %vm7052, %v7051, %v6840
      %vm7085 = vcmask 982016
      %v7087 = vsel %vm7085, %v7054, %v6843
      %v7090 = vsel %vm7085, %v7056, %v6845
      %v7093 = vsel %vm7085, %v7058, %v6847
      %v7096 = vsel %vm7085, %v7060, %v6849
      %v7099 = vsel %vm7085, %v7062, %v6851
      %v7102 = vsel %vm7085, %v7064, %v6853
      %v7105 = vsel %vm7085, %v7066, %v6855
      %v7108 = vsel %vm7085, %v7068, %v6857
      %v7111 = vsel %vm7085, %v7070, %v6859
      %v7114 = vsel %vm7085, %v7072, %v6861
      %v7117 = vsel %vm7085, %v7074, %v6863
      %v7120 = vsel %vm7085, %v7076, %v6865
      %v7123 = vsel %vm7085, %v7078, %v6867
      %v7126 = vsel %vm7085, %v7080, %v6869
      %v7129 = vsel %vm7085, %v7082, %v6871
      %v7132 = vsel %vm7085, %v7084, %v6873
      %v7135 = vsel %vm6556, %v6843, %v6875
      %v7137 = vsel %vm6556, %v6845, %v6877
      %v7139 = vsel %vm6556, %v6847, %v6879
      %v7141 = vsel %vm6556, %v6849, %v6881
      %v7143 = vsel %vm6556, %v6851, %v6883
      %v7145 = vsel %vm6556, %v6853, %v6885
      %v7147 = vsel %vm6556, %v6855, %v6887
      %v7149 = vsel %vm6556, %v6857, %v6889
      %v7151 = vsel %vm6556, %v6859, %v6891
      %v7153 = vsel %vm6556, %v6861, %v6893
      %v7155 = vsel %vm6556, %v6863, %v6895
      %v7157 = vsel %vm6556, %v6865, %v6897
      %v7159 = vsel %vm6556, %v6867, %v6899
      %v7160 = vsel %vm6556, %v6869, %v6899
      %v7161 = vsel %vm6556, %v6871, %v6899
      %v7162 = vsel %vm6556, %v6873, %v6899
      %vm7163 = vcmask 326656
      %v7165 = vsel %vm7163, %v7135, %v6901
      %v7167 = vsel %vm7163, %v7137, %v6903
      %v7169 = vsel %vm7163, %v7139, %v6905
      %v7171 = vsel %vm7163, %v7141, %v6907
      %v7173 = vsel %vm7163, %v7143, %v6909
      %v7175 = vsel %vm7163, %v7145, %v6911
      %v7177 = vsel %vm7163, %v7147, %v6913
      %v7179 = vsel %vm7163, %v7149, %v6915
      %v7181 = vsel %vm7163, %v7151, %v6917
      %v7183 = vsel %vm7163, %v7153, %v6919
      %v7185 = vsel %vm7163, %v7155, %v6921
      %v7187 = vsel %vm7163, %v7157, %v6923
      %v7189 = vsel %vm7163, %v7159, %v6925
      %v7190 = vsel %vm7163, %v7160, %v6925
      %v7191 = vsel %vm7163, %v7161, %v6925
      %v7192 = vsel %vm7163, %v7162, %v6925
      %vm7193 = vcmask 523264
      %v7195 = vsel %vm7193, %v7165, %v6927
      %v7197 = vsel %vm7193, %v7167, %v6929
      %v7199 = vsel %vm7193, %v7169, %v6931
      %v7201 = vsel %vm7193, %v7171, %v6933
      %v7203 = vsel %vm7193, %v7173, %v6935
      %v7205 = vsel %vm7193, %v7175, %v6937
      %v7207 = vsel %vm7193, %v7177, %v6939
      %v7209 = vsel %vm7193, %v7179, %v6941
      %v7211 = vsel %vm7193, %v7181, %v6943
      %v7213 = vsel %vm7193, %v7183, %v6945
      %v7215 = vsel %vm7193, %v7185, %v6947
      %v7217 = vsel %vm7193, %v7187, %v6949
      %v7219 = vsel %vm7193, %v7189, %v6951
      %v7220 = vsel %vm7193, %v7190, %v6951
      %v7221 = vsel %vm7193, %v7191, %v6951
      %v7222 = vsel %vm7193, %v7192, %v6951
      %v7223 = vld [vmem:[%s10] sm:$0xff]
      %v7224 = vld [vmem:[%s11] sm:$0xff]
      %7226 = vset.pattern.permute.xlu0 0
      %7227 = vperm.xlu0 %7226, %v7224
      %v7228 = vpop.permute.xlu0 %7227
      %v7231 = vunpack.c.l.b16 %v7223
      %v7232 = vunpack.c.h.b16 %v7223
      %v7233 = vpack.c.b16 %v7231, %v7231
      %v7234 = vpack.c.b16 %v7232, %v7232
      %vm7236 = vcmask 719872
      %v7238 = vsel %vm7236, %v7234, 0
      %v7240 = vsel %vm7236, %v7195, 0
      %v7242 = vsel %vm7236, %v7197, 0
      %v7244 = vsel %vm7236, %v7199, 0
      %v7246 = vsel %vm7236, %v7201, 0
      %v7248 = vsel %vm7236, %v7203, 0
      %v7250 = vsel %vm7236, %v7205, 0
      %v7252 = vsel %vm7236, %v7207, 0
      %v7254 = vsel %vm7236, %v7209, 0
      %v7256 = vsel %vm7236, %v7211, 0
      %v7258 = vsel %vm7236, %v7213, 0
      %v7260 = vsel %vm7236, %v7215, 0
      %v7262 = vsel %vm7236, %v7217, 0
      %v7264 = vsel %vm7236, %v7219, 0
      %v7266 = vsel %vm7236, %v7220, 0
      %v7268 = vsel %vm7236, %v7221, 0
      %v7270 = vsel %vm7236, %v7222, 0
      %7272 = vmatpush.bf16.xpose.msra.mxu0 %v7108
      %7273 = vmatpush.bf16.xpose.msra.mxu0 %v7105
      %7274 = vmatpush.bf16.xpose.msra.mxu0 %v7102
      %7275 = vmatpush.bf16.xpose.msra.mxu0 %v7099
      %7276 = vmatpush.bf16.xpose.msra.mxu0 %v7096
      %7277 = vmatpush.bf16.xpose.msra.mxu0 %v7093
      %7278 = vmatpush.bf16.xpose.msra.mxu0 %v7090
      %7279 = vmatpush.bf16.xpose.msra.mxu0 %v7087
      %7280 = vmatmul.bf16.gmra.mxu0 %v7233
      %v7281 = vpop.f32.mrf.mxu0
      %v7282 = vadd.f32 %v7228, %v7281
      %v7283 = vpop.f32.mrf.mxu0
      %7284 = vdwg.mxu0
      %7285 = vmatpush.bf16.xpose.msra.mxu0 %v7254
      %7286 = vmatpush.bf16.xpose.msra.mxu0 %v7252
      %7287 = vmatpush.bf16.xpose.msra.mxu0 %v7250
      %7288 = vmatpush.bf16.xpose.msra.mxu0 %v7248
      %7289 = vmatpush.bf16.xpose.msra.mxu0 %v7246
      %7290 = vmatpush.bf16.xpose.msra.mxu0 %v7244
      %7291 = vmatpush.bf16.xpose.msra.mxu0 %v7242
      %7292 = vmatpush.bf16.xpose.msra.mxu0 %v7240
      %7293 = vmatmul.bf16.gmra.mxu0 %v7238
      %v7294 = vpop.f32.mrf.mxu0
      %v7295 = vadd.f32 %v7282, %v7294
      %v7296 = vpop.f32.mrf.mxu0
      %7297 = vdwg.mxu0
      %7298 = vmatpush.bf16.xpose.msra.mxu0 %v7132
      %7299 = vmatpush.bf16.xpose.msra.mxu0 %v7129
      %7300 = vmatpush.bf16.xpose.msra.mxu0 %v7126
      %7301 = vmatpush.bf16.xpose.msra.mxu0 %v7123
      %7302 = vmatpush.bf16.xpose.msra.mxu0 %v7120
      %7303 = vmatpush.bf16.xpose.msra.mxu0 %v7117
      %7304 = vmatpush.bf16.xpose.msra.mxu0 %v7114
      %7305 = vmatpush.bf16.xpose.msra.mxu0 %v7111
      %7306 = vmatmul.bf16.gmra.mxu0 %v7233
      %v7307 = vpop.f32.mrf.mxu0
      %v7308 = vadd.f32 %v7228, %v7307
      %v7309 = vpop.f32.mrf.mxu0
      %7310 = vdwg.mxu0
      %7311 = vmatpush.bf16.xpose.msra.mxu0 %v7270
      %7312 = vmatpush.bf16.xpose.msra.mxu0 %v7268
      %7313 = vmatpush.bf16.xpose.msra.mxu0 %v7266
      %7314 = vmatpush.bf16.xpose.msra.mxu0 %v7264
      %7315 = vmatpush.bf16.xpose.msra.mxu0 %v7262
      %7316 = vmatpush.bf16.xpose.msra.mxu0 %v7260
      %7317 = vmatpush.bf16.xpose.msra.mxu0 %v7258
      %7318 = vmatpush.bf16.xpose.msra.mxu0 %v7256
      %7319 = vmatmul.bf16.gmra.mxu0 %v7238
      %v7320 = vpop.f32.mrf.mxu0
      %v7321 = vadd.f32 %v7308, %v7320
      %v7322 = vpop.f32.mrf.mxu0
      %7323 = vdwg.mxu0
      %v7324 = vmax.f32 %v7295, 0.0
      %v7325 = vmax.f32 %v7321, 0.0
      %v7326 = vld [vmem:[%s12] sm:$0x3]
      %v7327 = vpack.c.bf16 %v7324, %v7324
      %v7328 = vpack.c.bf16 %v7325, %v7325
      %v7329 = vld [vmem:[%s13] sm:$0xf]
      %7331 = vset.pattern.permute.xlu0 0
      %7332 = vperm.xlu0 %7331, %v7329
      %v7333 = vpop.permute.xlu0 %7332
      %v7336 = vsel %vm4629, %v7326, 0
      %v7339 = vsel %vm4678, %v7327, 0
      %v7342 = vsel %vm4678, %v7328, 0
      %7344 = vmatpush.bf16.msra.mxu0 0
      %7345 = vmatpush.bf16.msra.mxu0 0
      %7346 = vmatpush.bf16.msra.mxu0 0
      %7347 = vmatpush.bf16.msra.mxu0 0
      %7348 = vmatpush.bf16.msra.mxu0 0
      %7349 = vmatpush.bf16.msra.mxu0 0
      %7350 = vmatpush.bf16.msra.mxu0 0
      %7351 = vmatpush.bf16.msra.mxu0 %v7339
      %7352 = vmatmul.bf16.gmra.mxu0 %v7336
      %v7353 = vpop.f32.mrf.mxu0
      %v7354 = vadd.f32 %v7333, %v7353
      %v7355 = vpop.f32.mrf.mxu0
      %7356 = vdwg.mxu0
      %7357 = vmatpush.bf16.msra.mxu0 0
      %7358 = vmatpush.bf16.msra.mxu0 0
      %7359 = vmatpush.bf16.msra.mxu0 0
      %7360 = vmatpush.bf16.msra.mxu0 0
      %7361 = vmatpush.bf16.msra.mxu0 0
      %7362 = vmatpush.bf16.msra.mxu0 0
      %7363 = vmatpush.bf16.msra.mxu0 0
      %7364 = vmatpush.bf16.msra.mxu0 %v7342
      %7365 = vmatmul.bf16.gmra.mxu0 %v7336
      %v7366 = vpop.f32.mrf.mxu0
      %v7367 = vadd.f32 %v7333, %v7366
      %v7368 = vpop.f32.mrf.mxu0
      %7369 = vdwg.mxu0
      %v7370 = vmax.f32 %v7354, 0.0
      %v7371 = vmax.f32 %v7367, 0.0
      %v7374 = vrot.slane %v7371, 4
      %v7375 = vsel %vm4678, %v7370, %v7374
      %7377 = vst [vmem:[%s472] sm:$0xff] %v7375
      %p7378 = scmp.lt.s32.totalorder %s30, 1
      %s7379 = scalar_select %p7378, %s30, 1
      %s7380 = smul.addr %s7379, 2
      %s7381 = smul.addr %s7380, 4
      %s7382 = scalar_lea.vmem %s14, %s7381
      // Predicated region
      $region77: #{pnet_head_forward.1} parent=75 // pred_check
        %p7383 = pneg %p347
      $region78: #{pnet_head_forward.1} parent=75 // pred_check_branch
        %7385 = sbr.rel (%p7383) target = $region80
      $region79: #{pnet_head_forward.1} parent=75 // pred_region
        _
      $region80: #{pnet_head_forward.1} parent=75 // pred_fallthru
        _
    $region76: #{pnet_head_forward.1} parent=5 // pred_fallthru
      _
    %p7386 = scmp.le.s32.totalorder 2, %s25
    // Predicated region
    $region81: #{pnet_head_forward.1} parent=5 // pred_check
      %p7387 = pneg %p7386
    $region82: #{pnet_head_forward.1} parent=5 // pred_check_branch
      %7389 = sbr.rel (%p7387) target = $region84
    $region83: #{pnet_head_forward.1} parent=5 // pred_region
      %s7390 = ssub.s32 %s25, 2
      // Predicated region
      $region85: #{pnet_head_forward.1} parent=83 // pred_check
        %p7391 = pneg %p353
      $region86: #{pnet_head_forward.1} parent=83 // pred_check_branch
        %7393 = sbr.rel (%p7391) target = $region88
      $region87: #{pnet_head_forward.1} parent=83 // pred_region
        %p7394 = scmp.lt.s32.totalorder %s31, 1
        %s7395 = scalar_select %p7394, %s31, 1
        %s7396 = smul.addr %s7395, 2
        %s7397 = smul.addr %s7396, 4
        %s7398 = scalar_lea.vmem %s14, %s7397
      $region88: #{pnet_head_forward.1} parent=83 // pred_fallthru
        _
    $region84: #{pnet_head_forward.1} parent=5 // pred_fallthru
      _
  $region6: #{pnet_head_forward.1} parent=0 // loop_footer
    %s29 = sadd.s32 1, %s25
  $region7: #{pnet_head_forward.1} parent=0 // loop_footer_branch
    %24 = sbr.rel target = $region3
  $region8: #{pnet_head_forward.1} parent=0 // loop_exit
    _

</llo_original>
